<compile_context>
chip_gen: v5e
topology: v5e:2x2
jax: 0.10.0
libtpu: 0.0.40
codegen_flags: <defaults>
</compile_context>

<pallas_src>
import numpy as np
import jax
import jax.numpy as jnp
from jax.experimental import pallas as pl
from jax.experimental.pallas import tpu as pltpu

# Hyper-parameters of CnnRegressor(batch_size, inputs, outputs).
BATCH_SIZE = 2        # quirk of the module: also the out-channel count of input_layer
INPUTS = 4            # input channels
OUTPUTS = 3           # regression outputs
H_IN, W_IN = 1, 487   # spatial size such that flatten gives 512*1*19 = 9728 (Linear(9728,128))
W3 = 19               # width surviving three stride-3 1x1 convs: 487 -> 163 -> 55 -> 19
STRIDE_PROD = 27      # 3 * 3 * 3
MAX_N_BLK = 128       # cap on samples per grid block (v7x VMEM budget); always a multiple of 8
HID = 128             # hidden width of the Linear layer (and padded output lane width)


def _cnn_regressor_kernel(x_ref, w0_s, b0_s, w1_ref, b1_ref, w2_ref, b2_ref,
                          w3_ref, b3_ref, w4_ref, b4_ref, w5_ref, b5_ref,
                          out_ref):
    f32 = jnp.float32
    bf16 = jnp.bfloat16
    relu = lambda t: jnp.maximum(t, 0.0)
    n_blk = out_ref.shape[0]                              # samples handled by this grid step

    x = x_ref[...]                                        # (W3*n_blk, INPUTS) f32

    # input_layer (4 -> 2) + conv_layer1 (2 -> 128) on the VPU.  K=4 / K=2
    # contractions would each waste a full MXU pass, so use scalar*vector FMAs
    # with the tiny weights read from SMEM.
    def in_channel(j):
        acc = x[:, 0:1] * w0_s[0, j]
        for c in range(1, INPUTS):
            acc = acc + x[:, c:c + 1] * w0_s[c, j]
        return relu(acc + b0_s[j])                        # (rows, 1)

    a0 = in_channel(0)
    a1 = in_channel(1)
    h = relu(a0 * w1_ref[0:1, :] + a1 * w1_ref[1:2, :] + b1_ref[...])   # (rows, 128)

    # conv_layer2 (128 -> 256), conv_layer3 (256 -> 512): MXU with bf16
    # operands and f32 accumulation; bias + ReLU stay in f32.
    h = relu(jnp.dot(h.astype(bf16), w2_ref[...],
                     preferred_element_type=f32) + b2_ref[...])         # (rows, 256)
    h = relu(jnp.dot(h.astype(bf16), w3_ref[...],
                     preferred_element_type=f32) + b3_ref[...])         # (rows, 512)

    # Flatten (NCHW order) + Linear(9728, 128) without materializing the
    # flattened buffer: accumulate 19 per-w matmuls against the pre-permuted
    # (W3, 512, 128) weight.  Each h slice starts at a multiple of n_blk
    # (multiple of 8) so it is a tile-aligned f32 view; bf16 cast happens at
    # the MXU input only, accumulation stays f32.
    acc = jnp.zeros((n_blk, HID), f32)
    for w in range(W3):
        acc = acc + jnp.dot(h[w * n_blk:(w + 1) * n_blk, :].astype(bf16),
                            w4_ref[w], preferred_element_type=f32)
    g = relu(acc + b4_ref[...])                                         # (n_blk, 128)

    # output_layer (128 -> OUTPUTS), zero-padded to 128 output lanes so the
    # HBM writeback is a dense (n_blk, 128) store (no masked 3-lane stores);
    # the wrapper slices [:, :OUTPUTS].
    out_ref[...] = jnp.dot(g, w5_ref[...],
                           preferred_element_type=f32) + b5_ref[...]


def cnn_regressor_forward(x, params):
    """x: (N, INPUTS, 1, W_IN) float32 in PyTorch NCHW layout."""
    n, cin = x.shape[0], x.shape[1]

    # --- glue: hoist the three stride-3 subsamplings to the input ------------
    x_sub = x[:, :, 0, ::STRIDE_PROD]                                 # (N, Cin, W3)

    # --- glue: pick per-step sample count: fill MXU rows when the batch allows,
    #     stay a multiple of 8 (f32 sublane alignment), cap at 128 (v7x VMEM) --
    n_blk = min(MAX_N_BLK, max(8, ((n + 7) // 8) * 8))
    n_pad = ((n + n_blk - 1) // n_blk) * n_blk
    if n_pad != n:
        x_sub = jnp.pad(x_sub, ((0, n_pad - n), (0, 0), (0, 0)))
    nb = n_pad // n_blk
    # lay rows out as [block, w, n_local, c] so each grid block is a contiguous slab
    x2d = (x_sub.reshape(nb, n_blk, cin, W3)
                .transpose(0, 3, 1, 2)                                # (nb, W3, n_blk, Cin)
                .reshape(nb * W3 * n_blk, cin)).astype(jnp.float32)

    # --- glue: parameter layout / dtype conversion ----------------------------
    f32, bf16 = jnp.float32, jnp.bfloat16
    w0 = params['w_in'].T.astype(f32)                                 # (4, 2)   -> SMEM
    b0 = params['b_in'].astype(f32)                                   # (2,)     -> SMEM
    w1 = params['w_c1'].T.astype(f32)                                 # (2, 128)
    b1 = params['b_c1'].reshape(1, -1).astype(f32)
    w2 = params['w_c2'].T.astype(bf16)                                # (128, 256)
    b2 = params['b_c2'].reshape(1, -1).astype(f32)
    w3 = params['w_c3'].T.astype(bf16)                                # (256, 512)
    b3 = params['b_c3'].reshape(1, -1).astype(f32)
    # torch flatten index is c*W3 + w  ->  permute the Linear weight to
    # (w, c, out) so the kernel accumulates per-w matmuls directly (no flatten copy).
    w4 = (params['w_lin'].reshape(HID, 512, W3)
                         .transpose(2, 1, 0)).astype(bf16)            # (W3, 512, 128)
    b4 = params['b_lin'].reshape(1, -1).astype(f32)
    # output layer zero-padded to 128 lanes for a dense output store.
    w5 = jnp.pad(params['w_out'].T.astype(f32), ((0, 0), (0, HID - OUTPUTS)))   # (128, 128)
    b5 = jnp.pad(params['b_out'].reshape(1, -1).astype(f32),
                 ((0, 0), (0, HID - OUTPUTS)))                                  # (1, 128)

    rows_per_blk = W3 * n_blk
    smem = pl.BlockSpec(memory_space=pltpu.MemorySpace.SMEM)

    # Resident weights: constant index map (fetched once, stays in VMEM) and
    # single-buffered -- no point double-buffering a block that never changes.
    def resident(a):
        nd = a.ndim
        return pl.BlockSpec(a.shape, lambda i, _nd=nd: (0,) * _nd,
                            pipeline_mode=pl.Buffered(1))

    in_specs = [
        pl.BlockSpec((rows_per_blk, cin), lambda i: (i, 0)),          # x2d: streams per batch block
        smem, smem,                                                   # w0, b0 (scalars)
        resident(w1), resident(b1),
        resident(w2), resident(b2),
        resident(w3), resident(b3),
        resident(w4), resident(b4),
        resident(w5), resident(b5),
    ]
    out_spec = pl.BlockSpec((n_blk, HID), lambda i: (i, 0))

    out_pad = pl.pallas_call(
        _cnn_regressor_kernel,
        out_shape=jax.ShapeDtypeStruct((n_pad, HID), jnp.float32),
        grid_spec=pltpu.PrefetchScalarGridSpec(
            num_scalar_prefetch=0,
            grid=(nb,),
            in_specs=in_specs,
            out_specs=out_spec,
        ),
        compiler_params=pltpu.CompilerParams(
            dimension_semantics=("parallel",),
            vmem_limit_bytes=32 * 1024 * 1024,
        ),
    )(x2d, w0, b0, w1, b1, w2, b2, w3, b3, w4, b4, w5, b5)
    return out_pad[:n, :OUTPUTS]


def init_params(key):
    """Deterministic init mimicking PyTorch's default U(-1/sqrt(fan_in), 1/sqrt(fan_in))."""
    def unif(k, shape, fan_in):
        b = 1.0 / np.sqrt(fan_in)
        return jax.random.uniform(k, shape, jnp.float32, -b, b)

    ks = jax.random.split(key, 12)
    p = {}
    p['w_in'],  p['b_in']  = unif(ks[0], (BATCH_SIZE, INPUTS), INPUTS), unif(ks[1], (BATCH_SIZE,), INPUTS)
    p['w_c1'],  p['b_c1']  = unif(ks[2], (128, BATCH_SIZE), BATCH_SIZE), unif(ks[3], (128,), BATCH_SIZE)
    p['w_c2'],  p['b_c2']  = unif(ks[4], (256, 128), 128),  unif(ks[5], (256,), 128)
    p['w_c3'],  p['b_c3']  = unif(ks[6], (512, 256), 256),  unif(ks[7], (512,), 256)
    p['w_lin'], p['b_lin'] = unif(ks[8], (128, 9728), 9728), unif(ks[9], (128,), 9728)
    p['w_out'], p['b_out'] = unif(ks[10], (OUTPUTS, 128), 128), unif(ks[11], (OUTPUTS,), 128)
    # conv_layer4 (512 -> 512) is unused in forward(); not instantiated.
    return p


def reference_forward(x, p):
    """Pure-JAX f32 re-implementation of the PyTorch forward (NCHW, 1x1 strided convs)."""
    def conv1x1(h, w, b, stride):
        h = h[:, :, ::stride, ::stride]
        return jnp.einsum('nchw,oc->nohw', h, w) + b.reshape(1, -1, 1, 1)

    h = jax.nn.relu(conv1x1(x, p['w_in'], p['b_in'], 1))
    h = jax.nn.relu(conv1x1(h, p['w_c1'], p['b_c1'], 3))
    h = jax.nn.relu(conv1x1(h, p['w_c2'], p['b_c2'], 3))
    h = jax.nn.relu(conv1x1(h, p['w_c3'], p['b_c3'], 3))
    f = h.reshape(h.shape[0], -1)                       # NCHW flatten -> (N, 9728)
    g = jax.nn.relu(f @ p['w_lin'].T + p['b_lin'])
    return g @ p['w_out'].T + p['b_out']


if __name__ == "__main__":
    key = jax.random.PRNGKey(0)
    k_x, k_p = jax.random.split(key)
    x = jax.random.normal(k_x, (BATCH_SIZE, INPUTS, H_IN, W_IN), jnp.float32)
    params = init_params(k_p)

    out = cnn_regressor_forward(x, params)
    out = jax.block_until_ready(out)

    ref = reference_forward(x, params)
    # bf16 storage of w2/w3/w4 (with f32 accumulation) introduces ~1e-3-scale
    # deviation from the pure-f32 reference; tolerance set accordingly.
    np.testing.assert_allclose(np.asarray(out), np.asarray(ref), rtol=1e-2, atol=2e-3)

    print("KERNEL_OK")
</pallas_src>

<mosaic_0001>
module attributes {stable_mosaic.version = 11 : i64} {
  func.func @_cnn_regressor_kernel(%arg0: i32, %arg1: memref<152x4xf32, #tpu.memory_space<vmem>>, %arg2: memref<4x2xf32, #tpu.memory_space<smem>>, %arg3: memref<2xf32, #tpu.memory_space<smem>>, %arg4: memref<2x128xf32, #tpu.memory_space<vmem>>, %arg5: memref<1x128xf32, #tpu.memory_space<vmem>>, %arg6: memref<128x256xbf16, #tpu.memory_space<vmem>>, %arg7: memref<1x256xf32, #tpu.memory_space<vmem>>, %arg8: memref<256x512xbf16, #tpu.memory_space<vmem>>, %arg9: memref<1x512xf32, #tpu.memory_space<vmem>>, %arg10: memref<19x512x128xbf16, #tpu.memory_space<vmem>>, %arg11: memref<1x128xf32, #tpu.memory_space<vmem>>, %arg12: memref<128x128xf32, #tpu.memory_space<vmem>>, %arg13: memref<1x128xf32, #tpu.memory_space<vmem>>, %arg14: memref<8x128xf32, #tpu.memory_space<vmem>>) attributes {dimension_semantics = [#tpu.dimension_semantics<parallel>], iteration_bounds = array<i64: 1>, scalar_prefetch = 0 : i64, scratch_operands = 0 : i64, tpu.core_type = #tpu.core_type<tc>, window_params = [{transform_indices = @transform_0, window_bounds = array<i64: 152, 4>}, {transform_indices = @transform_1, window_bounds = array<i64: 4, 2>}, {transform_indices = @transform_2, window_bounds = array<i64: 2>}, {pipeline_mode = #tpu.pipeline_mode<synchronous>, transform_indices = @transform_3, window_bounds = array<i64: 2, 128>}, {pipeline_mode = #tpu.pipeline_mode<synchronous>, transform_indices = @transform_4, window_bounds = array<i64: 1, 128>}, {pipeline_mode = #tpu.pipeline_mode<synchronous>, transform_indices = @transform_5, window_bounds = array<i64: 128, 256>}, {pipeline_mode = #tpu.pipeline_mode<synchronous>, transform_indices = @transform_6, window_bounds = array<i64: 1, 256>}, {pipeline_mode = #tpu.pipeline_mode<synchronous>, transform_indices = @transform_7, window_bounds = array<i64: 256, 512>}, {pipeline_mode = #tpu.pipeline_mode<synchronous>, transform_indices = @transform_8, window_bounds = array<i64: 1, 512>}, {pipeline_mode = #tpu.pipeline_mode<synchronous>, transform_indices = @transform_9, window_bounds = array<i64: 19, 512, 128>}, {pipeline_mode = #tpu.pipeline_mode<synchronous>, transform_indices = @transform_10, window_bounds = array<i64: 1, 128>}, {pipeline_mode = #tpu.pipeline_mode<synchronous>, transform_indices = @transform_11, window_bounds = array<i64: 128, 128>}, {pipeline_mode = #tpu.pipeline_mode<synchronous>, transform_indices = @transform_12, window_bounds = array<i64: 1, 128>}, {transform_indices = @transform_13, window_bounds = array<i64: 8, 128>}]} {
    %c0 = arith.constant 0 : index
    %c0_0 = arith.constant 0 : index
    %0 = vector.load %arg1[%c0, %c0_0] : memref<152x4xf32, #tpu.memory_space<vmem>>, vector<152x4xf32>
    %1 = vector.extract_strided_slice %0 {offsets = [0, 0], sizes = [152, 1], strides = [1, 1]} : vector<152x4xf32> to vector<152x1xf32>
    %c0_1 = arith.constant 0 : index
    %c0_2 = arith.constant 0 : index
    %2 = memref.load %arg2[%c0_1, %c0_2] : memref<4x2xf32, #tpu.memory_space<smem>>
    %3 = vector.broadcast %2 : f32 to vector<152x1xf32>
    %4 = arith.mulf %1, %3 : vector<152x1xf32>
    %5 = vector.extract_strided_slice %0 {offsets = [0, 1], sizes = [152, 1], strides = [1, 1]} : vector<152x4xf32> to vector<152x1xf32>
    %c1 = arith.constant 1 : index
    %c0_3 = arith.constant 0 : index
    %6 = memref.load %arg2[%c1, %c0_3] : memref<4x2xf32, #tpu.memory_space<smem>>
    %7 = vector.broadcast %6 : f32 to vector<152x1xf32>
    %8 = arith.mulf %5, %7 : vector<152x1xf32>
    %9 = arith.addf %4, %8 : vector<152x1xf32>
    %10 = vector.extract_strided_slice %0 {offsets = [0, 2], sizes = [152, 1], strides = [1, 1]} : vector<152x4xf32> to vector<152x1xf32>
    %c2 = arith.constant 2 : index
    %c0_4 = arith.constant 0 : index
    %11 = memref.load %arg2[%c2, %c0_4] : memref<4x2xf32, #tpu.memory_space<smem>>
    %12 = vector.broadcast %11 : f32 to vector<152x1xf32>
    %13 = arith.mulf %10, %12 : vector<152x1xf32>
    %14 = arith.addf %9, %13 : vector<152x1xf32>
    %15 = vector.extract_strided_slice %0 {offsets = [0, 3], sizes = [152, 1], strides = [1, 1]} : vector<152x4xf32> to vector<152x1xf32>
    %c3 = arith.constant 3 : index
    %c0_5 = arith.constant 0 : index
    %16 = memref.load %arg2[%c3, %c0_5] : memref<4x2xf32, #tpu.memory_space<smem>>
    %17 = vector.broadcast %16 : f32 to vector<152x1xf32>
    %18 = arith.mulf %15, %17 : vector<152x1xf32>
    %19 = arith.addf %14, %18 : vector<152x1xf32>
    %c0_6 = arith.constant 0 : index
    %20 = memref.load %arg3[%c0_6] : memref<2xf32, #tpu.memory_space<smem>>
    %21 = vector.broadcast %20 : f32 to vector<152x1xf32>
    %22 = arith.addf %19, %21 : vector<152x1xf32>
    %cst = arith.constant 0.000000e+00 : f32
    %23 = vector.broadcast %cst : f32 to vector<152x1xf32>
    %24 = arith.maximumf %22, %23 : vector<152x1xf32>
    %25 = vector.extract_strided_slice %0 {offsets = [0, 0], sizes = [152, 1], strides = [1, 1]} : vector<152x4xf32> to vector<152x1xf32>
    %c0_7 = arith.constant 0 : index
    %c1_8 = arith.constant 1 : index
    %26 = memref.load %arg2[%c0_7, %c1_8] : memref<4x2xf32, #tpu.memory_space<smem>>
    %27 = vector.broadcast %26 : f32 to vector<152x1xf32>
    %28 = arith.mulf %25, %27 : vector<152x1xf32>
    %29 = vector.extract_strided_slice %0 {offsets = [0, 1], sizes = [152, 1], strides = [1, 1]} : vector<152x4xf32> to vector<152x1xf32>
    %c1_9 = arith.constant 1 : index
    %c1_10 = arith.constant 1 : index
    %30 = memref.load %arg2[%c1_9, %c1_10] : memref<4x2xf32, #tpu.memory_space<smem>>
    %31 = vector.broadcast %30 : f32 to vector<152x1xf32>
    %32 = arith.mulf %29, %31 : vector<152x1xf32>
    %33 = arith.addf %28, %32 : vector<152x1xf32>
    %34 = vector.extract_strided_slice %0 {offsets = [0, 2], sizes = [152, 1], strides = [1, 1]} : vector<152x4xf32> to vector<152x1xf32>
    %c2_11 = arith.constant 2 : index
    %c1_12 = arith.constant 1 : index
    %35 = memref.load %arg2[%c2_11, %c1_12] : memref<4x2xf32, #tpu.memory_space<smem>>
    %36 = vector.broadcast %35 : f32 to vector<152x1xf32>
    %37 = arith.mulf %34, %36 : vector<152x1xf32>
    %38 = arith.addf %33, %37 : vector<152x1xf32>
    %39 = vector.extract_strided_slice %0 {offsets = [0, 3], sizes = [152, 1], strides = [1, 1]} : vector<152x4xf32> to vector<152x1xf32>
    %c3_13 = arith.constant 3 : index
    %c1_14 = arith.constant 1 : index
    %40 = memref.load %arg2[%c3_13, %c1_14] : memref<4x2xf32, #tpu.memory_space<smem>>
    %41 = vector.broadcast %40 : f32 to vector<152x1xf32>
    %42 = arith.mulf %39, %41 : vector<152x1xf32>
    %43 = arith.addf %38, %42 : vector<152x1xf32>
    %c1_15 = arith.constant 1 : index
    %44 = memref.load %arg3[%c1_15] : memref<2xf32, #tpu.memory_space<smem>>
    %45 = vector.broadcast %44 : f32 to vector<152x1xf32>
    %46 = arith.addf %43, %45 : vector<152x1xf32>
    %cst_16 = arith.constant 0.000000e+00 : f32
    %47 = vector.broadcast %cst_16 : f32 to vector<152x1xf32>
    %48 = arith.maximumf %46, %47 : vector<152x1xf32>
    %c0_17 = arith.constant 0 : index
    %c0_18 = arith.constant 0 : index
    %49 = vector.load %arg4[%c0_17, %c0_18] : memref<2x128xf32, #tpu.memory_space<vmem>>, vector<1x128xf32>
    %50 = vector.broadcast %24 : vector<152x1xf32> to vector<152x128xf32>
    %51 = vector.broadcast %49 : vector<1x128xf32> to vector<152x128xf32>
    %52 = arith.mulf %50, %51 : vector<152x128xf32>
    %c1_19 = arith.constant 1 : index
    %c0_20 = arith.constant 0 : index
    %53 = vector.load %arg4[%c1_19, %c0_20] : memref<2x128xf32, #tpu.memory_space<vmem>>, vector<1x128xf32>
    %54 = vector.broadcast %48 : vector<152x1xf32> to vector<152x128xf32>
    %55 = vector.broadcast %53 : vector<1x128xf32> to vector<152x128xf32>
    %56 = arith.mulf %54, %55 : vector<152x128xf32>
    %57 = arith.addf %52, %56 : vector<152x128xf32>
    %c0_21 = arith.constant 0 : index
    %c0_22 = arith.constant 0 : index
    %58 = vector.load %arg5[%c0_21, %c0_22] : memref<1x128xf32, #tpu.memory_space<vmem>>, vector<1x128xf32>
    %59 = vector.broadcast %58 : vector<1x128xf32> to vector<152x128xf32>
    %60 = arith.addf %57, %59 : vector<152x128xf32>
    %cst_23 = arith.constant 0.000000e+00 : f32
    %61 = vector.broadcast %cst_23 : f32 to vector<152x128xf32>
    %62 = arith.maximumf %60, %61 : vector<152x128xf32>
    %63 = arith.truncf %62 : vector<152x128xf32> to vector<152x128xbf16>
    %c0_24 = arith.constant 0 : index
    %c0_25 = arith.constant 0 : index
    %64 = vector.load %arg6[%c0_24, %c0_25] : memref<128x256xbf16, #tpu.memory_space<vmem>>, vector<128x256xbf16>
    %cst_26 = arith.constant dense<0.000000e+00> : vector<152x256xf32>
    %65 = tpu.matmul %63, %64, %cst_26 {dimension_numbers = #tpu.dot_dimension_numbers<[1], [0], [0], [1], [0, 0, 1, 1], [], []>} : vector<152x128xbf16>, vector<128x256xbf16>, vector<152x256xf32> -> vector<152x256xf32>
    %c0_27 = arith.constant 0 : index
    %c0_28 = arith.constant 0 : index
    %66 = vector.load %arg7[%c0_27, %c0_28] : memref<1x256xf32, #tpu.memory_space<vmem>>, vector<1x256xf32>
    %67 = vector.broadcast %66 : vector<1x256xf32> to vector<152x256xf32>
    %68 = arith.addf %65, %67 : vector<152x256xf32>
    %cst_29 = arith.constant 0.000000e+00 : f32
    %69 = vector.broadcast %cst_29 : f32 to vector<152x256xf32>
    %70 = arith.maximumf %68, %69 : vector<152x256xf32>
    %71 = arith.truncf %70 : vector<152x256xf32> to vector<152x256xbf16>
    %c0_30 = arith.constant 0 : index
    %c0_31 = arith.constant 0 : index
    %72 = vector.load %arg8[%c0_30, %c0_31] : memref<256x512xbf16, #tpu.memory_space<vmem>>, vector<256x512xbf16>
    %cst_32 = arith.constant dense<0.000000e+00> : vector<152x512xf32>
    %73 = tpu.matmul %71, %72, %cst_32 {dimension_numbers = #tpu.dot_dimension_numbers<[1], [0], [0], [1], [0, 0, 1, 1], [], []>} : vector<152x256xbf16>, vector<256x512xbf16>, vector<152x512xf32> -> vector<152x512xf32>
    %c0_33 = arith.constant 0 : index
    %c0_34 = arith.constant 0 : index
    %74 = vector.load %arg9[%c0_33, %c0_34] : memref<1x512xf32, #tpu.memory_space<vmem>>, vector<1x512xf32>
    %75 = vector.broadcast %74 : vector<1x512xf32> to vector<152x512xf32>
    %76 = arith.addf %73, %75 : vector<152x512xf32>
    %cst_35 = arith.constant 0.000000e+00 : f32
    %77 = vector.broadcast %cst_35 : f32 to vector<152x512xf32>
    %78 = arith.maximumf %76, %77 : vector<152x512xf32>
    %cst_36 = arith.constant 0.000000e+00 : f32
    %79 = vector.broadcast %cst_36 : f32 to vector<8x128xf32>
    %80 = vector.extract_strided_slice %78 {offsets = [0, 0], sizes = [8, 512], strides = [1, 1]} : vector<152x512xf32> to vector<8x512xf32>
    %81 = arith.truncf %80 : vector<8x512xf32> to vector<8x512xbf16>
    %c0_37 = arith.constant 0 : index
    %c0_38 = arith.constant 0 : index
    %c0_39 = arith.constant 0 : index
    %82 = vector.load %arg10[%c0_37, %c0_38, %c0_39] : memref<19x512x128xbf16, #tpu.memory_space<vmem>>, vector<1x512x128xbf16>
    %83 = vector.shape_cast %82 : vector<1x512x128xbf16> to vector<512x128xbf16>
    %cst_40 = arith.constant dense<0.000000e+00> : vector<8x128xf32>
    %84 = tpu.matmul %81, %83, %cst_40 {dimension_numbers = #tpu.dot_dimension_numbers<[1], [0], [0], [1], [0, 0, 1, 1], [], []>} : vector<8x512xbf16>, vector<512x128xbf16>, vector<8x128xf32> -> vector<8x128xf32>
    %85 = arith.addf %79, %84 : vector<8x128xf32>
    %86 = vector.extract_strided_slice %78 {offsets = [8, 0], sizes = [8, 512], strides = [1, 1]} : vector<152x512xf32> to vector<8x512xf32>
    %87 = arith.truncf %86 : vector<8x512xf32> to vector<8x512xbf16>
    %c1_41 = arith.constant 1 : index
    %c0_42 = arith.constant 0 : index
    %c0_43 = arith.constant 0 : index
    %88 = vector.load %arg10[%c1_41, %c0_42, %c0_43] : memref<19x512x128xbf16, #tpu.memory_space<vmem>>, vector<1x512x128xbf16>
    %89 = vector.shape_cast %88 : vector<1x512x128xbf16> to vector<512x128xbf16>
    %cst_44 = arith.constant dense<0.000000e+00> : vector<8x128xf32>
    %90 = tpu.matmul %87, %89, %cst_44 {dimension_numbers = #tpu.dot_dimension_numbers<[1], [0], [0], [1], [0, 0, 1, 1], [], []>} : vector<8x512xbf16>, vector<512x128xbf16>, vector<8x128xf32> -> vector<8x128xf32>
    %91 = arith.addf %85, %90 : vector<8x128xf32>
    %92 = vector.extract_strided_slice %78 {offsets = [16, 0], sizes = [8, 512], strides = [1, 1]} : vector<152x512xf32> to vector<8x512xf32>
    %93 = arith.truncf %92 : vector<8x512xf32> to vector<8x512xbf16>
    %c2_45 = arith.constant 2 : index
    %c0_46 = arith.constant 0 : index
    %c0_47 = arith.constant 0 : index
    %94 = vector.load %arg10[%c2_45, %c0_46, %c0_47] : memref<19x512x128xbf16, #tpu.memory_space<vmem>>, vector<1x512x128xbf16>
    %95 = vector.shape_cast %94 : vector<1x512x128xbf16> to vector<512x128xbf16>
    %cst_48 = arith.constant dense<0.000000e+00> : vector<8x128xf32>
    %96 = tpu.matmul %93, %95, %cst_48 {dimension_numbers = #tpu.dot_dimension_numbers<[1], [0], [0], [1], [0, 0, 1, 1], [], []>} : vector<8x512xbf16>, vector<512x128xbf16>, vector<8x128xf32> -> vector<8x128xf32>
    %97 = arith.addf %91, %96 : vector<8x128xf32>
    %98 = vector.extract_strided_slice %78 {offsets = [24, 0], sizes = [8, 512], strides = [1, 1]} : vector<152x512xf32> to vector<8x512xf32>
    %99 = arith.truncf %98 : vector<8x512xf32> to vector<8x512xbf16>
    %c3_49 = arith.constant 3 : index
    %c0_50 = arith.constant 0 : index
    %c0_51 = arith.constant 0 : index
    %100 = vector.load %arg10[%c3_49, %c0_50, %c0_51] : memref<19x512x128xbf16, #tpu.memory_space<vmem>>, vector<1x512x128xbf16>
    %101 = vector.shape_cast %100 : vector<1x512x128xbf16> to vector<512x128xbf16>
    %cst_52 = arith.constant dense<0.000000e+00> : vector<8x128xf32>
    %102 = tpu.matmul %99, %101, %cst_52 {dimension_numbers = #tpu.dot_dimension_numbers<[1], [0], [0], [1], [0, 0, 1, 1], [], []>} : vector<8x512xbf16>, vector<512x128xbf16>, vector<8x128xf32> -> vector<8x128xf32>
    %103 = arith.addf %97, %102 : vector<8x128xf32>
    %104 = vector.extract_strided_slice %78 {offsets = [32, 0], sizes = [8, 512], strides = [1, 1]} : vector<152x512xf32> to vector<8x512xf32>
    %105 = arith.truncf %104 : vector<8x512xf32> to vector<8x512xbf16>
    %c4 = arith.constant 4 : index
    %c0_53 = arith.constant 0 : index
    %c0_54 = arith.constant 0 : index
    %106 = vector.load %arg10[%c4, %c0_53, %c0_54] : memref<19x512x128xbf16, #tpu.memory_space<vmem>>, vector<1x512x128xbf16>
    %107 = vector.shape_cast %106 : vector<1x512x128xbf16> to vector<512x128xbf16>
    %cst_55 = arith.constant dense<0.000000e+00> : vector<8x128xf32>
    %108 = tpu.matmul %105, %107, %cst_55 {dimension_numbers = #tpu.dot_dimension_numbers<[1], [0], [0], [1], [0, 0, 1, 1], [], []>} : vector<8x512xbf16>, vector<512x128xbf16>, vector<8x128xf32> -> vector<8x128xf32>
    %109 = arith.addf %103, %108 : vector<8x128xf32>
    %110 = vector.extract_strided_slice %78 {offsets = [40, 0], sizes = [8, 512], strides = [1, 1]} : vector<152x512xf32> to vector<8x512xf32>
    %111 = arith.truncf %110 : vector<8x512xf32> to vector<8x512xbf16>
    %c5 = arith.constant 5 : index
    %c0_56 = arith.constant 0 : index
    %c0_57 = arith.constant 0 : index
    %112 = vector.load %arg10[%c5, %c0_56, %c0_57] : memref<19x512x128xbf16, #tpu.memory_space<vmem>>, vector<1x512x128xbf16>
    %113 = vector.shape_cast %112 : vector<1x512x128xbf16> to vector<512x128xbf16>
    %cst_58 = arith.constant dense<0.000000e+00> : vector<8x128xf32>
    %114 = tpu.matmul %111, %113, %cst_58 {dimension_numbers = #tpu.dot_dimension_numbers<[1], [0], [0], [1], [0, 0, 1, 1], [], []>} : vector<8x512xbf16>, vector<512x128xbf16>, vector<8x128xf32> -> vector<8x128xf32>
    %115 = arith.addf %109, %114 : vector<8x128xf32>
    %116 = vector.extract_strided_slice %78 {offsets = [48, 0], sizes = [8, 512], strides = [1, 1]} : vector<152x512xf32> to vector<8x512xf32>
    %117 = arith.truncf %116 : vector<8x512xf32> to vector<8x512xbf16>
    %c6 = arith.constant 6 : index
    %c0_59 = arith.constant 0 : index
    %c0_60 = arith.constant 0 : index
    %118 = vector.load %arg10[%c6, %c0_59, %c0_60] : memref<19x512x128xbf16, #tpu.memory_space<vmem>>, vector<1x512x128xbf16>
    %119 = vector.shape_cast %118 : vector<1x512x128xbf16> to vector<512x128xbf16>
    %cst_61 = arith.constant dense<0.000000e+00> : vector<8x128xf32>
    %120 = tpu.matmul %117, %119, %cst_61 {dimension_numbers = #tpu.dot_dimension_numbers<[1], [0], [0], [1], [0, 0, 1, 1], [], []>} : vector<8x512xbf16>, vector<512x128xbf16>, vector<8x128xf32> -> vector<8x128xf32>
    %121 = arith.addf %115, %120 : vector<8x128xf32>
    %122 = vector.extract_strided_slice %78 {offsets = [56, 0], sizes = [8, 512], strides = [1, 1]} : vector<152x512xf32> to vector<8x512xf32>
    %123 = arith.truncf %122 : vector<8x512xf32> to vector<8x512xbf16>
    %c7 = arith.constant 7 : index
    %c0_62 = arith.constant 0 : index
    %c0_63 = arith.constant 0 : index
    %124 = vector.load %arg10[%c7, %c0_62, %c0_63] : memref<19x512x128xbf16, #tpu.memory_space<vmem>>, vector<1x512x128xbf16>
    %125 = vector.shape_cast %124 : vector<1x512x128xbf16> to vector<512x128xbf16>
    %cst_64 = arith.constant dense<0.000000e+00> : vector<8x128xf32>
    %126 = tpu.matmul %123, %125, %cst_64 {dimension_numbers = #tpu.dot_dimension_numbers<[1], [0], [0], [1], [0, 0, 1, 1], [], []>} : vector<8x512xbf16>, vector<512x128xbf16>, vector<8x128xf32> -> vector<8x128xf32>
    %127 = arith.addf %121, %126 : vector<8x128xf32>
    %128 = vector.extract_strided_slice %78 {offsets = [64, 0], sizes = [8, 512], strides = [1, 1]} : vector<152x512xf32> to vector<8x512xf32>
    %129 = arith.truncf %128 : vector<8x512xf32> to vector<8x512xbf16>
    %c8 = arith.constant 8 : index
    %c0_65 = arith.constant 0 : index
    %c0_66 = arith.constant 0 : index
    %130 = vector.load %arg10[%c8, %c0_65, %c0_66] : memref<19x512x128xbf16, #tpu.memory_space<vmem>>, vector<1x512x128xbf16>
    %131 = vector.shape_cast %130 : vector<1x512x128xbf16> to vector<512x128xbf16>
    %cst_67 = arith.constant dense<0.000000e+00> : vector<8x128xf32>
    %132 = tpu.matmul %129, %131, %cst_67 {dimension_numbers = #tpu.dot_dimension_numbers<[1], [0], [0], [1], [0, 0, 1, 1], [], []>} : vector<8x512xbf16>, vector<512x128xbf16>, vector<8x128xf32> -> vector<8x128xf32>
    %133 = arith.addf %127, %132 : vector<8x128xf32>
    %134 = vector.extract_strided_slice %78 {offsets = [72, 0], sizes = [8, 512], strides = [1, 1]} : vector<152x512xf32> to vector<8x512xf32>
    %135 = arith.truncf %134 : vector<8x512xf32> to vector<8x512xbf16>
    %c9 = arith.constant 9 : index
    %c0_68 = arith.constant 0 : index
    %c0_69 = arith.constant 0 : index
    %136 = vector.load %arg10[%c9, %c0_68, %c0_69] : memref<19x512x128xbf16, #tpu.memory_space<vmem>>, vector<1x512x128xbf16>
    %137 = vector.shape_cast %136 : vector<1x512x128xbf16> to vector<512x128xbf16>
    %cst_70 = arith.constant dense<0.000000e+00> : vector<8x128xf32>
    %138 = tpu.matmul %135, %137, %cst_70 {dimension_numbers = #tpu.dot_dimension_numbers<[1], [0], [0], [1], [0, 0, 1, 1], [], []>} : vector<8x512xbf16>, vector<512x128xbf16>, vector<8x128xf32> -> vector<8x128xf32>
    %139 = arith.addf %133, %138 : vector<8x128xf32>
    %140 = vector.extract_strided_slice %78 {offsets = [80, 0], sizes = [8, 512], strides = [1, 1]} : vector<152x512xf32> to vector<8x512xf32>
    %141 = arith.truncf %140 : vector<8x512xf32> to vector<8x512xbf16>
    %c10 = arith.constant 10 : index
    %c0_71 = arith.constant 0 : index
    %c0_72 = arith.constant 0 : index
    %142 = vector.load %arg10[%c10, %c0_71, %c0_72] : memref<19x512x128xbf16, #tpu.memory_space<vmem>>, vector<1x512x128xbf16>
    %143 = vector.shape_cast %142 : vector<1x512x128xbf16> to vector<512x128xbf16>
    %cst_73 = arith.constant dense<0.000000e+00> : vector<8x128xf32>
    %144 = tpu.matmul %141, %143, %cst_73 {dimension_numbers = #tpu.dot_dimension_numbers<[1], [0], [0], [1], [0, 0, 1, 1], [], []>} : vector<8x512xbf16>, vector<512x128xbf16>, vector<8x128xf32> -> vector<8x128xf32>
    %145 = arith.addf %139, %144 : vector<8x128xf32>
    %146 = vector.extract_strided_slice %78 {offsets = [88, 0], sizes = [8, 512], strides = [1, 1]} : vector<152x512xf32> to vector<8x512xf32>
    %147 = arith.truncf %146 : vector<8x512xf32> to vector<8x512xbf16>
    %c11 = arith.constant 11 : index
    %c0_74 = arith.constant 0 : index
    %c0_75 = arith.constant 0 : index
    %148 = vector.load %arg10[%c11, %c0_74, %c0_75] : memref<19x512x128xbf16, #tpu.memory_space<vmem>>, vector<1x512x128xbf16>
    %149 = vector.shape_cast %148 : vector<1x512x128xbf16> to vector<512x128xbf16>
    %cst_76 = arith.constant dense<0.000000e+00> : vector<8x128xf32>
    %150 = tpu.matmul %147, %149, %cst_76 {dimension_numbers = #tpu.dot_dimension_numbers<[1], [0], [0], [1], [0, 0, 1, 1], [], []>} : vector<8x512xbf16>, vector<512x128xbf16>, vector<8x128xf32> -> vector<8x128xf32>
    %151 = arith.addf %145, %150 : vector<8x128xf32>
    %152 = vector.extract_strided_slice %78 {offsets = [96, 0], sizes = [8, 512], strides = [1, 1]} : vector<152x512xf32> to vector<8x512xf32>
    %153 = arith.truncf %152 : vector<8x512xf32> to vector<8x512xbf16>
    %c12 = arith.constant 12 : index
    %c0_77 = arith.constant 0 : index
    %c0_78 = arith.constant 0 : index
    %154 = vector.load %arg10[%c12, %c0_77, %c0_78] : memref<19x512x128xbf16, #tpu.memory_space<vmem>>, vector<1x512x128xbf16>
    %155 = vector.shape_cast %154 : vector<1x512x128xbf16> to vector<512x128xbf16>
    %cst_79 = arith.constant dense<0.000000e+00> : vector<8x128xf32>
    %156 = tpu.matmul %153, %155, %cst_79 {dimension_numbers = #tpu.dot_dimension_numbers<[1], [0], [0], [1], [0, 0, 1, 1], [], []>} : vector<8x512xbf16>, vector<512x128xbf16>, vector<8x128xf32> -> vector<8x128xf32>
    %157 = arith.addf %151, %156 : vector<8x128xf32>
    %158 = vector.extract_strided_slice %78 {offsets = [104, 0], sizes = [8, 512], strides = [1, 1]} : vector<152x512xf32> to vector<8x512xf32>
    %159 = arith.truncf %158 : vector<8x512xf32> to vector<8x512xbf16>
    %c13 = arith.constant 13 : index
    %c0_80 = arith.constant 0 : index
    %c0_81 = arith.constant 0 : index
    %160 = vector.load %arg10[%c13, %c0_80, %c0_81] : memref<19x512x128xbf16, #tpu.memory_space<vmem>>, vector<1x512x128xbf16>
    %161 = vector.shape_cast %160 : vector<1x512x128xbf16> to vector<512x128xbf16>
    %cst_82 = arith.constant dense<0.000000e+00> : vector<8x128xf32>
    %162 = tpu.matmul %159, %161, %cst_82 {dimension_numbers = #tpu.dot_dimension_numbers<[1], [0], [0], [1], [0, 0, 1, 1], [], []>} : vector<8x512xbf16>, vector<512x128xbf16>, vector<8x128xf32> -> vector<8x128xf32>
    %163 = arith.addf %157, %162 : vector<8x128xf32>
    %164 = vector.extract_strided_slice %78 {offsets = [112, 0], sizes = [8, 512], strides = [1, 1]} : vector<152x512xf32> to vector<8x512xf32>
    %165 = arith.truncf %164 : vector<8x512xf32> to vector<8x512xbf16>
    %c14 = arith.constant 14 : index
    %c0_83 = arith.constant 0 : index
    %c0_84 = arith.constant 0 : index
    %166 = vector.load %arg10[%c14, %c0_83, %c0_84] : memref<19x512x128xbf16, #tpu.memory_space<vmem>>, vector<1x512x128xbf16>
    %167 = vector.shape_cast %166 : vector<1x512x128xbf16> to vector<512x128xbf16>
    %cst_85 = arith.constant dense<0.000000e+00> : vector<8x128xf32>
    %168 = tpu.matmul %165, %167, %cst_85 {dimension_numbers = #tpu.dot_dimension_numbers<[1], [0], [0], [1], [0, 0, 1, 1], [], []>} : vector<8x512xbf16>, vector<512x128xbf16>, vector<8x128xf32> -> vector<8x128xf32>
    %169 = arith.addf %163, %168 : vector<8x128xf32>
    %170 = vector.extract_strided_slice %78 {offsets = [120, 0], sizes = [8, 512], strides = [1, 1]} : vector<152x512xf32> to vector<8x512xf32>
    %171 = arith.truncf %170 : vector<8x512xf32> to vector<8x512xbf16>
    %c15 = arith.constant 15 : index
    %c0_86 = arith.constant 0 : index
    %c0_87 = arith.constant 0 : index
    %172 = vector.load %arg10[%c15, %c0_86, %c0_87] : memref<19x512x128xbf16, #tpu.memory_space<vmem>>, vector<1x512x128xbf16>
    %173 = vector.shape_cast %172 : vector<1x512x128xbf16> to vector<512x128xbf16>
    %cst_88 = arith.constant dense<0.000000e+00> : vector<8x128xf32>
    %174 = tpu.matmul %171, %173, %cst_88 {dimension_numbers = #tpu.dot_dimension_numbers<[1], [0], [0], [1], [0, 0, 1, 1], [], []>} : vector<8x512xbf16>, vector<512x128xbf16>, vector<8x128xf32> -> vector<8x128xf32>
    %175 = arith.addf %169, %174 : vector<8x128xf32>
    %176 = vector.extract_strided_slice %78 {offsets = [128, 0], sizes = [8, 512], strides = [1, 1]} : vector<152x512xf32> to vector<8x512xf32>
    %177 = arith.truncf %176 : vector<8x512xf32> to vector<8x512xbf16>
    %c16 = arith.constant 16 : index
    %c0_89 = arith.constant 0 : index
    %c0_90 = arith.constant 0 : index
    %178 = vector.load %arg10[%c16, %c0_89, %c0_90] : memref<19x512x128xbf16, #tpu.memory_space<vmem>>, vector<1x512x128xbf16>
    %179 = vector.shape_cast %178 : vector<1x512x128xbf16> to vector<512x128xbf16>
    %cst_91 = arith.constant dense<0.000000e+00> : vector<8x128xf32>
    %180 = tpu.matmul %177, %179, %cst_91 {dimension_numbers = #tpu.dot_dimension_numbers<[1], [0], [0], [1], [0, 0, 1, 1], [], []>} : vector<8x512xbf16>, vector<512x128xbf16>, vector<8x128xf32> -> vector<8x128xf32>
    %181 = arith.addf %175, %180 : vector<8x128xf32>
    %182 = vector.extract_strided_slice %78 {offsets = [136, 0], sizes = [8, 512], strides = [1, 1]} : vector<152x512xf32> to vector<8x512xf32>
    %183 = arith.truncf %182 : vector<8x512xf32> to vector<8x512xbf16>
    %c17 = arith.constant 17 : index
    %c0_92 = arith.constant 0 : index
    %c0_93 = arith.constant 0 : index
    %184 = vector.load %arg10[%c17, %c0_92, %c0_93] : memref<19x512x128xbf16, #tpu.memory_space<vmem>>, vector<1x512x128xbf16>
    %185 = vector.shape_cast %184 : vector<1x512x128xbf16> to vector<512x128xbf16>
    %cst_94 = arith.constant dense<0.000000e+00> : vector<8x128xf32>
    %186 = tpu.matmul %183, %185, %cst_94 {dimension_numbers = #tpu.dot_dimension_numbers<[1], [0], [0], [1], [0, 0, 1, 1], [], []>} : vector<8x512xbf16>, vector<512x128xbf16>, vector<8x128xf32> -> vector<8x128xf32>
    %187 = arith.addf %181, %186 : vector<8x128xf32>
    %188 = vector.extract_strided_slice %78 {offsets = [144, 0], sizes = [8, 512], strides = [1, 1]} : vector<152x512xf32> to vector<8x512xf32>
    %189 = arith.truncf %188 : vector<8x512xf32> to vector<8x512xbf16>
    %c18 = arith.constant 18 : index
    %c0_95 = arith.constant 0 : index
    %c0_96 = arith.constant 0 : index
    %190 = vector.load %arg10[%c18, %c0_95, %c0_96] : memref<19x512x128xbf16, #tpu.memory_space<vmem>>, vector<1x512x128xbf16>
    %191 = vector.shape_cast %190 : vector<1x512x128xbf16> to vector<512x128xbf16>
    %cst_97 = arith.constant dense<0.000000e+00> : vector<8x128xf32>
    %192 = tpu.matmul %189, %191, %cst_97 {dimension_numbers = #tpu.dot_dimension_numbers<[1], [0], [0], [1], [0, 0, 1, 1], [], []>} : vector<8x512xbf16>, vector<512x128xbf16>, vector<8x128xf32> -> vector<8x128xf32>
    %193 = arith.addf %187, %192 : vector<8x128xf32>
    %c0_98 = arith.constant 0 : index
    %c0_99 = arith.constant 0 : index
    %194 = vector.load %arg11[%c0_98, %c0_99] : memref<1x128xf32, #tpu.memory_space<vmem>>, vector<1x128xf32>
    %195 = vector.broadcast %194 : vector<1x128xf32> to vector<8x128xf32>
    %196 = arith.addf %193, %195 : vector<8x128xf32>
    %cst_100 = arith.constant 0.000000e+00 : f32
    %197 = vector.broadcast %cst_100 : f32 to vector<8x128xf32>
    %198 = arith.maximumf %196, %197 : vector<8x128xf32>
    %c0_101 = arith.constant 0 : index
    %c0_102 = arith.constant 0 : index
    %199 = vector.load %arg12[%c0_101, %c0_102] : memref<128x128xf32, #tpu.memory_space<vmem>>, vector<128x128xf32>
    %cst_103 = arith.constant dense<0.000000e+00> : vector<8x128xf32>
    %200 = tpu.matmul %198, %199, %cst_103 {dimension_numbers = #tpu.dot_dimension_numbers<[1], [0], [0], [1], [0, 0, 1, 1], [], []>} : vector<8x128xf32>, vector<128x128xf32>, vector<8x128xf32> -> vector<8x128xf32>
    %c0_104 = arith.constant 0 : index
    %c0_105 = arith.constant 0 : index
    %201 = vector.load %arg13[%c0_104, %c0_105] : memref<1x128xf32, #tpu.memory_space<vmem>>, vector<1x128xf32>
    %202 = vector.broadcast %201 : vector<1x128xf32> to vector<8x128xf32>
    %203 = arith.addf %200, %202 : vector<8x128xf32>
    %c0_106 = arith.constant 0 : index
    %c0_107 = arith.constant 0 : index
    %204 = vector.load %arg14[%c0_106, %c0_107] : memref<8x128xf32, #tpu.memory_space<vmem>>, vector<8x128xf32>
    tpu.vector_store %arg14[%c0_106, %c0_107], %203 {strides = array<i32>} : memref<8x128xf32, #tpu.memory_space<vmem>>, vector<8x128xf32>,
    return
  }
  func.func @transform_0(%arg0: i32) -> (i32, i32) {
    %c0_i32 = arith.constant 0 : i32
    %c0_i32_0 = arith.constant 0 : i32
    return %arg0, %c0_i32 : i32, i32
  }
  func.func @transform_1(%arg0: i32) -> (i32, i32) {
    %c0_i32 = arith.constant 0 : i32
    %c0_i32_0 = arith.constant 0 : i32
    %c0_i32_1 = arith.constant 0 : i32
    return %c0_i32, %c0_i32_0 : i32, i32
  }
  func.func @transform_2(%arg0: i32) -> i32 {
    %c0_i32 = arith.constant 0 : i32
    %c0_i32_0 = arith.constant 0 : i32
    return %c0_i32 : i32
  }
  func.func @transform_3(%arg0: i32) -> (i32, i32) {
    %c0_i32 = arith.constant 0 : i32
    %c0_i32_0 = arith.constant 0 : i32
    %c0_i32_1 = arith.constant 0 : i32
    return %c0_i32, %c0_i32_0 : i32, i32
  }
  func.func @transform_4(%arg0: i32) -> (i32, i32) {
    %c0_i32 = arith.constant 0 : i32
    %c0_i32_0 = arith.constant 0 : i32
    %c0_i32_1 = arith.constant 0 : i32
    return %c0_i32, %c0_i32_0 : i32, i32
  }
  func.func @transform_5(%arg0: i32) -> (i32, i32) {
    %c0_i32 = arith.constant 0 : i32
    %c0_i32_0 = arith.constant 0 : i32
    %c0_i32_1 = arith.constant 0 : i32
    return %c0_i32, %c0_i32_0 : i32, i32
  }
  func.func @transform_6(%arg0: i32) -> (i32, i32) {
    %c0_i32 = arith.constant 0 : i32
    %c0_i32_0 = arith.constant 0 : i32
    %c0_i32_1 = arith.constant 0 : i32
    return %c0_i32, %c0_i32_0 : i32, i32
  }
  func.func @transform_7(%arg0: i32) -> (i32, i32) {
    %c0_i32 = arith.constant 0 : i32
    %c0_i32_0 = arith.constant 0 : i32
    %c0_i32_1 = arith.constant 0 : i32
    return %c0_i32, %c0_i32_0 : i32, i32
  }
  func.func @transform_8(%arg0: i32) -> (i32, i32) {
    %c0_i32 = arith.constant 0 : i32
    %c0_i32_0 = arith.constant 0 : i32
    %c0_i32_1 = arith.constant 0 : i32
    return %c0_i32, %c0_i32_0 : i32, i32
  }
  func.func @transform_9(%arg0: i32) -> (i32, i32, i32) {
    %c0_i32 = arith.constant 0 : i32
    %c0_i32_0 = arith.constant 0 : i32
    %c0_i32_1 = arith.constant 0 : i32
    %c0_i32_2 = arith.constant 0 : i32
    return %c0_i32, %c0_i32_0, %c0_i32_1 : i32, i32, i32
  }
  func.func @transform_10(%arg0: i32) -> (i32, i32) {
    %c0_i32 = arith.constant 0 : i32
    %c0_i32_0 = arith.constant 0 : i32
    %c0_i32_1 = arith.constant 0 : i32
    return %c0_i32, %c0_i32_0 : i32, i32
  }
  func.func @transform_11(%arg0: i32) -> (i32, i32) {
    %c0_i32 = arith.constant 0 : i32
    %c0_i32_0 = arith.constant 0 : i32
    %c0_i32_1 = arith.constant 0 : i32
    return %c0_i32, %c0_i32_0 : i32, i32
  }
  func.func @transform_12(%arg0: i32) -> (i32, i32) {
    %c0_i32 = arith.constant 0 : i32
    %c0_i32_0 = arith.constant 0 : i32
    %c0_i32_1 = arith.constant 0 : i32
    return %c0_i32, %c0_i32_0 : i32, i32
  }
  func.func @transform_13(%arg0: i32) -> (i32, i32) {
    %c0_i32 = arith.constant 0 : i32
    %c0_i32_0 = arith.constant 0 : i32
    return %arg0, %c0_i32 : i32, i32
  }
}

</mosaic_0001>

<llo_original>
// kernel: tpu_custom_call.1
$region0: #{tpu_custom_call.1}
  #allocation0 [shape = 'u32[]', space=smem, size = 0x4, offset = 0x4, fixed_abs, tag = 'smem constant byte address 0x4 - core index']
  #allocation1 [shape = 'u32[72,128]{1,0:T(1,128)}', space=vmem, size = 0x9000, scoped, tag = 'internal scratch']
  %s0 = inlined_call_operand.vmem [shape: f32[152,4], index: 0, kind: input, shape index: {}]
  %s1 = inlined_call_operand.vmem [shape: f32[4,2], index: 1, kind: input, shape index: {}]
  %s2 = inlined_call_operand.hbm [shape: f32[2], index: 2, kind: input, shape index: {}]
  %s3 = inlined_call_operand.hbm [shape: f32[2,128], index: 3, kind: input, shape index: {}]
  %s4 = inlined_call_operand.hbm [shape: f32[1,128], index: 4, kind: input, shape index: {}]
  %s5 = inlined_call_operand.hbm [shape: bf16[128,256], index: 5, kind: input, shape index: {}]
  %s6 = inlined_call_operand.hbm [shape: f32[1,256], index: 6, kind: input, shape index: {}]
  %s7 = inlined_call_operand.hbm [shape: bf16[256,512], index: 7, kind: input, shape index: {}]
  %s8 = inlined_call_operand.hbm [shape: f32[1,512], index: 8, kind: input, shape index: {}]
  %s9 = inlined_call_operand.hbm [shape: bf16[19,512,128], index: 9, kind: input, shape index: {}]
  %s10 = inlined_call_operand.hbm [shape: f32[1,128], index: 10, kind: input, shape index: {}]
  %s11 = inlined_call_operand.hbm [shape: f32[128,128], index: 11, kind: input, shape index: {}]
  %s12 = inlined_call_operand.hbm [shape: f32[1,128], index: 12, kind: input, shape index: {}]
  %s13 = inlined_call_operand.hbm [shape: f32[8,128], index: 13, kind: output, shape index: {}]
  %s14 = sld [smem:[#allocation0]]
  $region110: #{tpu_custom_call.1} parent=0
    _
  %s16 = ssub.s32 1, %s14
  %s17 = scalar_select 0, %s16, %s14
  $region1: #{tpu_custom_call.1} parent=0
    #allocation2 [shape = 'u8[2048]{0}', space=smem, size = 0x800, scoped, tag = 'input window, operand 1, single buffered']
    #allocation3 [shape = 's32[1]{0}', space=sflag, size = 0x4, scoped, tag = 'scoped memory for tpu_custom_call.1']
    #allocation4 [shape = 's32[1]{0}', space=sflag, size = 0x4, scoped, tag = 'scoped memory for tpu_custom_call.1']
    #allocation5 [shape = 's32[1]{0}', space=sflag, size = 0x4, scoped, tag = 'scoped memory for tpu_custom_call.1']
    #allocation6 [shape = 's32[1]{0}', space=sflag, size = 0x4, scoped, tag = 'scoped memory for tpu_custom_call.1']
    #allocation7 [shape = 'u8[512]{0}', space=smem, size = 0x200, scoped, tag = 'input window, operand 2, single buffered']
    #allocation8 [shape = 'u8[1024]{0}', space=vmem, size = 0x400, scoped, tag = 'input window, operand 3, single buffered']
    #allocation9 [shape = 'u8[512]{0}', space=vmem, size = 0x400, scoped, tag = 'input window, operand 4, single buffered']
    #allocation10 [shape = 's32[1]{0}', space=sflag, size = 0x4, scoped, tag = 'scoped memory for tpu_custom_call.1']
    #allocation11 [shape = 'u8[65536]{0}', space=vmem, size = 0x10000, scoped, tag = 'input window, operand 5, single buffered']
    #allocation12 [shape = 'u8[1024]{0}', space=vmem, size = 0x400, scoped, tag = 'input window, operand 6, single buffered']
    #allocation13 [shape = 's32[1]{0}', space=sflag, size = 0x4, scoped, tag = 'scoped memory for tpu_custom_call.1']
    #allocation14 [shape = 'u8[262144]{0}', space=vmem, size = 0x40000, scoped, tag = 'input window, operand 7, single buffered']
    #allocation15 [shape = 'u8[2048]{0}', space=vmem, size = 0x800, scoped, tag = 'input window, operand 8, single buffered']
    #allocation16 [shape = 's32[1]{0}', space=sflag, size = 0x4, scoped, tag = 'scoped memory for tpu_custom_call.1']
    #allocation17 [shape = 'u8[2490368]{0}', space=vmem, size = 0x260000, scoped, tag = 'input window, operand 9, single buffered']
    #allocation18 [shape = 'u8[512]{0}', space=vmem, size = 0x400, scoped, tag = 'input window, operand 10, single buffered']
    #allocation19 [shape = 's32[1]{0}', space=sflag, size = 0x4, scoped, tag = 'scoped memory for tpu_custom_call.1']
    #allocation20 [shape = 'u8[65536]{0}', space=vmem, size = 0x10000, scoped, tag = 'input window, operand 11, single buffered']
    #allocation21 [shape = 'u8[512]{0}', space=vmem, size = 0x400, scoped, tag = 'input window, operand 12, single buffered']
    #allocation22 [shape = 's32[1]{0}', space=sflag, size = 0x4, scoped, tag = 'scoped memory for tpu_custom_call.1']
    #allocation23 [shape = 'u8[4096]{0}', space=vmem, size = 0x1000, scoped, tag = 'output window, operand 0, single buffered']
    %18 = vsyncpa [#allocation6], 0
    %19 = vsyncpa [#allocation5], 0
    %20 = vsyncpa [#allocation3], 0
    %21 = vsyncpa [#allocation10], 0
    %22 = vsyncpa [#allocation13], 0
    %23 = vsyncpa [#allocation16], 0
    %24 = vsyncpa [#allocation19], 0
    %25 = vsyncpa [#allocation22], 0
    %26 = vsyncpa [#allocation4], 0
    // Predicated region
    $region2: #{tpu_custom_call.1} parent=1 // pred_check
      _
    $region3: #{tpu_custom_call.1} parent=1 // pred_check_branch
      %28 = sbr.rel (0) target = $region5
    $region4: #{tpu_custom_call.1} parent=1 // pred_region
      _
    $region5: #{tpu_custom_call.1} parent=1 // pred_fallthru
      _
    // Predicated region
    $region6: #{tpu_custom_call.1} parent=1 // pred_check
      _
    $region7: #{tpu_custom_call.1} parent=1 // pred_check_branch
      %30 = sbr.rel (0) target = $region9
    $region8: #{tpu_custom_call.1} parent=1 // pred_region
      %32 = vsyncadd [#allocation6], 0
      %s34 = sshll.u32 %s1, 4
      %s35 = int_to_ptr.vmem [resolvable:$true] %s34
      %37 = dma.vmem_to_smem %s35, 64, [#allocation2], [#allocation6]
    $region9: #{tpu_custom_call.1} parent=1 // pred_fallthru
      _
    // Predicated region
    $region10: #{tpu_custom_call.1} parent=1 // pred_check
      _
    $region11: #{tpu_custom_call.1} parent=1 // pred_check_branch
      %39 = sbr.rel (0) target = $region13
    $region12: #{tpu_custom_call.1} parent=1 // pred_region
      %41 = vsyncadd [#allocation5], 0
      %s43 = sshll.u32 %s2, 4
      %s44 = int_to_ptr.hbm [resolvable:$true] %s43
      %46 = dma.hbm_to_smem %s44, 16, [#allocation7], [#allocation5]
    $region13: #{tpu_custom_call.1} parent=1 // pred_fallthru
      _
    // Predicated region
    $region14: #{tpu_custom_call.1} parent=1 // pred_check
      _
    $region15: #{tpu_custom_call.1} parent=1 // pred_check_branch
      %48 = sbr.rel (0) target = $region17
    $region16: #{tpu_custom_call.1} parent=1 // pred_region
      %50 = vsyncadd [#allocation3], 0
      %s52 = sshll.u32 %s3, 4
      %s53 = int_to_ptr.hbm [resolvable:$true] %s52
      %s54 = sshll.u32 [#allocation8], 4
      %s55 = int_to_ptr.vmem [resolvable:$true] %s54
      %57 = dma.hbm_to_vmem [thread:$0]  %s53, 32, %s55, [#allocation3]
    $region17: #{tpu_custom_call.1} parent=1 // pred_fallthru
      _
    // Predicated region
    $region18: #{tpu_custom_call.1} parent=1 // pred_check
      _
    $region19: #{tpu_custom_call.1} parent=1 // pred_check_branch
      %59 = sbr.rel (0) target = $region21
    $region20: #{tpu_custom_call.1} parent=1 // pred_region
      %61 = vsyncadd [#allocation10], 0
      %s63 = sshll.u32 %s4, 4
      %s64 = int_to_ptr.hbm [resolvable:$true] %s63
      %s65 = sshll.u32 [#allocation9], 4
      %s66 = int_to_ptr.vmem [resolvable:$true] %s65
      %68 = dma.hbm_to_vmem [thread:$0]  %s64, 16, %s66, [#allocation10]
    $region21: #{tpu_custom_call.1} parent=1 // pred_fallthru
      _
    // Predicated region
    $region22: #{tpu_custom_call.1} parent=1 // pred_check
      _
    $region23: #{tpu_custom_call.1} parent=1 // pred_check_branch
      %70 = sbr.rel (0) target = $region25
    $region24: #{tpu_custom_call.1} parent=1 // pred_region
      %72 = vsyncadd [#allocation10], 0
      %s73 = sshll.u32 %s5, 4
      %s74 = int_to_ptr.hbm [resolvable:$true] %s73
      %s75 = sshll.u32 [#allocation11], 4
      %s76 = int_to_ptr.vmem [resolvable:$true] %s75
      %81 = dma.hbm_to_vmem [thread:$0]  %s74, 2048, %s76, [#allocation10], 128, 128, 8
    $region25: #{tpu_custom_call.1} parent=1 // pred_fallthru
      _
    // Predicated region
    $region26: #{tpu_custom_call.1} parent=1 // pred_check
      _
    $region27: #{tpu_custom_call.1} parent=1 // pred_check_branch
      %83 = sbr.rel (0) target = $region29
    $region28: #{tpu_custom_call.1} parent=1 // pred_region
      %85 = vsyncadd [#allocation13], 0
      %s87 = sshll.u32 %s6, 4
      %s88 = int_to_ptr.hbm [resolvable:$true] %s87
      %s89 = sshll.u32 [#allocation12], 4
      %s90 = int_to_ptr.vmem [resolvable:$true] %s89
      %92 = dma.hbm_to_vmem [thread:$0]  %s88, 32, %s90, [#allocation13]
    $region29: #{tpu_custom_call.1} parent=1 // pred_fallthru
      _
    // Predicated region
    $region30: #{tpu_custom_call.1} parent=1 // pred_check
      _
    $region31: #{tpu_custom_call.1} parent=1 // pred_check_branch
      %94 = sbr.rel (0) target = $region33
    $region32: #{tpu_custom_call.1} parent=1 // pred_region
      %96 = vsyncadd [#allocation13], 0
      %s97 = sshll.u32 %s7, 4
      %s98 = int_to_ptr.hbm [resolvable:$true] %s97
      %s99 = sshll.u32 [#allocation14], 4
      %s100 = int_to_ptr.vmem [resolvable:$true] %s99
      %105 = dma.hbm_to_vmem [thread:$0]  %s98, 8192, %s100, [#allocation13], 256, 256, 16
    $region33: #{tpu_custom_call.1} parent=1 // pred_fallthru
      _
    // Predicated region
    $region34: #{tpu_custom_call.1} parent=1 // pred_check
      _
    $region35: #{tpu_custom_call.1} parent=1 // pred_check_branch
      %107 = sbr.rel (0) target = $region37
    $region36: #{tpu_custom_call.1} parent=1 // pred_region
      %109 = vsyncadd [#allocation16], 0
      %s111 = sshll.u32 %s8, 4
      %s112 = int_to_ptr.hbm [resolvable:$true] %s111
      %s113 = sshll.u32 [#allocation15], 4
      %s114 = int_to_ptr.vmem [resolvable:$true] %s113
      %116 = dma.hbm_to_vmem [thread:$0]  %s112, 64, %s114, [#allocation16]
    $region37: #{tpu_custom_call.1} parent=1 // pred_fallthru
      _
    // Predicated region
    $region38: #{tpu_custom_call.1} parent=1 // pred_check
      _
    $region39: #{tpu_custom_call.1} parent=1 // pred_check_branch
      %118 = sbr.rel (0) target = $region41
    $region40: #{tpu_custom_call.1} parent=1 // pred_region
      %120 = vsyncadd [#allocation16], 0
      %s121 = sshll.u32 %s9, 4
      %s122 = int_to_ptr.hbm [resolvable:$true] %s121
      %s123 = sshll.u32 [#allocation17], 4
      %s124 = int_to_ptr.vmem [resolvable:$true] %s123
      %129 = dma.hbm_to_vmem [thread:$0]  %s122, 77824, %s124, [#allocation16], 64, 64, 4
    $region41: #{tpu_custom_call.1} parent=1 // pred_fallthru
      _
    // Predicated region
    $region42: #{tpu_custom_call.1} parent=1 // pred_check
      _
    $region43: #{tpu_custom_call.1} parent=1 // pred_check_branch
      %131 = sbr.rel (0) target = $region45
    $region44: #{tpu_custom_call.1} parent=1 // pred_region
      %133 = vsyncadd [#allocation19], 0
      %s135 = sshll.u32 %s10, 4
      %s136 = int_to_ptr.hbm [resolvable:$true] %s135
      %s137 = sshll.u32 [#allocation18], 4
      %s138 = int_to_ptr.vmem [resolvable:$true] %s137
      %140 = dma.hbm_to_vmem [thread:$0]  %s136, 16, %s138, [#allocation19]
    $region45: #{tpu_custom_call.1} parent=1 // pred_fallthru
      _
    // Predicated region
    $region46: #{tpu_custom_call.1} parent=1 // pred_check
      _
    $region47: #{tpu_custom_call.1} parent=1 // pred_check_branch
      %142 = sbr.rel (0) target = $region49
    $region48: #{tpu_custom_call.1} parent=1 // pred_region
      %144 = vsyncadd [#allocation19], 0
      %s145 = sshll.u32 %s11, 4
      %s146 = int_to_ptr.hbm [resolvable:$true] %s145
      %s147 = sshll.u32 [#allocation20], 4
      %s148 = int_to_ptr.vmem [resolvable:$true] %s147
      %153 = dma.hbm_to_vmem [thread:$0]  %s146, 2048, %s148, [#allocation19], 128, 128, 8
    $region49: #{tpu_custom_call.1} parent=1 // pred_fallthru
      _
    // Predicated region
    $region50: #{tpu_custom_call.1} parent=1 // pred_check
      _
    $region51: #{tpu_custom_call.1} parent=1 // pred_check_branch
      %155 = sbr.rel (0) target = $region53
    $region52: #{tpu_custom_call.1} parent=1 // pred_region
      %157 = vsyncadd [#allocation22], 0
      %s159 = sshll.u32 %s12, 4
      %s160 = int_to_ptr.hbm [resolvable:$true] %s159
      %s161 = sshll.u32 [#allocation21], 4
      %s162 = int_to_ptr.vmem [resolvable:$true] %s161
      %164 = dma.hbm_to_vmem [thread:$0]  %s160, 16, %s162, [#allocation22]
    $region53: #{tpu_custom_call.1} parent=1 // pred_fallthru
      _
    // Predicated region
    $region54: #{tpu_custom_call.1} parent=1 // pred_check
      _
    $region55: #{tpu_custom_call.1} parent=1 // pred_check_branch
      %166 = sbr.rel (0) target = $region57
    $region56: #{tpu_custom_call.1} parent=1 // pred_region
      %168 = dma.done [#allocation6], 64
    $region57: #{tpu_custom_call.1} parent=1 // pred_fallthru
      _
    // Predicated region
    $region58: #{tpu_custom_call.1} parent=1 // pred_check
      _
    $region59: #{tpu_custom_call.1} parent=1 // pred_check_branch
      %170 = sbr.rel (0) target = $region61
    $region60: #{tpu_custom_call.1} parent=1 // pred_region
      %172 = dma.done [#allocation5], 16
    $region61: #{tpu_custom_call.1} parent=1 // pred_fallthru
      _
    // Predicated region
    $region62: #{tpu_custom_call.1} parent=1 // pred_check
      _
    $region63: #{tpu_custom_call.1} parent=1 // pred_check_branch
      %174 = sbr.rel (0) target = $region65
    $region64: #{tpu_custom_call.1} parent=1 // pred_region
      %176 = dma.done [#allocation3], 32
    $region65: #{tpu_custom_call.1} parent=1 // pred_fallthru
      _
    // Predicated region
    $region66: #{tpu_custom_call.1} parent=1 // pred_check
      _
    $region67: #{tpu_custom_call.1} parent=1 // pred_check_branch
      %178 = sbr.rel (0) target = $region69
    $region68: #{tpu_custom_call.1} parent=1 // pred_region
      %180 = dma.done [#allocation10], 16
    $region69: #{tpu_custom_call.1} parent=1 // pred_fallthru
      _
    // Predicated region
    $region70: #{tpu_custom_call.1} parent=1 // pred_check
      _
    $region71: #{tpu_custom_call.1} parent=1 // pred_check_branch
      %182 = sbr.rel (0) target = $region73
    $region72: #{tpu_custom_call.1} parent=1 // pred_region
      %184 = dma.done [#allocation10], 2048
    $region73: #{tpu_custom_call.1} parent=1 // pred_fallthru
      _
    // Predicated region
    $region74: #{tpu_custom_call.1} parent=1 // pred_check
      _
    $region75: #{tpu_custom_call.1} parent=1 // pred_check_branch
      %186 = sbr.rel (0) target = $region77
    $region76: #{tpu_custom_call.1} parent=1 // pred_region
      %188 = dma.done [#allocation13], 32
    $region77: #{tpu_custom_call.1} parent=1 // pred_fallthru
      _
    // Predicated region
    $region78: #{tpu_custom_call.1} parent=1 // pred_check
      _
    $region79: #{tpu_custom_call.1} parent=1 // pred_check_branch
      %190 = sbr.rel (0) target = $region81
    $region80: #{tpu_custom_call.1} parent=1 // pred_region
      %192 = dma.done [#allocation13], 8192
    $region81: #{tpu_custom_call.1} parent=1 // pred_fallthru
      _
    // Predicated region
    $region82: #{tpu_custom_call.1} parent=1 // pred_check
      _
    $region83: #{tpu_custom_call.1} parent=1 // pred_check_branch
      %194 = sbr.rel (0) target = $region85
    $region84: #{tpu_custom_call.1} parent=1 // pred_region
      %196 = dma.done [#allocation16], 64
    $region85: #{tpu_custom_call.1} parent=1 // pred_fallthru
      _
    // Predicated region
    $region86: #{tpu_custom_call.1} parent=1 // pred_check
      _
    $region87: #{tpu_custom_call.1} parent=1 // pred_check_branch
      %198 = sbr.rel (0) target = $region89
    $region88: #{tpu_custom_call.1} parent=1 // pred_region
      %200 = dma.done [#allocation16], 77824
    $region89: #{tpu_custom_call.1} parent=1 // pred_fallthru
      _
    // Predicated region
    $region90: #{tpu_custom_call.1} parent=1 // pred_check
      _
    $region91: #{tpu_custom_call.1} parent=1 // pred_check_branch
      %202 = sbr.rel (0) target = $region93
    $region92: #{tpu_custom_call.1} parent=1 // pred_region
      %204 = dma.done [#allocation19], 16
    $region93: #{tpu_custom_call.1} parent=1 // pred_fallthru
      _
    // Predicated region
    $region94: #{tpu_custom_call.1} parent=1 // pred_check
      _
    $region95: #{tpu_custom_call.1} parent=1 // pred_check_branch
      %206 = sbr.rel (0) target = $region97
    $region96: #{tpu_custom_call.1} parent=1 // pred_region
      %208 = dma.done [#allocation19], 2048
    $region97: #{tpu_custom_call.1} parent=1 // pred_fallthru
      _
    // Predicated region
    $region98: #{tpu_custom_call.1} parent=1 // pred_check
      _
    $region99: #{tpu_custom_call.1} parent=1 // pred_check_branch
      %210 = sbr.rel (0) target = $region101
    $region100: #{tpu_custom_call.1} parent=1 // pred_region
      %212 = dma.done [#allocation22], 16
    $region101: #{tpu_custom_call.1} parent=1 // pred_fallthru
      _
    %213 = sfence
    %v214 = vld [vmem:[%s0] sm:$0xff]
    %v215 = vld [vmem:[%s0 + $0x8] sm:$0xff]
    %v216 = vld [vmem:[%s0 + $0x10] sm:$0xff]
    %v217 = vld [vmem:[%s0 + $0x18] sm:$0xff]
    %v218 = vld [vmem:[%s0 + $0x20] sm:$0xff]
    %v219 = vld [vmem:[%s0 + $0x28] sm:$0xff]
    %v220 = vld [vmem:[%s0 + $0x30] sm:$0xff]
    %v221 = vld [vmem:[%s0 + $0x38] sm:$0xff]
    %v222 = vld [vmem:[%s0 + $0x40] sm:$0xff]
    %v223 = vld [vmem:[%s0 + $0x48] sm:$0xff]
    %v224 = vld [vmem:[%s0 + $0x50] sm:$0xff]
    %v225 = vld [vmem:[%s0 + $0x58] sm:$0xff]
    %v226 = vld [vmem:[%s0 + $0x60] sm:$0xff]
    %v227 = vld [vmem:[%s0 + $0x68] sm:$0xff]
    %v228 = vld [vmem:[%s0 + $0x70] sm:$0xff]
    %v229 = vld [vmem:[%s0 + $0x78] sm:$0xff]
    %v230 = vld [vmem:[%s0 + $0x80] sm:$0xff]
    %v231 = vld [vmem:[%s0 + $0x88] sm:$0xff]
    %v232 = vld [vmem:[%s0 + $0x90] sm:$0xff]
    %s233 = sld [smem:[#allocation2]]
    %v234 = vstv %s233
    %v235 = vmul.f32 %v214, %v234
    %v236 = vmul.f32 %v215, %v234
    %v237 = vmul.f32 %v216, %v234
    %v238 = vmul.f32 %v217, %v234
    %v239 = vmul.f32 %v218, %v234
    %v240 = vmul.f32 %v219, %v234
    %v241 = vmul.f32 %v220, %v234
    %v242 = vmul.f32 %v221, %v234
    %v243 = vmul.f32 %v222, %v234
    %v244 = vmul.f32 %v223, %v234
    %v245 = vmul.f32 %v224, %v234
    %v246 = vmul.f32 %v225, %v234
    %v247 = vmul.f32 %v226, %v234
    %v248 = vmul.f32 %v227, %v234
    %v249 = vmul.f32 %v228, %v234
    %v250 = vmul.f32 %v229, %v234
    %v251 = vmul.f32 %v230, %v234
    %v252 = vmul.f32 %v231, %v234
    %v253 = vmul.f32 %v232, %v234
    %s254 = sld [smem:[#allocation2 + $0x80]]
    %v255 = vstv %s254
    %v256 = vmul.f32 %v214, %v255
    %v257 = vmul.f32 %v215, %v255
    %v258 = vmul.f32 %v216, %v255
    %v259 = vmul.f32 %v217, %v255
    %v260 = vmul.f32 %v218, %v255
    %v261 = vmul.f32 %v219, %v255
    %v262 = vmul.f32 %v220, %v255
    %v263 = vmul.f32 %v221, %v255
    %v264 = vmul.f32 %v222, %v255
    %v265 = vmul.f32 %v223, %v255
    %v266 = vmul.f32 %v224, %v255
    %v267 = vmul.f32 %v225, %v255
    %v268 = vmul.f32 %v226, %v255
    %v269 = vmul.f32 %v227, %v255
    %v270 = vmul.f32 %v228, %v255
    %v271 = vmul.f32 %v229, %v255
    %v272 = vmul.f32 %v230, %v255
    %v273 = vmul.f32 %v231, %v255
    %v274 = vmul.f32 %v232, %v255
    %294 = vrot.lane.b32.xlu0 %v256, 127
    %v295 = vpop.permute.xlu0 %294
    %296 = vrot.lane.b32.xlu0 %v257, 127
    %v297 = vpop.permute.xlu0 %296
    %298 = vrot.lane.b32.xlu0 %v258, 127
    %v299 = vpop.permute.xlu0 %298
    %300 = vrot.lane.b32.xlu0 %v259, 127
    %v301 = vpop.permute.xlu0 %300
    %302 = vrot.lane.b32.xlu0 %v260, 127
    %v303 = vpop.permute.xlu0 %302
    %304 = vrot.lane.b32.xlu0 %v261, 127
    %v305 = vpop.permute.xlu0 %304
    %306 = vrot.lane.b32.xlu0 %v262, 127
    %v307 = vpop.permute.xlu0 %306
    %308 = vrot.lane.b32.xlu0 %v263, 127
    %v309 = vpop.permute.xlu0 %308
    %310 = vrot.lane.b32.xlu0 %v264, 127
    %v311 = vpop.permute.xlu0 %310
    %312 = vrot.lane.b32.xlu0 %v265, 127
    %v313 = vpop.permute.xlu0 %312
    %314 = vrot.lane.b32.xlu0 %v266, 127
    %v315 = vpop.permute.xlu0 %314
    %316 = vrot.lane.b32.xlu0 %v267, 127
    %v317 = vpop.permute.xlu0 %316
    %318 = vrot.lane.b32.xlu0 %v268, 127
    %v319 = vpop.permute.xlu0 %318
    %320 = vrot.lane.b32.xlu0 %v269, 127
    %v321 = vpop.permute.xlu0 %320
    %322 = vrot.lane.b32.xlu0 %v270, 127
    %v323 = vpop.permute.xlu0 %322
    %324 = vrot.lane.b32.xlu0 %v271, 127
    %v325 = vpop.permute.xlu0 %324
    %326 = vrot.lane.b32.xlu0 %v272, 127
    %v327 = vpop.permute.xlu0 %326
    %328 = vrot.lane.b32.xlu0 %v273, 127
    %v329 = vpop.permute.xlu0 %328
    %330 = vrot.lane.b32.xlu0 %v274, 127
    %v331 = vpop.permute.xlu0 %330
    %v351 = vadd.f32 %v235, %v295
    %v352 = vadd.f32 %v236, %v297
    %v353 = vadd.f32 %v237, %v299
    %v354 = vadd.f32 %v238, %v301
    %v355 = vadd.f32 %v239, %v303
    %v356 = vadd.f32 %v240, %v305
    %v357 = vadd.f32 %v241, %v307
    %v358 = vadd.f32 %v242, %v309
    %v359 = vadd.f32 %v243, %v311
    %v360 = vadd.f32 %v244, %v313
    %v361 = vadd.f32 %v245, %v315
    %v362 = vadd.f32 %v246, %v317
    %v363 = vadd.f32 %v247, %v319
    %v364 = vadd.f32 %v248, %v321
    %v365 = vadd.f32 %v249, %v323
    %v366 = vadd.f32 %v250, %v325
    %v367 = vadd.f32 %v251, %v327
    %v368 = vadd.f32 %v252, %v329
    %v369 = vadd.f32 %v253, %v331
    %s370 = sld [smem:[#allocation2 + $0x100]]
    %v371 = vstv %s370
    %v372 = vmul.f32 %v214, %v371
    %v373 = vmul.f32 %v215, %v371
    %v374 = vmul.f32 %v216, %v371
    %v375 = vmul.f32 %v217, %v371
    %v376 = vmul.f32 %v218, %v371
    %v377 = vmul.f32 %v219, %v371
    %v378 = vmul.f32 %v220, %v371
    %v379 = vmul.f32 %v221, %v371
    %v380 = vmul.f32 %v222, %v371
    %v381 = vmul.f32 %v223, %v371
    %v382 = vmul.f32 %v224, %v371
    %v383 = vmul.f32 %v225, %v371
    %v384 = vmul.f32 %v226, %v371
    %v385 = vmul.f32 %v227, %v371
    %v386 = vmul.f32 %v228, %v371
    %v387 = vmul.f32 %v229, %v371
    %v388 = vmul.f32 %v230, %v371
    %v389 = vmul.f32 %v231, %v371
    %v390 = vmul.f32 %v232, %v371
    %410 = vrot.lane.b32.xlu0 %v372, 126
    %v411 = vpop.permute.xlu0 %410
    %412 = vrot.lane.b32.xlu0 %v373, 126
    %v413 = vpop.permute.xlu0 %412
    %414 = vrot.lane.b32.xlu0 %v374, 126
    %v415 = vpop.permute.xlu0 %414
    %416 = vrot.lane.b32.xlu0 %v375, 126
    %v417 = vpop.permute.xlu0 %416
    %418 = vrot.lane.b32.xlu0 %v376, 126
    %v419 = vpop.permute.xlu0 %418
    %420 = vrot.lane.b32.xlu0 %v377, 126
    %v421 = vpop.permute.xlu0 %420
    %422 = vrot.lane.b32.xlu0 %v378, 126
    %v423 = vpop.permute.xlu0 %422
    %424 = vrot.lane.b32.xlu0 %v379, 126
    %v425 = vpop.permute.xlu0 %424
    %426 = vrot.lane.b32.xlu0 %v380, 126
    %v427 = vpop.permute.xlu0 %426
    %428 = vrot.lane.b32.xlu0 %v381, 126
    %v429 = vpop.permute.xlu0 %428
    %430 = vrot.lane.b32.xlu0 %v382, 126
    %v431 = vpop.permute.xlu0 %430
    %432 = vrot.lane.b32.xlu0 %v383, 126
    %v433 = vpop.permute.xlu0 %432
    %434 = vrot.lane.b32.xlu0 %v384, 126
    %v435 = vpop.permute.xlu0 %434
    %436 = vrot.lane.b32.xlu0 %v385, 126
    %v437 = vpop.permute.xlu0 %436
    %438 = vrot.lane.b32.xlu0 %v386, 126
    %v439 = vpop.permute.xlu0 %438
    %440 = vrot.lane.b32.xlu0 %v387, 126
    %v441 = vpop.permute.xlu0 %440
    %442 = vrot.lane.b32.xlu0 %v388, 126
    %v443 = vpop.permute.xlu0 %442
    %444 = vrot.lane.b32.xlu0 %v389, 126
    %v445 = vpop.permute.xlu0 %444
    %446 = vrot.lane.b32.xlu0 %v390, 126
    %v447 = vpop.permute.xlu0 %446
    %v467 = vadd.f32 %v351, %v411
    %v468 = vadd.f32 %v352, %v413
    %v469 = vadd.f32 %v353, %v415
    %v470 = vadd.f32 %v354, %v417
    %v471 = vadd.f32 %v355, %v419
    %v472 = vadd.f32 %v356, %v421
    %v473 = vadd.f32 %v357, %v423
    %v474 = vadd.f32 %v358, %v425
    %v475 = vadd.f32 %v359, %v427
    %v476 = vadd.f32 %v360, %v429
    %v477 = vadd.f32 %v361, %v431
    %v478 = vadd.f32 %v362, %v433
    %v479 = vadd.f32 %v363, %v435
    %v480 = vadd.f32 %v364, %v437
    %v481 = vadd.f32 %v365, %v439
    %v482 = vadd.f32 %v366, %v441
    %v483 = vadd.f32 %v367, %v443
    %v484 = vadd.f32 %v368, %v445
    %v485 = vadd.f32 %v369, %v447
    %s486 = sld [smem:[#allocation2 + $0x180]]
    %v487 = vstv %s486
    %v488 = vmul.f32 %v214, %v487
    %v489 = vmul.f32 %v215, %v487
    %v490 = vmul.f32 %v216, %v487
    %v491 = vmul.f32 %v217, %v487
    %v492 = vmul.f32 %v218, %v487
    %v493 = vmul.f32 %v219, %v487
    %v494 = vmul.f32 %v220, %v487
    %v495 = vmul.f32 %v221, %v487
    %v496 = vmul.f32 %v222, %v487
    %v497 = vmul.f32 %v223, %v487
    %v498 = vmul.f32 %v224, %v487
    %v499 = vmul.f32 %v225, %v487
    %v500 = vmul.f32 %v226, %v487
    %v501 = vmul.f32 %v227, %v487
    %v502 = vmul.f32 %v228, %v487
    %v503 = vmul.f32 %v229, %v487
    %v504 = vmul.f32 %v230, %v487
    %v505 = vmul.f32 %v231, %v487
    %v506 = vmul.f32 %v232, %v487
    %526 = vrot.lane.b32.xlu0 %v488, 125
    %v527 = vpop.permute.xlu0 %526
    %528 = vrot.lane.b32.xlu0 %v489, 125
    %v529 = vpop.permute.xlu0 %528
    %530 = vrot.lane.b32.xlu0 %v490, 125
    %v531 = vpop.permute.xlu0 %530
    %532 = vrot.lane.b32.xlu0 %v491, 125
    %v533 = vpop.permute.xlu0 %532
    %534 = vrot.lane.b32.xlu0 %v492, 125
    %v535 = vpop.permute.xlu0 %534
    %536 = vrot.lane.b32.xlu0 %v493, 125
    %v537 = vpop.permute.xlu0 %536
    %538 = vrot.lane.b32.xlu0 %v494, 125
    %v539 = vpop.permute.xlu0 %538
    %540 = vrot.lane.b32.xlu0 %v495, 125
    %v541 = vpop.permute.xlu0 %540
    %542 = vrot.lane.b32.xlu0 %v496, 125
    %v543 = vpop.permute.xlu0 %542
    %544 = vrot.lane.b32.xlu0 %v497, 125
    %v545 = vpop.permute.xlu0 %544
    %546 = vrot.lane.b32.xlu0 %v498, 125
    %v547 = vpop.permute.xlu0 %546
    %548 = vrot.lane.b32.xlu0 %v499, 125
    %v549 = vpop.permute.xlu0 %548
    %550 = vrot.lane.b32.xlu0 %v500, 125
    %v551 = vpop.permute.xlu0 %550
    %552 = vrot.lane.b32.xlu0 %v501, 125
    %v553 = vpop.permute.xlu0 %552
    %554 = vrot.lane.b32.xlu0 %v502, 125
    %v555 = vpop.permute.xlu0 %554
    %556 = vrot.lane.b32.xlu0 %v503, 125
    %v557 = vpop.permute.xlu0 %556
    %558 = vrot.lane.b32.xlu0 %v504, 125
    %v559 = vpop.permute.xlu0 %558
    %560 = vrot.lane.b32.xlu0 %v505, 125
    %v561 = vpop.permute.xlu0 %560
    %562 = vrot.lane.b32.xlu0 %v506, 125
    %v563 = vpop.permute.xlu0 %562
    %v583 = vadd.f32 %v467, %v527
    %v584 = vadd.f32 %v468, %v529
    %v585 = vadd.f32 %v469, %v531
    %v586 = vadd.f32 %v470, %v533
    %v587 = vadd.f32 %v471, %v535
    %v588 = vadd.f32 %v472, %v537
    %v589 = vadd.f32 %v473, %v539
    %v590 = vadd.f32 %v474, %v541
    %v591 = vadd.f32 %v475, %v543
    %v592 = vadd.f32 %v476, %v545
    %v593 = vadd.f32 %v477, %v547
    %v594 = vadd.f32 %v478, %v549
    %v595 = vadd.f32 %v479, %v551
    %v596 = vadd.f32 %v480, %v553
    %v597 = vadd.f32 %v481, %v555
    %v598 = vadd.f32 %v482, %v557
    %v599 = vadd.f32 %v483, %v559
    %v600 = vadd.f32 %v484, %v561
    %v601 = vadd.f32 %v485, %v563
    %s602 = sld [smem:[#allocation7]]
    %v603 = vstv %s602
    %v604 = vadd.f32 %v583, %v603
    %v605 = vadd.f32 %v584, %v603
    %v606 = vadd.f32 %v585, %v603
    %v607 = vadd.f32 %v586, %v603
    %v608 = vadd.f32 %v587, %v603
    %v609 = vadd.f32 %v588, %v603
    %v610 = vadd.f32 %v589, %v603
    %v611 = vadd.f32 %v590, %v603
    %v612 = vadd.f32 %v591, %v603
    %v613 = vadd.f32 %v592, %v603
    %v614 = vadd.f32 %v593, %v603
    %v615 = vadd.f32 %v594, %v603
    %v616 = vadd.f32 %v595, %v603
    %v617 = vadd.f32 %v596, %v603
    %v618 = vadd.f32 %v597, %v603
    %v619 = vadd.f32 %v598, %v603
    %v620 = vadd.f32 %v599, %v603
    %v621 = vadd.f32 %v600, %v603
    %v622 = vadd.f32 %v601, %v603
    %v623 = vmax.f32 %v604, 0.0
    %v624 = vmax.f32 %v605, 0.0
    %v625 = vmax.f32 %v606, 0.0
    %v626 = vmax.f32 %v607, 0.0
    %v627 = vmax.f32 %v608, 0.0
    %v628 = vmax.f32 %v609, 0.0
    %v629 = vmax.f32 %v610, 0.0
    %v630 = vmax.f32 %v611, 0.0
    %v631 = vmax.f32 %v612, 0.0
    %v632 = vmax.f32 %v613, 0.0
    %v633 = vmax.f32 %v614, 0.0
    %v634 = vmax.f32 %v615, 0.0
    %v635 = vmax.f32 %v616, 0.0
    %v636 = vmax.f32 %v617, 0.0
    %v637 = vmax.f32 %v618, 0.0
    %v638 = vmax.f32 %v619, 0.0
    %v639 = vmax.f32 %v620, 0.0
    %v640 = vmax.f32 %v621, 0.0
    %v641 = vmax.f32 %v622, 0.0
    %s642 = sld [smem:[#allocation2 + $0x1]]
    %v643 = vstv %s642
    %v644 = vmul.f32 %v214, %v643
    %v645 = vmul.f32 %v215, %v643
    %v646 = vmul.f32 %v216, %v643
    %v647 = vmul.f32 %v217, %v643
    %v648 = vmul.f32 %v218, %v643
    %v649 = vmul.f32 %v219, %v643
    %v650 = vmul.f32 %v220, %v643
    %v651 = vmul.f32 %v221, %v643
    %v652 = vmul.f32 %v222, %v643
    %v653 = vmul.f32 %v223, %v643
    %v654 = vmul.f32 %v224, %v643
    %v655 = vmul.f32 %v225, %v643
    %v656 = vmul.f32 %v226, %v643
    %v657 = vmul.f32 %v227, %v643
    %v658 = vmul.f32 %v228, %v643
    %v659 = vmul.f32 %v229, %v643
    %v660 = vmul.f32 %v230, %v643
    %v661 = vmul.f32 %v231, %v643
    %v662 = vmul.f32 %v232, %v643
    %s663 = sld [smem:[#allocation2 + $0x81]]
    %v664 = vstv %s663
    %v665 = vmul.f32 %v214, %v664
    %v666 = vmul.f32 %v215, %v664
    %v667 = vmul.f32 %v216, %v664
    %v668 = vmul.f32 %v217, %v664
    %v669 = vmul.f32 %v218, %v664
    %v670 = vmul.f32 %v219, %v664
    %v671 = vmul.f32 %v220, %v664
    %v672 = vmul.f32 %v221, %v664
    %v673 = vmul.f32 %v222, %v664
    %v674 = vmul.f32 %v223, %v664
    %v675 = vmul.f32 %v224, %v664
    %v676 = vmul.f32 %v225, %v664
    %v677 = vmul.f32 %v226, %v664
    %v678 = vmul.f32 %v227, %v664
    %v679 = vmul.f32 %v228, %v664
    %v680 = vmul.f32 %v229, %v664
    %v681 = vmul.f32 %v230, %v664
    %v682 = vmul.f32 %v231, %v664
    %v683 = vmul.f32 %v232, %v664
    %703 = vrot.lane.b32.xlu0 %v665, 127
    %v704 = vpop.permute.xlu0 %703
    %705 = vrot.lane.b32.xlu0 %v666, 127
    %v706 = vpop.permute.xlu0 %705
    %707 = vrot.lane.b32.xlu0 %v667, 127
    %v708 = vpop.permute.xlu0 %707
    %709 = vrot.lane.b32.xlu0 %v668, 127
    %v710 = vpop.permute.xlu0 %709
    %711 = vrot.lane.b32.xlu0 %v669, 127
    %v712 = vpop.permute.xlu0 %711
    %713 = vrot.lane.b32.xlu0 %v670, 127
    %v714 = vpop.permute.xlu0 %713
    %715 = vrot.lane.b32.xlu0 %v671, 127
    %v716 = vpop.permute.xlu0 %715
    %717 = vrot.lane.b32.xlu0 %v672, 127
    %v718 = vpop.permute.xlu0 %717
    %719 = vrot.lane.b32.xlu0 %v673, 127
    %v720 = vpop.permute.xlu0 %719
    %721 = vrot.lane.b32.xlu0 %v674, 127
    %v722 = vpop.permute.xlu0 %721
    %723 = vrot.lane.b32.xlu0 %v675, 127
    %v724 = vpop.permute.xlu0 %723
    %725 = vrot.lane.b32.xlu0 %v676, 127
    %v726 = vpop.permute.xlu0 %725
    %727 = vrot.lane.b32.xlu0 %v677, 127
    %v728 = vpop.permute.xlu0 %727
    %729 = vrot.lane.b32.xlu0 %v678, 127
    %v730 = vpop.permute.xlu0 %729
    %731 = vrot.lane.b32.xlu0 %v679, 127
    %v732 = vpop.permute.xlu0 %731
    %733 = vrot.lane.b32.xlu0 %v680, 127
    %v734 = vpop.permute.xlu0 %733
    %735 = vrot.lane.b32.xlu0 %v681, 127
    %v736 = vpop.permute.xlu0 %735
    %737 = vrot.lane.b32.xlu0 %v682, 127
    %v738 = vpop.permute.xlu0 %737
    %739 = vrot.lane.b32.xlu0 %v683, 127
    %v740 = vpop.permute.xlu0 %739
    %v760 = vadd.f32 %v644, %v704
    %v761 = vadd.f32 %v645, %v706
    %v762 = vadd.f32 %v646, %v708
    %v763 = vadd.f32 %v647, %v710
    %v764 = vadd.f32 %v648, %v712
    %v765 = vadd.f32 %v649, %v714
    %v766 = vadd.f32 %v650, %v716
    %v767 = vadd.f32 %v651, %v718
    %v768 = vadd.f32 %v652, %v720
    %v769 = vadd.f32 %v653, %v722
    %v770 = vadd.f32 %v654, %v724
    %v771 = vadd.f32 %v655, %v726
    %v772 = vadd.f32 %v656, %v728
    %v773 = vadd.f32 %v657, %v730
    %v774 = vadd.f32 %v658, %v732
    %v775 = vadd.f32 %v659, %v734
    %v776 = vadd.f32 %v660, %v736
    %v777 = vadd.f32 %v661, %v738
    %v778 = vadd.f32 %v662, %v740
    %s779 = sld [smem:[#allocation2 + $0x101]]
    %v780 = vstv %s779
    %v781 = vmul.f32 %v214, %v780
    %v782 = vmul.f32 %v215, %v780
    %v783 = vmul.f32 %v216, %v780
    %v784 = vmul.f32 %v217, %v780
    %v785 = vmul.f32 %v218, %v780
    %v786 = vmul.f32 %v219, %v780
    %v787 = vmul.f32 %v220, %v780
    %v788 = vmul.f32 %v221, %v780
    %v789 = vmul.f32 %v222, %v780
    %v790 = vmul.f32 %v223, %v780
    %v791 = vmul.f32 %v224, %v780
    %v792 = vmul.f32 %v225, %v780
    %v793 = vmul.f32 %v226, %v780
    %v794 = vmul.f32 %v227, %v780
    %v795 = vmul.f32 %v228, %v780
    %v796 = vmul.f32 %v229, %v780
    %v797 = vmul.f32 %v230, %v780
    %v798 = vmul.f32 %v231, %v780
    %v799 = vmul.f32 %v232, %v780
    %819 = vrot.lane.b32.xlu0 %v781, 126
    %v820 = vpop.permute.xlu0 %819
    %821 = vrot.lane.b32.xlu0 %v782, 126
    %v822 = vpop.permute.xlu0 %821
    %823 = vrot.lane.b32.xlu0 %v783, 126
    %v824 = vpop.permute.xlu0 %823
    %825 = vrot.lane.b32.xlu0 %v784, 126
    %v826 = vpop.permute.xlu0 %825
    %827 = vrot.lane.b32.xlu0 %v785, 126
    %v828 = vpop.permute.xlu0 %827
    %829 = vrot.lane.b32.xlu0 %v786, 126
    %v830 = vpop.permute.xlu0 %829
    %831 = vrot.lane.b32.xlu0 %v787, 126
    %v832 = vpop.permute.xlu0 %831
    %833 = vrot.lane.b32.xlu0 %v788, 126
    %v834 = vpop.permute.xlu0 %833
    %835 = vrot.lane.b32.xlu0 %v789, 126
    %v836 = vpop.permute.xlu0 %835
    %837 = vrot.lane.b32.xlu0 %v790, 126
    %v838 = vpop.permute.xlu0 %837
    %839 = vrot.lane.b32.xlu0 %v791, 126
    %v840 = vpop.permute.xlu0 %839
    %841 = vrot.lane.b32.xlu0 %v792, 126
    %v842 = vpop.permute.xlu0 %841
    %843 = vrot.lane.b32.xlu0 %v793, 126
    %v844 = vpop.permute.xlu0 %843
    %845 = vrot.lane.b32.xlu0 %v794, 126
    %v846 = vpop.permute.xlu0 %845
    %847 = vrot.lane.b32.xlu0 %v795, 126
    %v848 = vpop.permute.xlu0 %847
    %849 = vrot.lane.b32.xlu0 %v796, 126
    %v850 = vpop.permute.xlu0 %849
    %851 = vrot.lane.b32.xlu0 %v797, 126
    %v852 = vpop.permute.xlu0 %851
    %853 = vrot.lane.b32.xlu0 %v798, 126
    %v854 = vpop.permute.xlu0 %853
    %855 = vrot.lane.b32.xlu0 %v799, 126
    %v856 = vpop.permute.xlu0 %855
    %v876 = vadd.f32 %v760, %v820
    %v877 = vadd.f32 %v761, %v822
    %v878 = vadd.f32 %v762, %v824
    %v879 = vadd.f32 %v763, %v826
    %v880 = vadd.f32 %v764, %v828
    %v881 = vadd.f32 %v765, %v830
    %v882 = vadd.f32 %v766, %v832
    %v883 = vadd.f32 %v767, %v834
    %v884 = vadd.f32 %v768, %v836
    %v885 = vadd.f32 %v769, %v838
    %v886 = vadd.f32 %v770, %v840
    %v887 = vadd.f32 %v771, %v842
    %v888 = vadd.f32 %v772, %v844
    %v889 = vadd.f32 %v773, %v846
    %v890 = vadd.f32 %v774, %v848
    %v891 = vadd.f32 %v775, %v850
    %v892 = vadd.f32 %v776, %v852
    %v893 = vadd.f32 %v777, %v854
    %v894 = vadd.f32 %v778, %v856
    %s895 = sld [smem:[#allocation2 + $0x181]]
    %v896 = vstv %s895
    %v897 = vmul.f32 %v214, %v896
    %v898 = vmul.f32 %v215, %v896
    %v899 = vmul.f32 %v216, %v896
    %v900 = vmul.f32 %v217, %v896
    %v901 = vmul.f32 %v218, %v896
    %v902 = vmul.f32 %v219, %v896
    %v903 = vmul.f32 %v220, %v896
    %v904 = vmul.f32 %v221, %v896
    %v905 = vmul.f32 %v222, %v896
    %v906 = vmul.f32 %v223, %v896
    %v907 = vmul.f32 %v224, %v896
    %v908 = vmul.f32 %v225, %v896
    %v909 = vmul.f32 %v226, %v896
    %v910 = vmul.f32 %v227, %v896
    %v911 = vmul.f32 %v228, %v896
    %v912 = vmul.f32 %v229, %v896
    %v913 = vmul.f32 %v230, %v896
    %v914 = vmul.f32 %v231, %v896
    %v915 = vmul.f32 %v232, %v896
    %935 = vrot.lane.b32.xlu0 %v897, 125
    %v936 = vpop.permute.xlu0 %935
    %937 = vrot.lane.b32.xlu0 %v898, 125
    %v938 = vpop.permute.xlu0 %937
    %939 = vrot.lane.b32.xlu0 %v899, 125
    %v940 = vpop.permute.xlu0 %939
    %941 = vrot.lane.b32.xlu0 %v900, 125
    %v942 = vpop.permute.xlu0 %941
    %943 = vrot.lane.b32.xlu0 %v901, 125
    %v944 = vpop.permute.xlu0 %943
    %945 = vrot.lane.b32.xlu0 %v902, 125
    %v946 = vpop.permute.xlu0 %945
    %947 = vrot.lane.b32.xlu0 %v903, 125
    %v948 = vpop.permute.xlu0 %947
    %949 = vrot.lane.b32.xlu0 %v904, 125
    %v950 = vpop.permute.xlu0 %949
    %951 = vrot.lane.b32.xlu0 %v905, 125
    %v952 = vpop.permute.xlu0 %951
    %953 = vrot.lane.b32.xlu0 %v906, 125
    %v954 = vpop.permute.xlu0 %953
    %955 = vrot.lane.b32.xlu0 %v907, 125
    %v956 = vpop.permute.xlu0 %955
    %957 = vrot.lane.b32.xlu0 %v908, 125
    %v958 = vpop.permute.xlu0 %957
    %959 = vrot.lane.b32.xlu0 %v909, 125
    %v960 = vpop.permute.xlu0 %959
    %961 = vrot.lane.b32.xlu0 %v910, 125
    %v962 = vpop.permute.xlu0 %961
    %963 = vrot.lane.b32.xlu0 %v911, 125
    %v964 = vpop.permute.xlu0 %963
    %965 = vrot.lane.b32.xlu0 %v912, 125
    %v966 = vpop.permute.xlu0 %965
    %967 = vrot.lane.b32.xlu0 %v913, 125
    %v968 = vpop.permute.xlu0 %967
    %969 = vrot.lane.b32.xlu0 %v914, 125
    %v970 = vpop.permute.xlu0 %969
    %971 = vrot.lane.b32.xlu0 %v915, 125
    %v972 = vpop.permute.xlu0 %971
    %v992 = vadd.f32 %v876, %v936
    %v993 = vadd.f32 %v877, %v938
    %v994 = vadd.f32 %v878, %v940
    %v995 = vadd.f32 %v879, %v942
    %v996 = vadd.f32 %v880, %v944
    %v997 = vadd.f32 %v881, %v946
    %v998 = vadd.f32 %v882, %v948
    %v999 = vadd.f32 %v883, %v950
    %v1000 = vadd.f32 %v884, %v952
    %v1001 = vadd.f32 %v885, %v954
    %v1002 = vadd.f32 %v886, %v956
    %v1003 = vadd.f32 %v887, %v958
    %v1004 = vadd.f32 %v888, %v960
    %v1005 = vadd.f32 %v889, %v962
    %v1006 = vadd.f32 %v890, %v964
    %v1007 = vadd.f32 %v891, %v966
    %v1008 = vadd.f32 %v892, %v968
    %v1009 = vadd.f32 %v893, %v970
    %v1010 = vadd.f32 %v894, %v972
    %s1011 = sld [smem:[#allocation7 + $0x1]]
    %v1012 = vstv %s1011
    %v1013 = vadd.f32 %v992, %v1012
    %v1014 = vadd.f32 %v993, %v1012
    %v1015 = vadd.f32 %v994, %v1012
    %v1016 = vadd.f32 %v995, %v1012
    %v1017 = vadd.f32 %v996, %v1012
    %v1018 = vadd.f32 %v997, %v1012
    %v1019 = vadd.f32 %v998, %v1012
    %v1020 = vadd.f32 %v999, %v1012
    %v1021 = vadd.f32 %v1000, %v1012
    %v1022 = vadd.f32 %v1001, %v1012
    %v1023 = vadd.f32 %v1002, %v1012
    %v1024 = vadd.f32 %v1003, %v1012
    %v1025 = vadd.f32 %v1004, %v1012
    %v1026 = vadd.f32 %v1005, %v1012
    %v1027 = vadd.f32 %v1006, %v1012
    %v1028 = vadd.f32 %v1007, %v1012
    %v1029 = vadd.f32 %v1008, %v1012
    %v1030 = vadd.f32 %v1009, %v1012
    %v1031 = vadd.f32 %v1010, %v1012
    %v1032 = vmax.f32 %v1013, 0.0
    %v1033 = vmax.f32 %v1014, 0.0
    %v1034 = vmax.f32 %v1015, 0.0
    %v1035 = vmax.f32 %v1016, 0.0
    %v1036 = vmax.f32 %v1017, 0.0
    %v1037 = vmax.f32 %v1018, 0.0
    %v1038 = vmax.f32 %v1019, 0.0
    %v1039 = vmax.f32 %v1020, 0.0
    %v1040 = vmax.f32 %v1021, 0.0
    %v1041 = vmax.f32 %v1022, 0.0
    %v1042 = vmax.f32 %v1023, 0.0
    %v1043 = vmax.f32 %v1024, 0.0
    %v1044 = vmax.f32 %v1025, 0.0
    %v1045 = vmax.f32 %v1026, 0.0
    %v1046 = vmax.f32 %v1027, 0.0
    %v1047 = vmax.f32 %v1028, 0.0
    %v1048 = vmax.f32 %v1029, 0.0
    %v1049 = vmax.f32 %v1030, 0.0
    %v1050 = vmax.f32 %v1031, 0.0
    %v1051 = vld [vmem:[#allocation8] sm:$0x1]
    %1053 = vset.pattern.permute.xlu0 0
    %1054 = vperm.xlu0 %1053, %v623
    %v1055 = vpop.permute.xlu0 %1054
    %1058 = vset.pattern.permute.xlu0 0
    %1059 = vperm.xlu0 %1058, %v624
    %v1060 = vpop.permute.xlu0 %1059
    %1063 = vset.pattern.permute.xlu0 0
    %1064 = vperm.xlu0 %1063, %v625
    %v1065 = vpop.permute.xlu0 %1064
    %1068 = vset.pattern.permute.xlu0 0
    %1069 = vperm.xlu0 %1068, %v626
    %v1070 = vpop.permute.xlu0 %1069
    %1073 = vset.pattern.permute.xlu0 0
    %1074 = vperm.xlu0 %1073, %v627
    %v1075 = vpop.permute.xlu0 %1074
    %1078 = vset.pattern.permute.xlu0 0
    %1079 = vperm.xlu0 %1078, %v628
    %v1080 = vpop.permute.xlu0 %1079
    %1083 = vset.pattern.permute.xlu0 0
    %1084 = vperm.xlu0 %1083, %v629
    %v1085 = vpop.permute.xlu0 %1084
    %1088 = vset.pattern.permute.xlu0 0
    %1089 = vperm.xlu0 %1088, %v630
    %v1090 = vpop.permute.xlu0 %1089
    %1093 = vset.pattern.permute.xlu0 0
    %1094 = vperm.xlu0 %1093, %v631
    %v1095 = vpop.permute.xlu0 %1094
    %1098 = vset.pattern.permute.xlu0 0
    %1099 = vperm.xlu0 %1098, %v632
    %v1100 = vpop.permute.xlu0 %1099
    %1103 = vset.pattern.permute.xlu0 0
    %1104 = vperm.xlu0 %1103, %v633
    %v1105 = vpop.permute.xlu0 %1104
    %1108 = vset.pattern.permute.xlu0 0
    %1109 = vperm.xlu0 %1108, %v634
    %v1110 = vpop.permute.xlu0 %1109
    %1113 = vset.pattern.permute.xlu0 0
    %1114 = vperm.xlu0 %1113, %v635
    %v1115 = vpop.permute.xlu0 %1114
    %1118 = vset.pattern.permute.xlu0 0
    %1119 = vperm.xlu0 %1118, %v636
    %v1120 = vpop.permute.xlu0 %1119
    %1123 = vset.pattern.permute.xlu0 0
    %1124 = vperm.xlu0 %1123, %v637
    %v1125 = vpop.permute.xlu0 %1124
    %1128 = vset.pattern.permute.xlu0 0
    %1129 = vperm.xlu0 %1128, %v638
    %v1130 = vpop.permute.xlu0 %1129
    %1133 = vset.pattern.permute.xlu0 0
    %1134 = vperm.xlu0 %1133, %v639
    %v1135 = vpop.permute.xlu0 %1134
    %1138 = vset.pattern.permute.xlu0 0
    %1139 = vperm.xlu0 %1138, %v640
    %v1140 = vpop.permute.xlu0 %1139
    %1143 = vset.pattern.permute.xlu0 0
    %1144 = vperm.xlu0 %1143, %v641
    %v1145 = vpop.permute.xlu0 %1144
    %v1147 = vperm.slane %v1051, 0
    %v1148 = vmul.f32 %v1055, %v1147
    %v1149 = vmul.f32 %v1060, %v1147
    %v1150 = vmul.f32 %v1065, %v1147
    %v1151 = vmul.f32 %v1070, %v1147
    %v1152 = vmul.f32 %v1075, %v1147
    %v1153 = vmul.f32 %v1080, %v1147
    %v1154 = vmul.f32 %v1085, %v1147
    %v1155 = vmul.f32 %v1090, %v1147
    %v1156 = vmul.f32 %v1095, %v1147
    %v1157 = vmul.f32 %v1100, %v1147
    %v1158 = vmul.f32 %v1105, %v1147
    %v1159 = vmul.f32 %v1110, %v1147
    %v1160 = vmul.f32 %v1115, %v1147
    %v1161 = vmul.f32 %v1120, %v1147
    %v1162 = vmul.f32 %v1125, %v1147
    %v1163 = vmul.f32 %v1130, %v1147
    %v1164 = vmul.f32 %v1135, %v1147
    %v1165 = vmul.f32 %v1140, %v1147
    %v1166 = vmul.f32 %v1145, %v1147
    %v1167 = vld [vmem:[#allocation8 + $0x1] sm:$0x1]
    %1169 = vset.pattern.permute.xlu0 0
    %1170 = vperm.xlu0 %1169, %v1032
    %v1171 = vpop.permute.xlu0 %1170
    %1174 = vset.pattern.permute.xlu0 0
    %1175 = vperm.xlu0 %1174, %v1033
    %v1176 = vpop.permute.xlu0 %1175
    %1179 = vset.pattern.permute.xlu0 0
    %1180 = vperm.xlu0 %1179, %v1034
    %v1181 = vpop.permute.xlu0 %1180
    %1184 = vset.pattern.permute.xlu0 0
    %1185 = vperm.xlu0 %1184, %v1035
    %v1186 = vpop.permute.xlu0 %1185
    %1189 = vset.pattern.permute.xlu0 0
    %1190 = vperm.xlu0 %1189, %v1036
    %v1191 = vpop.permute.xlu0 %1190
    %1194 = vset.pattern.permute.xlu0 0
    %1195 = vperm.xlu0 %1194, %v1037
    %v1196 = vpop.permute.xlu0 %1195
    %1199 = vset.pattern.permute.xlu0 0
    %1200 = vperm.xlu0 %1199, %v1038
    %v1201 = vpop.permute.xlu0 %1200
    %1204 = vset.pattern.permute.xlu0 0
    %1205 = vperm.xlu0 %1204, %v1039
    %v1206 = vpop.permute.xlu0 %1205
    %1209 = vset.pattern.permute.xlu0 0
    %1210 = vperm.xlu0 %1209, %v1040
    %v1211 = vpop.permute.xlu0 %1210
    %1214 = vset.pattern.permute.xlu0 0
    %1215 = vperm.xlu0 %1214, %v1041
    %v1216 = vpop.permute.xlu0 %1215
    %1219 = vset.pattern.permute.xlu0 0
    %1220 = vperm.xlu0 %1219, %v1042
    %v1221 = vpop.permute.xlu0 %1220
    %1224 = vset.pattern.permute.xlu0 0
    %1225 = vperm.xlu0 %1224, %v1043
    %v1226 = vpop.permute.xlu0 %1225
    %1229 = vset.pattern.permute.xlu0 0
    %1230 = vperm.xlu0 %1229, %v1044
    %v1231 = vpop.permute.xlu0 %1230
    %1234 = vset.pattern.permute.xlu0 0
    %1235 = vperm.xlu0 %1234, %v1045
    %v1236 = vpop.permute.xlu0 %1235
    %1239 = vset.pattern.permute.xlu0 0
    %1240 = vperm.xlu0 %1239, %v1046
    %v1241 = vpop.permute.xlu0 %1240
    %1244 = vset.pattern.permute.xlu0 0
    %1245 = vperm.xlu0 %1244, %v1047
    %v1246 = vpop.permute.xlu0 %1245
    %1249 = vset.pattern.permute.xlu0 0
    %1250 = vperm.xlu0 %1249, %v1048
    %v1251 = vpop.permute.xlu0 %1250
    %1254 = vset.pattern.permute.xlu0 0
    %1255 = vperm.xlu0 %1254, %v1049
    %v1256 = vpop.permute.xlu0 %1255
    %1259 = vset.pattern.permute.xlu0 0
    %1260 = vperm.xlu0 %1259, %v1050
    %v1261 = vpop.permute.xlu0 %1260
    %v1263 = vperm.slane %v1167, 0
    %v1264 = vmul.f32 %v1171, %v1263
    %v1265 = vmul.f32 %v1176, %v1263
    %v1266 = vmul.f32 %v1181, %v1263
    %v1267 = vmul.f32 %v1186, %v1263
    %v1268 = vmul.f32 %v1191, %v1263
    %v1269 = vmul.f32 %v1196, %v1263
    %v1270 = vmul.f32 %v1201, %v1263
    %v1271 = vmul.f32 %v1206, %v1263
    %v1272 = vmul.f32 %v1211, %v1263
    %v1273 = vmul.f32 %v1216, %v1263
    %v1274 = vmul.f32 %v1221, %v1263
    %v1275 = vmul.f32 %v1226, %v1263
    %v1276 = vmul.f32 %v1231, %v1263
    %v1277 = vmul.f32 %v1236, %v1263
    %v1278 = vmul.f32 %v1241, %v1263
    %v1279 = vmul.f32 %v1246, %v1263
    %v1280 = vmul.f32 %v1251, %v1263
    %v1281 = vmul.f32 %v1256, %v1263
    %v1282 = vmul.f32 %v1261, %v1263
    %v1283 = vadd.f32 %v1148, %v1264
    %v1284 = vadd.f32 %v1149, %v1265
    %v1285 = vadd.f32 %v1150, %v1266
    %v1286 = vadd.f32 %v1151, %v1267
    %v1287 = vadd.f32 %v1152, %v1268
    %v1288 = vadd.f32 %v1153, %v1269
    %v1289 = vadd.f32 %v1154, %v1270
    %v1290 = vadd.f32 %v1155, %v1271
    %v1291 = vadd.f32 %v1156, %v1272
    %v1292 = vadd.f32 %v1157, %v1273
    %v1293 = vadd.f32 %v1158, %v1274
    %v1294 = vadd.f32 %v1159, %v1275
    %v1295 = vadd.f32 %v1160, %v1276
    %v1296 = vadd.f32 %v1161, %v1277
    %v1297 = vadd.f32 %v1162, %v1278
    %v1298 = vadd.f32 %v1163, %v1279
    %v1299 = vadd.f32 %v1164, %v1280
    %v1300 = vadd.f32 %v1165, %v1281
    %v1301 = vadd.f32 %v1166, %v1282
    %v1302 = vld [vmem:[#allocation9] sm:$0x1]
    %v1304 = vperm.slane %v1302, 0
    %v1306 = vadd.f32 %v1283, %v1304
    %v1307 = vadd.f32 %v1284, %v1304
    %v1308 = vadd.f32 %v1285, %v1304
    %v1309 = vadd.f32 %v1286, %v1304
    %v1310 = vadd.f32 %v1287, %v1304
    %v1311 = vadd.f32 %v1288, %v1304
    %v1312 = vadd.f32 %v1289, %v1304
    %v1313 = vadd.f32 %v1290, %v1304
    %v1314 = vadd.f32 %v1291, %v1304
    %v1315 = vadd.f32 %v1292, %v1304
    %v1316 = vadd.f32 %v1293, %v1304
    %v1317 = vadd.f32 %v1294, %v1304
    %v1318 = vadd.f32 %v1295, %v1304
    %v1319 = vadd.f32 %v1296, %v1304
    %v1320 = vadd.f32 %v1297, %v1304
    %v1321 = vadd.f32 %v1298, %v1304
    %v1322 = vadd.f32 %v1299, %v1304
    %v1323 = vadd.f32 %v1300, %v1304
    %v1324 = vadd.f32 %v1301, %v1304
    %v1325 = vmax.f32 %v1306, 0.0
    %v1326 = vmax.f32 %v1307, 0.0
    %v1327 = vmax.f32 %v1308, 0.0
    %v1328 = vmax.f32 %v1309, 0.0
    %v1329 = vmax.f32 %v1310, 0.0
    %v1330 = vmax.f32 %v1311, 0.0
    %v1331 = vmax.f32 %v1312, 0.0
    %v1332 = vmax.f32 %v1313, 0.0
    %v1333 = vmax.f32 %v1314, 0.0
    %v1334 = vmax.f32 %v1315, 0.0
    %v1335 = vmax.f32 %v1316, 0.0
    %v1336 = vmax.f32 %v1317, 0.0
    %v1337 = vmax.f32 %v1318, 0.0
    %v1338 = vmax.f32 %v1319, 0.0
    %v1339 = vmax.f32 %v1320, 0.0
    %v1340 = vmax.f32 %v1321, 0.0
    %v1341 = vmax.f32 %v1322, 0.0
    %v1342 = vmax.f32 %v1323, 0.0
    %v1343 = vmax.f32 %v1324, 0.0
    %v1344 = vpack.c.bf16 %v1326, %v1325
    %v1345 = vpack.c.bf16 %v1328, %v1327
    %v1346 = vpack.c.bf16 %v1330, %v1329
    %v1347 = vpack.c.bf16 %v1332, %v1331
    %v1348 = vpack.c.bf16 %v1334, %v1333
    %v1349 = vpack.c.bf16 %v1336, %v1335
    %v1350 = vpack.c.bf16 %v1338, %v1337
    %v1351 = vpack.c.bf16 %v1340, %v1339
    %v1352 = vpack.c.bf16 %v1342, %v1341
    %v1353 = vpack.c.bf16 %v1343, %v1343
    %v1354 = vld [vmem:[#allocation11] sm:$0xff]
    %v1355 = vld [vmem:[#allocation11 + $0x8] sm:$0xff]
    %v1356 = vld [vmem:[#allocation11 + $0x10] sm:$0xff]
    %v1357 = vld [vmem:[#allocation11 + $0x18] sm:$0xff]
    %v1358 = vld [vmem:[#allocation11 + $0x20] sm:$0xff]
    %v1359 = vld [vmem:[#allocation11 + $0x28] sm:$0xff]
    %v1360 = vld [vmem:[#allocation11 + $0x30] sm:$0xff]
    %v1361 = vld [vmem:[#allocation11 + $0x38] sm:$0xff]
    %v1362 = vld [vmem:[#allocation11 + $0x40] sm:$0xff]
    %v1363 = vld [vmem:[#allocation11 + $0x48] sm:$0xff]
    %v1364 = vld [vmem:[#allocation11 + $0x50] sm:$0xff]
    %v1365 = vld [vmem:[#allocation11 + $0x58] sm:$0xff]
    %v1366 = vld [vmem:[#allocation11 + $0x60] sm:$0xff]
    %v1367 = vld [vmem:[#allocation11 + $0x68] sm:$0xff]
    %v1368 = vld [vmem:[#allocation11 + $0x70] sm:$0xff]
    %v1369 = vld [vmem:[#allocation11 + $0x78] sm:$0xff]
    %v1370 = vld [vmem:[#allocation12] sm:$0x3]
    %v1372 = vperm.slane %v1370, 0
    %v1373 = vperm.slane %v1370, 1
    %v1392 = vunpack.c.l.b16 %v1354
    %v1393 = vunpack.c.h.b16 %v1354
    %v1394 = vunpack.c.l.b16 %v1355
    %v1395 = vunpack.c.h.b16 %v1355
    %v1396 = vunpack.c.l.b16 %v1356
    %v1397 = vunpack.c.h.b16 %v1356
    %v1398 = vunpack.c.l.b16 %v1357
    %v1399 = vunpack.c.h.b16 %v1357
    %v1400 = vunpack.c.l.b16 %v1358
    %v1401 = vunpack.c.h.b16 %v1358
    %v1402 = vunpack.c.l.b16 %v1359
    %v1403 = vunpack.c.h.b16 %v1359
    %v1404 = vunpack.c.l.b16 %v1360
    %v1405 = vunpack.c.h.b16 %v1360
    %v1406 = vunpack.c.l.b16 %v1361
    %v1407 = vunpack.c.h.b16 %v1361
    %v1408 = vunpack.c.l.b16 %v1362
    %v1409 = vunpack.c.h.b16 %v1362
    %v1410 = vunpack.c.l.b16 %v1363
    %v1411 = vunpack.c.h.b16 %v1363
    %v1412 = vunpack.c.l.b16 %v1364
    %v1413 = vunpack.c.h.b16 %v1364
    %v1414 = vunpack.c.l.b16 %v1365
    %v1415 = vunpack.c.h.b16 %v1365
    %v1416 = vunpack.c.l.b16 %v1366
    %v1417 = vunpack.c.h.b16 %v1366
    %v1418 = vunpack.c.l.b16 %v1367
    %v1419 = vunpack.c.h.b16 %v1367
    %v1420 = vunpack.c.l.b16 %v1368
    %v1421 = vunpack.c.h.b16 %v1368
    %v1422 = vunpack.c.l.b16 %v1369
    %v1423 = vunpack.c.h.b16 %v1369
    %v1424 = vpack.c.b16 %v1394, %v1392
    %v1425 = vpack.c.b16 %v1395, %v1393
    %v1426 = vpack.c.b16 %v1398, %v1396
    %v1427 = vpack.c.b16 %v1399, %v1397
    %v1428 = vpack.c.b16 %v1402, %v1400
    %v1429 = vpack.c.b16 %v1403, %v1401
    %v1430 = vpack.c.b16 %v1406, %v1404
    %v1431 = vpack.c.b16 %v1407, %v1405
    %v1432 = vpack.c.b16 %v1410, %v1408
    %v1433 = vpack.c.b16 %v1411, %v1409
    %v1434 = vpack.c.b16 %v1414, %v1412
    %v1435 = vpack.c.b16 %v1415, %v1413
    %v1436 = vpack.c.b16 %v1418, %v1416
    %v1437 = vpack.c.b16 %v1419, %v1417
    %v1438 = vpack.c.b16 %v1422, %v1420
    %v1439 = vpack.c.b16 %v1423, %v1421
    %1456 = vmatpush.bf16.msra.mxu0 %v1438
    %1457 = vmatpush.bf16.msra.mxu0 %v1436
    %1458 = vmatpush.bf16.msra.mxu0 %v1434
    %1459 = vmatpush.bf16.msra.mxu0 %v1432
    %1460 = vmatpush.bf16.msra.mxu0 %v1430
    %1461 = vmatpush.bf16.msra.mxu0 %v1428
    %1462 = vmatpush.bf16.msra.mxu0 %v1426
    %1463 = vmatpush.bf16.msra.mxu0 %v1424
    %1464 = vmatmul.bf16.gmra.mxu0 %v1344
    %v1465 = vpop.f32.mrf.mxu0
    %v1466 = vadd.f32 %v1372, %v1465
    %v1467 = vpop.f32.mrf.mxu0
    %v1468 = vadd.f32 %v1372, %v1467
    %1469 = vmatmul.bf16.gmra.mxu0 %v1345
    %v1470 = vpop.f32.mrf.mxu0
    %v1471 = vadd.f32 %v1372, %v1470
    %v1472 = vpop.f32.mrf.mxu0
    %v1473 = vadd.f32 %v1372, %v1472
    %1474 = vmatmul.bf16.gmra.mxu0 %v1346
    %v1475 = vpop.f32.mrf.mxu0
    %v1476 = vadd.f32 %v1372, %v1475
    %v1477 = vpop.f32.mrf.mxu0
    %v1478 = vadd.f32 %v1372, %v1477
    %1479 = vmatmul.bf16.gmra.mxu0 %v1347
    %v1480 = vpop.f32.mrf.mxu0
    %v1481 = vadd.f32 %v1372, %v1480
    %v1482 = vpop.f32.mrf.mxu0
    %v1483 = vadd.f32 %v1372, %v1482
    %1484 = vmatmul.bf16.gmra.mxu0 %v1348
    %v1485 = vpop.f32.mrf.mxu0
    %v1486 = vadd.f32 %v1372, %v1485
    %v1487 = vpop.f32.mrf.mxu0
    %v1488 = vadd.f32 %v1372, %v1487
    %1489 = vmatmul.bf16.gmra.mxu0 %v1349
    %v1490 = vpop.f32.mrf.mxu0
    %v1491 = vadd.f32 %v1372, %v1490
    %v1492 = vpop.f32.mrf.mxu0
    %v1493 = vadd.f32 %v1372, %v1492
    %1494 = vmatmul.bf16.gmra.mxu0 %v1350
    %v1495 = vpop.f32.mrf.mxu0
    %v1496 = vadd.f32 %v1372, %v1495
    %v1497 = vpop.f32.mrf.mxu0
    %v1498 = vadd.f32 %v1372, %v1497
    %1499 = vmatmul.bf16.gmra.mxu0 %v1351
    %v1500 = vpop.f32.mrf.mxu0
    %v1501 = vadd.f32 %v1372, %v1500
    %v1502 = vpop.f32.mrf.mxu0
    %v1503 = vadd.f32 %v1372, %v1502
    %1504 = vmatmul.bf16.gmra.mxu0 %v1352
    %v1505 = vpop.f32.mrf.mxu0
    %v1506 = vadd.f32 %v1372, %v1505
    %v1507 = vpop.f32.mrf.mxu0
    %v1508 = vadd.f32 %v1372, %v1507
    %1509 = vmatmul.bf16.gmra.mxu0 %v1353
    %v1510 = vpop.f32.mrf.mxu0
    %v1511 = vadd.f32 %v1372, %v1510
    %v1512 = vpop.f32.mrf.mxu0
    %1513 = vdwg.mxu0
    %1514 = vmatpush.bf16.msra.mxu0 %v1439
    %1515 = vmatpush.bf16.msra.mxu0 %v1437
    %1516 = vmatpush.bf16.msra.mxu0 %v1435
    %1517 = vmatpush.bf16.msra.mxu0 %v1433
    %1518 = vmatpush.bf16.msra.mxu0 %v1431
    %1519 = vmatpush.bf16.msra.mxu0 %v1429
    %1520 = vmatpush.bf16.msra.mxu0 %v1427
    %1521 = vmatpush.bf16.msra.mxu0 %v1425
    %1522 = vmatmul.bf16.gmra.mxu0 %v1344
    %v1523 = vpop.f32.mrf.mxu0
    %v1524 = vadd.f32 %v1373, %v1523
    %v1525 = vpop.f32.mrf.mxu0
    %v1526 = vadd.f32 %v1373, %v1525
    %1527 = vmatmul.bf16.gmra.mxu0 %v1345
    %v1528 = vpop.f32.mrf.mxu0
    %v1529 = vadd.f32 %v1373, %v1528
    %v1530 = vpop.f32.mrf.mxu0
    %v1531 = vadd.f32 %v1373, %v1530
    %1532 = vmatmul.bf16.gmra.mxu0 %v1346
    %v1533 = vpop.f32.mrf.mxu0
    %v1534 = vadd.f32 %v1373, %v1533
    %v1535 = vpop.f32.mrf.mxu0
    %v1536 = vadd.f32 %v1373, %v1535
    %1537 = vmatmul.bf16.gmra.mxu0 %v1347
    %v1538 = vpop.f32.mrf.mxu0
    %v1539 = vadd.f32 %v1373, %v1538
    %v1540 = vpop.f32.mrf.mxu0
    %v1541 = vadd.f32 %v1373, %v1540
    %1542 = vmatmul.bf16.gmra.mxu0 %v1348
    %v1543 = vpop.f32.mrf.mxu0
    %v1544 = vadd.f32 %v1373, %v1543
    %v1545 = vpop.f32.mrf.mxu0
    %v1546 = vadd.f32 %v1373, %v1545
    %1547 = vmatmul.bf16.gmra.mxu0 %v1349
    %v1548 = vpop.f32.mrf.mxu0
    %v1549 = vadd.f32 %v1373, %v1548
    %v1550 = vpop.f32.mrf.mxu0
    %v1551 = vadd.f32 %v1373, %v1550
    %1552 = vmatmul.bf16.gmra.mxu0 %v1350
    %v1553 = vpop.f32.mrf.mxu0
    %v1554 = vadd.f32 %v1373, %v1553
    %v1555 = vpop.f32.mrf.mxu0
    %v1556 = vadd.f32 %v1373, %v1555
    %1557 = vmatmul.bf16.gmra.mxu0 %v1351
    %v1558 = vpop.f32.mrf.mxu0
    %v1559 = vadd.f32 %v1373, %v1558
    %v1560 = vpop.f32.mrf.mxu0
    %v1561 = vadd.f32 %v1373, %v1560
    %1562 = vmatmul.bf16.gmra.mxu0 %v1352
    %v1563 = vpop.f32.mrf.mxu0
    %v1564 = vadd.f32 %v1373, %v1563
    %v1565 = vpop.f32.mrf.mxu0
    %v1566 = vadd.f32 %v1373, %v1565
    %1567 = vmatmul.bf16.gmra.mxu0 %v1353
    %v1568 = vpop.f32.mrf.mxu0
    %v1569 = vadd.f32 %v1373, %v1568
    %v1570 = vpop.f32.mrf.mxu0
    %1571 = vdwg.mxu0
    %v1572 = vmax.f32 %v1466, 0.0
    %v1573 = vmax.f32 %v1524, 0.0
    %v1574 = vmax.f32 %v1468, 0.0
    %v1575 = vmax.f32 %v1526, 0.0
    %v1576 = vmax.f32 %v1471, 0.0
    %v1577 = vmax.f32 %v1529, 0.0
    %v1578 = vmax.f32 %v1473, 0.0
    %v1579 = vmax.f32 %v1531, 0.0
    %v1580 = vmax.f32 %v1476, 0.0
    %v1581 = vmax.f32 %v1534, 0.0
    %v1582 = vmax.f32 %v1478, 0.0
    %v1583 = vmax.f32 %v1536, 0.0
    %v1584 = vmax.f32 %v1481, 0.0
    %v1585 = vmax.f32 %v1539, 0.0
    %v1586 = vmax.f32 %v1483, 0.0
    %v1587 = vmax.f32 %v1541, 0.0
    %v1588 = vmax.f32 %v1486, 0.0
    %v1589 = vmax.f32 %v1544, 0.0
    %v1590 = vmax.f32 %v1488, 0.0
    %v1591 = vmax.f32 %v1546, 0.0
    %v1592 = vmax.f32 %v1491, 0.0
    %v1593 = vmax.f32 %v1549, 0.0
    %v1594 = vmax.f32 %v1493, 0.0
    %v1595 = vmax.f32 %v1551, 0.0
    %v1596 = vmax.f32 %v1496, 0.0
    %v1597 = vmax.f32 %v1554, 0.0
    %v1598 = vmax.f32 %v1498, 0.0
    %v1599 = vmax.f32 %v1556, 0.0
    %v1600 = vmax.f32 %v1501, 0.0
    %v1601 = vmax.f32 %v1559, 0.0
    %v1602 = vmax.f32 %v1503, 0.0
    %v1603 = vmax.f32 %v1561, 0.0
    %v1604 = vmax.f32 %v1506, 0.0
    %v1605 = vmax.f32 %v1564, 0.0
    %v1606 = vmax.f32 %v1508, 0.0
    %v1607 = vmax.f32 %v1566, 0.0
    %v1608 = vmax.f32 %v1511, 0.0
    %v1609 = vmax.f32 %v1569, 0.0
    %v1610 = vpack.c.bf16 %v1574, %v1572
    %v1611 = vpack.c.bf16 %v1575, %v1573
    %v1612 = vpack.c.bf16 %v1578, %v1576
    %v1613 = vpack.c.bf16 %v1579, %v1577
    %v1614 = vpack.c.bf16 %v1582, %v1580
    %v1615 = vpack.c.bf16 %v1583, %v1581
    %v1616 = vpack.c.bf16 %v1586, %v1584
    %v1617 = vpack.c.bf16 %v1587, %v1585
    %v1618 = vpack.c.bf16 %v1590, %v1588
    %v1619 = vpack.c.bf16 %v1591, %v1589
    %v1620 = vpack.c.bf16 %v1594, %v1592
    %v1621 = vpack.c.bf16 %v1595, %v1593
    %v1622 = vpack.c.bf16 %v1598, %v1596
    %v1623 = vpack.c.bf16 %v1599, %v1597
    %v1624 = vpack.c.bf16 %v1602, %v1600
    %v1625 = vpack.c.bf16 %v1603, %v1601
    %v1626 = vpack.c.bf16 %v1606, %v1604
    %v1627 = vpack.c.bf16 %v1607, %v1605
    %v1628 = vpack.c.bf16 %v1608, %v1608
    %v1629 = vpack.c.bf16 %v1609, %v1609
    %v1630 = vld [vmem:[#allocation14] sm:$0xff]
    %v1631 = vld [vmem:[#allocation14 + $0x8] sm:$0xff]
    %v1632 = vld [vmem:[#allocation14 + $0x10] sm:$0xff]
    %v1633 = vld [vmem:[#allocation14 + $0x18] sm:$0xff]
    %v1634 = vld [vmem:[#allocation14 + $0x20] sm:$0xff]
    %v1635 = vld [vmem:[#allocation14 + $0x28] sm:$0xff]
    %v1636 = vld [vmem:[#allocation14 + $0x30] sm:$0xff]
    %v1637 = vld [vmem:[#allocation14 + $0x38] sm:$0xff]
    %v1638 = vld [vmem:[#allocation14 + $0x40] sm:$0xff]
    %v1639 = vld [vmem:[#allocation14 + $0x48] sm:$0xff]
    %v1640 = vld [vmem:[#allocation14 + $0x50] sm:$0xff]
    %v1641 = vld [vmem:[#allocation14 + $0x58] sm:$0xff]
    %v1642 = vld [vmem:[#allocation14 + $0x60] sm:$0xff]
    %v1643 = vld [vmem:[#allocation14 + $0x68] sm:$0xff]
    %v1644 = vld [vmem:[#allocation14 + $0x70] sm:$0xff]
    %v1645 = vld [vmem:[#allocation14 + $0x78] sm:$0xff]
    %v1646 = vld [vmem:[#allocation14 + $0x80] sm:$0xff]
    %v1647 = vld [vmem:[#allocation14 + $0x88] sm:$0xff]
    %v1648 = vld [vmem:[#allocation14 + $0x90] sm:$0xff]
    %v1649 = vld [vmem:[#allocation14 + $0x98] sm:$0xff]
    %v1650 = vld [vmem:[#allocation14 + $0xa0] sm:$0xff]
    %v1651 = vld [vmem:[#allocation14 + $0xa8] sm:$0xff]
    %v1652 = vld [vmem:[#allocation14 + $0xb0] sm:$0xff]
    %v1653 = vld [vmem:[#allocation14 + $0xb8] sm:$0xff]
    %v1654 = vld [vmem:[#allocation14 + $0xc0] sm:$0xff]
    %v1655 = vld [vmem:[#allocation14 + $0xc8] sm:$0xff]
    %v1656 = vld [vmem:[#allocation14 + $0xd0] sm:$0xff]
    %v1657 = vld [vmem:[#allocation14 + $0xd8] sm:$0xff]
    %v1658 = vld [vmem:[#allocation14 + $0xe0] sm:$0xff]
    %v1659 = vld [vmem:[#allocation14 + $0xe8] sm:$0xff]
    %v1660 = vld [vmem:[#allocation14 + $0xf0] sm:$0xff]
    %v1661 = vld [vmem:[#allocation14 + $0xf8] sm:$0xff]
    %v1662 = vld [vmem:[#allocation14 + $0x100] sm:$0xff]
    %v1663 = vld [vmem:[#allocation14 + $0x108] sm:$0xff]
    %v1664 = vld [vmem:[#allocation14 + $0x110] sm:$0xff]
    %v1665 = vld [vmem:[#allocation14 + $0x118] sm:$0xff]
    %v1666 = vld [vmem:[#allocation14 + $0x120] sm:$0xff]
    %v1667 = vld [vmem:[#allocation14 + $0x128] sm:$0xff]
    %v1668 = vld [vmem:[#allocation14 + $0x130] sm:$0xff]
    %v1669 = vld [vmem:[#allocation14 + $0x138] sm:$0xff]
    %v1670 = vld [vmem:[#allocation14 + $0x140] sm:$0xff]
    %v1671 = vld [vmem:[#allocation14 + $0x148] sm:$0xff]
    %v1672 = vld [vmem:[#allocation14 + $0x150] sm:$0xff]
    %v1673 = vld [vmem:[#allocation14 + $0x158] sm:$0xff]
    %v1674 = vld [vmem:[#allocation14 + $0x160] sm:$0xff]
    %v1675 = vld [vmem:[#allocation14 + $0x168] sm:$0xff]
    %v1676 = vld [vmem:[#allocation14 + $0x170] sm:$0xff]
    %v1677 = vld [vmem:[#allocation14 + $0x178] sm:$0xff]
    %v1678 = vld [vmem:[#allocation14 + $0x180] sm:$0xff]
    %v1679 = vld [vmem:[#allocation14 + $0x188] sm:$0xff]
    %v1680 = vld [vmem:[#allocation14 + $0x190] sm:$0xff]
    %v1681 = vld [vmem:[#allocation14 + $0x198] sm:$0xff]
    %v1682 = vld [vmem:[#allocation14 + $0x1a0] sm:$0xff]
    %v1683 = vld [vmem:[#allocation14 + $0x1a8] sm:$0xff]
    %v1684 = vld [vmem:[#allocation14 + $0x1b0] sm:$0xff]
    %v1685 = vld [vmem:[#allocation14 + $0x1b8] sm:$0xff]
    %v1686 = vld [vmem:[#allocation14 + $0x1c0] sm:$0xff]
    %v1687 = vld [vmem:[#allocation14 + $0x1c8] sm:$0xff]
    %v1688 = vld [vmem:[#allocation14 + $0x1d0] sm:$0xff]
    %v1689 = vld [vmem:[#allocation14 + $0x1d8] sm:$0xff]
    %v1690 = vld [vmem:[#allocation14 + $0x1e0] sm:$0xff]
    %v1691 = vld [vmem:[#allocation14 + $0x1e8] sm:$0xff]
    %v1692 = vld [vmem:[#allocation14 + $0x1f0] sm:$0xff]
    %v1693 = vld [vmem:[#allocation14 + $0x1f8] sm:$0xff]
    %v1694 = vld [vmem:[#allocation15] sm:$0xf]
    %v1696 = vperm.slane %v1694, 0
    %v1697 = vperm.slane %v1694, 1
    %v1698 = vperm.slane %v1694, 2
    %v1699 = vperm.slane %v1694, 3
    %v1768 = vunpack.c.l.b16 %v1630
    %v1769 = vunpack.c.h.b16 %v1630
    %v1770 = vunpack.c.l.b16 %v1631
    %v1771 = vunpack.c.h.b16 %v1631
    %v1772 = vunpack.c.l.b16 %v1632
    %v1773 = vunpack.c.h.b16 %v1632
    %v1774 = vunpack.c.l.b16 %v1633
    %v1775 = vunpack.c.h.b16 %v1633
    %v1776 = vunpack.c.l.b16 %v1634
    %v1777 = vunpack.c.h.b16 %v1634
    %v1778 = vunpack.c.l.b16 %v1635
    %v1779 = vunpack.c.h.b16 %v1635
    %v1780 = vunpack.c.l.b16 %v1636
    %v1781 = vunpack.c.h.b16 %v1636
    %v1782 = vunpack.c.l.b16 %v1637
    %v1783 = vunpack.c.h.b16 %v1637
    %v1784 = vunpack.c.l.b16 %v1638
    %v1785 = vunpack.c.h.b16 %v1638
    %v1786 = vunpack.c.l.b16 %v1639
    %v1787 = vunpack.c.h.b16 %v1639
    %v1788 = vunpack.c.l.b16 %v1640
    %v1789 = vunpack.c.h.b16 %v1640
    %v1790 = vunpack.c.l.b16 %v1641
    %v1791 = vunpack.c.h.b16 %v1641
    %v1792 = vunpack.c.l.b16 %v1642
    %v1793 = vunpack.c.h.b16 %v1642
    %v1794 = vunpack.c.l.b16 %v1643
    %v1795 = vunpack.c.h.b16 %v1643
    %v1796 = vunpack.c.l.b16 %v1644
    %v1797 = vunpack.c.h.b16 %v1644
    %v1798 = vunpack.c.l.b16 %v1645
    %v1799 = vunpack.c.h.b16 %v1645
    %v1800 = vunpack.c.l.b16 %v1646
    %v1801 = vunpack.c.h.b16 %v1646
    %v1802 = vunpack.c.l.b16 %v1647
    %v1803 = vunpack.c.h.b16 %v1647
    %v1804 = vunpack.c.l.b16 %v1648
    %v1805 = vunpack.c.h.b16 %v1648
    %v1806 = vunpack.c.l.b16 %v1649
    %v1807 = vunpack.c.h.b16 %v1649
    %v1808 = vunpack.c.l.b16 %v1650
    %v1809 = vunpack.c.h.b16 %v1650
    %v1810 = vunpack.c.l.b16 %v1651
    %v1811 = vunpack.c.h.b16 %v1651
    %v1812 = vunpack.c.l.b16 %v1652
    %v1813 = vunpack.c.h.b16 %v1652
    %v1814 = vunpack.c.l.b16 %v1653
    %v1815 = vunpack.c.h.b16 %v1653
    %v1816 = vunpack.c.l.b16 %v1654
    %v1817 = vunpack.c.h.b16 %v1654
    %v1818 = vunpack.c.l.b16 %v1655
    %v1819 = vunpack.c.h.b16 %v1655
    %v1820 = vunpack.c.l.b16 %v1656
    %v1821 = vunpack.c.h.b16 %v1656
    %v1822 = vunpack.c.l.b16 %v1657
    %v1823 = vunpack.c.h.b16 %v1657
    %v1824 = vunpack.c.l.b16 %v1658
    %v1825 = vunpack.c.h.b16 %v1658
    %v1826 = vunpack.c.l.b16 %v1659
    %v1827 = vunpack.c.h.b16 %v1659
    %v1828 = vunpack.c.l.b16 %v1660
    %v1829 = vunpack.c.h.b16 %v1660
    %v1830 = vunpack.c.l.b16 %v1661
    %v1831 = vunpack.c.h.b16 %v1661
    %v1832 = vunpack.c.l.b16 %v1662
    %v1833 = vunpack.c.h.b16 %v1662
    %v1834 = vunpack.c.l.b16 %v1663
    %v1835 = vunpack.c.h.b16 %v1663
    %v1836 = vunpack.c.l.b16 %v1664
    %v1837 = vunpack.c.h.b16 %v1664
    %v1838 = vunpack.c.l.b16 %v1665
    %v1839 = vunpack.c.h.b16 %v1665
    %v1840 = vunpack.c.l.b16 %v1666
    %v1841 = vunpack.c.h.b16 %v1666
    %v1842 = vunpack.c.l.b16 %v1667
    %v1843 = vunpack.c.h.b16 %v1667
    %v1844 = vunpack.c.l.b16 %v1668
    %v1845 = vunpack.c.h.b16 %v1668
    %v1846 = vunpack.c.l.b16 %v1669
    %v1847 = vunpack.c.h.b16 %v1669
    %v1848 = vunpack.c.l.b16 %v1670
    %v1849 = vunpack.c.h.b16 %v1670
    %v1850 = vunpack.c.l.b16 %v1671
    %v1851 = vunpack.c.h.b16 %v1671
    %v1852 = vunpack.c.l.b16 %v1672
    %v1853 = vunpack.c.h.b16 %v1672
    %v1854 = vunpack.c.l.b16 %v1673
    %v1855 = vunpack.c.h.b16 %v1673
    %v1856 = vunpack.c.l.b16 %v1674
    %v1857 = vunpack.c.h.b16 %v1674
    %v1858 = vunpack.c.l.b16 %v1675
    %v1859 = vunpack.c.h.b16 %v1675
    %v1860 = vunpack.c.l.b16 %v1676
    %v1861 = vunpack.c.h.b16 %v1676
    %v1862 = vunpack.c.l.b16 %v1677
    %v1863 = vunpack.c.h.b16 %v1677
    %v1864 = vunpack.c.l.b16 %v1678
    %v1865 = vunpack.c.h.b16 %v1678
    %v1866 = vunpack.c.l.b16 %v1679
    %v1867 = vunpack.c.h.b16 %v1679
    %v1868 = vunpack.c.l.b16 %v1680
    %v1869 = vunpack.c.h.b16 %v1680
    %v1870 = vunpack.c.l.b16 %v1681
    %v1871 = vunpack.c.h.b16 %v1681
    %v1872 = vunpack.c.l.b16 %v1682
    %v1873 = vunpack.c.h.b16 %v1682
    %v1874 = vunpack.c.l.b16 %v1683
    %v1875 = vunpack.c.h.b16 %v1683
    %v1876 = vunpack.c.l.b16 %v1684
    %v1877 = vunpack.c.h.b16 %v1684
    %v1878 = vunpack.c.l.b16 %v1685
    %v1879 = vunpack.c.h.b16 %v1685
    %v1880 = vunpack.c.l.b16 %v1686
    %v1881 = vunpack.c.h.b16 %v1686
    %v1882 = vunpack.c.l.b16 %v1687
    %v1883 = vunpack.c.h.b16 %v1687
    %v1884 = vunpack.c.l.b16 %v1688
    %v1885 = vunpack.c.h.b16 %v1688
    %v1886 = vunpack.c.l.b16 %v1689
    %v1887 = vunpack.c.h.b16 %v1689
    %v1888 = vunpack.c.l.b16 %v1690
    %v1889 = vunpack.c.h.b16 %v1690
    %v1890 = vunpack.c.l.b16 %v1691
    %v1891 = vunpack.c.h.b16 %v1691
    %v1892 = vunpack.c.l.b16 %v1692
    %v1893 = vunpack.c.h.b16 %v1692
    %v1894 = vunpack.c.l.b16 %v1693
    %v1895 = vunpack.c.h.b16 %v1693
    %v1896 = vpack.c.b16 %v1772, %v1768
    %v1897 = vpack.c.b16 %v1773, %v1769
    %v1898 = vpack.c.b16 %v1774, %v1770
    %v1899 = vpack.c.b16 %v1775, %v1771
    %v1900 = vpack.c.b16 %v1780, %v1776
    %v1901 = vpack.c.b16 %v1781, %v1777
    %v1902 = vpack.c.b16 %v1782, %v1778
    %v1903 = vpack.c.b16 %v1783, %v1779
    %v1904 = vpack.c.b16 %v1788, %v1784
    %v1905 = vpack.c.b16 %v1789, %v1785
    %v1906 = vpack.c.b16 %v1790, %v1786
    %v1907 = vpack.c.b16 %v1791, %v1787
    %v1908 = vpack.c.b16 %v1796, %v1792
    %v1909 = vpack.c.b16 %v1797, %v1793
    %v1910 = vpack.c.b16 %v1798, %v1794
    %v1911 = vpack.c.b16 %v1799, %v1795
    %v1912 = vpack.c.b16 %v1804, %v1800
    %v1913 = vpack.c.b16 %v1805, %v1801
    %v1914 = vpack.c.b16 %v1806, %v1802
    %v1915 = vpack.c.b16 %v1807, %v1803
    %v1916 = vpack.c.b16 %v1812, %v1808
    %v1917 = vpack.c.b16 %v1813, %v1809
    %v1918 = vpack.c.b16 %v1814, %v1810
    %v1919 = vpack.c.b16 %v1815, %v1811
    %v1920 = vpack.c.b16 %v1820, %v1816
    %v1921 = vpack.c.b16 %v1821, %v1817
    %v1922 = vpack.c.b16 %v1822, %v1818
    %v1923 = vpack.c.b16 %v1823, %v1819
    %v1924 = vpack.c.b16 %v1828, %v1824
    %v1925 = vpack.c.b16 %v1829, %v1825
    %v1926 = vpack.c.b16 %v1830, %v1826
    %v1927 = vpack.c.b16 %v1831, %v1827
    %v1928 = vpack.c.b16 %v1836, %v1832
    %v1929 = vpack.c.b16 %v1837, %v1833
    %v1930 = vpack.c.b16 %v1838, %v1834
    %v1931 = vpack.c.b16 %v1839, %v1835
    %v1932 = vpack.c.b16 %v1844, %v1840
    %v1933 = vpack.c.b16 %v1845, %v1841
    %v1934 = vpack.c.b16 %v1846, %v1842
    %v1935 = vpack.c.b16 %v1847, %v1843
    %v1936 = vpack.c.b16 %v1852, %v1848
    %v1937 = vpack.c.b16 %v1853, %v1849
    %v1938 = vpack.c.b16 %v1854, %v1850
    %v1939 = vpack.c.b16 %v1855, %v1851
    %v1940 = vpack.c.b16 %v1860, %v1856
    %v1941 = vpack.c.b16 %v1861, %v1857
    %v1942 = vpack.c.b16 %v1862, %v1858
    %v1943 = vpack.c.b16 %v1863, %v1859
    %v1944 = vpack.c.b16 %v1868, %v1864
    %v1945 = vpack.c.b16 %v1869, %v1865
    %v1946 = vpack.c.b16 %v1870, %v1866
    %v1947 = vpack.c.b16 %v1871, %v1867
    %v1948 = vpack.c.b16 %v1876, %v1872
    %v1949 = vpack.c.b16 %v1877, %v1873
    %v1950 = vpack.c.b16 %v1878, %v1874
    %v1951 = vpack.c.b16 %v1879, %v1875
    %v1952 = vpack.c.b16 %v1884, %v1880
    %v1953 = vpack.c.b16 %v1885, %v1881
    %v1954 = vpack.c.b16 %v1886, %v1882
    %v1955 = vpack.c.b16 %v1887, %v1883
    %v1956 = vpack.c.b16 %v1892, %v1888
    %v1957 = vpack.c.b16 %v1893, %v1889
    %v1958 = vpack.c.b16 %v1894, %v1890
    %v1959 = vpack.c.b16 %v1895, %v1891
    %2024 = vmatpush.bf16.msra.mxu0 %v1924
    %2025 = vmatpush.bf16.msra.mxu0 %v1920
    %2026 = vmatpush.bf16.msra.mxu0 %v1916
    %2027 = vmatpush.bf16.msra.mxu0 %v1912
    %2028 = vmatpush.bf16.msra.mxu0 %v1908
    %2029 = vmatpush.bf16.msra.mxu0 %v1904
    %2030 = vmatpush.bf16.msra.mxu0 %v1900
    %2031 = vmatpush.bf16.msra.mxu0 %v1896
    %2032 = vmatmul.bf16.gmra.mxu0 %v1610
    %v2033 = vpop.f32.mrf.mxu0
    %v2034 = vadd.f32 %v1696, %v2033
    %v2035 = vpop.f32.mrf.mxu0
    %v2036 = vadd.f32 %v1696, %v2035
    %2037 = vmatmul.bf16.gmra.mxu0 %v1612
    %v2038 = vpop.f32.mrf.mxu0
    %v2039 = vadd.f32 %v1696, %v2038
    %v2040 = vpop.f32.mrf.mxu0
    %v2041 = vadd.f32 %v1696, %v2040
    %2042 = vmatmul.bf16.gmra.mxu0 %v1614
    %v2043 = vpop.f32.mrf.mxu0
    %v2044 = vadd.f32 %v1696, %v2043
    %v2045 = vpop.f32.mrf.mxu0
    %v2046 = vadd.f32 %v1696, %v2045
    %2047 = vmatmul.bf16.gmra.mxu0 %v1616
    %v2048 = vpop.f32.mrf.mxu0
    %v2049 = vadd.f32 %v1696, %v2048
    %v2050 = vpop.f32.mrf.mxu0
    %v2051 = vadd.f32 %v1696, %v2050
    %2052 = vmatmul.bf16.gmra.mxu0 %v1618
    %v2053 = vpop.f32.mrf.mxu0
    %v2054 = vadd.f32 %v1696, %v2053
    %v2055 = vpop.f32.mrf.mxu0
    %v2056 = vadd.f32 %v1696, %v2055
    %2057 = vmatmul.bf16.gmra.mxu0 %v1620
    %v2058 = vpop.f32.mrf.mxu0
    %v2059 = vadd.f32 %v1696, %v2058
    %v2060 = vpop.f32.mrf.mxu0
    %v2061 = vadd.f32 %v1696, %v2060
    %2062 = vmatmul.bf16.gmra.mxu0 %v1622
    %v2063 = vpop.f32.mrf.mxu0
    %v2064 = vadd.f32 %v1696, %v2063
    %v2065 = vpop.f32.mrf.mxu0
    %v2066 = vadd.f32 %v1696, %v2065
    %2067 = vmatmul.bf16.gmra.mxu0 %v1624
    %v2068 = vpop.f32.mrf.mxu0
    %v2069 = vadd.f32 %v1696, %v2068
    %v2070 = vpop.f32.mrf.mxu0
    %v2071 = vadd.f32 %v1696, %v2070
    %2072 = vmatmul.bf16.gmra.mxu0 %v1626
    %v2073 = vpop.f32.mrf.mxu0
    %v2074 = vadd.f32 %v1696, %v2073
    %v2075 = vpop.f32.mrf.mxu0
    %v2076 = vadd.f32 %v1696, %v2075
    %2077 = vmatmul.bf16.gmra.mxu0 %v1628
    %v2078 = vpop.f32.mrf.mxu0
    %v2079 = vadd.f32 %v1696, %v2078
    %v2080 = vpop.f32.mrf.mxu0
    %2081 = vdwg.mxu0
    %2082 = vmatpush.bf16.msra.mxu0 %v1956
    %2083 = vmatpush.bf16.msra.mxu0 %v1952
    %2084 = vmatpush.bf16.msra.mxu0 %v1948
    %2085 = vmatpush.bf16.msra.mxu0 %v1944
    %2086 = vmatpush.bf16.msra.mxu0 %v1940
    %2087 = vmatpush.bf16.msra.mxu0 %v1936
    %2088 = vmatpush.bf16.msra.mxu0 %v1932
    %2089 = vmatpush.bf16.msra.mxu0 %v1928
    %2090 = vmatmul.bf16.gmra.mxu0 %v1611
    %v2091 = vpop.f32.mrf.mxu0
    %v2092 = vadd.f32 %v2034, %v2091
    %v2093 = vpop.f32.mrf.mxu0
    %v2094 = vadd.f32 %v2036, %v2093
    %2095 = vmatmul.bf16.gmra.mxu0 %v1613
    %v2096 = vpop.f32.mrf.mxu0
    %v2097 = vadd.f32 %v2039, %v2096
    %v2098 = vpop.f32.mrf.mxu0
    %v2099 = vadd.f32 %v2041, %v2098
    %2100 = vmatmul.bf16.gmra.mxu0 %v1615
    %v2101 = vpop.f32.mrf.mxu0
    %v2102 = vadd.f32 %v2044, %v2101
    %v2103 = vpop.f32.mrf.mxu0
    %v2104 = vadd.f32 %v2046, %v2103
    %2105 = vmatmul.bf16.gmra.mxu0 %v1617
    %v2106 = vpop.f32.mrf.mxu0
    %v2107 = vadd.f32 %v2049, %v2106
    %v2108 = vpop.f32.mrf.mxu0
    %v2109 = vadd.f32 %v2051, %v2108
    %2110 = vmatmul.bf16.gmra.mxu0 %v1619
    %v2111 = vpop.f32.mrf.mxu0
    %v2112 = vadd.f32 %v2054, %v2111
    %v2113 = vpop.f32.mrf.mxu0
    %v2114 = vadd.f32 %v2056, %v2113
    %2115 = vmatmul.bf16.gmra.mxu0 %v1621
    %v2116 = vpop.f32.mrf.mxu0
    %v2117 = vadd.f32 %v2059, %v2116
    %v2118 = vpop.f32.mrf.mxu0
    %v2119 = vadd.f32 %v2061, %v2118
    %2120 = vmatmul.bf16.gmra.mxu0 %v1623
    %v2121 = vpop.f32.mrf.mxu0
    %v2122 = vadd.f32 %v2064, %v2121
    %v2123 = vpop.f32.mrf.mxu0
    %v2124 = vadd.f32 %v2066, %v2123
    %2125 = vmatmul.bf16.gmra.mxu0 %v1625
    %v2126 = vpop.f32.mrf.mxu0
    %v2127 = vadd.f32 %v2069, %v2126
    %v2128 = vpop.f32.mrf.mxu0
    %v2129 = vadd.f32 %v2071, %v2128
    %2130 = vmatmul.bf16.gmra.mxu0 %v1627
    %v2131 = vpop.f32.mrf.mxu0
    %v2132 = vadd.f32 %v2074, %v2131
    %v2133 = vpop.f32.mrf.mxu0
    %v2134 = vadd.f32 %v2076, %v2133
    %2135 = vmatmul.bf16.gmra.mxu0 %v1629
    %v2136 = vpop.f32.mrf.mxu0
    %v2137 = vadd.f32 %v2079, %v2136
    %v2138 = vpop.f32.mrf.mxu0
    %2139 = vdwg.mxu0
    %2140 = vmatpush.bf16.msra.mxu0 %v1925
    %2141 = vmatpush.bf16.msra.mxu0 %v1921
    %2142 = vmatpush.bf16.msra.mxu0 %v1917
    %2143 = vmatpush.bf16.msra.mxu0 %v1913
    %2144 = vmatpush.bf16.msra.mxu0 %v1909
    %2145 = vmatpush.bf16.msra.mxu0 %v1905
    %2146 = vmatpush.bf16.msra.mxu0 %v1901
    %2147 = vmatpush.bf16.msra.mxu0 %v1897
    %2148 = vmatmul.bf16.gmra.mxu0 %v1610
    %v2149 = vpop.f32.mrf.mxu0
    %v2150 = vadd.f32 %v1697, %v2149
    %v2151 = vpop.f32.mrf.mxu0
    %v2152 = vadd.f32 %v1697, %v2151
    %2153 = vmatmul.bf16.gmra.mxu0 %v1612
    %v2154 = vpop.f32.mrf.mxu0
    %v2155 = vadd.f32 %v1697, %v2154
    %v2156 = vpop.f32.mrf.mxu0
    %v2157 = vadd.f32 %v1697, %v2156
    %2158 = vmatmul.bf16.gmra.mxu0 %v1614
    %v2159 = vpop.f32.mrf.mxu0
    %v2160 = vadd.f32 %v1697, %v2159
    %v2161 = vpop.f32.mrf.mxu0
    %v2162 = vadd.f32 %v1697, %v2161
    %2163 = vmatmul.bf16.gmra.mxu0 %v1616
    %v2164 = vpop.f32.mrf.mxu0
    %v2165 = vadd.f32 %v1697, %v2164
    %v2166 = vpop.f32.mrf.mxu0
    %v2167 = vadd.f32 %v1697, %v2166
    %2168 = vmatmul.bf16.gmra.mxu0 %v1618
    %v2169 = vpop.f32.mrf.mxu0
    %v2170 = vadd.f32 %v1697, %v2169
    %v2171 = vpop.f32.mrf.mxu0
    %v2172 = vadd.f32 %v1697, %v2171
    %2173 = vmatmul.bf16.gmra.mxu0 %v1620
    %v2174 = vpop.f32.mrf.mxu0
    %v2175 = vadd.f32 %v1697, %v2174
    %v2176 = vpop.f32.mrf.mxu0
    %v2177 = vadd.f32 %v1697, %v2176
    %2178 = vmatmul.bf16.gmra.mxu0 %v1622
    %v2179 = vpop.f32.mrf.mxu0
    %v2180 = vadd.f32 %v1697, %v2179
    %v2181 = vpop.f32.mrf.mxu0
    %v2182 = vadd.f32 %v1697, %v2181
    %2183 = vmatmul.bf16.gmra.mxu0 %v1624
    %v2184 = vpop.f32.mrf.mxu0
    %v2185 = vadd.f32 %v1697, %v2184
    %v2186 = vpop.f32.mrf.mxu0
    %v2187 = vadd.f32 %v1697, %v2186
    %2188 = vmatmul.bf16.gmra.mxu0 %v1626
    %v2189 = vpop.f32.mrf.mxu0
    %v2190 = vadd.f32 %v1697, %v2189
    %v2191 = vpop.f32.mrf.mxu0
    %v2192 = vadd.f32 %v1697, %v2191
    %2193 = vmatmul.bf16.gmra.mxu0 %v1628
    %v2194 = vpop.f32.mrf.mxu0
    %v2195 = vadd.f32 %v1697, %v2194
    %v2196 = vpop.f32.mrf.mxu0
    %2197 = vdwg.mxu0
    %2198 = vmatpush.bf16.msra.mxu0 %v1957
    %2199 = vmatpush.bf16.msra.mxu0 %v1953
    %2200 = vmatpush.bf16.msra.mxu0 %v1949
    %2201 = vmatpush.bf16.msra.mxu0 %v1945
    %2202 = vmatpush.bf16.msra.mxu0 %v1941
    %2203 = vmatpush.bf16.msra.mxu0 %v1937
    %2204 = vmatpush.bf16.msra.mxu0 %v1933
    %2205 = vmatpush.bf16.msra.mxu0 %v1929
    %2206 = vmatmul.bf16.gmra.mxu0 %v1611
    %v2207 = vpop.f32.mrf.mxu0
    %v2208 = vadd.f32 %v2150, %v2207
    %v2209 = vpop.f32.mrf.mxu0
    %v2210 = vadd.f32 %v2152, %v2209
    %2211 = vmatmul.bf16.gmra.mxu0 %v1613
    %v2212 = vpop.f32.mrf.mxu0
    %v2213 = vadd.f32 %v2155, %v2212
    %v2214 = vpop.f32.mrf.mxu0
    %v2215 = vadd.f32 %v2157, %v2214
    %2216 = vmatmul.bf16.gmra.mxu0 %v1615
    %v2217 = vpop.f32.mrf.mxu0
    %v2218 = vadd.f32 %v2160, %v2217
    %v2219 = vpop.f32.mrf.mxu0
    %v2220 = vadd.f32 %v2162, %v2219
    %2221 = vmatmul.bf16.gmra.mxu0 %v1617
    %v2222 = vpop.f32.mrf.mxu0
    %v2223 = vadd.f32 %v2165, %v2222
    %v2224 = vpop.f32.mrf.mxu0
    %v2225 = vadd.f32 %v2167, %v2224
    %2226 = vmatmul.bf16.gmra.mxu0 %v1619
    %v2227 = vpop.f32.mrf.mxu0
    %v2228 = vadd.f32 %v2170, %v2227
    %v2229 = vpop.f32.mrf.mxu0
    %v2230 = vadd.f32 %v2172, %v2229
    %2231 = vmatmul.bf16.gmra.mxu0 %v1621
    %v2232 = vpop.f32.mrf.mxu0
    %v2233 = vadd.f32 %v2175, %v2232
    %v2234 = vpop.f32.mrf.mxu0
    %v2235 = vadd.f32 %v2177, %v2234
    %2236 = vmatmul.bf16.gmra.mxu0 %v1623
    %v2237 = vpop.f32.mrf.mxu0
    %v2238 = vadd.f32 %v2180, %v2237
    %v2239 = vpop.f32.mrf.mxu0
    %v2240 = vadd.f32 %v2182, %v2239
    %2241 = vmatmul.bf16.gmra.mxu0 %v1625
    %v2242 = vpop.f32.mrf.mxu0
    %v2243 = vadd.f32 %v2185, %v2242
    %v2244 = vpop.f32.mrf.mxu0
    %v2245 = vadd.f32 %v2187, %v2244
    %2246 = vmatmul.bf16.gmra.mxu0 %v1627
    %v2247 = vpop.f32.mrf.mxu0
    %v2248 = vadd.f32 %v2190, %v2247
    %v2249 = vpop.f32.mrf.mxu0
    %v2250 = vadd.f32 %v2192, %v2249
    %2251 = vmatmul.bf16.gmra.mxu0 %v1629
    %v2252 = vpop.f32.mrf.mxu0
    %v2253 = vadd.f32 %v2195, %v2252
    %v2254 = vpop.f32.mrf.mxu0
    %2255 = vdwg.mxu0
    %2256 = vmatpush.bf16.msra.mxu0 %v1926
    %2257 = vmatpush.bf16.msra.mxu0 %v1922
    %2258 = vmatpush.bf16.msra.mxu0 %v1918
    %2259 = vmatpush.bf16.msra.mxu0 %v1914
    %2260 = vmatpush.bf16.msra.mxu0 %v1910
    %2261 = vmatpush.bf16.msra.mxu0 %v1906
    %2262 = vmatpush.bf16.msra.mxu0 %v1902
    %2263 = vmatpush.bf16.msra.mxu0 %v1898
    %2264 = vmatmul.bf16.gmra.mxu0 %v1610
    %v2265 = vpop.f32.mrf.mxu0
    %v2266 = vadd.f32 %v1698, %v2265
    %v2267 = vpop.f32.mrf.mxu0
    %v2268 = vadd.f32 %v1698, %v2267
    %2269 = vmatmul.bf16.gmra.mxu0 %v1612
    %v2270 = vpop.f32.mrf.mxu0
    %v2271 = vadd.f32 %v1698, %v2270
    %v2272 = vpop.f32.mrf.mxu0
    %v2273 = vadd.f32 %v1698, %v2272
    %2274 = vmatmul.bf16.gmra.mxu0 %v1614
    %v2275 = vpop.f32.mrf.mxu0
    %v2276 = vadd.f32 %v1698, %v2275
    %v2277 = vpop.f32.mrf.mxu0
    %v2278 = vadd.f32 %v1698, %v2277
    %2279 = vmatmul.bf16.gmra.mxu0 %v1616
    %v2280 = vpop.f32.mrf.mxu0
    %v2281 = vadd.f32 %v1698, %v2280
    %v2282 = vpop.f32.mrf.mxu0
    %v2283 = vadd.f32 %v1698, %v2282
    %2284 = vmatmul.bf16.gmra.mxu0 %v1618
    %v2285 = vpop.f32.mrf.mxu0
    %v2286 = vadd.f32 %v1698, %v2285
    %v2287 = vpop.f32.mrf.mxu0
    %v2288 = vadd.f32 %v1698, %v2287
    %2289 = vmatmul.bf16.gmra.mxu0 %v1620
    %v2290 = vpop.f32.mrf.mxu0
    %v2291 = vadd.f32 %v1698, %v2290
    %v2292 = vpop.f32.mrf.mxu0
    %v2293 = vadd.f32 %v1698, %v2292
    %2294 = vmatmul.bf16.gmra.mxu0 %v1622
    %v2295 = vpop.f32.mrf.mxu0
    %v2296 = vadd.f32 %v1698, %v2295
    %v2297 = vpop.f32.mrf.mxu0
    %v2298 = vadd.f32 %v1698, %v2297
    %2299 = vmatmul.bf16.gmra.mxu0 %v1624
    %v2300 = vpop.f32.mrf.mxu0
    %v2301 = vadd.f32 %v1698, %v2300
    %v2302 = vpop.f32.mrf.mxu0
    %v2303 = vadd.f32 %v1698, %v2302
    %2304 = vmatmul.bf16.gmra.mxu0 %v1626
    %v2305 = vpop.f32.mrf.mxu0
    %v2306 = vadd.f32 %v1698, %v2305
    %v2307 = vpop.f32.mrf.mxu0
    %v2308 = vadd.f32 %v1698, %v2307
    %2309 = vmatmul.bf16.gmra.mxu0 %v1628
    %v2310 = vpop.f32.mrf.mxu0
    %v2311 = vadd.f32 %v1698, %v2310
    %v2312 = vpop.f32.mrf.mxu0
    %2313 = vdwg.mxu0
    %2314 = vmatpush.bf16.msra.mxu0 %v1958
    %2315 = vmatpush.bf16.msra.mxu0 %v1954
    %2316 = vmatpush.bf16.msra.mxu0 %v1950
    %2317 = vmatpush.bf16.msra.mxu0 %v1946
    %2318 = vmatpush.bf16.msra.mxu0 %v1942
    %2319 = vmatpush.bf16.msra.mxu0 %v1938
    %2320 = vmatpush.bf16.msra.mxu0 %v1934
    %2321 = vmatpush.bf16.msra.mxu0 %v1930
    %2322 = vmatmul.bf16.gmra.mxu0 %v1611
    %v2323 = vpop.f32.mrf.mxu0
    %v2324 = vadd.f32 %v2266, %v2323
    %v2325 = vpop.f32.mrf.mxu0
    %v2326 = vadd.f32 %v2268, %v2325
    %2327 = vmatmul.bf16.gmra.mxu0 %v1613
    %v2328 = vpop.f32.mrf.mxu0
    %v2329 = vadd.f32 %v2271, %v2328
    %v2330 = vpop.f32.mrf.mxu0
    %v2331 = vadd.f32 %v2273, %v2330
    %2332 = vmatmul.bf16.gmra.mxu0 %v1615
    %v2333 = vpop.f32.mrf.mxu0
    %v2334 = vadd.f32 %v2276, %v2333
    %v2335 = vpop.f32.mrf.mxu0
    %v2336 = vadd.f32 %v2278, %v2335
    %2337 = vmatmul.bf16.gmra.mxu0 %v1617
    %v2338 = vpop.f32.mrf.mxu0
    %v2339 = vadd.f32 %v2281, %v2338
    %v2340 = vpop.f32.mrf.mxu0
    %v2341 = vadd.f32 %v2283, %v2340
    %2342 = vmatmul.bf16.gmra.mxu0 %v1619
    %v2343 = vpop.f32.mrf.mxu0
    %v2344 = vadd.f32 %v2286, %v2343
    %v2345 = vpop.f32.mrf.mxu0
    %v2346 = vadd.f32 %v2288, %v2345
    %2347 = vmatmul.bf16.gmra.mxu0 %v1621
    %v2348 = vpop.f32.mrf.mxu0
    %v2349 = vadd.f32 %v2291, %v2348
    %v2350 = vpop.f32.mrf.mxu0
    %v2351 = vadd.f32 %v2293, %v2350
    %2352 = vmatmul.bf16.gmra.mxu0 %v1623
    %v2353 = vpop.f32.mrf.mxu0
    %v2354 = vadd.f32 %v2296, %v2353
    %v2355 = vpop.f32.mrf.mxu0
    %v2356 = vadd.f32 %v2298, %v2355
    %2357 = vmatmul.bf16.gmra.mxu0 %v1625
    %v2358 = vpop.f32.mrf.mxu0
    %v2359 = vadd.f32 %v2301, %v2358
    %v2360 = vpop.f32.mrf.mxu0
    %v2361 = vadd.f32 %v2303, %v2360
    %2362 = vmatmul.bf16.gmra.mxu0 %v1627
    %v2363 = vpop.f32.mrf.mxu0
    %v2364 = vadd.f32 %v2306, %v2363
    %v2365 = vpop.f32.mrf.mxu0
    %v2366 = vadd.f32 %v2308, %v2365
    %2367 = vmatmul.bf16.gmra.mxu0 %v1629
    %v2368 = vpop.f32.mrf.mxu0
    %v2369 = vadd.f32 %v2311, %v2368
    %v2370 = vpop.f32.mrf.mxu0
    %2371 = vdwg.mxu0
    %2372 = vmatpush.bf16.msra.mxu0 %v1927
    %2373 = vmatpush.bf16.msra.mxu0 %v1923
    %2374 = vmatpush.bf16.msra.mxu0 %v1919
    %2375 = vmatpush.bf16.msra.mxu0 %v1915
    %2376 = vmatpush.bf16.msra.mxu0 %v1911
    %2377 = vmatpush.bf16.msra.mxu0 %v1907
    %2378 = vmatpush.bf16.msra.mxu0 %v1903
    %2379 = vmatpush.bf16.msra.mxu0 %v1899
    %2380 = vmatmul.bf16.gmra.mxu0 %v1610
    %v2381 = vpop.f32.mrf.mxu0
    %v2382 = vadd.f32 %v1699, %v2381
    %v2383 = vpop.f32.mrf.mxu0
    %v2384 = vadd.f32 %v1699, %v2383
    %2385 = vmatmul.bf16.gmra.mxu0 %v1612
    %v2386 = vpop.f32.mrf.mxu0
    %v2387 = vadd.f32 %v1699, %v2386
    %v2388 = vpop.f32.mrf.mxu0
    %v2389 = vadd.f32 %v1699, %v2388
    %2390 = vmatmul.bf16.gmra.mxu0 %v1614
    %v2391 = vpop.f32.mrf.mxu0
    %v2392 = vadd.f32 %v1699, %v2391
    %v2393 = vpop.f32.mrf.mxu0
    %v2394 = vadd.f32 %v1699, %v2393
    %2395 = vmatmul.bf16.gmra.mxu0 %v1616
    %v2396 = vpop.f32.mrf.mxu0
    %v2397 = vadd.f32 %v1699, %v2396
    %v2398 = vpop.f32.mrf.mxu0
    %v2399 = vadd.f32 %v1699, %v2398
    %2400 = vmatmul.bf16.gmra.mxu0 %v1618
    %v2401 = vpop.f32.mrf.mxu0
    %v2402 = vadd.f32 %v1699, %v2401
    %v2403 = vpop.f32.mrf.mxu0
    %v2404 = vadd.f32 %v1699, %v2403
    %2405 = vmatmul.bf16.gmra.mxu0 %v1620
    %v2406 = vpop.f32.mrf.mxu0
    %v2407 = vadd.f32 %v1699, %v2406
    %v2408 = vpop.f32.mrf.mxu0
    %v2409 = vadd.f32 %v1699, %v2408
    %2410 = vmatmul.bf16.gmra.mxu0 %v1622
    %v2411 = vpop.f32.mrf.mxu0
    %v2412 = vadd.f32 %v1699, %v2411
    %v2413 = vpop.f32.mrf.mxu0
    %v2414 = vadd.f32 %v1699, %v2413
    %2415 = vmatmul.bf16.gmra.mxu0 %v1624
    %v2416 = vpop.f32.mrf.mxu0
    %v2417 = vadd.f32 %v1699, %v2416
    %v2418 = vpop.f32.mrf.mxu0
    %v2419 = vadd.f32 %v1699, %v2418
    %2420 = vmatmul.bf16.gmra.mxu0 %v1626
    %v2421 = vpop.f32.mrf.mxu0
    %v2422 = vadd.f32 %v1699, %v2421
    %v2423 = vpop.f32.mrf.mxu0
    %v2424 = vadd.f32 %v1699, %v2423
    %2425 = vmatmul.bf16.gmra.mxu0 %v1628
    %v2426 = vpop.f32.mrf.mxu0
    %v2427 = vadd.f32 %v1699, %v2426
    %v2428 = vpop.f32.mrf.mxu0
    %2429 = vdwg.mxu0
    %2430 = vmatpush.bf16.msra.mxu0 %v1959
    %2431 = vmatpush.bf16.msra.mxu0 %v1955
    %2432 = vmatpush.bf16.msra.mxu0 %v1951
    %2433 = vmatpush.bf16.msra.mxu0 %v1947
    %2434 = vmatpush.bf16.msra.mxu0 %v1943
    %2435 = vmatpush.bf16.msra.mxu0 %v1939
    %2436 = vmatpush.bf16.msra.mxu0 %v1935
    %2437 = vmatpush.bf16.msra.mxu0 %v1931
    %2438 = vmatmul.bf16.gmra.mxu0 %v1611
    %v2439 = vpop.f32.mrf.mxu0
    %v2440 = vadd.f32 %v2382, %v2439
    %v2441 = vpop.f32.mrf.mxu0
    %v2442 = vadd.f32 %v2384, %v2441
    %2443 = vmatmul.bf16.gmra.mxu0 %v1613
    %v2444 = vpop.f32.mrf.mxu0
    %v2445 = vadd.f32 %v2387, %v2444
    %v2446 = vpop.f32.mrf.mxu0
    %v2447 = vadd.f32 %v2389, %v2446
    %2448 = vmatmul.bf16.gmra.mxu0 %v1615
    %v2449 = vpop.f32.mrf.mxu0
    %v2450 = vadd.f32 %v2392, %v2449
    %v2451 = vpop.f32.mrf.mxu0
    %v2452 = vadd.f32 %v2394, %v2451
    %2453 = vmatmul.bf16.gmra.mxu0 %v1617
    %v2454 = vpop.f32.mrf.mxu0
    %v2455 = vadd.f32 %v2397, %v2454
    %v2456 = vpop.f32.mrf.mxu0
    %v2457 = vadd.f32 %v2399, %v2456
    %2458 = vmatmul.bf16.gmra.mxu0 %v1619
    %v2459 = vpop.f32.mrf.mxu0
    %v2460 = vadd.f32 %v2402, %v2459
    %v2461 = vpop.f32.mrf.mxu0
    %v2462 = vadd.f32 %v2404, %v2461
    %2463 = vmatmul.bf16.gmra.mxu0 %v1621
    %v2464 = vpop.f32.mrf.mxu0
    %v2465 = vadd.f32 %v2407, %v2464
    %v2466 = vpop.f32.mrf.mxu0
    %v2467 = vadd.f32 %v2409, %v2466
    %2468 = vmatmul.bf16.gmra.mxu0 %v1623
    %v2469 = vpop.f32.mrf.mxu0
    %v2470 = vadd.f32 %v2412, %v2469
    %v2471 = vpop.f32.mrf.mxu0
    %v2472 = vadd.f32 %v2414, %v2471
    %2473 = vmatmul.bf16.gmra.mxu0 %v1625
    %v2474 = vpop.f32.mrf.mxu0
    %v2475 = vadd.f32 %v2417, %v2474
    %v2476 = vpop.f32.mrf.mxu0
    %v2477 = vadd.f32 %v2419, %v2476
    %2478 = vmatmul.bf16.gmra.mxu0 %v1627
    %v2479 = vpop.f32.mrf.mxu0
    %v2480 = vadd.f32 %v2422, %v2479
    %v2481 = vpop.f32.mrf.mxu0
    %v2482 = vadd.f32 %v2424, %v2481
    %2483 = vmatmul.bf16.gmra.mxu0 %v1629
    %v2484 = vpop.f32.mrf.mxu0
    %v2485 = vadd.f32 %v2427, %v2484
    %v2486 = vpop.f32.mrf.mxu0
    %2487 = vdwg.mxu0
    %v2488 = vmax.f32 %v2092, 0.0
    %v2489 = vmax.f32 %v2208, 0.0
    %v2490 = vmax.f32 %v2324, 0.0
    %v2491 = vmax.f32 %v2440, 0.0
    %v2492 = vmax.f32 %v2094, 0.0
    %v2493 = vmax.f32 %v2210, 0.0
    %v2494 = vmax.f32 %v2326, 0.0
    %v2495 = vmax.f32 %v2442, 0.0
    %v2496 = vmax.f32 %v2097, 0.0
    %v2497 = vmax.f32 %v2213, 0.0
    %v2498 = vmax.f32 %v2329, 0.0
    %v2499 = vmax.f32 %v2445, 0.0
    %v2500 = vmax.f32 %v2099, 0.0
    %v2501 = vmax.f32 %v2215, 0.0
    %v2502 = vmax.f32 %v2331, 0.0
    %v2503 = vmax.f32 %v2447, 0.0
    %v2504 = vmax.f32 %v2102, 0.0
    %v2505 = vmax.f32 %v2218, 0.0
    %v2506 = vmax.f32 %v2334, 0.0
    %v2507 = vmax.f32 %v2450, 0.0
    %v2508 = vmax.f32 %v2104, 0.0
    %v2509 = vmax.f32 %v2220, 0.0
    %v2510 = vmax.f32 %v2336, 0.0
    %v2511 = vmax.f32 %v2452, 0.0
    %v2512 = vmax.f32 %v2107, 0.0
    %v2513 = vmax.f32 %v2223, 0.0
    %v2514 = vmax.f32 %v2339, 0.0
    %v2515 = vmax.f32 %v2455, 0.0
    %v2516 = vmax.f32 %v2109, 0.0
    %v2517 = vmax.f32 %v2225, 0.0
    %v2518 = vmax.f32 %v2341, 0.0
    %v2519 = vmax.f32 %v2457, 0.0
    %v2520 = vmax.f32 %v2112, 0.0
    %v2521 = vmax.f32 %v2228, 0.0
    %v2522 = vmax.f32 %v2344, 0.0
    %v2523 = vmax.f32 %v2460, 0.0
    %v2524 = vmax.f32 %v2114, 0.0
    %v2525 = vmax.f32 %v2230, 0.0
    %v2526 = vmax.f32 %v2346, 0.0
    %v2527 = vmax.f32 %v2462, 0.0
    %v2528 = vmax.f32 %v2117, 0.0
    %v2529 = vmax.f32 %v2233, 0.0
    %v2530 = vmax.f32 %v2349, 0.0
    %v2531 = vmax.f32 %v2465, 0.0
    %v2532 = vmax.f32 %v2119, 0.0
    %v2533 = vmax.f32 %v2235, 0.0
    %v2534 = vmax.f32 %v2351, 0.0
    %v2535 = vmax.f32 %v2467, 0.0
    %v2536 = vmax.f32 %v2122, 0.0
    %v2537 = vmax.f32 %v2238, 0.0
    %v2538 = vmax.f32 %v2354, 0.0
    %v2539 = vmax.f32 %v2470, 0.0
    %v2540 = vmax.f32 %v2124, 0.0
    %v2541 = vmax.f32 %v2240, 0.0
    %v2542 = vmax.f32 %v2356, 0.0
    %v2543 = vmax.f32 %v2472, 0.0
    %v2544 = vmax.f32 %v2127, 0.0
    %v2545 = vmax.f32 %v2243, 0.0
    %v2546 = vmax.f32 %v2359, 0.0
    %v2547 = vmax.f32 %v2475, 0.0
    %v2548 = vmax.f32 %v2129, 0.0
    %v2549 = vmax.f32 %v2245, 0.0
    %v2550 = vmax.f32 %v2361, 0.0
    %v2551 = vmax.f32 %v2477, 0.0
    %v2552 = vmax.f32 %v2132, 0.0
    %v2553 = vmax.f32 %v2248, 0.0
    %v2554 = vmax.f32 %v2364, 0.0
    %v2555 = vmax.f32 %v2480, 0.0
    %v2556 = vmax.f32 %v2134, 0.0
    %v2557 = vmax.f32 %v2250, 0.0
    %v2558 = vmax.f32 %v2366, 0.0
    %v2559 = vmax.f32 %v2482, 0.0
    %v2560 = vmax.f32 %v2137, 0.0
    %v2561 = vmax.f32 %v2253, 0.0
    %v2562 = vmax.f32 %v2369, 0.0
    %v2563 = vmax.f32 %v2485, 0.0
    %v2564 = vpack.c.bf16 %v2488, %v2488
    %v2565 = vpack.c.bf16 %v2489, %v2489
    %v2566 = vpack.c.bf16 %v2490, %v2490
    %v2567 = vpack.c.bf16 %v2491, %v2491
    %v2568 = vld [vmem:[#allocation17] sm:$0xf]
    %v2569 = vld [vmem:[#allocation17 + $0x4] sm:$0xf]
    %v2570 = vld [vmem:[#allocation17 + $0x8] sm:$0xf]
    %v2571 = vld [vmem:[#allocation17 + $0xc] sm:$0xf]
    %v2572 = vld [vmem:[#allocation17 + $0x10] sm:$0xf]
    %v2573 = vld [vmem:[#allocation17 + $0x14] sm:$0xf]
    %v2574 = vld [vmem:[#allocation17 + $0x18] sm:$0xf]
    %v2575 = vld [vmem:[#allocation17 + $0x1c] sm:$0xf]
    %v2576 = vld [vmem:[#allocation17 + $0x20] sm:$0xf]
    %v2577 = vld [vmem:[#allocation17 + $0x24] sm:$0xf]
    %v2578 = vld [vmem:[#allocation17 + $0x28] sm:$0xf]
    %v2579 = vld [vmem:[#allocation17 + $0x2c] sm:$0xf]
    %v2580 = vld [vmem:[#allocation17 + $0x30] sm:$0xf]
    %v2581 = vld [vmem:[#allocation17 + $0x34] sm:$0xf]
    %v2582 = vld [vmem:[#allocation17 + $0x38] sm:$0xf]
    %v2583 = vld [vmem:[#allocation17 + $0x3c] sm:$0xf]
    %v2584 = vld [vmem:[#allocation17 + $0x40] sm:$0xf]
    %v2585 = vld [vmem:[#allocation17 + $0x44] sm:$0xf]
    %v2586 = vld [vmem:[#allocation17 + $0x48] sm:$0xf]
    %v2587 = vld [vmem:[#allocation17 + $0x4c] sm:$0xf]
    %v2588 = vld [vmem:[#allocation17 + $0x50] sm:$0xf]
    %v2589 = vld [vmem:[#allocation17 + $0x54] sm:$0xf]
    %v2590 = vld [vmem:[#allocation17 + $0x58] sm:$0xf]
    %v2591 = vld [vmem:[#allocation17 + $0x5c] sm:$0xf]
    %v2592 = vld [vmem:[#allocation17 + $0x60] sm:$0xf]
    %v2593 = vld [vmem:[#allocation17 + $0x64] sm:$0xf]
    %v2594 = vld [vmem:[#allocation17 + $0x68] sm:$0xf]
    %v2595 = vld [vmem:[#allocation17 + $0x6c] sm:$0xf]
    %v2596 = vld [vmem:[#allocation17 + $0x70] sm:$0xf]
    %v2597 = vld [vmem:[#allocation17 + $0x74] sm:$0xf]
    %v2598 = vld [vmem:[#allocation17 + $0x78] sm:$0xf]
    %v2599 = vld [vmem:[#allocation17 + $0x7c] sm:$0xf]
    %v2600 = vld [vmem:[#allocation17 + $0x80] sm:$0xf]
    %v2601 = vld [vmem:[#allocation17 + $0x84] sm:$0xf]
    %v2602 = vld [vmem:[#allocation17 + $0x88] sm:$0xf]
    %v2603 = vld [vmem:[#allocation17 + $0x8c] sm:$0xf]
    %v2604 = vld [vmem:[#allocation17 + $0x90] sm:$0xf]
    %v2605 = vld [vmem:[#allocation17 + $0x94] sm:$0xf]
    %v2606 = vld [vmem:[#allocation17 + $0x98] sm:$0xf]
    %v2607 = vld [vmem:[#allocation17 + $0x9c] sm:$0xf]
    %v2608 = vld [vmem:[#allocation17 + $0xa0] sm:$0xf]
    %v2609 = vld [vmem:[#allocation17 + $0xa4] sm:$0xf]
    %v2610 = vld [vmem:[#allocation17 + $0xa8] sm:$0xf]
    %v2611 = vld [vmem:[#allocation17 + $0xac] sm:$0xf]
    %v2612 = vld [vmem:[#allocation17 + $0xb0] sm:$0xf]
    %v2613 = vld [vmem:[#allocation17 + $0xb4] sm:$0xf]
    %v2614 = vld [vmem:[#allocation17 + $0xb8] sm:$0xf]
    %v2615 = vld [vmem:[#allocation17 + $0xbc] sm:$0xf]
    %v2616 = vld [vmem:[#allocation17 + $0xc0] sm:$0xf]
    %v2617 = vld [vmem:[#allocation17 + $0xc4] sm:$0xf]
    %v2618 = vld [vmem:[#allocation17 + $0xc8] sm:$0xf]
    %v2619 = vld [vmem:[#allocation17 + $0xcc] sm:$0xf]
    %v2620 = vld [vmem:[#allocation17 + $0xd0] sm:$0xf]
    %v2621 = vld [vmem:[#allocation17 + $0xd4] sm:$0xf]
    %v2622 = vld [vmem:[#allocation17 + $0xd8] sm:$0xf]
    %v2623 = vld [vmem:[#allocation17 + $0xdc] sm:$0xf]
    %v2624 = vld [vmem:[#allocation17 + $0xe0] sm:$0xf]
    %v2625 = vld [vmem:[#allocation17 + $0xe4] sm:$0xf]
    %v2626 = vld [vmem:[#allocation17 + $0xe8] sm:$0xf]
    %v2627 = vld [vmem:[#allocation17 + $0xec] sm:$0xf]
    %v2628 = vld [vmem:[#allocation17 + $0xf0] sm:$0xf]
    %v2629 = vld [vmem:[#allocation17 + $0xf4] sm:$0xf]
    %v2630 = vld [vmem:[#allocation17 + $0xf8] sm:$0xf]
    %v2631 = vld [vmem:[#allocation17 + $0xfc] sm:$0xf]
    %v2632 = vpack.c.bf16 %v2492, %v2492
    %v2633 = vpack.c.bf16 %v2493, %v2493
    %v2634 = vpack.c.bf16 %v2494, %v2494
    %v2635 = vpack.c.bf16 %v2495, %v2495
    %s2636 = scalar_lea.vmem [#allocation17], 256
    %v2637 = vld [vmem:[%s2636] sm:$0xf]
    %v2638 = vld [vmem:[%s2636 + $0x4] sm:$0xf]
    %v2639 = vld [vmem:[%s2636 + $0x8] sm:$0xf]
    %v2640 = vld [vmem:[%s2636 + $0xc] sm:$0xf]
    %v2641 = vld [vmem:[%s2636 + $0x10] sm:$0xf]
    %v2642 = vld [vmem:[%s2636 + $0x14] sm:$0xf]
    %v2643 = vld [vmem:[%s2636 + $0x18] sm:$0xf]
    %v2644 = vld [vmem:[%s2636 + $0x1c] sm:$0xf]
    %v2645 = vld [vmem:[%s2636 + $0x20] sm:$0xf]
    %v2646 = vld [vmem:[%s2636 + $0x24] sm:$0xf]
    %v2647 = vld [vmem:[%s2636 + $0x28] sm:$0xf]
    %v2648 = vld [vmem:[%s2636 + $0x2c] sm:$0xf]
    %v2649 = vld [vmem:[%s2636 + $0x30] sm:$0xf]
    %v2650 = vld [vmem:[%s2636 + $0x34] sm:$0xf]
    %v2651 = vld [vmem:[%s2636 + $0x38] sm:$0xf]
    %v2652 = vld [vmem:[%s2636 + $0x3c] sm:$0xf]
    %v2653 = vld [vmem:[%s2636 + $0x40] sm:$0xf]
    %v2654 = vld [vmem:[%s2636 + $0x44] sm:$0xf]
    %v2655 = vld [vmem:[%s2636 + $0x48] sm:$0xf]
    %v2656 = vld [vmem:[%s2636 + $0x4c] sm:$0xf]
    %v2657 = vld [vmem:[%s2636 + $0x50] sm:$0xf]
    %v2658 = vld [vmem:[%s2636 + $0x54] sm:$0xf]
    %v2659 = vld [vmem:[%s2636 + $0x58] sm:$0xf]
    %v2660 = vld [vmem:[%s2636 + $0x5c] sm:$0xf]
    %v2661 = vld [vmem:[%s2636 + $0x60] sm:$0xf]
    %v2662 = vld [vmem:[%s2636 + $0x64] sm:$0xf]
    %v2663 = vld [vmem:[%s2636 + $0x68] sm:$0xf]
    %v2664 = vld [vmem:[%s2636 + $0x6c] sm:$0xf]
    %v2665 = vld [vmem:[%s2636 + $0x70] sm:$0xf]
    %v2666 = vld [vmem:[%s2636 + $0x74] sm:$0xf]
    %v2667 = vld [vmem:[%s2636 + $0x78] sm:$0xf]
    %v2668 = vld [vmem:[%s2636 + $0x7c] sm:$0xf]
    %v2669 = vld [vmem:[%s2636 + $0x80] sm:$0xf]
    %v2670 = vld [vmem:[%s2636 + $0x84] sm:$0xf]
    %v2671 = vld [vmem:[%s2636 + $0x88] sm:$0xf]
    %v2672 = vld [vmem:[%s2636 + $0x8c] sm:$0xf]
    %v2673 = vld [vmem:[%s2636 + $0x90] sm:$0xf]
    %v2674 = vld [vmem:[%s2636 + $0x94] sm:$0xf]
    %v2675 = vld [vmem:[%s2636 + $0x98] sm:$0xf]
    %v2676 = vld [vmem:[%s2636 + $0x9c] sm:$0xf]
    %v2677 = vld [vmem:[%s2636 + $0xa0] sm:$0xf]
    %v2678 = vld [vmem:[%s2636 + $0xa4] sm:$0xf]
    %v2679 = vld [vmem:[%s2636 + $0xa8] sm:$0xf]
    %v2680 = vld [vmem:[%s2636 + $0xac] sm:$0xf]
    %v2681 = vld [vmem:[%s2636 + $0xb0] sm:$0xf]
    %v2682 = vld [vmem:[%s2636 + $0xb4] sm:$0xf]
    %v2683 = vld [vmem:[%s2636 + $0xb8] sm:$0xf]
    %v2684 = vld [vmem:[%s2636 + $0xbc] sm:$0xf]
    %v2685 = vld [vmem:[%s2636 + $0xc0] sm:$0xf]
    %v2686 = vld [vmem:[%s2636 + $0xc4] sm:$0xf]
    %v2687 = vld [vmem:[%s2636 + $0xc8] sm:$0xf]
    %v2688 = vld [vmem:[%s2636 + $0xcc] sm:$0xf]
    %v2689 = vld [vmem:[%s2636 + $0xd0] sm:$0xf]
    %v2690 = vld [vmem:[%s2636 + $0xd4] sm:$0xf]
    %v2691 = vld [vmem:[%s2636 + $0xd8] sm:$0xf]
    %v2692 = vld [vmem:[%s2636 + $0xdc] sm:$0xf]
    %v2693 = vld [vmem:[%s2636 + $0xe0] sm:$0xf]
    %v2694 = vld [vmem:[%s2636 + $0xe4] sm:$0xf]
    %v2695 = vld [vmem:[%s2636 + $0xe8] sm:$0xf]
    %v2696 = vld [vmem:[%s2636 + $0xec] sm:$0xf]
    %v2697 = vld [vmem:[%s2636 + $0xf0] sm:$0xf]
    %v2698 = vld [vmem:[%s2636 + $0xf4] sm:$0xf]
    %v2699 = vld [vmem:[%s2636 + $0xf8] sm:$0xf]
    %v2700 = vld [vmem:[%s2636 + $0xfc] sm:$0xf]
    %v2765 = vunpack.c.l.b16 %v2637
    %v2766 = vunpack.c.l.b16 %v2638
    %v2767 = vunpack.c.l.b16 %v2639
    %v2768 = vunpack.c.l.b16 %v2640
    %v2769 = vunpack.c.l.b16 %v2641
    %v2770 = vunpack.c.l.b16 %v2642
    %v2771 = vunpack.c.l.b16 %v2643
    %v2772 = vunpack.c.l.b16 %v2644
    %v2773 = vunpack.c.l.b16 %v2645
    %v2774 = vunpack.c.l.b16 %v2646
    %v2775 = vunpack.c.l.b16 %v2647
    %v2776 = vunpack.c.l.b16 %v2648
    %v2777 = vunpack.c.l.b16 %v2649
    %v2778 = vunpack.c.l.b16 %v2650
    %v2779 = vunpack.c.l.b16 %v2651
    %v2780 = vunpack.c.l.b16 %v2652
    %v2781 = vunpack.c.l.b16 %v2653
    %v2782 = vunpack.c.l.b16 %v2654
    %v2783 = vunpack.c.l.b16 %v2655
    %v2784 = vunpack.c.l.b16 %v2656
    %v2785 = vunpack.c.l.b16 %v2657
    %v2786 = vunpack.c.l.b16 %v2658
    %v2787 = vunpack.c.l.b16 %v2659
    %v2788 = vunpack.c.l.b16 %v2660
    %v2789 = vunpack.c.l.b16 %v2661
    %v2790 = vunpack.c.l.b16 %v2662
    %v2791 = vunpack.c.l.b16 %v2663
    %v2792 = vunpack.c.l.b16 %v2664
    %v2793 = vunpack.c.l.b16 %v2665
    %v2794 = vunpack.c.l.b16 %v2666
    %v2795 = vunpack.c.l.b16 %v2667
    %v2796 = vunpack.c.l.b16 %v2668
    %v2797 = vunpack.c.l.b16 %v2669
    %v2798 = vunpack.c.l.b16 %v2670
    %v2799 = vunpack.c.l.b16 %v2671
    %v2800 = vunpack.c.l.b16 %v2672
    %v2801 = vunpack.c.l.b16 %v2673
    %v2802 = vunpack.c.l.b16 %v2674
    %v2803 = vunpack.c.l.b16 %v2675
    %v2804 = vunpack.c.l.b16 %v2676
    %v2805 = vunpack.c.l.b16 %v2677
    %v2806 = vunpack.c.l.b16 %v2678
    %v2807 = vunpack.c.l.b16 %v2679
    %v2808 = vunpack.c.l.b16 %v2680
    %v2809 = vunpack.c.l.b16 %v2681
    %v2810 = vunpack.c.l.b16 %v2682
    %v2811 = vunpack.c.l.b16 %v2683
    %v2812 = vunpack.c.l.b16 %v2684
    %v2813 = vunpack.c.l.b16 %v2685
    %v2814 = vunpack.c.l.b16 %v2686
    %v2815 = vunpack.c.l.b16 %v2687
    %v2816 = vunpack.c.l.b16 %v2688
    %v2817 = vunpack.c.l.b16 %v2689
    %v2818 = vunpack.c.l.b16 %v2690
    %v2819 = vunpack.c.l.b16 %v2691
    %v2820 = vunpack.c.l.b16 %v2692
    %v2821 = vunpack.c.l.b16 %v2693
    %v2822 = vunpack.c.l.b16 %v2694
    %v2823 = vunpack.c.l.b16 %v2695
    %v2824 = vunpack.c.l.b16 %v2696
    %v2825 = vunpack.c.l.b16 %v2697
    %v2826 = vunpack.c.l.b16 %v2698
    %v2827 = vunpack.c.l.b16 %v2699
    %v2828 = vunpack.c.l.b16 %v2700
    %v2829 = vpack.c.b16 %v2766, %v2765
    %v2830 = vpack.c.b16 %v2768, %v2767
    %v2831 = vpack.c.b16 %v2770, %v2769
    %v2832 = vpack.c.b16 %v2772, %v2771
    %v2833 = vpack.c.b16 %v2774, %v2773
    %v2834 = vpack.c.b16 %v2776, %v2775
    %v2835 = vpack.c.b16 %v2778, %v2777
    %v2836 = vpack.c.b16 %v2780, %v2779
    %v2837 = vpack.c.b16 %v2782, %v2781
    %v2838 = vpack.c.b16 %v2784, %v2783
    %v2839 = vpack.c.b16 %v2786, %v2785
    %v2840 = vpack.c.b16 %v2788, %v2787
    %v2841 = vpack.c.b16 %v2790, %v2789
    %v2842 = vpack.c.b16 %v2792, %v2791
    %v2843 = vpack.c.b16 %v2794, %v2793
    %v2844 = vpack.c.b16 %v2796, %v2795
    %v2845 = vpack.c.b16 %v2798, %v2797
    %v2846 = vpack.c.b16 %v2800, %v2799
    %v2847 = vpack.c.b16 %v2802, %v2801
    %v2848 = vpack.c.b16 %v2804, %v2803
    %v2849 = vpack.c.b16 %v2806, %v2805
    %v2850 = vpack.c.b16 %v2808, %v2807
    %v2851 = vpack.c.b16 %v2810, %v2809
    %v2852 = vpack.c.b16 %v2812, %v2811
    %v2853 = vpack.c.b16 %v2814, %v2813
    %v2854 = vpack.c.b16 %v2816, %v2815
    %v2855 = vpack.c.b16 %v2818, %v2817
    %v2856 = vpack.c.b16 %v2820, %v2819
    %v2857 = vpack.c.b16 %v2822, %v2821
    %v2858 = vpack.c.b16 %v2824, %v2823
    %v2859 = vpack.c.b16 %v2826, %v2825
    %v2860 = vpack.c.b16 %v2828, %v2827
    %2893 = vmatpush.bf16.msra.mxu0 %v2836
    %2894 = vmatpush.bf16.msra.mxu0 %v2835
    %2895 = vmatpush.bf16.msra.mxu0 %v2834
    %2896 = vmatpush.bf16.msra.mxu0 %v2833
    %2897 = vmatpush.bf16.msra.mxu0 %v2832
    %2898 = vmatpush.bf16.msra.mxu0 %v2831
    %2899 = vmatpush.bf16.msra.mxu0 %v2830
    %2900 = vmatpush.bf16.msra.mxu0 %v2829
    %2901 = vmatmul.bf16.gmra.mxu0 %v2632
    %v2902 = vpop.f32.mrf.mxu0
    %v2903 = vadd.f32 0.0, %v2902
    %v2904 = vpop.f32.mrf.mxu0
    %2905 = vdwg.mxu0
    %2906 = vmatpush.bf16.msra.mxu0 %v2844
    %2907 = vmatpush.bf16.msra.mxu0 %v2843
    %2908 = vmatpush.bf16.msra.mxu0 %v2842
    %2909 = vmatpush.bf16.msra.mxu0 %v2841
    %2910 = vmatpush.bf16.msra.mxu0 %v2840
    %2911 = vmatpush.bf16.msra.mxu0 %v2839
    %2912 = vmatpush.bf16.msra.mxu0 %v2838
    %2913 = vmatpush.bf16.msra.mxu0 %v2837
    %2914 = vmatmul.bf16.gmra.mxu0 %v2633
    %v2915 = vpop.f32.mrf.mxu0
    %v2916 = vadd.f32 %v2903, %v2915
    %v2917 = vpop.f32.mrf.mxu0
    %2918 = vdwg.mxu0
    %2919 = vmatpush.bf16.msra.mxu0 %v2852
    %2920 = vmatpush.bf16.msra.mxu0 %v2851
    %2921 = vmatpush.bf16.msra.mxu0 %v2850
    %2922 = vmatpush.bf16.msra.mxu0 %v2849
    %2923 = vmatpush.bf16.msra.mxu0 %v2848
    %2924 = vmatpush.bf16.msra.mxu0 %v2847
    %2925 = vmatpush.bf16.msra.mxu0 %v2846
    %2926 = vmatpush.bf16.msra.mxu0 %v2845
    %2927 = vmatmul.bf16.gmra.mxu0 %v2634
    %v2928 = vpop.f32.mrf.mxu0
    %v2929 = vadd.f32 %v2916, %v2928
    %v2930 = vpop.f32.mrf.mxu0
    %2931 = vdwg.mxu0
    %2932 = vmatpush.bf16.msra.mxu0 %v2860
    %2933 = vmatpush.bf16.msra.mxu0 %v2859
    %2934 = vmatpush.bf16.msra.mxu0 %v2858
    %2935 = vmatpush.bf16.msra.mxu0 %v2857
    %2936 = vmatpush.bf16.msra.mxu0 %v2856
    %2937 = vmatpush.bf16.msra.mxu0 %v2855
    %2938 = vmatpush.bf16.msra.mxu0 %v2854
    %2939 = vmatpush.bf16.msra.mxu0 %v2853
    %2940 = vmatmul.bf16.gmra.mxu0 %v2635
    %v2941 = vpop.f32.mrf.mxu0
    %v2942 = vadd.f32 %v2929, %v2941
    %v2943 = vpop.f32.mrf.mxu0
    %2944 = vdwg.mxu0
    %v3009 = vunpack.c.l.b16 %v2568
    %v3010 = vunpack.c.l.b16 %v2569
    %v3011 = vunpack.c.l.b16 %v2570
    %v3012 = vunpack.c.l.b16 %v2571
    %v3013 = vunpack.c.l.b16 %v2572
    %v3014 = vunpack.c.l.b16 %v2573
    %v3015 = vunpack.c.l.b16 %v2574
    %v3016 = vunpack.c.l.b16 %v2575
    %v3017 = vunpack.c.l.b16 %v2576
    %v3018 = vunpack.c.l.b16 %v2577
    %v3019 = vunpack.c.l.b16 %v2578
    %v3020 = vunpack.c.l.b16 %v2579
    %v3021 = vunpack.c.l.b16 %v2580
    %v3022 = vunpack.c.l.b16 %v2581
    %v3023 = vunpack.c.l.b16 %v2582
    %v3024 = vunpack.c.l.b16 %v2583
    %v3025 = vunpack.c.l.b16 %v2584
    %v3026 = vunpack.c.l.b16 %v2585
    %v3027 = vunpack.c.l.b16 %v2586
    %v3028 = vunpack.c.l.b16 %v2587
    %v3029 = vunpack.c.l.b16 %v2588
    %v3030 = vunpack.c.l.b16 %v2589
    %v3031 = vunpack.c.l.b16 %v2590
    %v3032 = vunpack.c.l.b16 %v2591
    %v3033 = vunpack.c.l.b16 %v2592
    %v3034 = vunpack.c.l.b16 %v2593
    %v3035 = vunpack.c.l.b16 %v2594
    %v3036 = vunpack.c.l.b16 %v2595
    %v3037 = vunpack.c.l.b16 %v2596
    %v3038 = vunpack.c.l.b16 %v2597
    %v3039 = vunpack.c.l.b16 %v2598
    %v3040 = vunpack.c.l.b16 %v2599
    %v3041 = vunpack.c.l.b16 %v2600
    %v3042 = vunpack.c.l.b16 %v2601
    %v3043 = vunpack.c.l.b16 %v2602
    %v3044 = vunpack.c.l.b16 %v2603
    %v3045 = vunpack.c.l.b16 %v2604
    %v3046 = vunpack.c.l.b16 %v2605
    %v3047 = vunpack.c.l.b16 %v2606
    %v3048 = vunpack.c.l.b16 %v2607
    %v3049 = vunpack.c.l.b16 %v2608
    %v3050 = vunpack.c.l.b16 %v2609
    %v3051 = vunpack.c.l.b16 %v2610
    %v3052 = vunpack.c.l.b16 %v2611
    %v3053 = vunpack.c.l.b16 %v2612
    %v3054 = vunpack.c.l.b16 %v2613
    %v3055 = vunpack.c.l.b16 %v2614
    %v3056 = vunpack.c.l.b16 %v2615
    %v3057 = vunpack.c.l.b16 %v2616
    %v3058 = vunpack.c.l.b16 %v2617
    %v3059 = vunpack.c.l.b16 %v2618
    %v3060 = vunpack.c.l.b16 %v2619
    %v3061 = vunpack.c.l.b16 %v2620
    %v3062 = vunpack.c.l.b16 %v2621
    %v3063 = vunpack.c.l.b16 %v2622
    %v3064 = vunpack.c.l.b16 %v2623
    %v3065 = vunpack.c.l.b16 %v2624
    %v3066 = vunpack.c.l.b16 %v2625
    %v3067 = vunpack.c.l.b16 %v2626
    %v3068 = vunpack.c.l.b16 %v2627
    %v3069 = vunpack.c.l.b16 %v2628
    %v3070 = vunpack.c.l.b16 %v2629
    %v3071 = vunpack.c.l.b16 %v2630
    %v3072 = vunpack.c.l.b16 %v2631
    %v3073 = vpack.c.b16 %v3010, %v3009
    %v3074 = vpack.c.b16 %v3012, %v3011
    %v3075 = vpack.c.b16 %v3014, %v3013
    %v3076 = vpack.c.b16 %v3016, %v3015
    %v3077 = vpack.c.b16 %v3018, %v3017
    %v3078 = vpack.c.b16 %v3020, %v3019
    %v3079 = vpack.c.b16 %v3022, %v3021
    %v3080 = vpack.c.b16 %v3024, %v3023
    %v3081 = vpack.c.b16 %v3026, %v3025
    %v3082 = vpack.c.b16 %v3028, %v3027
    %v3083 = vpack.c.b16 %v3030, %v3029
    %v3084 = vpack.c.b16 %v3032, %v3031
    %v3085 = vpack.c.b16 %v3034, %v3033
    %v3086 = vpack.c.b16 %v3036, %v3035
    %v3087 = vpack.c.b16 %v3038, %v3037
    %v3088 = vpack.c.b16 %v3040, %v3039
    %v3089 = vpack.c.b16 %v3042, %v3041
    %v3090 = vpack.c.b16 %v3044, %v3043
    %v3091 = vpack.c.b16 %v3046, %v3045
    %v3092 = vpack.c.b16 %v3048, %v3047
    %v3093 = vpack.c.b16 %v3050, %v3049
    %v3094 = vpack.c.b16 %v3052, %v3051
    %v3095 = vpack.c.b16 %v3054, %v3053
    %v3096 = vpack.c.b16 %v3056, %v3055
    %v3097 = vpack.c.b16 %v3058, %v3057
    %v3098 = vpack.c.b16 %v3060, %v3059
    %v3099 = vpack.c.b16 %v3062, %v3061
    %v3100 = vpack.c.b16 %v3064, %v3063
    %v3101 = vpack.c.b16 %v3066, %v3065
    %v3102 = vpack.c.b16 %v3068, %v3067
    %v3103 = vpack.c.b16 %v3070, %v3069
    %v3104 = vpack.c.b16 %v3072, %v3071
    %3137 = vmatpush.bf16.msra.mxu0 %v3080
    %3138 = vmatpush.bf16.msra.mxu0 %v3079
    %3139 = vmatpush.bf16.msra.mxu0 %v3078
    %3140 = vmatpush.bf16.msra.mxu0 %v3077
    %3141 = vmatpush.bf16.msra.mxu0 %v3076
    %3142 = vmatpush.bf16.msra.mxu0 %v3075
    %3143 = vmatpush.bf16.msra.mxu0 %v3074
    %3144 = vmatpush.bf16.msra.mxu0 %v3073
    %3145 = vmatmul.bf16.gmra.mxu0 %v2564
    %v3146 = vpop.f32.mrf.mxu0
    %v3147 = vadd.f32 %v2942, %v3146
    %v3148 = vpop.f32.mrf.mxu0
    %3149 = vdwg.mxu0
    %3150 = vmatpush.bf16.msra.mxu0 %v3088
    %3151 = vmatpush.bf16.msra.mxu0 %v3087
    %3152 = vmatpush.bf16.msra.mxu0 %v3086
    %3153 = vmatpush.bf16.msra.mxu0 %v3085
    %3154 = vmatpush.bf16.msra.mxu0 %v3084
    %3155 = vmatpush.bf16.msra.mxu0 %v3083
    %3156 = vmatpush.bf16.msra.mxu0 %v3082
    %3157 = vmatpush.bf16.msra.mxu0 %v3081
    %3158 = vmatmul.bf16.gmra.mxu0 %v2565
    %v3159 = vpop.f32.mrf.mxu0
    %v3160 = vadd.f32 %v3147, %v3159
    %v3161 = vpop.f32.mrf.mxu0
    %3162 = vdwg.mxu0
    %3163 = vmatpush.bf16.msra.mxu0 %v3096
    %3164 = vmatpush.bf16.msra.mxu0 %v3095
    %3165 = vmatpush.bf16.msra.mxu0 %v3094
    %3166 = vmatpush.bf16.msra.mxu0 %v3093
    %3167 = vmatpush.bf16.msra.mxu0 %v3092
    %3168 = vmatpush.bf16.msra.mxu0 %v3091
    %3169 = vmatpush.bf16.msra.mxu0 %v3090
    %3170 = vmatpush.bf16.msra.mxu0 %v3089
    %3171 = vmatmul.bf16.gmra.mxu0 %v2566
    %v3172 = vpop.f32.mrf.mxu0
    %v3173 = vadd.f32 %v3160, %v3172
    %v3174 = vpop.f32.mrf.mxu0
    %3175 = vdwg.mxu0
    %3176 = vmatpush.bf16.msra.mxu0 %v3104
    %3177 = vmatpush.bf16.msra.mxu0 %v3103
    %3178 = vmatpush.bf16.msra.mxu0 %v3102
    %3179 = vmatpush.bf16.msra.mxu0 %v3101
    %3180 = vmatpush.bf16.msra.mxu0 %v3100
    %3181 = vmatpush.bf16.msra.mxu0 %v3099
    %3182 = vmatpush.bf16.msra.mxu0 %v3098
    %3183 = vmatpush.bf16.msra.mxu0 %v3097
    %3184 = vmatmul.bf16.gmra.mxu0 %v2567
    %v3185 = vpop.f32.mrf.mxu0
    %v3186 = vadd.f32 %v3173, %v3185
    %v3187 = vpop.f32.mrf.mxu0
    %3188 = vdwg.mxu0
    %v3189 = vpack.c.bf16 %v2496, %v2496
    %v3190 = vpack.c.bf16 %v2497, %v2497
    %v3191 = vpack.c.bf16 %v2498, %v2498
    %v3192 = vpack.c.bf16 %v2499, %v2499
    %s3193 = scalar_lea.vmem [#allocation17], 512
    %v3194 = vld [vmem:[%s3193] sm:$0xf]
    %v3195 = vld [vmem:[%s3193 + $0x4] sm:$0xf]
    %v3196 = vld [vmem:[%s3193 + $0x8] sm:$0xf]
    %v3197 = vld [vmem:[%s3193 + $0xc] sm:$0xf]
    %v3198 = vld [vmem:[%s3193 + $0x10] sm:$0xf]
    %v3199 = vld [vmem:[%s3193 + $0x14] sm:$0xf]
    %v3200 = vld [vmem:[%s3193 + $0x18] sm:$0xf]
    %v3201 = vld [vmem:[%s3193 + $0x1c] sm:$0xf]
    %v3202 = vld [vmem:[%s3193 + $0x20] sm:$0xf]
    %v3203 = vld [vmem:[%s3193 + $0x24] sm:$0xf]
    %v3204 = vld [vmem:[%s3193 + $0x28] sm:$0xf]
    %v3205 = vld [vmem:[%s3193 + $0x2c] sm:$0xf]
    %v3206 = vld [vmem:[%s3193 + $0x30] sm:$0xf]
    %v3207 = vld [vmem:[%s3193 + $0x34] sm:$0xf]
    %v3208 = vld [vmem:[%s3193 + $0x38] sm:$0xf]
    %v3209 = vld [vmem:[%s3193 + $0x3c] sm:$0xf]
    %v3210 = vld [vmem:[%s3193 + $0x40] sm:$0xf]
    %v3211 = vld [vmem:[%s3193 + $0x44] sm:$0xf]
    %v3212 = vld [vmem:[%s3193 + $0x48] sm:$0xf]
    %v3213 = vld [vmem:[%s3193 + $0x4c] sm:$0xf]
    %v3214 = vld [vmem:[%s3193 + $0x50] sm:$0xf]
    %v3215 = vld [vmem:[%s3193 + $0x54] sm:$0xf]
    %v3216 = vld [vmem:[%s3193 + $0x58] sm:$0xf]
    %v3217 = vld [vmem:[%s3193 + $0x5c] sm:$0xf]
    %v3218 = vld [vmem:[%s3193 + $0x60] sm:$0xf]
    %v3219 = vld [vmem:[%s3193 + $0x64] sm:$0xf]
    %v3220 = vld [vmem:[%s3193 + $0x68] sm:$0xf]
    %v3221 = vld [vmem:[%s3193 + $0x6c] sm:$0xf]
    %v3222 = vld [vmem:[%s3193 + $0x70] sm:$0xf]
    %v3223 = vld [vmem:[%s3193 + $0x74] sm:$0xf]
    %v3224 = vld [vmem:[%s3193 + $0x78] sm:$0xf]
    %v3225 = vld [vmem:[%s3193 + $0x7c] sm:$0xf]
    %v3226 = vld [vmem:[%s3193 + $0x80] sm:$0xf]
    %v3227 = vld [vmem:[%s3193 + $0x84] sm:$0xf]
    %v3228 = vld [vmem:[%s3193 + $0x88] sm:$0xf]
    %v3229 = vld [vmem:[%s3193 + $0x8c] sm:$0xf]
    %v3230 = vld [vmem:[%s3193 + $0x90] sm:$0xf]
    %v3231 = vld [vmem:[%s3193 + $0x94] sm:$0xf]
    %v3232 = vld [vmem:[%s3193 + $0x98] sm:$0xf]
    %v3233 = vld [vmem:[%s3193 + $0x9c] sm:$0xf]
    %v3234 = vld [vmem:[%s3193 + $0xa0] sm:$0xf]
    %v3235 = vld [vmem:[%s3193 + $0xa4] sm:$0xf]
    %v3236 = vld [vmem:[%s3193 + $0xa8] sm:$0xf]
    %v3237 = vld [vmem:[%s3193 + $0xac] sm:$0xf]
    %v3238 = vld [vmem:[%s3193 + $0xb0] sm:$0xf]
    %v3239 = vld [vmem:[%s3193 + $0xb4] sm:$0xf]
    %v3240 = vld [vmem:[%s3193 + $0xb8] sm:$0xf]
    %v3241 = vld [vmem:[%s3193 + $0xbc] sm:$0xf]
    %v3242 = vld [vmem:[%s3193 + $0xc0] sm:$0xf]
    %v3243 = vld [vmem:[%s3193 + $0xc4] sm:$0xf]
    %v3244 = vld [vmem:[%s3193 + $0xc8] sm:$0xf]
    %v3245 = vld [vmem:[%s3193 + $0xcc] sm:$0xf]
    %v3246 = vld [vmem:[%s3193 + $0xd0] sm:$0xf]
    %v3247 = vld [vmem:[%s3193 + $0xd4] sm:$0xf]
    %v3248 = vld [vmem:[%s3193 + $0xd8] sm:$0xf]
    %v3249 = vld [vmem:[%s3193 + $0xdc] sm:$0xf]
    %v3250 = vld [vmem:[%s3193 + $0xe0] sm:$0xf]
    %v3251 = vld [vmem:[%s3193 + $0xe4] sm:$0xf]
    %v3252 = vld [vmem:[%s3193 + $0xe8] sm:$0xf]
    %v3253 = vld [vmem:[%s3193 + $0xec] sm:$0xf]
    %v3254 = vld [vmem:[%s3193 + $0xf0] sm:$0xf]
    %v3255 = vld [vmem:[%s3193 + $0xf4] sm:$0xf]
    %v3256 = vld [vmem:[%s3193 + $0xf8] sm:$0xf]
    %v3257 = vld [vmem:[%s3193 + $0xfc] sm:$0xf]
    %v3322 = vunpack.c.l.b16 %v3194
    %v3323 = vunpack.c.l.b16 %v3195
    %v3324 = vunpack.c.l.b16 %v3196
    %v3325 = vunpack.c.l.b16 %v3197
    %v3326 = vunpack.c.l.b16 %v3198
    %v3327 = vunpack.c.l.b16 %v3199
    %v3328 = vunpack.c.l.b16 %v3200
    %v3329 = vunpack.c.l.b16 %v3201
    %v3330 = vunpack.c.l.b16 %v3202
    %v3331 = vunpack.c.l.b16 %v3203
    %v3332 = vunpack.c.l.b16 %v3204
    %v3333 = vunpack.c.l.b16 %v3205
    %v3334 = vunpack.c.l.b16 %v3206
    %v3335 = vunpack.c.l.b16 %v3207
    %v3336 = vunpack.c.l.b16 %v3208
    %v3337 = vunpack.c.l.b16 %v3209
    %v3338 = vunpack.c.l.b16 %v3210
    %v3339 = vunpack.c.l.b16 %v3211
    %v3340 = vunpack.c.l.b16 %v3212
    %v3341 = vunpack.c.l.b16 %v3213
    %v3342 = vunpack.c.l.b16 %v3214
    %v3343 = vunpack.c.l.b16 %v3215
    %v3344 = vunpack.c.l.b16 %v3216
    %v3345 = vunpack.c.l.b16 %v3217
    %v3346 = vunpack.c.l.b16 %v3218
    %v3347 = vunpack.c.l.b16 %v3219
    %v3348 = vunpack.c.l.b16 %v3220
    %v3349 = vunpack.c.l.b16 %v3221
    %v3350 = vunpack.c.l.b16 %v3222
    %v3351 = vunpack.c.l.b16 %v3223
    %v3352 = vunpack.c.l.b16 %v3224
    %v3353 = vunpack.c.l.b16 %v3225
    %v3354 = vunpack.c.l.b16 %v3226
    %v3355 = vunpack.c.l.b16 %v3227
    %v3356 = vunpack.c.l.b16 %v3228
    %v3357 = vunpack.c.l.b16 %v3229
    %v3358 = vunpack.c.l.b16 %v3230
    %v3359 = vunpack.c.l.b16 %v3231
    %v3360 = vunpack.c.l.b16 %v3232
    %v3361 = vunpack.c.l.b16 %v3233
    %v3362 = vunpack.c.l.b16 %v3234
    %v3363 = vunpack.c.l.b16 %v3235
    %v3364 = vunpack.c.l.b16 %v3236
    %v3365 = vunpack.c.l.b16 %v3237
    %v3366 = vunpack.c.l.b16 %v3238
    %v3367 = vunpack.c.l.b16 %v3239
    %v3368 = vunpack.c.l.b16 %v3240
    %v3369 = vunpack.c.l.b16 %v3241
    %v3370 = vunpack.c.l.b16 %v3242
    %v3371 = vunpack.c.l.b16 %v3243
    %v3372 = vunpack.c.l.b16 %v3244
    %v3373 = vunpack.c.l.b16 %v3245
    %v3374 = vunpack.c.l.b16 %v3246
    %v3375 = vunpack.c.l.b16 %v3247
    %v3376 = vunpack.c.l.b16 %v3248
    %v3377 = vunpack.c.l.b16 %v3249
    %v3378 = vunpack.c.l.b16 %v3250
    %v3379 = vunpack.c.l.b16 %v3251
    %v3380 = vunpack.c.l.b16 %v3252
    %v3381 = vunpack.c.l.b16 %v3253
    %v3382 = vunpack.c.l.b16 %v3254
    %v3383 = vunpack.c.l.b16 %v3255
    %v3384 = vunpack.c.l.b16 %v3256
    %v3385 = vunpack.c.l.b16 %v3257
    %v3386 = vpack.c.b16 %v3323, %v3322
    %v3387 = vpack.c.b16 %v3325, %v3324
    %v3388 = vpack.c.b16 %v3327, %v3326
    %v3389 = vpack.c.b16 %v3329, %v3328
    %v3390 = vpack.c.b16 %v3331, %v3330
    %v3391 = vpack.c.b16 %v3333, %v3332
    %v3392 = vpack.c.b16 %v3335, %v3334
    %v3393 = vpack.c.b16 %v3337, %v3336
    %v3394 = vpack.c.b16 %v3339, %v3338
    %v3395 = vpack.c.b16 %v3341, %v3340
    %v3396 = vpack.c.b16 %v3343, %v3342
    %v3397 = vpack.c.b16 %v3345, %v3344
    %v3398 = vpack.c.b16 %v3347, %v3346
    %v3399 = vpack.c.b16 %v3349, %v3348
    %v3400 = vpack.c.b16 %v3351, %v3350
    %v3401 = vpack.c.b16 %v3353, %v3352
    %v3402 = vpack.c.b16 %v3355, %v3354
    %v3403 = vpack.c.b16 %v3357, %v3356
    %v3404 = vpack.c.b16 %v3359, %v3358
    %v3405 = vpack.c.b16 %v3361, %v3360
    %v3406 = vpack.c.b16 %v3363, %v3362
    %v3407 = vpack.c.b16 %v3365, %v3364
    %v3408 = vpack.c.b16 %v3367, %v3366
    %v3409 = vpack.c.b16 %v3369, %v3368
    %v3410 = vpack.c.b16 %v3371, %v3370
    %v3411 = vpack.c.b16 %v3373, %v3372
    %v3412 = vpack.c.b16 %v3375, %v3374
    %v3413 = vpack.c.b16 %v3377, %v3376
    %v3414 = vpack.c.b16 %v3379, %v3378
    %v3415 = vpack.c.b16 %v3381, %v3380
    %v3416 = vpack.c.b16 %v3383, %v3382
    %v3417 = vpack.c.b16 %v3385, %v3384
    %3450 = vmatpush.bf16.msra.mxu0 %v3393
    %3451 = vmatpush.bf16.msra.mxu0 %v3392
    %3452 = vmatpush.bf16.msra.mxu0 %v3391
    %3453 = vmatpush.bf16.msra.mxu0 %v3390
    %3454 = vmatpush.bf16.msra.mxu0 %v3389
    %3455 = vmatpush.bf16.msra.mxu0 %v3388
    %3456 = vmatpush.bf16.msra.mxu0 %v3387
    %3457 = vmatpush.bf16.msra.mxu0 %v3386
    %3458 = vmatmul.bf16.gmra.mxu0 %v3189
    %v3459 = vpop.f32.mrf.mxu0
    %v3460 = vadd.f32 0.0, %v3459
    %v3461 = vpop.f32.mrf.mxu0
    %3462 = vdwg.mxu0
    %3463 = vmatpush.bf16.msra.mxu0 %v3401
    %3464 = vmatpush.bf16.msra.mxu0 %v3400
    %3465 = vmatpush.bf16.msra.mxu0 %v3399
    %3466 = vmatpush.bf16.msra.mxu0 %v3398
    %3467 = vmatpush.bf16.msra.mxu0 %v3397
    %3468 = vmatpush.bf16.msra.mxu0 %v3396
    %3469 = vmatpush.bf16.msra.mxu0 %v3395
    %3470 = vmatpush.bf16.msra.mxu0 %v3394
    %3471 = vmatmul.bf16.gmra.mxu0 %v3190
    %v3472 = vpop.f32.mrf.mxu0
    %v3473 = vadd.f32 %v3460, %v3472
    %v3474 = vpop.f32.mrf.mxu0
    %3475 = vdwg.mxu0
    %3476 = vmatpush.bf16.msra.mxu0 %v3409
    %3477 = vmatpush.bf16.msra.mxu0 %v3408
    %3478 = vmatpush.bf16.msra.mxu0 %v3407
    %3479 = vmatpush.bf16.msra.mxu0 %v3406
    %3480 = vmatpush.bf16.msra.mxu0 %v3405
    %3481 = vmatpush.bf16.msra.mxu0 %v3404
    %3482 = vmatpush.bf16.msra.mxu0 %v3403
    %3483 = vmatpush.bf16.msra.mxu0 %v3402
    %3484 = vmatmul.bf16.gmra.mxu0 %v3191
    %v3485 = vpop.f32.mrf.mxu0
    %v3486 = vadd.f32 %v3473, %v3485
    %v3487 = vpop.f32.mrf.mxu0
    %3488 = vdwg.mxu0
    %3489 = vmatpush.bf16.msra.mxu0 %v3417
    %3490 = vmatpush.bf16.msra.mxu0 %v3416
    %3491 = vmatpush.bf16.msra.mxu0 %v3415
    %3492 = vmatpush.bf16.msra.mxu0 %v3414
    %3493 = vmatpush.bf16.msra.mxu0 %v3413
    %3494 = vmatpush.bf16.msra.mxu0 %v3412
    %3495 = vmatpush.bf16.msra.mxu0 %v3411
    %3496 = vmatpush.bf16.msra.mxu0 %v3410
    %3497 = vmatmul.bf16.gmra.mxu0 %v3192
    %v3498 = vpop.f32.mrf.mxu0
    %v3499 = vadd.f32 %v3486, %v3498
    %v3500 = vpop.f32.mrf.mxu0
    %3501 = vdwg.mxu0
    %v3502 = vadd.f32 %v3186, %v3499
    %v3503 = vpack.c.bf16 %v2500, %v2500
    %v3504 = vpack.c.bf16 %v2501, %v2501
    %v3505 = vpack.c.bf16 %v2502, %v2502
    %v3506 = vpack.c.bf16 %v2503, %v2503
    %s3507 = scalar_lea.vmem [#allocation17], 768
    %v3508 = vld [vmem:[%s3507] sm:$0xf]
    %v3509 = vld [vmem:[%s3507 + $0x4] sm:$0xf]
    %v3510 = vld [vmem:[%s3507 + $0x8] sm:$0xf]
    %v3511 = vld [vmem:[%s3507 + $0xc] sm:$0xf]
    %v3512 = vld [vmem:[%s3507 + $0x10] sm:$0xf]
    %v3513 = vld [vmem:[%s3507 + $0x14] sm:$0xf]
    %v3514 = vld [vmem:[%s3507 + $0x18] sm:$0xf]
    %v3515 = vld [vmem:[%s3507 + $0x1c] sm:$0xf]
    %v3516 = vld [vmem:[%s3507 + $0x20] sm:$0xf]
    %v3517 = vld [vmem:[%s3507 + $0x24] sm:$0xf]
    %v3518 = vld [vmem:[%s3507 + $0x28] sm:$0xf]
    %v3519 = vld [vmem:[%s3507 + $0x2c] sm:$0xf]
    %v3520 = vld [vmem:[%s3507 + $0x30] sm:$0xf]
    %v3521 = vld [vmem:[%s3507 + $0x34] sm:$0xf]
    %v3522 = vld [vmem:[%s3507 + $0x38] sm:$0xf]
    %v3523 = vld [vmem:[%s3507 + $0x3c] sm:$0xf]
    %v3524 = vld [vmem:[%s3507 + $0x40] sm:$0xf]
    %v3525 = vld [vmem:[%s3507 + $0x44] sm:$0xf]
    %v3526 = vld [vmem:[%s3507 + $0x48] sm:$0xf]
    %v3527 = vld [vmem:[%s3507 + $0x4c] sm:$0xf]
    %v3528 = vld [vmem:[%s3507 + $0x50] sm:$0xf]
    %v3529 = vld [vmem:[%s3507 + $0x54] sm:$0xf]
    %v3530 = vld [vmem:[%s3507 + $0x58] sm:$0xf]
    %v3531 = vld [vmem:[%s3507 + $0x5c] sm:$0xf]
    %v3532 = vld [vmem:[%s3507 + $0x60] sm:$0xf]
    %v3533 = vld [vmem:[%s3507 + $0x64] sm:$0xf]
    %v3534 = vld [vmem:[%s3507 + $0x68] sm:$0xf]
    %v3535 = vld [vmem:[%s3507 + $0x6c] sm:$0xf]
    %v3536 = vld [vmem:[%s3507 + $0x70] sm:$0xf]
    %v3537 = vld [vmem:[%s3507 + $0x74] sm:$0xf]
    %v3538 = vld [vmem:[%s3507 + $0x78] sm:$0xf]
    %v3539 = vld [vmem:[%s3507 + $0x7c] sm:$0xf]
    %v3540 = vld [vmem:[%s3507 + $0x80] sm:$0xf]
    %v3541 = vld [vmem:[%s3507 + $0x84] sm:$0xf]
    %v3542 = vld [vmem:[%s3507 + $0x88] sm:$0xf]
    %v3543 = vld [vmem:[%s3507 + $0x8c] sm:$0xf]
    %v3544 = vld [vmem:[%s3507 + $0x90] sm:$0xf]
    %v3545 = vld [vmem:[%s3507 + $0x94] sm:$0xf]
    %v3546 = vld [vmem:[%s3507 + $0x98] sm:$0xf]
    %v3547 = vld [vmem:[%s3507 + $0x9c] sm:$0xf]
    %v3548 = vld [vmem:[%s3507 + $0xa0] sm:$0xf]
    %v3549 = vld [vmem:[%s3507 + $0xa4] sm:$0xf]
    %v3550 = vld [vmem:[%s3507 + $0xa8] sm:$0xf]
    %v3551 = vld [vmem:[%s3507 + $0xac] sm:$0xf]
    %v3552 = vld [vmem:[%s3507 + $0xb0] sm:$0xf]
    %v3553 = vld [vmem:[%s3507 + $0xb4] sm:$0xf]
    %v3554 = vld [vmem:[%s3507 + $0xb8] sm:$0xf]
    %v3555 = vld [vmem:[%s3507 + $0xbc] sm:$0xf]
    %v3556 = vld [vmem:[%s3507 + $0xc0] sm:$0xf]
    %v3557 = vld [vmem:[%s3507 + $0xc4] sm:$0xf]
    %v3558 = vld [vmem:[%s3507 + $0xc8] sm:$0xf]
    %v3559 = vld [vmem:[%s3507 + $0xcc] sm:$0xf]
    %v3560 = vld [vmem:[%s3507 + $0xd0] sm:$0xf]
    %v3561 = vld [vmem:[%s3507 + $0xd4] sm:$0xf]
    %v3562 = vld [vmem:[%s3507 + $0xd8] sm:$0xf]
    %v3563 = vld [vmem:[%s3507 + $0xdc] sm:$0xf]
    %v3564 = vld [vmem:[%s3507 + $0xe0] sm:$0xf]
    %v3565 = vld [vmem:[%s3507 + $0xe4] sm:$0xf]
    %v3566 = vld [vmem:[%s3507 + $0xe8] sm:$0xf]
    %v3567 = vld [vmem:[%s3507 + $0xec] sm:$0xf]
    %v3568 = vld [vmem:[%s3507 + $0xf0] sm:$0xf]
    %v3569 = vld [vmem:[%s3507 + $0xf4] sm:$0xf]
    %v3570 = vld [vmem:[%s3507 + $0xf8] sm:$0xf]
    %v3571 = vld [vmem:[%s3507 + $0xfc] sm:$0xf]
    %v3636 = vunpack.c.l.b16 %v3508
    %v3637 = vunpack.c.l.b16 %v3509
    %v3638 = vunpack.c.l.b16 %v3510
    %v3639 = vunpack.c.l.b16 %v3511
    %v3640 = vunpack.c.l.b16 %v3512
    %v3641 = vunpack.c.l.b16 %v3513
    %v3642 = vunpack.c.l.b16 %v3514
    %v3643 = vunpack.c.l.b16 %v3515
    %v3644 = vunpack.c.l.b16 %v3516
    %v3645 = vunpack.c.l.b16 %v3517
    %v3646 = vunpack.c.l.b16 %v3518
    %v3647 = vunpack.c.l.b16 %v3519
    %v3648 = vunpack.c.l.b16 %v3520
    %v3649 = vunpack.c.l.b16 %v3521
    %v3650 = vunpack.c.l.b16 %v3522
    %v3651 = vunpack.c.l.b16 %v3523
    %v3652 = vunpack.c.l.b16 %v3524
    %v3653 = vunpack.c.l.b16 %v3525
    %v3654 = vunpack.c.l.b16 %v3526
    %v3655 = vunpack.c.l.b16 %v3527
    %v3656 = vunpack.c.l.b16 %v3528
    %v3657 = vunpack.c.l.b16 %v3529
    %v3658 = vunpack.c.l.b16 %v3530
    %v3659 = vunpack.c.l.b16 %v3531
    %v3660 = vunpack.c.l.b16 %v3532
    %v3661 = vunpack.c.l.b16 %v3533
    %v3662 = vunpack.c.l.b16 %v3534
    %v3663 = vunpack.c.l.b16 %v3535
    %v3664 = vunpack.c.l.b16 %v3536
    %v3665 = vunpack.c.l.b16 %v3537
    %v3666 = vunpack.c.l.b16 %v3538
    %v3667 = vunpack.c.l.b16 %v3539
    %v3668 = vunpack.c.l.b16 %v3540
    %v3669 = vunpack.c.l.b16 %v3541
    %v3670 = vunpack.c.l.b16 %v3542
    %v3671 = vunpack.c.l.b16 %v3543
    %v3672 = vunpack.c.l.b16 %v3544
    %v3673 = vunpack.c.l.b16 %v3545
    %v3674 = vunpack.c.l.b16 %v3546
    %v3675 = vunpack.c.l.b16 %v3547
    %v3676 = vunpack.c.l.b16 %v3548
    %v3677 = vunpack.c.l.b16 %v3549
    %v3678 = vunpack.c.l.b16 %v3550
    %v3679 = vunpack.c.l.b16 %v3551
    %v3680 = vunpack.c.l.b16 %v3552
    %v3681 = vunpack.c.l.b16 %v3553
    %v3682 = vunpack.c.l.b16 %v3554
    %v3683 = vunpack.c.l.b16 %v3555
    %v3684 = vunpack.c.l.b16 %v3556
    %v3685 = vunpack.c.l.b16 %v3557
    %v3686 = vunpack.c.l.b16 %v3558
    %v3687 = vunpack.c.l.b16 %v3559
    %v3688 = vunpack.c.l.b16 %v3560
    %v3689 = vunpack.c.l.b16 %v3561
    %v3690 = vunpack.c.l.b16 %v3562
    %v3691 = vunpack.c.l.b16 %v3563
    %v3692 = vunpack.c.l.b16 %v3564
    %v3693 = vunpack.c.l.b16 %v3565
    %v3694 = vunpack.c.l.b16 %v3566
    %v3695 = vunpack.c.l.b16 %v3567
    %v3696 = vunpack.c.l.b16 %v3568
    %v3697 = vunpack.c.l.b16 %v3569
    %v3698 = vunpack.c.l.b16 %v3570
    %v3699 = vunpack.c.l.b16 %v3571
    %v3700 = vpack.c.b16 %v3637, %v3636
    %v3701 = vpack.c.b16 %v3639, %v3638
    %v3702 = vpack.c.b16 %v3641, %v3640
    %v3703 = vpack.c.b16 %v3643, %v3642
    %v3704 = vpack.c.b16 %v3645, %v3644
    %v3705 = vpack.c.b16 %v3647, %v3646
    %v3706 = vpack.c.b16 %v3649, %v3648
    %v3707 = vpack.c.b16 %v3651, %v3650
    %v3708 = vpack.c.b16 %v3653, %v3652
    %v3709 = vpack.c.b16 %v3655, %v3654
    %v3710 = vpack.c.b16 %v3657, %v3656
    %v3711 = vpack.c.b16 %v3659, %v3658
    %v3712 = vpack.c.b16 %v3661, %v3660
    %v3713 = vpack.c.b16 %v3663, %v3662
    %v3714 = vpack.c.b16 %v3665, %v3664
    %v3715 = vpack.c.b16 %v3667, %v3666
    %v3716 = vpack.c.b16 %v3669, %v3668
    %v3717 = vpack.c.b16 %v3671, %v3670
    %v3718 = vpack.c.b16 %v3673, %v3672
    %v3719 = vpack.c.b16 %v3675, %v3674
    %v3720 = vpack.c.b16 %v3677, %v3676
    %v3721 = vpack.c.b16 %v3679, %v3678
    %v3722 = vpack.c.b16 %v3681, %v3680
    %v3723 = vpack.c.b16 %v3683, %v3682
    %v3724 = vpack.c.b16 %v3685, %v3684
    %v3725 = vpack.c.b16 %v3687, %v3686
    %v3726 = vpack.c.b16 %v3689, %v3688
    %v3727 = vpack.c.b16 %v3691, %v3690
    %v3728 = vpack.c.b16 %v3693, %v3692
    %v3729 = vpack.c.b16 %v3695, %v3694
    %v3730 = vpack.c.b16 %v3697, %v3696
    %v3731 = vpack.c.b16 %v3699, %v3698
    %3764 = vmatpush.bf16.msra.mxu0 %v3707
    %3765 = vmatpush.bf16.msra.mxu0 %v3706
    %3766 = vmatpush.bf16.msra.mxu0 %v3705
    %3767 = vmatpush.bf16.msra.mxu0 %v3704
    %3768 = vmatpush.bf16.msra.mxu0 %v3703
    %3769 = vmatpush.bf16.msra.mxu0 %v3702
    %3770 = vmatpush.bf16.msra.mxu0 %v3701
    %3771 = vmatpush.bf16.msra.mxu0 %v3700
    %3772 = vmatmul.bf16.gmra.mxu0 %v3503
    %v3773 = vpop.f32.mrf.mxu0
    %v3774 = vadd.f32 0.0, %v3773
    %v3775 = vpop.f32.mrf.mxu0
    %3776 = vdwg.mxu0
    %3777 = vmatpush.bf16.msra.mxu0 %v3715
    %3778 = vmatpush.bf16.msra.mxu0 %v3714
    %3779 = vmatpush.bf16.msra.mxu0 %v3713
    %3780 = vmatpush.bf16.msra.mxu0 %v3712
    %3781 = vmatpush.bf16.msra.mxu0 %v3711
    %3782 = vmatpush.bf16.msra.mxu0 %v3710
    %3783 = vmatpush.bf16.msra.mxu0 %v3709
    %3784 = vmatpush.bf16.msra.mxu0 %v3708
    %3785 = vmatmul.bf16.gmra.mxu0 %v3504
    %v3786 = vpop.f32.mrf.mxu0
    %v3787 = vadd.f32 %v3774, %v3786
    %v3788 = vpop.f32.mrf.mxu0
    %3789 = vdwg.mxu0
    %3790 = vmatpush.bf16.msra.mxu0 %v3723
    %3791 = vmatpush.bf16.msra.mxu0 %v3722
    %3792 = vmatpush.bf16.msra.mxu0 %v3721
    %3793 = vmatpush.bf16.msra.mxu0 %v3720
    %3794 = vmatpush.bf16.msra.mxu0 %v3719
    %3795 = vmatpush.bf16.msra.mxu0 %v3718
    %3796 = vmatpush.bf16.msra.mxu0 %v3717
    %3797 = vmatpush.bf16.msra.mxu0 %v3716
    %3798 = vmatmul.bf16.gmra.mxu0 %v3505
    %v3799 = vpop.f32.mrf.mxu0
    %v3800 = vadd.f32 %v3787, %v3799
    %v3801 = vpop.f32.mrf.mxu0
    %3802 = vdwg.mxu0
    %3803 = vmatpush.bf16.msra.mxu0 %v3731
    %3804 = vmatpush.bf16.msra.mxu0 %v3730
    %3805 = vmatpush.bf16.msra.mxu0 %v3729
    %3806 = vmatpush.bf16.msra.mxu0 %v3728
    %3807 = vmatpush.bf16.msra.mxu0 %v3727
    %3808 = vmatpush.bf16.msra.mxu0 %v3726
    %3809 = vmatpush.bf16.msra.mxu0 %v3725
    %3810 = vmatpush.bf16.msra.mxu0 %v3724
    %3811 = vmatmul.bf16.gmra.mxu0 %v3506
    %v3812 = vpop.f32.mrf.mxu0
    %v3813 = vadd.f32 %v3800, %v3812
    %v3814 = vpop.f32.mrf.mxu0
    %3815 = vdwg.mxu0
    %v3816 = vadd.f32 %v3502, %v3813
    %v3817 = vpack.c.bf16 %v2504, %v2504
    %v3818 = vpack.c.bf16 %v2505, %v2505
    %v3819 = vpack.c.bf16 %v2506, %v2506
    %v3820 = vpack.c.bf16 %v2507, %v2507
    %s3821 = scalar_lea.vmem [#allocation17], 1024
    %v3822 = vld [vmem:[%s3821] sm:$0xf]
    %v3823 = vld [vmem:[%s3821 + $0x4] sm:$0xf]
    %v3824 = vld [vmem:[%s3821 + $0x8] sm:$0xf]
    %v3825 = vld [vmem:[%s3821 + $0xc] sm:$0xf]
    %v3826 = vld [vmem:[%s3821 + $0x10] sm:$0xf]
    %v3827 = vld [vmem:[%s3821 + $0x14] sm:$0xf]
    %v3828 = vld [vmem:[%s3821 + $0x18] sm:$0xf]
    %v3829 = vld [vmem:[%s3821 + $0x1c] sm:$0xf]
    %v3830 = vld [vmem:[%s3821 + $0x20] sm:$0xf]
    %v3831 = vld [vmem:[%s3821 + $0x24] sm:$0xf]
    %v3832 = vld [vmem:[%s3821 + $0x28] sm:$0xf]
    %v3833 = vld [vmem:[%s3821 + $0x2c] sm:$0xf]
    %v3834 = vld [vmem:[%s3821 + $0x30] sm:$0xf]
    %v3835 = vld [vmem:[%s3821 + $0x34] sm:$0xf]
    %v3836 = vld [vmem:[%s3821 + $0x38] sm:$0xf]
    %v3837 = vld [vmem:[%s3821 + $0x3c] sm:$0xf]
    %v3838 = vld [vmem:[%s3821 + $0x40] sm:$0xf]
    %v3839 = vld [vmem:[%s3821 + $0x44] sm:$0xf]
    %v3840 = vld [vmem:[%s3821 + $0x48] sm:$0xf]
    %v3841 = vld [vmem:[%s3821 + $0x4c] sm:$0xf]
    %v3842 = vld [vmem:[%s3821 + $0x50] sm:$0xf]
    %v3843 = vld [vmem:[%s3821 + $0x54] sm:$0xf]
    %v3844 = vld [vmem:[%s3821 + $0x58] sm:$0xf]
    %v3845 = vld [vmem:[%s3821 + $0x5c] sm:$0xf]
    %v3846 = vld [vmem:[%s3821 + $0x60] sm:$0xf]
    %v3847 = vld [vmem:[%s3821 + $0x64] sm:$0xf]
    %v3848 = vld [vmem:[%s3821 + $0x68] sm:$0xf]
    %v3849 = vld [vmem:[%s3821 + $0x6c] sm:$0xf]
    %v3850 = vld [vmem:[%s3821 + $0x70] sm:$0xf]
    %v3851 = vld [vmem:[%s3821 + $0x74] sm:$0xf]
    %v3852 = vld [vmem:[%s3821 + $0x78] sm:$0xf]
    %v3853 = vld [vmem:[%s3821 + $0x7c] sm:$0xf]
    %v3854 = vld [vmem:[%s3821 + $0x80] sm:$0xf]
    %v3855 = vld [vmem:[%s3821 + $0x84] sm:$0xf]
    %v3856 = vld [vmem:[%s3821 + $0x88] sm:$0xf]
    %v3857 = vld [vmem:[%s3821 + $0x8c] sm:$0xf]
    %v3858 = vld [vmem:[%s3821 + $0x90] sm:$0xf]
    %v3859 = vld [vmem:[%s3821 + $0x94] sm:$0xf]
    %v3860 = vld [vmem:[%s3821 + $0x98] sm:$0xf]
    %v3861 = vld [vmem:[%s3821 + $0x9c] sm:$0xf]
    %v3862 = vld [vmem:[%s3821 + $0xa0] sm:$0xf]
    %v3863 = vld [vmem:[%s3821 + $0xa4] sm:$0xf]
    %v3864 = vld [vmem:[%s3821 + $0xa8] sm:$0xf]
    %v3865 = vld [vmem:[%s3821 + $0xac] sm:$0xf]
    %v3866 = vld [vmem:[%s3821 + $0xb0] sm:$0xf]
    %v3867 = vld [vmem:[%s3821 + $0xb4] sm:$0xf]
    %v3868 = vld [vmem:[%s3821 + $0xb8] sm:$0xf]
    %v3869 = vld [vmem:[%s3821 + $0xbc] sm:$0xf]
    %v3870 = vld [vmem:[%s3821 + $0xc0] sm:$0xf]
    %v3871 = vld [vmem:[%s3821 + $0xc4] sm:$0xf]
    %v3872 = vld [vmem:[%s3821 + $0xc8] sm:$0xf]
    %v3873 = vld [vmem:[%s3821 + $0xcc] sm:$0xf]
    %v3874 = vld [vmem:[%s3821 + $0xd0] sm:$0xf]
    %v3875 = vld [vmem:[%s3821 + $0xd4] sm:$0xf]
    %v3876 = vld [vmem:[%s3821 + $0xd8] sm:$0xf]
    %v3877 = vld [vmem:[%s3821 + $0xdc] sm:$0xf]
    %v3878 = vld [vmem:[%s3821 + $0xe0] sm:$0xf]
    %v3879 = vld [vmem:[%s3821 + $0xe4] sm:$0xf]
    %v3880 = vld [vmem:[%s3821 + $0xe8] sm:$0xf]
    %v3881 = vld [vmem:[%s3821 + $0xec] sm:$0xf]
    %v3882 = vld [vmem:[%s3821 + $0xf0] sm:$0xf]
    %v3883 = vld [vmem:[%s3821 + $0xf4] sm:$0xf]
    %v3884 = vld [vmem:[%s3821 + $0xf8] sm:$0xf]
    %v3885 = vld [vmem:[%s3821 + $0xfc] sm:$0xf]
    %v3950 = vunpack.c.l.b16 %v3822
    %v3951 = vunpack.c.l.b16 %v3823
    %v3952 = vunpack.c.l.b16 %v3824
    %v3953 = vunpack.c.l.b16 %v3825
    %v3954 = vunpack.c.l.b16 %v3826
    %v3955 = vunpack.c.l.b16 %v3827
    %v3956 = vunpack.c.l.b16 %v3828
    %v3957 = vunpack.c.l.b16 %v3829
    %v3958 = vunpack.c.l.b16 %v3830
    %v3959 = vunpack.c.l.b16 %v3831
    %v3960 = vunpack.c.l.b16 %v3832
    %v3961 = vunpack.c.l.b16 %v3833
    %v3962 = vunpack.c.l.b16 %v3834
    %v3963 = vunpack.c.l.b16 %v3835
    %v3964 = vunpack.c.l.b16 %v3836
    %v3965 = vunpack.c.l.b16 %v3837
    %v3966 = vunpack.c.l.b16 %v3838
    %v3967 = vunpack.c.l.b16 %v3839
    %v3968 = vunpack.c.l.b16 %v3840
    %v3969 = vunpack.c.l.b16 %v3841
    %v3970 = vunpack.c.l.b16 %v3842
    %v3971 = vunpack.c.l.b16 %v3843
    %v3972 = vunpack.c.l.b16 %v3844
    %v3973 = vunpack.c.l.b16 %v3845
    %v3974 = vunpack.c.l.b16 %v3846
    %v3975 = vunpack.c.l.b16 %v3847
    %v3976 = vunpack.c.l.b16 %v3848
    %v3977 = vunpack.c.l.b16 %v3849
    %v3978 = vunpack.c.l.b16 %v3850
    %v3979 = vunpack.c.l.b16 %v3851
    %v3980 = vunpack.c.l.b16 %v3852
    %v3981 = vunpack.c.l.b16 %v3853
    %v3982 = vunpack.c.l.b16 %v3854
    %v3983 = vunpack.c.l.b16 %v3855
    %v3984 = vunpack.c.l.b16 %v3856
    %v3985 = vunpack.c.l.b16 %v3857
    %v3986 = vunpack.c.l.b16 %v3858
    %v3987 = vunpack.c.l.b16 %v3859
    %v3988 = vunpack.c.l.b16 %v3860
    %v3989 = vunpack.c.l.b16 %v3861
    %v3990 = vunpack.c.l.b16 %v3862
    %v3991 = vunpack.c.l.b16 %v3863
    %v3992 = vunpack.c.l.b16 %v3864
    %v3993 = vunpack.c.l.b16 %v3865
    %v3994 = vunpack.c.l.b16 %v3866
    %v3995 = vunpack.c.l.b16 %v3867
    %v3996 = vunpack.c.l.b16 %v3868
    %v3997 = vunpack.c.l.b16 %v3869
    %v3998 = vunpack.c.l.b16 %v3870
    %v3999 = vunpack.c.l.b16 %v3871
    %v4000 = vunpack.c.l.b16 %v3872
    %v4001 = vunpack.c.l.b16 %v3873
    %v4002 = vunpack.c.l.b16 %v3874
    %v4003 = vunpack.c.l.b16 %v3875
    %v4004 = vunpack.c.l.b16 %v3876
    %v4005 = vunpack.c.l.b16 %v3877
    %v4006 = vunpack.c.l.b16 %v3878
    %v4007 = vunpack.c.l.b16 %v3879
    %v4008 = vunpack.c.l.b16 %v3880
    %v4009 = vunpack.c.l.b16 %v3881
    %v4010 = vunpack.c.l.b16 %v3882
    %v4011 = vunpack.c.l.b16 %v3883
    %v4012 = vunpack.c.l.b16 %v3884
    %v4013 = vunpack.c.l.b16 %v3885
    %v4014 = vpack.c.b16 %v3951, %v3950
    %v4015 = vpack.c.b16 %v3953, %v3952
    %v4016 = vpack.c.b16 %v3955, %v3954
    %v4017 = vpack.c.b16 %v3957, %v3956
    %v4018 = vpack.c.b16 %v3959, %v3958
    %v4019 = vpack.c.b16 %v3961, %v3960
    %v4020 = vpack.c.b16 %v3963, %v3962
    %v4021 = vpack.c.b16 %v3965, %v3964
    %v4022 = vpack.c.b16 %v3967, %v3966
    %v4023 = vpack.c.b16 %v3969, %v3968
    %v4024 = vpack.c.b16 %v3971, %v3970
    %v4025 = vpack.c.b16 %v3973, %v3972
    %v4026 = vpack.c.b16 %v3975, %v3974
    %v4027 = vpack.c.b16 %v3977, %v3976
    %v4028 = vpack.c.b16 %v3979, %v3978
    %v4029 = vpack.c.b16 %v3981, %v3980
    %v4030 = vpack.c.b16 %v3983, %v3982
    %v4031 = vpack.c.b16 %v3985, %v3984
    %v4032 = vpack.c.b16 %v3987, %v3986
    %v4033 = vpack.c.b16 %v3989, %v3988
    %v4034 = vpack.c.b16 %v3991, %v3990
    %v4035 = vpack.c.b16 %v3993, %v3992
    %v4036 = vpack.c.b16 %v3995, %v3994
    %v4037 = vpack.c.b16 %v3997, %v3996
    %v4038 = vpack.c.b16 %v3999, %v3998
    %v4039 = vpack.c.b16 %v4001, %v4000
    %v4040 = vpack.c.b16 %v4003, %v4002
    %v4041 = vpack.c.b16 %v4005, %v4004
    %v4042 = vpack.c.b16 %v4007, %v4006
    %v4043 = vpack.c.b16 %v4009, %v4008
    %v4044 = vpack.c.b16 %v4011, %v4010
    %v4045 = vpack.c.b16 %v4013, %v4012
    %4078 = vmatpush.bf16.msra.mxu0 %v4021
    %4079 = vmatpush.bf16.msra.mxu0 %v4020
    %4080 = vmatpush.bf16.msra.mxu0 %v4019
    %4081 = vmatpush.bf16.msra.mxu0 %v4018
    %4082 = vmatpush.bf16.msra.mxu0 %v4017
    %4083 = vmatpush.bf16.msra.mxu0 %v4016
    %4084 = vmatpush.bf16.msra.mxu0 %v4015
    %4085 = vmatpush.bf16.msra.mxu0 %v4014
    %4086 = vmatmul.bf16.gmra.mxu0 %v3817
    %v4087 = vpop.f32.mrf.mxu0
    %v4088 = vadd.f32 0.0, %v4087
    %v4089 = vpop.f32.mrf.mxu0
    %4090 = vdwg.mxu0
    %4091 = vmatpush.bf16.msra.mxu0 %v4029
    %4092 = vmatpush.bf16.msra.mxu0 %v4028
    %4093 = vmatpush.bf16.msra.mxu0 %v4027
    %4094 = vmatpush.bf16.msra.mxu0 %v4026
    %4095 = vmatpush.bf16.msra.mxu0 %v4025
    %4096 = vmatpush.bf16.msra.mxu0 %v4024
    %4097 = vmatpush.bf16.msra.mxu0 %v4023
    %4098 = vmatpush.bf16.msra.mxu0 %v4022
    %4099 = vmatmul.bf16.gmra.mxu0 %v3818
    %v4100 = vpop.f32.mrf.mxu0
    %v4101 = vadd.f32 %v4088, %v4100
    %v4102 = vpop.f32.mrf.mxu0
    %4103 = vdwg.mxu0
    %4104 = vmatpush.bf16.msra.mxu0 %v4037
    %4105 = vmatpush.bf16.msra.mxu0 %v4036
    %4106 = vmatpush.bf16.msra.mxu0 %v4035
    %4107 = vmatpush.bf16.msra.mxu0 %v4034
    %4108 = vmatpush.bf16.msra.mxu0 %v4033
    %4109 = vmatpush.bf16.msra.mxu0 %v4032
    %4110 = vmatpush.bf16.msra.mxu0 %v4031
    %4111 = vmatpush.bf16.msra.mxu0 %v4030
    %4112 = vmatmul.bf16.gmra.mxu0 %v3819
    %v4113 = vpop.f32.mrf.mxu0
    %v4114 = vadd.f32 %v4101, %v4113
    %v4115 = vpop.f32.mrf.mxu0
    %4116 = vdwg.mxu0
    %4117 = vmatpush.bf16.msra.mxu0 %v4045
    %4118 = vmatpush.bf16.msra.mxu0 %v4044
    %4119 = vmatpush.bf16.msra.mxu0 %v4043
    %4120 = vmatpush.bf16.msra.mxu0 %v4042
    %4121 = vmatpush.bf16.msra.mxu0 %v4041
    %4122 = vmatpush.bf16.msra.mxu0 %v4040
    %4123 = vmatpush.bf16.msra.mxu0 %v4039
    %4124 = vmatpush.bf16.msra.mxu0 %v4038
    %4125 = vmatmul.bf16.gmra.mxu0 %v3820
    %v4126 = vpop.f32.mrf.mxu0
    %v4127 = vadd.f32 %v4114, %v4126
    %v4128 = vpop.f32.mrf.mxu0
    %4129 = vdwg.mxu0
    %v4130 = vadd.f32 %v3816, %v4127
    %v4131 = vpack.c.bf16 %v2508, %v2508
    %v4132 = vpack.c.bf16 %v2509, %v2509
    %v4133 = vpack.c.bf16 %v2510, %v2510
    %v4134 = vpack.c.bf16 %v2511, %v2511
    %s4135 = scalar_lea.vmem [#allocation17], 1280
    %v4136 = vld [vmem:[%s4135] sm:$0xf]
    %v4137 = vld [vmem:[%s4135 + $0x4] sm:$0xf]
    %v4138 = vld [vmem:[%s4135 + $0x8] sm:$0xf]
    %v4139 = vld [vmem:[%s4135 + $0xc] sm:$0xf]
    %v4140 = vld [vmem:[%s4135 + $0x10] sm:$0xf]
    %v4141 = vld [vmem:[%s4135 + $0x14] sm:$0xf]
    %v4142 = vld [vmem:[%s4135 + $0x18] sm:$0xf]
    %v4143 = vld [vmem:[%s4135 + $0x1c] sm:$0xf]
    %v4144 = vld [vmem:[%s4135 + $0x20] sm:$0xf]
    %v4145 = vld [vmem:[%s4135 + $0x24] sm:$0xf]
    %v4146 = vld [vmem:[%s4135 + $0x28] sm:$0xf]
    %v4147 = vld [vmem:[%s4135 + $0x2c] sm:$0xf]
    %v4148 = vld [vmem:[%s4135 + $0x30] sm:$0xf]
    %v4149 = vld [vmem:[%s4135 + $0x34] sm:$0xf]
    %v4150 = vld [vmem:[%s4135 + $0x38] sm:$0xf]
    %v4151 = vld [vmem:[%s4135 + $0x3c] sm:$0xf]
    %v4152 = vld [vmem:[%s4135 + $0x40] sm:$0xf]
    %v4153 = vld [vmem:[%s4135 + $0x44] sm:$0xf]
    %v4154 = vld [vmem:[%s4135 + $0x48] sm:$0xf]
    %v4155 = vld [vmem:[%s4135 + $0x4c] sm:$0xf]
    %v4156 = vld [vmem:[%s4135 + $0x50] sm:$0xf]
    %v4157 = vld [vmem:[%s4135 + $0x54] sm:$0xf]
    %v4158 = vld [vmem:[%s4135 + $0x58] sm:$0xf]
    %v4159 = vld [vmem:[%s4135 + $0x5c] sm:$0xf]
    %v4160 = vld [vmem:[%s4135 + $0x60] sm:$0xf]
    %v4161 = vld [vmem:[%s4135 + $0x64] sm:$0xf]
    %v4162 = vld [vmem:[%s4135 + $0x68] sm:$0xf]
    %v4163 = vld [vmem:[%s4135 + $0x6c] sm:$0xf]
    %v4164 = vld [vmem:[%s4135 + $0x70] sm:$0xf]
    %v4165 = vld [vmem:[%s4135 + $0x74] sm:$0xf]
    %v4166 = vld [vmem:[%s4135 + $0x78] sm:$0xf]
    %v4167 = vld [vmem:[%s4135 + $0x7c] sm:$0xf]
    %v4168 = vld [vmem:[%s4135 + $0x80] sm:$0xf]
    %v4169 = vld [vmem:[%s4135 + $0x84] sm:$0xf]
    %v4170 = vld [vmem:[%s4135 + $0x88] sm:$0xf]
    %v4171 = vld [vmem:[%s4135 + $0x8c] sm:$0xf]
    %v4172 = vld [vmem:[%s4135 + $0x90] sm:$0xf]
    %v4173 = vld [vmem:[%s4135 + $0x94] sm:$0xf]
    %v4174 = vld [vmem:[%s4135 + $0x98] sm:$0xf]
    %v4175 = vld [vmem:[%s4135 + $0x9c] sm:$0xf]
    %v4176 = vld [vmem:[%s4135 + $0xa0] sm:$0xf]
    %v4177 = vld [vmem:[%s4135 + $0xa4] sm:$0xf]
    %v4178 = vld [vmem:[%s4135 + $0xa8] sm:$0xf]
    %v4179 = vld [vmem:[%s4135 + $0xac] sm:$0xf]
    %v4180 = vld [vmem:[%s4135 + $0xb0] sm:$0xf]
    %v4181 = vld [vmem:[%s4135 + $0xb4] sm:$0xf]
    %v4182 = vld [vmem:[%s4135 + $0xb8] sm:$0xf]
    %v4183 = vld [vmem:[%s4135 + $0xbc] sm:$0xf]
    %v4184 = vld [vmem:[%s4135 + $0xc0] sm:$0xf]
    %v4185 = vld [vmem:[%s4135 + $0xc4] sm:$0xf]
    %v4186 = vld [vmem:[%s4135 + $0xc8] sm:$0xf]
    %v4187 = vld [vmem:[%s4135 + $0xcc] sm:$0xf]
    %v4188 = vld [vmem:[%s4135 + $0xd0] sm:$0xf]
    %v4189 = vld [vmem:[%s4135 + $0xd4] sm:$0xf]
    %v4190 = vld [vmem:[%s4135 + $0xd8] sm:$0xf]
    %v4191 = vld [vmem:[%s4135 + $0xdc] sm:$0xf]
    %v4192 = vld [vmem:[%s4135 + $0xe0] sm:$0xf]
    %v4193 = vld [vmem:[%s4135 + $0xe4] sm:$0xf]
    %v4194 = vld [vmem:[%s4135 + $0xe8] sm:$0xf]
    %v4195 = vld [vmem:[%s4135 + $0xec] sm:$0xf]
    %v4196 = vld [vmem:[%s4135 + $0xf0] sm:$0xf]
    %v4197 = vld [vmem:[%s4135 + $0xf4] sm:$0xf]
    %v4198 = vld [vmem:[%s4135 + $0xf8] sm:$0xf]
    %v4199 = vld [vmem:[%s4135 + $0xfc] sm:$0xf]
    %v4264 = vunpack.c.l.b16 %v4136
    %v4265 = vunpack.c.l.b16 %v4137
    %v4266 = vunpack.c.l.b16 %v4138
    %v4267 = vunpack.c.l.b16 %v4139
    %v4268 = vunpack.c.l.b16 %v4140
    %v4269 = vunpack.c.l.b16 %v4141
    %v4270 = vunpack.c.l.b16 %v4142
    %v4271 = vunpack.c.l.b16 %v4143
    %v4272 = vunpack.c.l.b16 %v4144
    %v4273 = vunpack.c.l.b16 %v4145
    %v4274 = vunpack.c.l.b16 %v4146
    %v4275 = vunpack.c.l.b16 %v4147
    %v4276 = vunpack.c.l.b16 %v4148
    %v4277 = vunpack.c.l.b16 %v4149
    %v4278 = vunpack.c.l.b16 %v4150
    %v4279 = vunpack.c.l.b16 %v4151
    %v4280 = vunpack.c.l.b16 %v4152
    %v4281 = vunpack.c.l.b16 %v4153
    %v4282 = vunpack.c.l.b16 %v4154
    %v4283 = vunpack.c.l.b16 %v4155
    %v4284 = vunpack.c.l.b16 %v4156
    %v4285 = vunpack.c.l.b16 %v4157
    %v4286 = vunpack.c.l.b16 %v4158
    %v4287 = vunpack.c.l.b16 %v4159
    %v4288 = vunpack.c.l.b16 %v4160
    %v4289 = vunpack.c.l.b16 %v4161
    %v4290 = vunpack.c.l.b16 %v4162
    %v4291 = vunpack.c.l.b16 %v4163
    %v4292 = vunpack.c.l.b16 %v4164
    %v4293 = vunpack.c.l.b16 %v4165
    %v4294 = vunpack.c.l.b16 %v4166
    %v4295 = vunpack.c.l.b16 %v4167
    %v4296 = vunpack.c.l.b16 %v4168
    %v4297 = vunpack.c.l.b16 %v4169
    %v4298 = vunpack.c.l.b16 %v4170
    %v4299 = vunpack.c.l.b16 %v4171
    %v4300 = vunpack.c.l.b16 %v4172
    %v4301 = vunpack.c.l.b16 %v4173
    %v4302 = vunpack.c.l.b16 %v4174
    %v4303 = vunpack.c.l.b16 %v4175
    %v4304 = vunpack.c.l.b16 %v4176
    %v4305 = vunpack.c.l.b16 %v4177
    %v4306 = vunpack.c.l.b16 %v4178
    %v4307 = vunpack.c.l.b16 %v4179
    %v4308 = vunpack.c.l.b16 %v4180
    %v4309 = vunpack.c.l.b16 %v4181
    %v4310 = vunpack.c.l.b16 %v4182
    %v4311 = vunpack.c.l.b16 %v4183
    %v4312 = vunpack.c.l.b16 %v4184
    %v4313 = vunpack.c.l.b16 %v4185
    %v4314 = vunpack.c.l.b16 %v4186
    %v4315 = vunpack.c.l.b16 %v4187
    %v4316 = vunpack.c.l.b16 %v4188
    %v4317 = vunpack.c.l.b16 %v4189
    %v4318 = vunpack.c.l.b16 %v4190
    %v4319 = vunpack.c.l.b16 %v4191
    %v4320 = vunpack.c.l.b16 %v4192
    %v4321 = vunpack.c.l.b16 %v4193
    %v4322 = vunpack.c.l.b16 %v4194
    %v4323 = vunpack.c.l.b16 %v4195
    %v4324 = vunpack.c.l.b16 %v4196
    %v4325 = vunpack.c.l.b16 %v4197
    %v4326 = vunpack.c.l.b16 %v4198
    %v4327 = vunpack.c.l.b16 %v4199
    %v4328 = vpack.c.b16 %v4265, %v4264
    %v4329 = vpack.c.b16 %v4267, %v4266
    %v4330 = vpack.c.b16 %v4269, %v4268
    %v4331 = vpack.c.b16 %v4271, %v4270
    %v4332 = vpack.c.b16 %v4273, %v4272
    %v4333 = vpack.c.b16 %v4275, %v4274
    %v4334 = vpack.c.b16 %v4277, %v4276
    %v4335 = vpack.c.b16 %v4279, %v4278
    %v4336 = vpack.c.b16 %v4281, %v4280
    %v4337 = vpack.c.b16 %v4283, %v4282
    %v4338 = vpack.c.b16 %v4285, %v4284
    %v4339 = vpack.c.b16 %v4287, %v4286
    %v4340 = vpack.c.b16 %v4289, %v4288
    %v4341 = vpack.c.b16 %v4291, %v4290
    %v4342 = vpack.c.b16 %v4293, %v4292
    %v4343 = vpack.c.b16 %v4295, %v4294
    %v4344 = vpack.c.b16 %v4297, %v4296
    %v4345 = vpack.c.b16 %v4299, %v4298
    %v4346 = vpack.c.b16 %v4301, %v4300
    %v4347 = vpack.c.b16 %v4303, %v4302
    %v4348 = vpack.c.b16 %v4305, %v4304
    %v4349 = vpack.c.b16 %v4307, %v4306
    %v4350 = vpack.c.b16 %v4309, %v4308
    %v4351 = vpack.c.b16 %v4311, %v4310
    %v4352 = vpack.c.b16 %v4313, %v4312
    %v4353 = vpack.c.b16 %v4315, %v4314
    %v4354 = vpack.c.b16 %v4317, %v4316
    %v4355 = vpack.c.b16 %v4319, %v4318
    %v4356 = vpack.c.b16 %v4321, %v4320
    %v4357 = vpack.c.b16 %v4323, %v4322
    %v4358 = vpack.c.b16 %v4325, %v4324
    %v4359 = vpack.c.b16 %v4327, %v4326
    %4392 = vmatpush.bf16.msra.mxu0 %v4335
    %4393 = vmatpush.bf16.msra.mxu0 %v4334
    %4394 = vmatpush.bf16.msra.mxu0 %v4333
    %4395 = vmatpush.bf16.msra.mxu0 %v4332
    %4396 = vmatpush.bf16.msra.mxu0 %v4331
    %4397 = vmatpush.bf16.msra.mxu0 %v4330
    %4398 = vmatpush.bf16.msra.mxu0 %v4329
    %4399 = vmatpush.bf16.msra.mxu0 %v4328
    %4400 = vmatmul.bf16.gmra.mxu0 %v4131
    %v4401 = vpop.f32.mrf.mxu0
    %v4402 = vadd.f32 0.0, %v4401
    %v4403 = vpop.f32.mrf.mxu0
    %4404 = vdwg.mxu0
    %4405 = vmatpush.bf16.msra.mxu0 %v4343
    %4406 = vmatpush.bf16.msra.mxu0 %v4342
    %4407 = vmatpush.bf16.msra.mxu0 %v4341
    %4408 = vmatpush.bf16.msra.mxu0 %v4340
    %4409 = vmatpush.bf16.msra.mxu0 %v4339
    %4410 = vmatpush.bf16.msra.mxu0 %v4338
    %4411 = vmatpush.bf16.msra.mxu0 %v4337
    %4412 = vmatpush.bf16.msra.mxu0 %v4336
    %4413 = vmatmul.bf16.gmra.mxu0 %v4132
    %v4414 = vpop.f32.mrf.mxu0
    %v4415 = vadd.f32 %v4402, %v4414
    %v4416 = vpop.f32.mrf.mxu0
    %4417 = vdwg.mxu0
    %4418 = vmatpush.bf16.msra.mxu0 %v4351
    %4419 = vmatpush.bf16.msra.mxu0 %v4350
    %4420 = vmatpush.bf16.msra.mxu0 %v4349
    %4421 = vmatpush.bf16.msra.mxu0 %v4348
    %4422 = vmatpush.bf16.msra.mxu0 %v4347
    %4423 = vmatpush.bf16.msra.mxu0 %v4346
    %4424 = vmatpush.bf16.msra.mxu0 %v4345
    %4425 = vmatpush.bf16.msra.mxu0 %v4344
    %4426 = vmatmul.bf16.gmra.mxu0 %v4133
    %v4427 = vpop.f32.mrf.mxu0
    %v4428 = vadd.f32 %v4415, %v4427
    %v4429 = vpop.f32.mrf.mxu0
    %4430 = vdwg.mxu0
    %4431 = vmatpush.bf16.msra.mxu0 %v4359
    %4432 = vmatpush.bf16.msra.mxu0 %v4358
    %4433 = vmatpush.bf16.msra.mxu0 %v4357
    %4434 = vmatpush.bf16.msra.mxu0 %v4356
    %4435 = vmatpush.bf16.msra.mxu0 %v4355
    %4436 = vmatpush.bf16.msra.mxu0 %v4354
    %4437 = vmatpush.bf16.msra.mxu0 %v4353
    %4438 = vmatpush.bf16.msra.mxu0 %v4352
    %4439 = vmatmul.bf16.gmra.mxu0 %v4134
    %v4440 = vpop.f32.mrf.mxu0
    %v4441 = vadd.f32 %v4428, %v4440
    %v4442 = vpop.f32.mrf.mxu0
    %4443 = vdwg.mxu0
    %v4444 = vadd.f32 %v4130, %v4441
    %v4445 = vpack.c.bf16 %v2512, %v2512
    %v4446 = vpack.c.bf16 %v2513, %v2513
    %v4447 = vpack.c.bf16 %v2514, %v2514
    %v4448 = vpack.c.bf16 %v2515, %v2515
    %s4449 = scalar_lea.vmem [#allocation17], 1536
    %v4450 = vld [vmem:[%s4449] sm:$0xf]
    %v4451 = vld [vmem:[%s4449 + $0x4] sm:$0xf]
    %v4452 = vld [vmem:[%s4449 + $0x8] sm:$0xf]
    %v4453 = vld [vmem:[%s4449 + $0xc] sm:$0xf]
    %v4454 = vld [vmem:[%s4449 + $0x10] sm:$0xf]
    %v4455 = vld [vmem:[%s4449 + $0x14] sm:$0xf]
    %v4456 = vld [vmem:[%s4449 + $0x18] sm:$0xf]
    %v4457 = vld [vmem:[%s4449 + $0x1c] sm:$0xf]
    %v4458 = vld [vmem:[%s4449 + $0x20] sm:$0xf]
    %v4459 = vld [vmem:[%s4449 + $0x24] sm:$0xf]
    %v4460 = vld [vmem:[%s4449 + $0x28] sm:$0xf]
    %v4461 = vld [vmem:[%s4449 + $0x2c] sm:$0xf]
    %v4462 = vld [vmem:[%s4449 + $0x30] sm:$0xf]
    %v4463 = vld [vmem:[%s4449 + $0x34] sm:$0xf]
    %v4464 = vld [vmem:[%s4449 + $0x38] sm:$0xf]
    %v4465 = vld [vmem:[%s4449 + $0x3c] sm:$0xf]
    %v4466 = vld [vmem:[%s4449 + $0x40] sm:$0xf]
    %v4467 = vld [vmem:[%s4449 + $0x44] sm:$0xf]
    %v4468 = vld [vmem:[%s4449 + $0x48] sm:$0xf]
    %v4469 = vld [vmem:[%s4449 + $0x4c] sm:$0xf]
    %v4470 = vld [vmem:[%s4449 + $0x50] sm:$0xf]
    %v4471 = vld [vmem:[%s4449 + $0x54] sm:$0xf]
    %v4472 = vld [vmem:[%s4449 + $0x58] sm:$0xf]
    %v4473 = vld [vmem:[%s4449 + $0x5c] sm:$0xf]
    %v4474 = vld [vmem:[%s4449 + $0x60] sm:$0xf]
    %v4475 = vld [vmem:[%s4449 + $0x64] sm:$0xf]
    %v4476 = vld [vmem:[%s4449 + $0x68] sm:$0xf]
    %v4477 = vld [vmem:[%s4449 + $0x6c] sm:$0xf]
    %v4478 = vld [vmem:[%s4449 + $0x70] sm:$0xf]
    %v4479 = vld [vmem:[%s4449 + $0x74] sm:$0xf]
    %v4480 = vld [vmem:[%s4449 + $0x78] sm:$0xf]
    %v4481 = vld [vmem:[%s4449 + $0x7c] sm:$0xf]
    %v4482 = vld [vmem:[%s4449 + $0x80] sm:$0xf]
    %v4483 = vld [vmem:[%s4449 + $0x84] sm:$0xf]
    %v4484 = vld [vmem:[%s4449 + $0x88] sm:$0xf]
    %v4485 = vld [vmem:[%s4449 + $0x8c] sm:$0xf]
    %v4486 = vld [vmem:[%s4449 + $0x90] sm:$0xf]
    %v4487 = vld [vmem:[%s4449 + $0x94] sm:$0xf]
    %v4488 = vld [vmem:[%s4449 + $0x98] sm:$0xf]
    %v4489 = vld [vmem:[%s4449 + $0x9c] sm:$0xf]
    %v4490 = vld [vmem:[%s4449 + $0xa0] sm:$0xf]
    %v4491 = vld [vmem:[%s4449 + $0xa4] sm:$0xf]
    %v4492 = vld [vmem:[%s4449 + $0xa8] sm:$0xf]
    %v4493 = vld [vmem:[%s4449 + $0xac] sm:$0xf]
    %v4494 = vld [vmem:[%s4449 + $0xb0] sm:$0xf]
    %v4495 = vld [vmem:[%s4449 + $0xb4] sm:$0xf]
    %v4496 = vld [vmem:[%s4449 + $0xb8] sm:$0xf]
    %v4497 = vld [vmem:[%s4449 + $0xbc] sm:$0xf]
    %v4498 = vld [vmem:[%s4449 + $0xc0] sm:$0xf]
    %v4499 = vld [vmem:[%s4449 + $0xc4] sm:$0xf]
    %v4500 = vld [vmem:[%s4449 + $0xc8] sm:$0xf]
    %v4501 = vld [vmem:[%s4449 + $0xcc] sm:$0xf]
    %v4502 = vld [vmem:[%s4449 + $0xd0] sm:$0xf]
    %v4503 = vld [vmem:[%s4449 + $0xd4] sm:$0xf]
    %v4504 = vld [vmem:[%s4449 + $0xd8] sm:$0xf]
    %v4505 = vld [vmem:[%s4449 + $0xdc] sm:$0xf]
    %v4506 = vld [vmem:[%s4449 + $0xe0] sm:$0xf]
    %v4507 = vld [vmem:[%s4449 + $0xe4] sm:$0xf]
    %v4508 = vld [vmem:[%s4449 + $0xe8] sm:$0xf]
    %v4509 = vld [vmem:[%s4449 + $0xec] sm:$0xf]
    %v4510 = vld [vmem:[%s4449 + $0xf0] sm:$0xf]
    %v4511 = vld [vmem:[%s4449 + $0xf4] sm:$0xf]
    %v4512 = vld [vmem:[%s4449 + $0xf8] sm:$0xf]
    %v4513 = vld [vmem:[%s4449 + $0xfc] sm:$0xf]
    %v4578 = vunpack.c.l.b16 %v4450
    %v4579 = vunpack.c.l.b16 %v4451
    %v4580 = vunpack.c.l.b16 %v4452
    %v4581 = vunpack.c.l.b16 %v4453
    %v4582 = vunpack.c.l.b16 %v4454
    %v4583 = vunpack.c.l.b16 %v4455
    %v4584 = vunpack.c.l.b16 %v4456
    %v4585 = vunpack.c.l.b16 %v4457
    %v4586 = vunpack.c.l.b16 %v4458
    %v4587 = vunpack.c.l.b16 %v4459
    %v4588 = vunpack.c.l.b16 %v4460
    %v4589 = vunpack.c.l.b16 %v4461
    %v4590 = vunpack.c.l.b16 %v4462
    %v4591 = vunpack.c.l.b16 %v4463
    %v4592 = vunpack.c.l.b16 %v4464
    %v4593 = vunpack.c.l.b16 %v4465
    %v4594 = vunpack.c.l.b16 %v4466
    %v4595 = vunpack.c.l.b16 %v4467
    %v4596 = vunpack.c.l.b16 %v4468
    %v4597 = vunpack.c.l.b16 %v4469
    %v4598 = vunpack.c.l.b16 %v4470
    %v4599 = vunpack.c.l.b16 %v4471
    %v4600 = vunpack.c.l.b16 %v4472
    %v4601 = vunpack.c.l.b16 %v4473
    %v4602 = vunpack.c.l.b16 %v4474
    %v4603 = vunpack.c.l.b16 %v4475
    %v4604 = vunpack.c.l.b16 %v4476
    %v4605 = vunpack.c.l.b16 %v4477
    %v4606 = vunpack.c.l.b16 %v4478
    %v4607 = vunpack.c.l.b16 %v4479
    %v4608 = vunpack.c.l.b16 %v4480
    %v4609 = vunpack.c.l.b16 %v4481
    %v4610 = vunpack.c.l.b16 %v4482
    %v4611 = vunpack.c.l.b16 %v4483
    %v4612 = vunpack.c.l.b16 %v4484
    %v4613 = vunpack.c.l.b16 %v4485
    %v4614 = vunpack.c.l.b16 %v4486
    %v4615 = vunpack.c.l.b16 %v4487
    %v4616 = vunpack.c.l.b16 %v4488
    %v4617 = vunpack.c.l.b16 %v4489
    %v4618 = vunpack.c.l.b16 %v4490
    %v4619 = vunpack.c.l.b16 %v4491
    %v4620 = vunpack.c.l.b16 %v4492
    %v4621 = vunpack.c.l.b16 %v4493
    %v4622 = vunpack.c.l.b16 %v4494
    %v4623 = vunpack.c.l.b16 %v4495
    %v4624 = vunpack.c.l.b16 %v4496
    %v4625 = vunpack.c.l.b16 %v4497
    %v4626 = vunpack.c.l.b16 %v4498
    %v4627 = vunpack.c.l.b16 %v4499
    %v4628 = vunpack.c.l.b16 %v4500
    %v4629 = vunpack.c.l.b16 %v4501
    %v4630 = vunpack.c.l.b16 %v4502
    %v4631 = vunpack.c.l.b16 %v4503
    %v4632 = vunpack.c.l.b16 %v4504
    %v4633 = vunpack.c.l.b16 %v4505
    %v4634 = vunpack.c.l.b16 %v4506
    %v4635 = vunpack.c.l.b16 %v4507
    %v4636 = vunpack.c.l.b16 %v4508
    %v4637 = vunpack.c.l.b16 %v4509
    %v4638 = vunpack.c.l.b16 %v4510
    %v4639 = vunpack.c.l.b16 %v4511
    %v4640 = vunpack.c.l.b16 %v4512
    %v4641 = vunpack.c.l.b16 %v4513
    %v4642 = vpack.c.b16 %v4579, %v4578
    %v4643 = vpack.c.b16 %v4581, %v4580
    %v4644 = vpack.c.b16 %v4583, %v4582
    %v4645 = vpack.c.b16 %v4585, %v4584
    %v4646 = vpack.c.b16 %v4587, %v4586
    %v4647 = vpack.c.b16 %v4589, %v4588
    %v4648 = vpack.c.b16 %v4591, %v4590
    %v4649 = vpack.c.b16 %v4593, %v4592
    %v4650 = vpack.c.b16 %v4595, %v4594
    %v4651 = vpack.c.b16 %v4597, %v4596
    %v4652 = vpack.c.b16 %v4599, %v4598
    %v4653 = vpack.c.b16 %v4601, %v4600
    %v4654 = vpack.c.b16 %v4603, %v4602
    %v4655 = vpack.c.b16 %v4605, %v4604
    %v4656 = vpack.c.b16 %v4607, %v4606
    %v4657 = vpack.c.b16 %v4609, %v4608
    %v4658 = vpack.c.b16 %v4611, %v4610
    %v4659 = vpack.c.b16 %v4613, %v4612
    %v4660 = vpack.c.b16 %v4615, %v4614
    %v4661 = vpack.c.b16 %v4617, %v4616
    %v4662 = vpack.c.b16 %v4619, %v4618
    %v4663 = vpack.c.b16 %v4621, %v4620
    %v4664 = vpack.c.b16 %v4623, %v4622
    %v4665 = vpack.c.b16 %v4625, %v4624
    %v4666 = vpack.c.b16 %v4627, %v4626
    %v4667 = vpack.c.b16 %v4629, %v4628
    %v4668 = vpack.c.b16 %v4631, %v4630
    %v4669 = vpack.c.b16 %v4633, %v4632
    %v4670 = vpack.c.b16 %v4635, %v4634
    %v4671 = vpack.c.b16 %v4637, %v4636
    %v4672 = vpack.c.b16 %v4639, %v4638
    %v4673 = vpack.c.b16 %v4641, %v4640
    %4706 = vmatpush.bf16.msra.mxu0 %v4649
    %4707 = vmatpush.bf16.msra.mxu0 %v4648
    %4708 = vmatpush.bf16.msra.mxu0 %v4647
    %4709 = vmatpush.bf16.msra.mxu0 %v4646
    %4710 = vmatpush.bf16.msra.mxu0 %v4645
    %4711 = vmatpush.bf16.msra.mxu0 %v4644
    %4712 = vmatpush.bf16.msra.mxu0 %v4643
    %4713 = vmatpush.bf16.msra.mxu0 %v4642
    %4714 = vmatmul.bf16.gmra.mxu0 %v4445
    %v4715 = vpop.f32.mrf.mxu0
    %v4716 = vadd.f32 0.0, %v4715
    %v4717 = vpop.f32.mrf.mxu0
    %4718 = vdwg.mxu0
    %4719 = vmatpush.bf16.msra.mxu0 %v4657
    %4720 = vmatpush.bf16.msra.mxu0 %v4656
    %4721 = vmatpush.bf16.msra.mxu0 %v4655
    %4722 = vmatpush.bf16.msra.mxu0 %v4654
    %4723 = vmatpush.bf16.msra.mxu0 %v4653
    %4724 = vmatpush.bf16.msra.mxu0 %v4652
    %4725 = vmatpush.bf16.msra.mxu0 %v4651
    %4726 = vmatpush.bf16.msra.mxu0 %v4650
    %4727 = vmatmul.bf16.gmra.mxu0 %v4446
    %v4728 = vpop.f32.mrf.mxu0
    %v4729 = vadd.f32 %v4716, %v4728
    %v4730 = vpop.f32.mrf.mxu0
    %4731 = vdwg.mxu0
    %4732 = vmatpush.bf16.msra.mxu0 %v4665
    %4733 = vmatpush.bf16.msra.mxu0 %v4664
    %4734 = vmatpush.bf16.msra.mxu0 %v4663
    %4735 = vmatpush.bf16.msra.mxu0 %v4662
    %4736 = vmatpush.bf16.msra.mxu0 %v4661
    %4737 = vmatpush.bf16.msra.mxu0 %v4660
    %4738 = vmatpush.bf16.msra.mxu0 %v4659
    %4739 = vmatpush.bf16.msra.mxu0 %v4658
    %4740 = vmatmul.bf16.gmra.mxu0 %v4447
    %v4741 = vpop.f32.mrf.mxu0
    %v4742 = vadd.f32 %v4729, %v4741
    %v4743 = vpop.f32.mrf.mxu0
    %4744 = vdwg.mxu0
    %4745 = vmatpush.bf16.msra.mxu0 %v4673
    %4746 = vmatpush.bf16.msra.mxu0 %v4672
    %4747 = vmatpush.bf16.msra.mxu0 %v4671
    %4748 = vmatpush.bf16.msra.mxu0 %v4670
    %4749 = vmatpush.bf16.msra.mxu0 %v4669
    %4750 = vmatpush.bf16.msra.mxu0 %v4668
    %4751 = vmatpush.bf16.msra.mxu0 %v4667
    %4752 = vmatpush.bf16.msra.mxu0 %v4666
    %4753 = vmatmul.bf16.gmra.mxu0 %v4448
    %v4754 = vpop.f32.mrf.mxu0
    %v4755 = vadd.f32 %v4742, %v4754
    %v4756 = vpop.f32.mrf.mxu0
    %4757 = vdwg.mxu0
    %v4758 = vadd.f32 %v4444, %v4755
    %v4759 = vpack.c.bf16 %v2516, %v2516
    %v4760 = vpack.c.bf16 %v2517, %v2517
    %v4761 = vpack.c.bf16 %v2518, %v2518
    %v4762 = vpack.c.bf16 %v2519, %v2519
    %s4763 = scalar_lea.vmem [#allocation17], 1792
    %v4764 = vld [vmem:[%s4763] sm:$0xf]
    %v4765 = vld [vmem:[%s4763 + $0x4] sm:$0xf]
    %v4766 = vld [vmem:[%s4763 + $0x8] sm:$0xf]
    %v4767 = vld [vmem:[%s4763 + $0xc] sm:$0xf]
    %v4768 = vld [vmem:[%s4763 + $0x10] sm:$0xf]
    %v4769 = vld [vmem:[%s4763 + $0x14] sm:$0xf]
    %v4770 = vld [vmem:[%s4763 + $0x18] sm:$0xf]
    %v4771 = vld [vmem:[%s4763 + $0x1c] sm:$0xf]
    %v4772 = vld [vmem:[%s4763 + $0x20] sm:$0xf]
    %v4773 = vld [vmem:[%s4763 + $0x24] sm:$0xf]
    %v4774 = vld [vmem:[%s4763 + $0x28] sm:$0xf]
    %v4775 = vld [vmem:[%s4763 + $0x2c] sm:$0xf]
    %v4776 = vld [vmem:[%s4763 + $0x30] sm:$0xf]
    %v4777 = vld [vmem:[%s4763 + $0x34] sm:$0xf]
    %v4778 = vld [vmem:[%s4763 + $0x38] sm:$0xf]
    %v4779 = vld [vmem:[%s4763 + $0x3c] sm:$0xf]
    %v4780 = vld [vmem:[%s4763 + $0x40] sm:$0xf]
    %v4781 = vld [vmem:[%s4763 + $0x44] sm:$0xf]
    %v4782 = vld [vmem:[%s4763 + $0x48] sm:$0xf]
    %v4783 = vld [vmem:[%s4763 + $0x4c] sm:$0xf]
    %v4784 = vld [vmem:[%s4763 + $0x50] sm:$0xf]
    %v4785 = vld [vmem:[%s4763 + $0x54] sm:$0xf]
    %v4786 = vld [vmem:[%s4763 + $0x58] sm:$0xf]
    %v4787 = vld [vmem:[%s4763 + $0x5c] sm:$0xf]
    %v4788 = vld [vmem:[%s4763 + $0x60] sm:$0xf]
    %v4789 = vld [vmem:[%s4763 + $0x64] sm:$0xf]
    %v4790 = vld [vmem:[%s4763 + $0x68] sm:$0xf]
    %v4791 = vld [vmem:[%s4763 + $0x6c] sm:$0xf]
    %v4792 = vld [vmem:[%s4763 + $0x70] sm:$0xf]
    %v4793 = vld [vmem:[%s4763 + $0x74] sm:$0xf]
    %v4794 = vld [vmem:[%s4763 + $0x78] sm:$0xf]
    %v4795 = vld [vmem:[%s4763 + $0x7c] sm:$0xf]
    %v4796 = vld [vmem:[%s4763 + $0x80] sm:$0xf]
    %v4797 = vld [vmem:[%s4763 + $0x84] sm:$0xf]
    %v4798 = vld [vmem:[%s4763 + $0x88] sm:$0xf]
    %v4799 = vld [vmem:[%s4763 + $0x8c] sm:$0xf]
    %v4800 = vld [vmem:[%s4763 + $0x90] sm:$0xf]
    %v4801 = vld [vmem:[%s4763 + $0x94] sm:$0xf]
    %v4802 = vld [vmem:[%s4763 + $0x98] sm:$0xf]
    %v4803 = vld [vmem:[%s4763 + $0x9c] sm:$0xf]
    %v4804 = vld [vmem:[%s4763 + $0xa0] sm:$0xf]
    %v4805 = vld [vmem:[%s4763 + $0xa4] sm:$0xf]
    %v4806 = vld [vmem:[%s4763 + $0xa8] sm:$0xf]
    %v4807 = vld [vmem:[%s4763 + $0xac] sm:$0xf]
    %v4808 = vld [vmem:[%s4763 + $0xb0] sm:$0xf]
    %v4809 = vld [vmem:[%s4763 + $0xb4] sm:$0xf]
    %v4810 = vld [vmem:[%s4763 + $0xb8] sm:$0xf]
    %v4811 = vld [vmem:[%s4763 + $0xbc] sm:$0xf]
    %v4812 = vld [vmem:[%s4763 + $0xc0] sm:$0xf]
    %v4813 = vld [vmem:[%s4763 + $0xc4] sm:$0xf]
    %v4814 = vld [vmem:[%s4763 + $0xc8] sm:$0xf]
    %v4815 = vld [vmem:[%s4763 + $0xcc] sm:$0xf]
    %v4816 = vld [vmem:[%s4763 + $0xd0] sm:$0xf]
    %v4817 = vld [vmem:[%s4763 + $0xd4] sm:$0xf]
    %v4818 = vld [vmem:[%s4763 + $0xd8] sm:$0xf]
    %v4819 = vld [vmem:[%s4763 + $0xdc] sm:$0xf]
    %v4820 = vld [vmem:[%s4763 + $0xe0] sm:$0xf]
    %v4821 = vld [vmem:[%s4763 + $0xe4] sm:$0xf]
    %v4822 = vld [vmem:[%s4763 + $0xe8] sm:$0xf]
    %v4823 = vld [vmem:[%s4763 + $0xec] sm:$0xf]
    %v4824 = vld [vmem:[%s4763 + $0xf0] sm:$0xf]
    %v4825 = vld [vmem:[%s4763 + $0xf4] sm:$0xf]
    %v4826 = vld [vmem:[%s4763 + $0xf8] sm:$0xf]
    %v4827 = vld [vmem:[%s4763 + $0xfc] sm:$0xf]
    %v4892 = vunpack.c.l.b16 %v4764
    %v4893 = vunpack.c.l.b16 %v4765
    %v4894 = vunpack.c.l.b16 %v4766
    %v4895 = vunpack.c.l.b16 %v4767
    %v4896 = vunpack.c.l.b16 %v4768
    %v4897 = vunpack.c.l.b16 %v4769
    %v4898 = vunpack.c.l.b16 %v4770
    %v4899 = vunpack.c.l.b16 %v4771
    %v4900 = vunpack.c.l.b16 %v4772
    %v4901 = vunpack.c.l.b16 %v4773
    %v4902 = vunpack.c.l.b16 %v4774
    %v4903 = vunpack.c.l.b16 %v4775
    %v4904 = vunpack.c.l.b16 %v4776
    %v4905 = vunpack.c.l.b16 %v4777
    %v4906 = vunpack.c.l.b16 %v4778
    %v4907 = vunpack.c.l.b16 %v4779
    %v4908 = vunpack.c.l.b16 %v4780
    %v4909 = vunpack.c.l.b16 %v4781
    %v4910 = vunpack.c.l.b16 %v4782
    %v4911 = vunpack.c.l.b16 %v4783
    %v4912 = vunpack.c.l.b16 %v4784
    %v4913 = vunpack.c.l.b16 %v4785
    %v4914 = vunpack.c.l.b16 %v4786
    %v4915 = vunpack.c.l.b16 %v4787
    %v4916 = vunpack.c.l.b16 %v4788
    %v4917 = vunpack.c.l.b16 %v4789
    %v4918 = vunpack.c.l.b16 %v4790
    %v4919 = vunpack.c.l.b16 %v4791
    %v4920 = vunpack.c.l.b16 %v4792
    %v4921 = vunpack.c.l.b16 %v4793
    %v4922 = vunpack.c.l.b16 %v4794
    %v4923 = vunpack.c.l.b16 %v4795
    %v4924 = vunpack.c.l.b16 %v4796
    %v4925 = vunpack.c.l.b16 %v4797
    %v4926 = vunpack.c.l.b16 %v4798
    %v4927 = vunpack.c.l.b16 %v4799
    %v4928 = vunpack.c.l.b16 %v4800
    %v4929 = vunpack.c.l.b16 %v4801
    %v4930 = vunpack.c.l.b16 %v4802
    %v4931 = vunpack.c.l.b16 %v4803
    %v4932 = vunpack.c.l.b16 %v4804
    %v4933 = vunpack.c.l.b16 %v4805
    %v4934 = vunpack.c.l.b16 %v4806
    %v4935 = vunpack.c.l.b16 %v4807
    %v4936 = vunpack.c.l.b16 %v4808
    %v4937 = vunpack.c.l.b16 %v4809
    %v4938 = vunpack.c.l.b16 %v4810
    %v4939 = vunpack.c.l.b16 %v4811
    %v4940 = vunpack.c.l.b16 %v4812
    %v4941 = vunpack.c.l.b16 %v4813
    %v4942 = vunpack.c.l.b16 %v4814
    %v4943 = vunpack.c.l.b16 %v4815
    %v4944 = vunpack.c.l.b16 %v4816
    %v4945 = vunpack.c.l.b16 %v4817
    %v4946 = vunpack.c.l.b16 %v4818
    %v4947 = vunpack.c.l.b16 %v4819
    %v4948 = vunpack.c.l.b16 %v4820
    %v4949 = vunpack.c.l.b16 %v4821
    %v4950 = vunpack.c.l.b16 %v4822
    %v4951 = vunpack.c.l.b16 %v4823
    %v4952 = vunpack.c.l.b16 %v4824
    %v4953 = vunpack.c.l.b16 %v4825
    %v4954 = vunpack.c.l.b16 %v4826
    %v4955 = vunpack.c.l.b16 %v4827
    %v4956 = vpack.c.b16 %v4893, %v4892
    %v4957 = vpack.c.b16 %v4895, %v4894
    %v4958 = vpack.c.b16 %v4897, %v4896
    %v4959 = vpack.c.b16 %v4899, %v4898
    %v4960 = vpack.c.b16 %v4901, %v4900
    %v4961 = vpack.c.b16 %v4903, %v4902
    %v4962 = vpack.c.b16 %v4905, %v4904
    %v4963 = vpack.c.b16 %v4907, %v4906
    %v4964 = vpack.c.b16 %v4909, %v4908
    %v4965 = vpack.c.b16 %v4911, %v4910
    %v4966 = vpack.c.b16 %v4913, %v4912
    %v4967 = vpack.c.b16 %v4915, %v4914
    %v4968 = vpack.c.b16 %v4917, %v4916
    %v4969 = vpack.c.b16 %v4919, %v4918
    %v4970 = vpack.c.b16 %v4921, %v4920
    %v4971 = vpack.c.b16 %v4923, %v4922
    %v4972 = vpack.c.b16 %v4925, %v4924
    %v4973 = vpack.c.b16 %v4927, %v4926
    %v4974 = vpack.c.b16 %v4929, %v4928
    %v4975 = vpack.c.b16 %v4931, %v4930
    %v4976 = vpack.c.b16 %v4933, %v4932
    %v4977 = vpack.c.b16 %v4935, %v4934
    %v4978 = vpack.c.b16 %v4937, %v4936
    %v4979 = vpack.c.b16 %v4939, %v4938
    %v4980 = vpack.c.b16 %v4941, %v4940
    %v4981 = vpack.c.b16 %v4943, %v4942
    %v4982 = vpack.c.b16 %v4945, %v4944
    %v4983 = vpack.c.b16 %v4947, %v4946
    %v4984 = vpack.c.b16 %v4949, %v4948
    %v4985 = vpack.c.b16 %v4951, %v4950
    %v4986 = vpack.c.b16 %v4953, %v4952
    %v4987 = vpack.c.b16 %v4955, %v4954
    %5020 = vmatpush.bf16.msra.mxu0 %v4963
    %5021 = vmatpush.bf16.msra.mxu0 %v4962
    %5022 = vmatpush.bf16.msra.mxu0 %v4961
    %5023 = vmatpush.bf16.msra.mxu0 %v4960
    %5024 = vmatpush.bf16.msra.mxu0 %v4959
    %5025 = vmatpush.bf16.msra.mxu0 %v4958
    %5026 = vmatpush.bf16.msra.mxu0 %v4957
    %5027 = vmatpush.bf16.msra.mxu0 %v4956
    %5028 = vmatmul.bf16.gmra.mxu0 %v4759
    %v5029 = vpop.f32.mrf.mxu0
    %v5030 = vadd.f32 0.0, %v5029
    %v5031 = vpop.f32.mrf.mxu0
    %5032 = vdwg.mxu0
    %5033 = vmatpush.bf16.msra.mxu0 %v4971
    %5034 = vmatpush.bf16.msra.mxu0 %v4970
    %5035 = vmatpush.bf16.msra.mxu0 %v4969
    %5036 = vmatpush.bf16.msra.mxu0 %v4968
    %5037 = vmatpush.bf16.msra.mxu0 %v4967
    %5038 = vmatpush.bf16.msra.mxu0 %v4966
    %5039 = vmatpush.bf16.msra.mxu0 %v4965
    %5040 = vmatpush.bf16.msra.mxu0 %v4964
    %5041 = vmatmul.bf16.gmra.mxu0 %v4760
    %v5042 = vpop.f32.mrf.mxu0
    %v5043 = vadd.f32 %v5030, %v5042
    %v5044 = vpop.f32.mrf.mxu0
    %5045 = vdwg.mxu0
    %5046 = vmatpush.bf16.msra.mxu0 %v4979
    %5047 = vmatpush.bf16.msra.mxu0 %v4978
    %5048 = vmatpush.bf16.msra.mxu0 %v4977
    %5049 = vmatpush.bf16.msra.mxu0 %v4976
    %5050 = vmatpush.bf16.msra.mxu0 %v4975
    %5051 = vmatpush.bf16.msra.mxu0 %v4974
    %5052 = vmatpush.bf16.msra.mxu0 %v4973
    %5053 = vmatpush.bf16.msra.mxu0 %v4972
    %5054 = vmatmul.bf16.gmra.mxu0 %v4761
    %v5055 = vpop.f32.mrf.mxu0
    %v5056 = vadd.f32 %v5043, %v5055
    %v5057 = vpop.f32.mrf.mxu0
    %5058 = vdwg.mxu0
    %5059 = vmatpush.bf16.msra.mxu0 %v4987
    %5060 = vmatpush.bf16.msra.mxu0 %v4986
    %5061 = vmatpush.bf16.msra.mxu0 %v4985
    %5062 = vmatpush.bf16.msra.mxu0 %v4984
    %5063 = vmatpush.bf16.msra.mxu0 %v4983
    %5064 = vmatpush.bf16.msra.mxu0 %v4982
    %5065 = vmatpush.bf16.msra.mxu0 %v4981
    %5066 = vmatpush.bf16.msra.mxu0 %v4980
    %5067 = vmatmul.bf16.gmra.mxu0 %v4762
    %v5068 = vpop.f32.mrf.mxu0
    %v5069 = vadd.f32 %v5056, %v5068
    %v5070 = vpop.f32.mrf.mxu0
    %5071 = vdwg.mxu0
    %v5072 = vadd.f32 %v4758, %v5069
    %v5073 = vpack.c.bf16 %v2520, %v2520
    %v5074 = vpack.c.bf16 %v2521, %v2521
    %v5075 = vpack.c.bf16 %v2522, %v2522
    %v5076 = vpack.c.bf16 %v2523, %v2523
    %s5077 = scalar_lea.vmem [#allocation17], 2048
    %v5078 = vld [vmem:[%s5077] sm:$0xf]
    %v5079 = vld [vmem:[%s5077 + $0x4] sm:$0xf]
    %v5080 = vld [vmem:[%s5077 + $0x8] sm:$0xf]
    %v5081 = vld [vmem:[%s5077 + $0xc] sm:$0xf]
    %v5082 = vld [vmem:[%s5077 + $0x10] sm:$0xf]
    %v5083 = vld [vmem:[%s5077 + $0x14] sm:$0xf]
    %v5084 = vld [vmem:[%s5077 + $0x18] sm:$0xf]
    %v5085 = vld [vmem:[%s5077 + $0x1c] sm:$0xf]
    %v5086 = vld [vmem:[%s5077 + $0x20] sm:$0xf]
    %v5087 = vld [vmem:[%s5077 + $0x24] sm:$0xf]
    %v5088 = vld [vmem:[%s5077 + $0x28] sm:$0xf]
    %v5089 = vld [vmem:[%s5077 + $0x2c] sm:$0xf]
    %v5090 = vld [vmem:[%s5077 + $0x30] sm:$0xf]
    %v5091 = vld [vmem:[%s5077 + $0x34] sm:$0xf]
    %v5092 = vld [vmem:[%s5077 + $0x38] sm:$0xf]
    %v5093 = vld [vmem:[%s5077 + $0x3c] sm:$0xf]
    %v5094 = vld [vmem:[%s5077 + $0x40] sm:$0xf]
    %v5095 = vld [vmem:[%s5077 + $0x44] sm:$0xf]
    %v5096 = vld [vmem:[%s5077 + $0x48] sm:$0xf]
    %v5097 = vld [vmem:[%s5077 + $0x4c] sm:$0xf]
    %v5098 = vld [vmem:[%s5077 + $0x50] sm:$0xf]
    %v5099 = vld [vmem:[%s5077 + $0x54] sm:$0xf]
    %v5100 = vld [vmem:[%s5077 + $0x58] sm:$0xf]
    %v5101 = vld [vmem:[%s5077 + $0x5c] sm:$0xf]
    %v5102 = vld [vmem:[%s5077 + $0x60] sm:$0xf]
    %v5103 = vld [vmem:[%s5077 + $0x64] sm:$0xf]
    %v5104 = vld [vmem:[%s5077 + $0x68] sm:$0xf]
    %v5105 = vld [vmem:[%s5077 + $0x6c] sm:$0xf]
    %v5106 = vld [vmem:[%s5077 + $0x70] sm:$0xf]
    %v5107 = vld [vmem:[%s5077 + $0x74] sm:$0xf]
    %v5108 = vld [vmem:[%s5077 + $0x78] sm:$0xf]
    %v5109 = vld [vmem:[%s5077 + $0x7c] sm:$0xf]
    %v5110 = vld [vmem:[%s5077 + $0x80] sm:$0xf]
    %v5111 = vld [vmem:[%s5077 + $0x84] sm:$0xf]
    %v5112 = vld [vmem:[%s5077 + $0x88] sm:$0xf]
    %v5113 = vld [vmem:[%s5077 + $0x8c] sm:$0xf]
    %v5114 = vld [vmem:[%s5077 + $0x90] sm:$0xf]
    %v5115 = vld [vmem:[%s5077 + $0x94] sm:$0xf]
    %v5116 = vld [vmem:[%s5077 + $0x98] sm:$0xf]
    %v5117 = vld [vmem:[%s5077 + $0x9c] sm:$0xf]
    %v5118 = vld [vmem:[%s5077 + $0xa0] sm:$0xf]
    %v5119 = vld [vmem:[%s5077 + $0xa4] sm:$0xf]
    %v5120 = vld [vmem:[%s5077 + $0xa8] sm:$0xf]
    %v5121 = vld [vmem:[%s5077 + $0xac] sm:$0xf]
    %v5122 = vld [vmem:[%s5077 + $0xb0] sm:$0xf]
    %v5123 = vld [vmem:[%s5077 + $0xb4] sm:$0xf]
    %v5124 = vld [vmem:[%s5077 + $0xb8] sm:$0xf]
    %v5125 = vld [vmem:[%s5077 + $0xbc] sm:$0xf]
    %v5126 = vld [vmem:[%s5077 + $0xc0] sm:$0xf]
    %v5127 = vld [vmem:[%s5077 + $0xc4] sm:$0xf]
    %v5128 = vld [vmem:[%s5077 + $0xc8] sm:$0xf]
    %v5129 = vld [vmem:[%s5077 + $0xcc] sm:$0xf]
    %v5130 = vld [vmem:[%s5077 + $0xd0] sm:$0xf]
    %v5131 = vld [vmem:[%s5077 + $0xd4] sm:$0xf]
    %v5132 = vld [vmem:[%s5077 + $0xd8] sm:$0xf]
    %v5133 = vld [vmem:[%s5077 + $0xdc] sm:$0xf]
    %v5134 = vld [vmem:[%s5077 + $0xe0] sm:$0xf]
    %v5135 = vld [vmem:[%s5077 + $0xe4] sm:$0xf]
    %v5136 = vld [vmem:[%s5077 + $0xe8] sm:$0xf]
    %v5137 = vld [vmem:[%s5077 + $0xec] sm:$0xf]
    %v5138 = vld [vmem:[%s5077 + $0xf0] sm:$0xf]
    %v5139 = vld [vmem:[%s5077 + $0xf4] sm:$0xf]
    %v5140 = vld [vmem:[%s5077 + $0xf8] sm:$0xf]
    %v5141 = vld [vmem:[%s5077 + $0xfc] sm:$0xf]
    %v5206 = vunpack.c.l.b16 %v5078
    %v5207 = vunpack.c.l.b16 %v5079
    %v5208 = vunpack.c.l.b16 %v5080
    %v5209 = vunpack.c.l.b16 %v5081
    %v5210 = vunpack.c.l.b16 %v5082
    %v5211 = vunpack.c.l.b16 %v5083
    %v5212 = vunpack.c.l.b16 %v5084
    %v5213 = vunpack.c.l.b16 %v5085
    %v5214 = vunpack.c.l.b16 %v5086
    %v5215 = vunpack.c.l.b16 %v5087
    %v5216 = vunpack.c.l.b16 %v5088
    %v5217 = vunpack.c.l.b16 %v5089
    %v5218 = vunpack.c.l.b16 %v5090
    %v5219 = vunpack.c.l.b16 %v5091
    %v5220 = vunpack.c.l.b16 %v5092
    %v5221 = vunpack.c.l.b16 %v5093
    %v5222 = vunpack.c.l.b16 %v5094
    %v5223 = vunpack.c.l.b16 %v5095
    %v5224 = vunpack.c.l.b16 %v5096
    %v5225 = vunpack.c.l.b16 %v5097
    %v5226 = vunpack.c.l.b16 %v5098
    %v5227 = vunpack.c.l.b16 %v5099
    %v5228 = vunpack.c.l.b16 %v5100
    %v5229 = vunpack.c.l.b16 %v5101
    %v5230 = vunpack.c.l.b16 %v5102
    %v5231 = vunpack.c.l.b16 %v5103
    %v5232 = vunpack.c.l.b16 %v5104
    %v5233 = vunpack.c.l.b16 %v5105
    %v5234 = vunpack.c.l.b16 %v5106
    %v5235 = vunpack.c.l.b16 %v5107
    %v5236 = vunpack.c.l.b16 %v5108
    %v5237 = vunpack.c.l.b16 %v5109
    %v5238 = vunpack.c.l.b16 %v5110
    %v5239 = vunpack.c.l.b16 %v5111
    %v5240 = vunpack.c.l.b16 %v5112
    %v5241 = vunpack.c.l.b16 %v5113
    %v5242 = vunpack.c.l.b16 %v5114
    %v5243 = vunpack.c.l.b16 %v5115
    %v5244 = vunpack.c.l.b16 %v5116
    %v5245 = vunpack.c.l.b16 %v5117
    %v5246 = vunpack.c.l.b16 %v5118
    %v5247 = vunpack.c.l.b16 %v5119
    %v5248 = vunpack.c.l.b16 %v5120
    %v5249 = vunpack.c.l.b16 %v5121
    %v5250 = vunpack.c.l.b16 %v5122
    %v5251 = vunpack.c.l.b16 %v5123
    %v5252 = vunpack.c.l.b16 %v5124
    %v5253 = vunpack.c.l.b16 %v5125
    %v5254 = vunpack.c.l.b16 %v5126
    %v5255 = vunpack.c.l.b16 %v5127
    %v5256 = vunpack.c.l.b16 %v5128
    %v5257 = vunpack.c.l.b16 %v5129
    %v5258 = vunpack.c.l.b16 %v5130
    %v5259 = vunpack.c.l.b16 %v5131
    %v5260 = vunpack.c.l.b16 %v5132
    %v5261 = vunpack.c.l.b16 %v5133
    %v5262 = vunpack.c.l.b16 %v5134
    %v5263 = vunpack.c.l.b16 %v5135
    %v5264 = vunpack.c.l.b16 %v5136
    %v5265 = vunpack.c.l.b16 %v5137
    %v5266 = vunpack.c.l.b16 %v5138
    %v5267 = vunpack.c.l.b16 %v5139
    %v5268 = vunpack.c.l.b16 %v5140
    %v5269 = vunpack.c.l.b16 %v5141
    %v5270 = vpack.c.b16 %v5207, %v5206
    %v5271 = vpack.c.b16 %v5209, %v5208
    %v5272 = vpack.c.b16 %v5211, %v5210
    %v5273 = vpack.c.b16 %v5213, %v5212
    %v5274 = vpack.c.b16 %v5215, %v5214
    %v5275 = vpack.c.b16 %v5217, %v5216
    %v5276 = vpack.c.b16 %v5219, %v5218
    %v5277 = vpack.c.b16 %v5221, %v5220
    %v5278 = vpack.c.b16 %v5223, %v5222
    %v5279 = vpack.c.b16 %v5225, %v5224
    %v5280 = vpack.c.b16 %v5227, %v5226
    %v5281 = vpack.c.b16 %v5229, %v5228
    %v5282 = vpack.c.b16 %v5231, %v5230
    %v5283 = vpack.c.b16 %v5233, %v5232
    %v5284 = vpack.c.b16 %v5235, %v5234
    %v5285 = vpack.c.b16 %v5237, %v5236
    %v5286 = vpack.c.b16 %v5239, %v5238
    %v5287 = vpack.c.b16 %v5241, %v5240
    %v5288 = vpack.c.b16 %v5243, %v5242
    %v5289 = vpack.c.b16 %v5245, %v5244
    %v5290 = vpack.c.b16 %v5247, %v5246
    %v5291 = vpack.c.b16 %v5249, %v5248
    %v5292 = vpack.c.b16 %v5251, %v5250
    %v5293 = vpack.c.b16 %v5253, %v5252
    %v5294 = vpack.c.b16 %v5255, %v5254
    %v5295 = vpack.c.b16 %v5257, %v5256
    %v5296 = vpack.c.b16 %v5259, %v5258
    %v5297 = vpack.c.b16 %v5261, %v5260
    %v5298 = vpack.c.b16 %v5263, %v5262
    %v5299 = vpack.c.b16 %v5265, %v5264
    %v5300 = vpack.c.b16 %v5267, %v5266
    %v5301 = vpack.c.b16 %v5269, %v5268
    %5334 = vmatpush.bf16.msra.mxu0 %v5277
    %5335 = vmatpush.bf16.msra.mxu0 %v5276
    %5336 = vmatpush.bf16.msra.mxu0 %v5275
    %5337 = vmatpush.bf16.msra.mxu0 %v5274
    %5338 = vmatpush.bf16.msra.mxu0 %v5273
    %5339 = vmatpush.bf16.msra.mxu0 %v5272
    %5340 = vmatpush.bf16.msra.mxu0 %v5271
    %5341 = vmatpush.bf16.msra.mxu0 %v5270
    %5342 = vmatmul.bf16.gmra.mxu0 %v5073
    %v5343 = vpop.f32.mrf.mxu0
    %v5344 = vadd.f32 0.0, %v5343
    %v5345 = vpop.f32.mrf.mxu0
    %5346 = vdwg.mxu0
    %5347 = vmatpush.bf16.msra.mxu0 %v5285
    %5348 = vmatpush.bf16.msra.mxu0 %v5284
    %5349 = vmatpush.bf16.msra.mxu0 %v5283
    %5350 = vmatpush.bf16.msra.mxu0 %v5282
    %5351 = vmatpush.bf16.msra.mxu0 %v5281
    %5352 = vmatpush.bf16.msra.mxu0 %v5280
    %5353 = vmatpush.bf16.msra.mxu0 %v5279
    %5354 = vmatpush.bf16.msra.mxu0 %v5278
    %5355 = vmatmul.bf16.gmra.mxu0 %v5074
    %v5356 = vpop.f32.mrf.mxu0
    %v5357 = vadd.f32 %v5344, %v5356
    %v5358 = vpop.f32.mrf.mxu0
    %5359 = vdwg.mxu0
    %5360 = vmatpush.bf16.msra.mxu0 %v5293
    %5361 = vmatpush.bf16.msra.mxu0 %v5292
    %5362 = vmatpush.bf16.msra.mxu0 %v5291
    %5363 = vmatpush.bf16.msra.mxu0 %v5290
    %5364 = vmatpush.bf16.msra.mxu0 %v5289
    %5365 = vmatpush.bf16.msra.mxu0 %v5288
    %5366 = vmatpush.bf16.msra.mxu0 %v5287
    %5367 = vmatpush.bf16.msra.mxu0 %v5286
    %5368 = vmatmul.bf16.gmra.mxu0 %v5075
    %v5369 = vpop.f32.mrf.mxu0
    %v5370 = vadd.f32 %v5357, %v5369
    %v5371 = vpop.f32.mrf.mxu0
    %5372 = vdwg.mxu0
    %5373 = vmatpush.bf16.msra.mxu0 %v5301
    %5374 = vmatpush.bf16.msra.mxu0 %v5300
    %5375 = vmatpush.bf16.msra.mxu0 %v5299
    %5376 = vmatpush.bf16.msra.mxu0 %v5298
    %5377 = vmatpush.bf16.msra.mxu0 %v5297
    %5378 = vmatpush.bf16.msra.mxu0 %v5296
    %5379 = vmatpush.bf16.msra.mxu0 %v5295
    %5380 = vmatpush.bf16.msra.mxu0 %v5294
    %5381 = vmatmul.bf16.gmra.mxu0 %v5076
    %v5382 = vpop.f32.mrf.mxu0
    %v5383 = vadd.f32 %v5370, %v5382
    %v5384 = vpop.f32.mrf.mxu0
    %5385 = vdwg.mxu0
    %v5386 = vadd.f32 %v5072, %v5383
    %v5387 = vpack.c.bf16 %v2524, %v2524
    %v5388 = vpack.c.bf16 %v2525, %v2525
    %v5389 = vpack.c.bf16 %v2526, %v2526
    %v5390 = vpack.c.bf16 %v2527, %v2527
    %s5391 = scalar_lea.vmem [#allocation17], 2304
    %v5392 = vld [vmem:[%s5391] sm:$0xf]
    %v5393 = vld [vmem:[%s5391 + $0x4] sm:$0xf]
    %v5394 = vld [vmem:[%s5391 + $0x8] sm:$0xf]
    %v5395 = vld [vmem:[%s5391 + $0xc] sm:$0xf]
    %v5396 = vld [vmem:[%s5391 + $0x10] sm:$0xf]
    %v5397 = vld [vmem:[%s5391 + $0x14] sm:$0xf]
    %v5398 = vld [vmem:[%s5391 + $0x18] sm:$0xf]
    %v5399 = vld [vmem:[%s5391 + $0x1c] sm:$0xf]
    %v5400 = vld [vmem:[%s5391 + $0x20] sm:$0xf]
    %v5401 = vld [vmem:[%s5391 + $0x24] sm:$0xf]
    %v5402 = vld [vmem:[%s5391 + $0x28] sm:$0xf]
    %v5403 = vld [vmem:[%s5391 + $0x2c] sm:$0xf]
    %v5404 = vld [vmem:[%s5391 + $0x30] sm:$0xf]
    %v5405 = vld [vmem:[%s5391 + $0x34] sm:$0xf]
    %v5406 = vld [vmem:[%s5391 + $0x38] sm:$0xf]
    %v5407 = vld [vmem:[%s5391 + $0x3c] sm:$0xf]
    %v5408 = vld [vmem:[%s5391 + $0x40] sm:$0xf]
    %v5409 = vld [vmem:[%s5391 + $0x44] sm:$0xf]
    %v5410 = vld [vmem:[%s5391 + $0x48] sm:$0xf]
    %v5411 = vld [vmem:[%s5391 + $0x4c] sm:$0xf]
    %v5412 = vld [vmem:[%s5391 + $0x50] sm:$0xf]
    %v5413 = vld [vmem:[%s5391 + $0x54] sm:$0xf]
    %v5414 = vld [vmem:[%s5391 + $0x58] sm:$0xf]
    %v5415 = vld [vmem:[%s5391 + $0x5c] sm:$0xf]
    %v5416 = vld [vmem:[%s5391 + $0x60] sm:$0xf]
    %v5417 = vld [vmem:[%s5391 + $0x64] sm:$0xf]
    %v5418 = vld [vmem:[%s5391 + $0x68] sm:$0xf]
    %v5419 = vld [vmem:[%s5391 + $0x6c] sm:$0xf]
    %v5420 = vld [vmem:[%s5391 + $0x70] sm:$0xf]
    %v5421 = vld [vmem:[%s5391 + $0x74] sm:$0xf]
    %v5422 = vld [vmem:[%s5391 + $0x78] sm:$0xf]
    %v5423 = vld [vmem:[%s5391 + $0x7c] sm:$0xf]
    %v5424 = vld [vmem:[%s5391 + $0x80] sm:$0xf]
    %v5425 = vld [vmem:[%s5391 + $0x84] sm:$0xf]
    %v5426 = vld [vmem:[%s5391 + $0x88] sm:$0xf]
    %v5427 = vld [vmem:[%s5391 + $0x8c] sm:$0xf]
    %v5428 = vld [vmem:[%s5391 + $0x90] sm:$0xf]
    %v5429 = vld [vmem:[%s5391 + $0x94] sm:$0xf]
    %v5430 = vld [vmem:[%s5391 + $0x98] sm:$0xf]
    %v5431 = vld [vmem:[%s5391 + $0x9c] sm:$0xf]
    %v5432 = vld [vmem:[%s5391 + $0xa0] sm:$0xf]
    %v5433 = vld [vmem:[%s5391 + $0xa4] sm:$0xf]
    %v5434 = vld [vmem:[%s5391 + $0xa8] sm:$0xf]
    %v5435 = vld [vmem:[%s5391 + $0xac] sm:$0xf]
    %v5436 = vld [vmem:[%s5391 + $0xb0] sm:$0xf]
    %v5437 = vld [vmem:[%s5391 + $0xb4] sm:$0xf]
    %v5438 = vld [vmem:[%s5391 + $0xb8] sm:$0xf]
    %v5439 = vld [vmem:[%s5391 + $0xbc] sm:$0xf]
    %v5440 = vld [vmem:[%s5391 + $0xc0] sm:$0xf]
    %v5441 = vld [vmem:[%s5391 + $0xc4] sm:$0xf]
    %v5442 = vld [vmem:[%s5391 + $0xc8] sm:$0xf]
    %v5443 = vld [vmem:[%s5391 + $0xcc] sm:$0xf]
    %v5444 = vld [vmem:[%s5391 + $0xd0] sm:$0xf]
    %v5445 = vld [vmem:[%s5391 + $0xd4] sm:$0xf]
    %v5446 = vld [vmem:[%s5391 + $0xd8] sm:$0xf]
    %v5447 = vld [vmem:[%s5391 + $0xdc] sm:$0xf]
    %v5448 = vld [vmem:[%s5391 + $0xe0] sm:$0xf]
    %v5449 = vld [vmem:[%s5391 + $0xe4] sm:$0xf]
    %v5450 = vld [vmem:[%s5391 + $0xe8] sm:$0xf]
    %v5451 = vld [vmem:[%s5391 + $0xec] sm:$0xf]
    %v5452 = vld [vmem:[%s5391 + $0xf0] sm:$0xf]
    %v5453 = vld [vmem:[%s5391 + $0xf4] sm:$0xf]
    %v5454 = vld [vmem:[%s5391 + $0xf8] sm:$0xf]
    %v5455 = vld [vmem:[%s5391 + $0xfc] sm:$0xf]
    %v5520 = vunpack.c.l.b16 %v5392
    %v5521 = vunpack.c.l.b16 %v5393
    %v5522 = vunpack.c.l.b16 %v5394
    %v5523 = vunpack.c.l.b16 %v5395
    %v5524 = vunpack.c.l.b16 %v5396
    %v5525 = vunpack.c.l.b16 %v5397
    %v5526 = vunpack.c.l.b16 %v5398
    %v5527 = vunpack.c.l.b16 %v5399
    %v5528 = vunpack.c.l.b16 %v5400
    %v5529 = vunpack.c.l.b16 %v5401
    %v5530 = vunpack.c.l.b16 %v5402
    %v5531 = vunpack.c.l.b16 %v5403
    %v5532 = vunpack.c.l.b16 %v5404
    %v5533 = vunpack.c.l.b16 %v5405
    %v5534 = vunpack.c.l.b16 %v5406
    %v5535 = vunpack.c.l.b16 %v5407
    %v5536 = vunpack.c.l.b16 %v5408
    %v5537 = vunpack.c.l.b16 %v5409
    %v5538 = vunpack.c.l.b16 %v5410
    %v5539 = vunpack.c.l.b16 %v5411
    %v5540 = vunpack.c.l.b16 %v5412
    %v5541 = vunpack.c.l.b16 %v5413
    %v5542 = vunpack.c.l.b16 %v5414
    %v5543 = vunpack.c.l.b16 %v5415
    %v5544 = vunpack.c.l.b16 %v5416
    %v5545 = vunpack.c.l.b16 %v5417
    %v5546 = vunpack.c.l.b16 %v5418
    %v5547 = vunpack.c.l.b16 %v5419
    %v5548 = vunpack.c.l.b16 %v5420
    %v5549 = vunpack.c.l.b16 %v5421
    %v5550 = vunpack.c.l.b16 %v5422
    %v5551 = vunpack.c.l.b16 %v5423
    %v5552 = vunpack.c.l.b16 %v5424
    %v5553 = vunpack.c.l.b16 %v5425
    %v5554 = vunpack.c.l.b16 %v5426
    %v5555 = vunpack.c.l.b16 %v5427
    %v5556 = vunpack.c.l.b16 %v5428
    %v5557 = vunpack.c.l.b16 %v5429
    %v5558 = vunpack.c.l.b16 %v5430
    %v5559 = vunpack.c.l.b16 %v5431
    %v5560 = vunpack.c.l.b16 %v5432
    %v5561 = vunpack.c.l.b16 %v5433
    %v5562 = vunpack.c.l.b16 %v5434
    %v5563 = vunpack.c.l.b16 %v5435
    %v5564 = vunpack.c.l.b16 %v5436
    %v5565 = vunpack.c.l.b16 %v5437
    %v5566 = vunpack.c.l.b16 %v5438
    %v5567 = vunpack.c.l.b16 %v5439
    %v5568 = vunpack.c.l.b16 %v5440
    %v5569 = vunpack.c.l.b16 %v5441
    %v5570 = vunpack.c.l.b16 %v5442
    %v5571 = vunpack.c.l.b16 %v5443
    %v5572 = vunpack.c.l.b16 %v5444
    %v5573 = vunpack.c.l.b16 %v5445
    %v5574 = vunpack.c.l.b16 %v5446
    %v5575 = vunpack.c.l.b16 %v5447
    %v5576 = vunpack.c.l.b16 %v5448
    %v5577 = vunpack.c.l.b16 %v5449
    %v5578 = vunpack.c.l.b16 %v5450
    %v5579 = vunpack.c.l.b16 %v5451
    %v5580 = vunpack.c.l.b16 %v5452
    %v5581 = vunpack.c.l.b16 %v5453
    %v5582 = vunpack.c.l.b16 %v5454
    %v5583 = vunpack.c.l.b16 %v5455
    %v5584 = vpack.c.b16 %v5521, %v5520
    %v5585 = vpack.c.b16 %v5523, %v5522
    %v5586 = vpack.c.b16 %v5525, %v5524
    %v5587 = vpack.c.b16 %v5527, %v5526
    %v5588 = vpack.c.b16 %v5529, %v5528
    %v5589 = vpack.c.b16 %v5531, %v5530
    %v5590 = vpack.c.b16 %v5533, %v5532
    %v5591 = vpack.c.b16 %v5535, %v5534
    %v5592 = vpack.c.b16 %v5537, %v5536
    %v5593 = vpack.c.b16 %v5539, %v5538
    %v5594 = vpack.c.b16 %v5541, %v5540
    %v5595 = vpack.c.b16 %v5543, %v5542
    %v5596 = vpack.c.b16 %v5545, %v5544
    %v5597 = vpack.c.b16 %v5547, %v5546
    %v5598 = vpack.c.b16 %v5549, %v5548
    %v5599 = vpack.c.b16 %v5551, %v5550
    %v5600 = vpack.c.b16 %v5553, %v5552
    %v5601 = vpack.c.b16 %v5555, %v5554
    %v5602 = vpack.c.b16 %v5557, %v5556
    %v5603 = vpack.c.b16 %v5559, %v5558
    %v5604 = vpack.c.b16 %v5561, %v5560
    %v5605 = vpack.c.b16 %v5563, %v5562
    %v5606 = vpack.c.b16 %v5565, %v5564
    %v5607 = vpack.c.b16 %v5567, %v5566
    %v5608 = vpack.c.b16 %v5569, %v5568
    %v5609 = vpack.c.b16 %v5571, %v5570
    %v5610 = vpack.c.b16 %v5573, %v5572
    %v5611 = vpack.c.b16 %v5575, %v5574
    %v5612 = vpack.c.b16 %v5577, %v5576
    %v5613 = vpack.c.b16 %v5579, %v5578
    %v5614 = vpack.c.b16 %v5581, %v5580
    %v5615 = vpack.c.b16 %v5583, %v5582
    %5648 = vmatpush.bf16.msra.mxu0 %v5591
    %5649 = vmatpush.bf16.msra.mxu0 %v5590
    %5650 = vmatpush.bf16.msra.mxu0 %v5589
    %5651 = vmatpush.bf16.msra.mxu0 %v5588
    %5652 = vmatpush.bf16.msra.mxu0 %v5587
    %5653 = vmatpush.bf16.msra.mxu0 %v5586
    %5654 = vmatpush.bf16.msra.mxu0 %v5585
    %5655 = vmatpush.bf16.msra.mxu0 %v5584
    %5656 = vmatmul.bf16.gmra.mxu0 %v5387
    %v5657 = vpop.f32.mrf.mxu0
    %v5658 = vadd.f32 0.0, %v5657
    %v5659 = vpop.f32.mrf.mxu0
    %5660 = vdwg.mxu0
    %5661 = vmatpush.bf16.msra.mxu0 %v5599
    %5662 = vmatpush.bf16.msra.mxu0 %v5598
    %5663 = vmatpush.bf16.msra.mxu0 %v5597
    %5664 = vmatpush.bf16.msra.mxu0 %v5596
    %5665 = vmatpush.bf16.msra.mxu0 %v5595
    %5666 = vmatpush.bf16.msra.mxu0 %v5594
    %5667 = vmatpush.bf16.msra.mxu0 %v5593
    %5668 = vmatpush.bf16.msra.mxu0 %v5592
    %5669 = vmatmul.bf16.gmra.mxu0 %v5388
    %v5670 = vpop.f32.mrf.mxu0
    %v5671 = vadd.f32 %v5658, %v5670
    %v5672 = vpop.f32.mrf.mxu0
    %5673 = vdwg.mxu0
    %5674 = vmatpush.bf16.msra.mxu0 %v5607
    %5675 = vmatpush.bf16.msra.mxu0 %v5606
    %5676 = vmatpush.bf16.msra.mxu0 %v5605
    %5677 = vmatpush.bf16.msra.mxu0 %v5604
    %5678 = vmatpush.bf16.msra.mxu0 %v5603
    %5679 = vmatpush.bf16.msra.mxu0 %v5602
    %5680 = vmatpush.bf16.msra.mxu0 %v5601
    %5681 = vmatpush.bf16.msra.mxu0 %v5600
    %5682 = vmatmul.bf16.gmra.mxu0 %v5389
    %v5683 = vpop.f32.mrf.mxu0
    %v5684 = vadd.f32 %v5671, %v5683
    %v5685 = vpop.f32.mrf.mxu0
    %5686 = vdwg.mxu0
    %5687 = vmatpush.bf16.msra.mxu0 %v5615
    %5688 = vmatpush.bf16.msra.mxu0 %v5614
    %5689 = vmatpush.bf16.msra.mxu0 %v5613
    %5690 = vmatpush.bf16.msra.mxu0 %v5612
    %5691 = vmatpush.bf16.msra.mxu0 %v5611
    %5692 = vmatpush.bf16.msra.mxu0 %v5610
    %5693 = vmatpush.bf16.msra.mxu0 %v5609
    %5694 = vmatpush.bf16.msra.mxu0 %v5608
    %5695 = vmatmul.bf16.gmra.mxu0 %v5390
    %v5696 = vpop.f32.mrf.mxu0
    %v5697 = vadd.f32 %v5684, %v5696
    %v5698 = vpop.f32.mrf.mxu0
    %5699 = vdwg.mxu0
    %v5700 = vadd.f32 %v5386, %v5697
    %v5701 = vpack.c.bf16 %v2528, %v2528
    %v5702 = vpack.c.bf16 %v2529, %v2529
    %v5703 = vpack.c.bf16 %v2530, %v2530
    %v5704 = vpack.c.bf16 %v2531, %v2531
    %s5705 = scalar_lea.vmem [#allocation17], 2560
    %v5706 = vld [vmem:[%s5705] sm:$0xf]
    %v5707 = vld [vmem:[%s5705 + $0x4] sm:$0xf]
    %v5708 = vld [vmem:[%s5705 + $0x8] sm:$0xf]
    %v5709 = vld [vmem:[%s5705 + $0xc] sm:$0xf]
    %v5710 = vld [vmem:[%s5705 + $0x10] sm:$0xf]
    %v5711 = vld [vmem:[%s5705 + $0x14] sm:$0xf]
    %v5712 = vld [vmem:[%s5705 + $0x18] sm:$0xf]
    %v5713 = vld [vmem:[%s5705 + $0x1c] sm:$0xf]
    %v5714 = vld [vmem:[%s5705 + $0x20] sm:$0xf]
    %v5715 = vld [vmem:[%s5705 + $0x24] sm:$0xf]
    %v5716 = vld [vmem:[%s5705 + $0x28] sm:$0xf]
    %v5717 = vld [vmem:[%s5705 + $0x2c] sm:$0xf]
    %v5718 = vld [vmem:[%s5705 + $0x30] sm:$0xf]
    %v5719 = vld [vmem:[%s5705 + $0x34] sm:$0xf]
    %v5720 = vld [vmem:[%s5705 + $0x38] sm:$0xf]
    %v5721 = vld [vmem:[%s5705 + $0x3c] sm:$0xf]
    %v5722 = vld [vmem:[%s5705 + $0x40] sm:$0xf]
    %v5723 = vld [vmem:[%s5705 + $0x44] sm:$0xf]
    %v5724 = vld [vmem:[%s5705 + $0x48] sm:$0xf]
    %v5725 = vld [vmem:[%s5705 + $0x4c] sm:$0xf]
    %v5726 = vld [vmem:[%s5705 + $0x50] sm:$0xf]
    %v5727 = vld [vmem:[%s5705 + $0x54] sm:$0xf]
    %v5728 = vld [vmem:[%s5705 + $0x58] sm:$0xf]
    %v5729 = vld [vmem:[%s5705 + $0x5c] sm:$0xf]
    %v5730 = vld [vmem:[%s5705 + $0x60] sm:$0xf]
    %v5731 = vld [vmem:[%s5705 + $0x64] sm:$0xf]
    %v5732 = vld [vmem:[%s5705 + $0x68] sm:$0xf]
    %v5733 = vld [vmem:[%s5705 + $0x6c] sm:$0xf]
    %v5734 = vld [vmem:[%s5705 + $0x70] sm:$0xf]
    %v5735 = vld [vmem:[%s5705 + $0x74] sm:$0xf]
    %v5736 = vld [vmem:[%s5705 + $0x78] sm:$0xf]
    %v5737 = vld [vmem:[%s5705 + $0x7c] sm:$0xf]
    %v5738 = vld [vmem:[%s5705 + $0x80] sm:$0xf]
    %v5739 = vld [vmem:[%s5705 + $0x84] sm:$0xf]
    %v5740 = vld [vmem:[%s5705 + $0x88] sm:$0xf]
    %v5741 = vld [vmem:[%s5705 + $0x8c] sm:$0xf]
    %v5742 = vld [vmem:[%s5705 + $0x90] sm:$0xf]
    %v5743 = vld [vmem:[%s5705 + $0x94] sm:$0xf]
    %v5744 = vld [vmem:[%s5705 + $0x98] sm:$0xf]
    %v5745 = vld [vmem:[%s5705 + $0x9c] sm:$0xf]
    %v5746 = vld [vmem:[%s5705 + $0xa0] sm:$0xf]
    %v5747 = vld [vmem:[%s5705 + $0xa4] sm:$0xf]
    %v5748 = vld [vmem:[%s5705 + $0xa8] sm:$0xf]
    %v5749 = vld [vmem:[%s5705 + $0xac] sm:$0xf]
    %v5750 = vld [vmem:[%s5705 + $0xb0] sm:$0xf]
    %v5751 = vld [vmem:[%s5705 + $0xb4] sm:$0xf]
    %v5752 = vld [vmem:[%s5705 + $0xb8] sm:$0xf]
    %v5753 = vld [vmem:[%s5705 + $0xbc] sm:$0xf]
    %v5754 = vld [vmem:[%s5705 + $0xc0] sm:$0xf]
    %v5755 = vld [vmem:[%s5705 + $0xc4] sm:$0xf]
    %v5756 = vld [vmem:[%s5705 + $0xc8] sm:$0xf]
    %v5757 = vld [vmem:[%s5705 + $0xcc] sm:$0xf]
    %v5758 = vld [vmem:[%s5705 + $0xd0] sm:$0xf]
    %v5759 = vld [vmem:[%s5705 + $0xd4] sm:$0xf]
    %v5760 = vld [vmem:[%s5705 + $0xd8] sm:$0xf]
    %v5761 = vld [vmem:[%s5705 + $0xdc] sm:$0xf]
    %v5762 = vld [vmem:[%s5705 + $0xe0] sm:$0xf]
    %v5763 = vld [vmem:[%s5705 + $0xe4] sm:$0xf]
    %v5764 = vld [vmem:[%s5705 + $0xe8] sm:$0xf]
    %v5765 = vld [vmem:[%s5705 + $0xec] sm:$0xf]
    %v5766 = vld [vmem:[%s5705 + $0xf0] sm:$0xf]
    %v5767 = vld [vmem:[%s5705 + $0xf4] sm:$0xf]
    %v5768 = vld [vmem:[%s5705 + $0xf8] sm:$0xf]
    %v5769 = vld [vmem:[%s5705 + $0xfc] sm:$0xf]
    %v5834 = vunpack.c.l.b16 %v5706
    %v5835 = vunpack.c.l.b16 %v5707
    %v5836 = vunpack.c.l.b16 %v5708
    %v5837 = vunpack.c.l.b16 %v5709
    %v5838 = vunpack.c.l.b16 %v5710
    %v5839 = vunpack.c.l.b16 %v5711
    %v5840 = vunpack.c.l.b16 %v5712
    %v5841 = vunpack.c.l.b16 %v5713
    %v5842 = vunpack.c.l.b16 %v5714
    %v5843 = vunpack.c.l.b16 %v5715
    %v5844 = vunpack.c.l.b16 %v5716
    %v5845 = vunpack.c.l.b16 %v5717
    %v5846 = vunpack.c.l.b16 %v5718
    %v5847 = vunpack.c.l.b16 %v5719
    %v5848 = vunpack.c.l.b16 %v5720
    %v5849 = vunpack.c.l.b16 %v5721
    %v5850 = vunpack.c.l.b16 %v5722
    %v5851 = vunpack.c.l.b16 %v5723
    %v5852 = vunpack.c.l.b16 %v5724
    %v5853 = vunpack.c.l.b16 %v5725
    %v5854 = vunpack.c.l.b16 %v5726
    %v5855 = vunpack.c.l.b16 %v5727
    %v5856 = vunpack.c.l.b16 %v5728
    %v5857 = vunpack.c.l.b16 %v5729
    %v5858 = vunpack.c.l.b16 %v5730
    %v5859 = vunpack.c.l.b16 %v5731
    %v5860 = vunpack.c.l.b16 %v5732
    %v5861 = vunpack.c.l.b16 %v5733
    %v5862 = vunpack.c.l.b16 %v5734
    %v5863 = vunpack.c.l.b16 %v5735
    %v5864 = vunpack.c.l.b16 %v5736
    %v5865 = vunpack.c.l.b16 %v5737
    %v5866 = vunpack.c.l.b16 %v5738
    %v5867 = vunpack.c.l.b16 %v5739
    %v5868 = vunpack.c.l.b16 %v5740
    %v5869 = vunpack.c.l.b16 %v5741
    %v5870 = vunpack.c.l.b16 %v5742
    %v5871 = vunpack.c.l.b16 %v5743
    %v5872 = vunpack.c.l.b16 %v5744
    %v5873 = vunpack.c.l.b16 %v5745
    %v5874 = vunpack.c.l.b16 %v5746
    %v5875 = vunpack.c.l.b16 %v5747
    %v5876 = vunpack.c.l.b16 %v5748
    %v5877 = vunpack.c.l.b16 %v5749
    %v5878 = vunpack.c.l.b16 %v5750
    %v5879 = vunpack.c.l.b16 %v5751
    %v5880 = vunpack.c.l.b16 %v5752
    %v5881 = vunpack.c.l.b16 %v5753
    %v5882 = vunpack.c.l.b16 %v5754
    %v5883 = vunpack.c.l.b16 %v5755
    %v5884 = vunpack.c.l.b16 %v5756
    %v5885 = vunpack.c.l.b16 %v5757
    %v5886 = vunpack.c.l.b16 %v5758
    %v5887 = vunpack.c.l.b16 %v5759
    %v5888 = vunpack.c.l.b16 %v5760
    %v5889 = vunpack.c.l.b16 %v5761
    %v5890 = vunpack.c.l.b16 %v5762
    %v5891 = vunpack.c.l.b16 %v5763
    %v5892 = vunpack.c.l.b16 %v5764
    %v5893 = vunpack.c.l.b16 %v5765
    %v5894 = vunpack.c.l.b16 %v5766
    %v5895 = vunpack.c.l.b16 %v5767
    %v5896 = vunpack.c.l.b16 %v5768
    %v5897 = vunpack.c.l.b16 %v5769
    %v5898 = vpack.c.b16 %v5835, %v5834
    %v5899 = vpack.c.b16 %v5837, %v5836
    %v5900 = vpack.c.b16 %v5839, %v5838
    %v5901 = vpack.c.b16 %v5841, %v5840
    %v5902 = vpack.c.b16 %v5843, %v5842
    %v5903 = vpack.c.b16 %v5845, %v5844
    %v5904 = vpack.c.b16 %v5847, %v5846
    %v5905 = vpack.c.b16 %v5849, %v5848
    %v5906 = vpack.c.b16 %v5851, %v5850
    %v5907 = vpack.c.b16 %v5853, %v5852
    %v5908 = vpack.c.b16 %v5855, %v5854
    %v5909 = vpack.c.b16 %v5857, %v5856
    %v5910 = vpack.c.b16 %v5859, %v5858
    %v5911 = vpack.c.b16 %v5861, %v5860
    %v5912 = vpack.c.b16 %v5863, %v5862
    %v5913 = vpack.c.b16 %v5865, %v5864
    %v5914 = vpack.c.b16 %v5867, %v5866
    %v5915 = vpack.c.b16 %v5869, %v5868
    %v5916 = vpack.c.b16 %v5871, %v5870
    %v5917 = vpack.c.b16 %v5873, %v5872
    %v5918 = vpack.c.b16 %v5875, %v5874
    %v5919 = vpack.c.b16 %v5877, %v5876
    %v5920 = vpack.c.b16 %v5879, %v5878
    %v5921 = vpack.c.b16 %v5881, %v5880
    %v5922 = vpack.c.b16 %v5883, %v5882
    %v5923 = vpack.c.b16 %v5885, %v5884
    %v5924 = vpack.c.b16 %v5887, %v5886
    %v5925 = vpack.c.b16 %v5889, %v5888
    %v5926 = vpack.c.b16 %v5891, %v5890
    %v5927 = vpack.c.b16 %v5893, %v5892
    %v5928 = vpack.c.b16 %v5895, %v5894
    %v5929 = vpack.c.b16 %v5897, %v5896
    %5962 = vmatpush.bf16.msra.mxu0 %v5905
    %5963 = vmatpush.bf16.msra.mxu0 %v5904
    %5964 = vmatpush.bf16.msra.mxu0 %v5903
    %5965 = vmatpush.bf16.msra.mxu0 %v5902
    %5966 = vmatpush.bf16.msra.mxu0 %v5901
    %5967 = vmatpush.bf16.msra.mxu0 %v5900
    %5968 = vmatpush.bf16.msra.mxu0 %v5899
    %5969 = vmatpush.bf16.msra.mxu0 %v5898
    %5970 = vmatmul.bf16.gmra.mxu0 %v5701
    %v5971 = vpop.f32.mrf.mxu0
    %v5972 = vadd.f32 0.0, %v5971
    %v5973 = vpop.f32.mrf.mxu0
    %5974 = vdwg.mxu0
    %5975 = vmatpush.bf16.msra.mxu0 %v5913
    %5976 = vmatpush.bf16.msra.mxu0 %v5912
    %5977 = vmatpush.bf16.msra.mxu0 %v5911
    %5978 = vmatpush.bf16.msra.mxu0 %v5910
    %5979 = vmatpush.bf16.msra.mxu0 %v5909
    %5980 = vmatpush.bf16.msra.mxu0 %v5908
    %5981 = vmatpush.bf16.msra.mxu0 %v5907
    %5982 = vmatpush.bf16.msra.mxu0 %v5906
    %5983 = vmatmul.bf16.gmra.mxu0 %v5702
    %v5984 = vpop.f32.mrf.mxu0
    %v5985 = vadd.f32 %v5972, %v5984
    %v5986 = vpop.f32.mrf.mxu0
    %5987 = vdwg.mxu0
    %5988 = vmatpush.bf16.msra.mxu0 %v5921
    %5989 = vmatpush.bf16.msra.mxu0 %v5920
    %5990 = vmatpush.bf16.msra.mxu0 %v5919
    %5991 = vmatpush.bf16.msra.mxu0 %v5918
    %5992 = vmatpush.bf16.msra.mxu0 %v5917
    %5993 = vmatpush.bf16.msra.mxu0 %v5916
    %5994 = vmatpush.bf16.msra.mxu0 %v5915
    %5995 = vmatpush.bf16.msra.mxu0 %v5914
    %5996 = vmatmul.bf16.gmra.mxu0 %v5703
    %v5997 = vpop.f32.mrf.mxu0
    %v5998 = vadd.f32 %v5985, %v5997
    %v5999 = vpop.f32.mrf.mxu0
    %6000 = vdwg.mxu0
    %6001 = vmatpush.bf16.msra.mxu0 %v5929
    %6002 = vmatpush.bf16.msra.mxu0 %v5928
    %6003 = vmatpush.bf16.msra.mxu0 %v5927
    %6004 = vmatpush.bf16.msra.mxu0 %v5926
    %6005 = vmatpush.bf16.msra.mxu0 %v5925
    %6006 = vmatpush.bf16.msra.mxu0 %v5924
    %6007 = vmatpush.bf16.msra.mxu0 %v5923
    %6008 = vmatpush.bf16.msra.mxu0 %v5922
    %6009 = vmatmul.bf16.gmra.mxu0 %v5704
    %v6010 = vpop.f32.mrf.mxu0
    %v6011 = vadd.f32 %v5998, %v6010
    %v6012 = vpop.f32.mrf.mxu0
    %6013 = vdwg.mxu0
    %v6014 = vadd.f32 %v5700, %v6011
    %v6015 = vpack.c.bf16 %v2532, %v2532
    %v6016 = vpack.c.bf16 %v2533, %v2533
    %v6017 = vpack.c.bf16 %v2534, %v2534
    %v6018 = vpack.c.bf16 %v2535, %v2535
    %s6019 = scalar_lea.vmem [#allocation17], 2816
    %v6020 = vld [vmem:[%s6019] sm:$0xf]
    %v6021 = vld [vmem:[%s6019 + $0x4] sm:$0xf]
    %v6022 = vld [vmem:[%s6019 + $0x8] sm:$0xf]
    %v6023 = vld [vmem:[%s6019 + $0xc] sm:$0xf]
    %v6024 = vld [vmem:[%s6019 + $0x10] sm:$0xf]
    %v6025 = vld [vmem:[%s6019 + $0x14] sm:$0xf]
    %v6026 = vld [vmem:[%s6019 + $0x18] sm:$0xf]
    %v6027 = vld [vmem:[%s6019 + $0x1c] sm:$0xf]
    %v6028 = vld [vmem:[%s6019 + $0x20] sm:$0xf]
    %v6029 = vld [vmem:[%s6019 + $0x24] sm:$0xf]
    %v6030 = vld [vmem:[%s6019 + $0x28] sm:$0xf]
    %v6031 = vld [vmem:[%s6019 + $0x2c] sm:$0xf]
    %v6032 = vld [vmem:[%s6019 + $0x30] sm:$0xf]
    %v6033 = vld [vmem:[%s6019 + $0x34] sm:$0xf]
    %v6034 = vld [vmem:[%s6019 + $0x38] sm:$0xf]
    %v6035 = vld [vmem:[%s6019 + $0x3c] sm:$0xf]
    %v6036 = vld [vmem:[%s6019 + $0x40] sm:$0xf]
    %v6037 = vld [vmem:[%s6019 + $0x44] sm:$0xf]
    %v6038 = vld [vmem:[%s6019 + $0x48] sm:$0xf]
    %v6039 = vld [vmem:[%s6019 + $0x4c] sm:$0xf]
    %v6040 = vld [vmem:[%s6019 + $0x50] sm:$0xf]
    %v6041 = vld [vmem:[%s6019 + $0x54] sm:$0xf]
    %v6042 = vld [vmem:[%s6019 + $0x58] sm:$0xf]
    %v6043 = vld [vmem:[%s6019 + $0x5c] sm:$0xf]
    %v6044 = vld [vmem:[%s6019 + $0x60] sm:$0xf]
    %v6045 = vld [vmem:[%s6019 + $0x64] sm:$0xf]
    %v6046 = vld [vmem:[%s6019 + $0x68] sm:$0xf]
    %v6047 = vld [vmem:[%s6019 + $0x6c] sm:$0xf]
    %v6048 = vld [vmem:[%s6019 + $0x70] sm:$0xf]
    %v6049 = vld [vmem:[%s6019 + $0x74] sm:$0xf]
    %v6050 = vld [vmem:[%s6019 + $0x78] sm:$0xf]
    %v6051 = vld [vmem:[%s6019 + $0x7c] sm:$0xf]
    %v6052 = vld [vmem:[%s6019 + $0x80] sm:$0xf]
    %v6053 = vld [vmem:[%s6019 + $0x84] sm:$0xf]
    %v6054 = vld [vmem:[%s6019 + $0x88] sm:$0xf]
    %v6055 = vld [vmem:[%s6019 + $0x8c] sm:$0xf]
    %v6056 = vld [vmem:[%s6019 + $0x90] sm:$0xf]
    %v6057 = vld [vmem:[%s6019 + $0x94] sm:$0xf]
    %v6058 = vld [vmem:[%s6019 + $0x98] sm:$0xf]
    %v6059 = vld [vmem:[%s6019 + $0x9c] sm:$0xf]
    %v6060 = vld [vmem:[%s6019 + $0xa0] sm:$0xf]
    %v6061 = vld [vmem:[%s6019 + $0xa4] sm:$0xf]
    %v6062 = vld [vmem:[%s6019 + $0xa8] sm:$0xf]
    %v6063 = vld [vmem:[%s6019 + $0xac] sm:$0xf]
    %v6064 = vld [vmem:[%s6019 + $0xb0] sm:$0xf]
    %v6065 = vld [vmem:[%s6019 + $0xb4] sm:$0xf]
    %v6066 = vld [vmem:[%s6019 + $0xb8] sm:$0xf]
    %v6067 = vld [vmem:[%s6019 + $0xbc] sm:$0xf]
    %v6068 = vld [vmem:[%s6019 + $0xc0] sm:$0xf]
    %v6069 = vld [vmem:[%s6019 + $0xc4] sm:$0xf]
    %v6070 = vld [vmem:[%s6019 + $0xc8] sm:$0xf]
    %v6071 = vld [vmem:[%s6019 + $0xcc] sm:$0xf]
    %v6072 = vld [vmem:[%s6019 + $0xd0] sm:$0xf]
    %v6073 = vld [vmem:[%s6019 + $0xd4] sm:$0xf]
    %v6074 = vld [vmem:[%s6019 + $0xd8] sm:$0xf]
    %v6075 = vld [vmem:[%s6019 + $0xdc] sm:$0xf]
    %v6076 = vld [vmem:[%s6019 + $0xe0] sm:$0xf]
    %v6077 = vld [vmem:[%s6019 + $0xe4] sm:$0xf]
    %v6078 = vld [vmem:[%s6019 + $0xe8] sm:$0xf]
    %v6079 = vld [vmem:[%s6019 + $0xec] sm:$0xf]
    %v6080 = vld [vmem:[%s6019 + $0xf0] sm:$0xf]
    %v6081 = vld [vmem:[%s6019 + $0xf4] sm:$0xf]
    %v6082 = vld [vmem:[%s6019 + $0xf8] sm:$0xf]
    %v6083 = vld [vmem:[%s6019 + $0xfc] sm:$0xf]
    %v6148 = vunpack.c.l.b16 %v6020
    %v6149 = vunpack.c.l.b16 %v6021
    %v6150 = vunpack.c.l.b16 %v6022
    %v6151 = vunpack.c.l.b16 %v6023
    %v6152 = vunpack.c.l.b16 %v6024
    %v6153 = vunpack.c.l.b16 %v6025
    %v6154 = vunpack.c.l.b16 %v6026
    %v6155 = vunpack.c.l.b16 %v6027
    %v6156 = vunpack.c.l.b16 %v6028
    %v6157 = vunpack.c.l.b16 %v6029
    %v6158 = vunpack.c.l.b16 %v6030
    %v6159 = vunpack.c.l.b16 %v6031
    %v6160 = vunpack.c.l.b16 %v6032
    %v6161 = vunpack.c.l.b16 %v6033
    %v6162 = vunpack.c.l.b16 %v6034
    %v6163 = vunpack.c.l.b16 %v6035
    %v6164 = vunpack.c.l.b16 %v6036
    %v6165 = vunpack.c.l.b16 %v6037
    %v6166 = vunpack.c.l.b16 %v6038
    %v6167 = vunpack.c.l.b16 %v6039
    %v6168 = vunpack.c.l.b16 %v6040
    %v6169 = vunpack.c.l.b16 %v6041
    %v6170 = vunpack.c.l.b16 %v6042
    %v6171 = vunpack.c.l.b16 %v6043
    %v6172 = vunpack.c.l.b16 %v6044
    %v6173 = vunpack.c.l.b16 %v6045
    %v6174 = vunpack.c.l.b16 %v6046
    %v6175 = vunpack.c.l.b16 %v6047
    %v6176 = vunpack.c.l.b16 %v6048
    %v6177 = vunpack.c.l.b16 %v6049
    %v6178 = vunpack.c.l.b16 %v6050
    %v6179 = vunpack.c.l.b16 %v6051
    %v6180 = vunpack.c.l.b16 %v6052
    %v6181 = vunpack.c.l.b16 %v6053
    %v6182 = vunpack.c.l.b16 %v6054
    %v6183 = vunpack.c.l.b16 %v6055
    %v6184 = vunpack.c.l.b16 %v6056
    %v6185 = vunpack.c.l.b16 %v6057
    %v6186 = vunpack.c.l.b16 %v6058
    %v6187 = vunpack.c.l.b16 %v6059
    %v6188 = vunpack.c.l.b16 %v6060
    %v6189 = vunpack.c.l.b16 %v6061
    %v6190 = vunpack.c.l.b16 %v6062
    %v6191 = vunpack.c.l.b16 %v6063
    %v6192 = vunpack.c.l.b16 %v6064
    %v6193 = vunpack.c.l.b16 %v6065
    %v6194 = vunpack.c.l.b16 %v6066
    %v6195 = vunpack.c.l.b16 %v6067
    %v6196 = vunpack.c.l.b16 %v6068
    %v6197 = vunpack.c.l.b16 %v6069
    %v6198 = vunpack.c.l.b16 %v6070
    %v6199 = vunpack.c.l.b16 %v6071
    %v6200 = vunpack.c.l.b16 %v6072
    %v6201 = vunpack.c.l.b16 %v6073
    %v6202 = vunpack.c.l.b16 %v6074
    %v6203 = vunpack.c.l.b16 %v6075
    %v6204 = vunpack.c.l.b16 %v6076
    %v6205 = vunpack.c.l.b16 %v6077
    %v6206 = vunpack.c.l.b16 %v6078
    %v6207 = vunpack.c.l.b16 %v6079
    %v6208 = vunpack.c.l.b16 %v6080
    %v6209 = vunpack.c.l.b16 %v6081
    %v6210 = vunpack.c.l.b16 %v6082
    %v6211 = vunpack.c.l.b16 %v6083
    %v6212 = vpack.c.b16 %v6149, %v6148
    %v6213 = vpack.c.b16 %v6151, %v6150
    %v6214 = vpack.c.b16 %v6153, %v6152
    %v6215 = vpack.c.b16 %v6155, %v6154
    %v6216 = vpack.c.b16 %v6157, %v6156
    %v6217 = vpack.c.b16 %v6159, %v6158
    %v6218 = vpack.c.b16 %v6161, %v6160
    %v6219 = vpack.c.b16 %v6163, %v6162
    %v6220 = vpack.c.b16 %v6165, %v6164
    %v6221 = vpack.c.b16 %v6167, %v6166
    %v6222 = vpack.c.b16 %v6169, %v6168
    %v6223 = vpack.c.b16 %v6171, %v6170
    %v6224 = vpack.c.b16 %v6173, %v6172
    %v6225 = vpack.c.b16 %v6175, %v6174
    %v6226 = vpack.c.b16 %v6177, %v6176
    %v6227 = vpack.c.b16 %v6179, %v6178
    %v6228 = vpack.c.b16 %v6181, %v6180
    %v6229 = vpack.c.b16 %v6183, %v6182
    %v6230 = vpack.c.b16 %v6185, %v6184
    %v6231 = vpack.c.b16 %v6187, %v6186
    %v6232 = vpack.c.b16 %v6189, %v6188
    %v6233 = vpack.c.b16 %v6191, %v6190
    %v6234 = vpack.c.b16 %v6193, %v6192
    %v6235 = vpack.c.b16 %v6195, %v6194
    %v6236 = vpack.c.b16 %v6197, %v6196
    %v6237 = vpack.c.b16 %v6199, %v6198
    %v6238 = vpack.c.b16 %v6201, %v6200
    %v6239 = vpack.c.b16 %v6203, %v6202
    %v6240 = vpack.c.b16 %v6205, %v6204
    %v6241 = vpack.c.b16 %v6207, %v6206
    %v6242 = vpack.c.b16 %v6209, %v6208
    %v6243 = vpack.c.b16 %v6211, %v6210
    %6276 = vmatpush.bf16.msra.mxu0 %v6219
    %6277 = vmatpush.bf16.msra.mxu0 %v6218
    %6278 = vmatpush.bf16.msra.mxu0 %v6217
    %6279 = vmatpush.bf16.msra.mxu0 %v6216
    %6280 = vmatpush.bf16.msra.mxu0 %v6215
    %6281 = vmatpush.bf16.msra.mxu0 %v6214
    %6282 = vmatpush.bf16.msra.mxu0 %v6213
    %6283 = vmatpush.bf16.msra.mxu0 %v6212
    %6284 = vmatmul.bf16.gmra.mxu0 %v6015
    %v6285 = vpop.f32.mrf.mxu0
    %v6286 = vadd.f32 0.0, %v6285
    %v6287 = vpop.f32.mrf.mxu0
    %6288 = vdwg.mxu0
    %6289 = vmatpush.bf16.msra.mxu0 %v6227
    %6290 = vmatpush.bf16.msra.mxu0 %v6226
    %6291 = vmatpush.bf16.msra.mxu0 %v6225
    %6292 = vmatpush.bf16.msra.mxu0 %v6224
    %6293 = vmatpush.bf16.msra.mxu0 %v6223
    %6294 = vmatpush.bf16.msra.mxu0 %v6222
    %6295 = vmatpush.bf16.msra.mxu0 %v6221
    %6296 = vmatpush.bf16.msra.mxu0 %v6220
    %6297 = vmatmul.bf16.gmra.mxu0 %v6016
    %v6298 = vpop.f32.mrf.mxu0
    %v6299 = vadd.f32 %v6286, %v6298
    %v6300 = vpop.f32.mrf.mxu0
    %6301 = vdwg.mxu0
    %6302 = vmatpush.bf16.msra.mxu0 %v6235
    %6303 = vmatpush.bf16.msra.mxu0 %v6234
    %6304 = vmatpush.bf16.msra.mxu0 %v6233
    %6305 = vmatpush.bf16.msra.mxu0 %v6232
    %6306 = vmatpush.bf16.msra.mxu0 %v6231
    %6307 = vmatpush.bf16.msra.mxu0 %v6230
    %6308 = vmatpush.bf16.msra.mxu0 %v6229
    %6309 = vmatpush.bf16.msra.mxu0 %v6228
    %6310 = vmatmul.bf16.gmra.mxu0 %v6017
    %v6311 = vpop.f32.mrf.mxu0
    %v6312 = vadd.f32 %v6299, %v6311
    %v6313 = vpop.f32.mrf.mxu0
    %6314 = vdwg.mxu0
    %6315 = vmatpush.bf16.msra.mxu0 %v6243
    %6316 = vmatpush.bf16.msra.mxu0 %v6242
    %6317 = vmatpush.bf16.msra.mxu0 %v6241
    %6318 = vmatpush.bf16.msra.mxu0 %v6240
    %6319 = vmatpush.bf16.msra.mxu0 %v6239
    %6320 = vmatpush.bf16.msra.mxu0 %v6238
    %6321 = vmatpush.bf16.msra.mxu0 %v6237
    %6322 = vmatpush.bf16.msra.mxu0 %v6236
    %6323 = vmatmul.bf16.gmra.mxu0 %v6018
    %v6324 = vpop.f32.mrf.mxu0
    %v6325 = vadd.f32 %v6312, %v6324
    %v6326 = vpop.f32.mrf.mxu0
    %6327 = vdwg.mxu0
    %v6328 = vadd.f32 %v6014, %v6325
    %v6329 = vpack.c.bf16 %v2536, %v2536
    %v6330 = vpack.c.bf16 %v2537, %v2537
    %v6331 = vpack.c.bf16 %v2538, %v2538
    %v6332 = vpack.c.bf16 %v2539, %v2539
    %s6333 = scalar_lea.vmem [#allocation17], 3072
    %v6334 = vld [vmem:[%s6333] sm:$0xf]
    %v6335 = vld [vmem:[%s6333 + $0x4] sm:$0xf]
    %v6336 = vld [vmem:[%s6333 + $0x8] sm:$0xf]
    %v6337 = vld [vmem:[%s6333 + $0xc] sm:$0xf]
    %v6338 = vld [vmem:[%s6333 + $0x10] sm:$0xf]
    %v6339 = vld [vmem:[%s6333 + $0x14] sm:$0xf]
    %v6340 = vld [vmem:[%s6333 + $0x18] sm:$0xf]
    %v6341 = vld [vmem:[%s6333 + $0x1c] sm:$0xf]
    %v6342 = vld [vmem:[%s6333 + $0x20] sm:$0xf]
    %v6343 = vld [vmem:[%s6333 + $0x24] sm:$0xf]
    %v6344 = vld [vmem:[%s6333 + $0x28] sm:$0xf]
    %v6345 = vld [vmem:[%s6333 + $0x2c] sm:$0xf]
    %v6346 = vld [vmem:[%s6333 + $0x30] sm:$0xf]
    %v6347 = vld [vmem:[%s6333 + $0x34] sm:$0xf]
    %v6348 = vld [vmem:[%s6333 + $0x38] sm:$0xf]
    %v6349 = vld [vmem:[%s6333 + $0x3c] sm:$0xf]
    %v6350 = vld [vmem:[%s6333 + $0x40] sm:$0xf]
    %v6351 = vld [vmem:[%s6333 + $0x44] sm:$0xf]
    %v6352 = vld [vmem:[%s6333 + $0x48] sm:$0xf]
    %v6353 = vld [vmem:[%s6333 + $0x4c] sm:$0xf]
    %v6354 = vld [vmem:[%s6333 + $0x50] sm:$0xf]
    %v6355 = vld [vmem:[%s6333 + $0x54] sm:$0xf]
    %v6356 = vld [vmem:[%s6333 + $0x58] sm:$0xf]
    %v6357 = vld [vmem:[%s6333 + $0x5c] sm:$0xf]
    %v6358 = vld [vmem:[%s6333 + $0x60] sm:$0xf]
    %v6359 = vld [vmem:[%s6333 + $0x64] sm:$0xf]
    %v6360 = vld [vmem:[%s6333 + $0x68] sm:$0xf]
    %v6361 = vld [vmem:[%s6333 + $0x6c] sm:$0xf]
    %v6362 = vld [vmem:[%s6333 + $0x70] sm:$0xf]
    %v6363 = vld [vmem:[%s6333 + $0x74] sm:$0xf]
    %v6364 = vld [vmem:[%s6333 + $0x78] sm:$0xf]
    %v6365 = vld [vmem:[%s6333 + $0x7c] sm:$0xf]
    %v6366 = vld [vmem:[%s6333 + $0x80] sm:$0xf]
    %v6367 = vld [vmem:[%s6333 + $0x84] sm:$0xf]
    %v6368 = vld [vmem:[%s6333 + $0x88] sm:$0xf]
    %v6369 = vld [vmem:[%s6333 + $0x8c] sm:$0xf]
    %v6370 = vld [vmem:[%s6333 + $0x90] sm:$0xf]
    %v6371 = vld [vmem:[%s6333 + $0x94] sm:$0xf]
    %v6372 = vld [vmem:[%s6333 + $0x98] sm:$0xf]
    %v6373 = vld [vmem:[%s6333 + $0x9c] sm:$0xf]
    %v6374 = vld [vmem:[%s6333 + $0xa0] sm:$0xf]
    %v6375 = vld [vmem:[%s6333 + $0xa4] sm:$0xf]
    %v6376 = vld [vmem:[%s6333 + $0xa8] sm:$0xf]
    %v6377 = vld [vmem:[%s6333 + $0xac] sm:$0xf]
    %v6378 = vld [vmem:[%s6333 + $0xb0] sm:$0xf]
    %v6379 = vld [vmem:[%s6333 + $0xb4] sm:$0xf]
    %v6380 = vld [vmem:[%s6333 + $0xb8] sm:$0xf]
    %v6381 = vld [vmem:[%s6333 + $0xbc] sm:$0xf]
    %v6382 = vld [vmem:[%s6333 + $0xc0] sm:$0xf]
    %v6383 = vld [vmem:[%s6333 + $0xc4] sm:$0xf]
    %v6384 = vld [vmem:[%s6333 + $0xc8] sm:$0xf]
    %v6385 = vld [vmem:[%s6333 + $0xcc] sm:$0xf]
    %v6386 = vld [vmem:[%s6333 + $0xd0] sm:$0xf]
    %v6387 = vld [vmem:[%s6333 + $0xd4] sm:$0xf]
    %v6388 = vld [vmem:[%s6333 + $0xd8] sm:$0xf]
    %v6389 = vld [vmem:[%s6333 + $0xdc] sm:$0xf]
    %v6390 = vld [vmem:[%s6333 + $0xe0] sm:$0xf]
    %v6391 = vld [vmem:[%s6333 + $0xe4] sm:$0xf]
    %v6392 = vld [vmem:[%s6333 + $0xe8] sm:$0xf]
    %v6393 = vld [vmem:[%s6333 + $0xec] sm:$0xf]
    %v6394 = vld [vmem:[%s6333 + $0xf0] sm:$0xf]
    %v6395 = vld [vmem:[%s6333 + $0xf4] sm:$0xf]
    %v6396 = vld [vmem:[%s6333 + $0xf8] sm:$0xf]
    %v6397 = vld [vmem:[%s6333 + $0xfc] sm:$0xf]
    %v6462 = vunpack.c.l.b16 %v6334
    %v6463 = vunpack.c.l.b16 %v6335
    %v6464 = vunpack.c.l.b16 %v6336
    %v6465 = vunpack.c.l.b16 %v6337
    %v6466 = vunpack.c.l.b16 %v6338
    %v6467 = vunpack.c.l.b16 %v6339
    %v6468 = vunpack.c.l.b16 %v6340
    %v6469 = vunpack.c.l.b16 %v6341
    %v6470 = vunpack.c.l.b16 %v6342
    %v6471 = vunpack.c.l.b16 %v6343
    %v6472 = vunpack.c.l.b16 %v6344
    %v6473 = vunpack.c.l.b16 %v6345
    %v6474 = vunpack.c.l.b16 %v6346
    %v6475 = vunpack.c.l.b16 %v6347
    %v6476 = vunpack.c.l.b16 %v6348
    %v6477 = vunpack.c.l.b16 %v6349
    %v6478 = vunpack.c.l.b16 %v6350
    %v6479 = vunpack.c.l.b16 %v6351
    %v6480 = vunpack.c.l.b16 %v6352
    %v6481 = vunpack.c.l.b16 %v6353
    %v6482 = vunpack.c.l.b16 %v6354
    %v6483 = vunpack.c.l.b16 %v6355
    %v6484 = vunpack.c.l.b16 %v6356
    %v6485 = vunpack.c.l.b16 %v6357
    %v6486 = vunpack.c.l.b16 %v6358
    %v6487 = vunpack.c.l.b16 %v6359
    %v6488 = vunpack.c.l.b16 %v6360
    %v6489 = vunpack.c.l.b16 %v6361
    %v6490 = vunpack.c.l.b16 %v6362
    %v6491 = vunpack.c.l.b16 %v6363
    %v6492 = vunpack.c.l.b16 %v6364
    %v6493 = vunpack.c.l.b16 %v6365
    %v6494 = vunpack.c.l.b16 %v6366
    %v6495 = vunpack.c.l.b16 %v6367
    %v6496 = vunpack.c.l.b16 %v6368
    %v6497 = vunpack.c.l.b16 %v6369
    %v6498 = vunpack.c.l.b16 %v6370
    %v6499 = vunpack.c.l.b16 %v6371
    %v6500 = vunpack.c.l.b16 %v6372
    %v6501 = vunpack.c.l.b16 %v6373
    %v6502 = vunpack.c.l.b16 %v6374
    %v6503 = vunpack.c.l.b16 %v6375
    %v6504 = vunpack.c.l.b16 %v6376
    %v6505 = vunpack.c.l.b16 %v6377
    %v6506 = vunpack.c.l.b16 %v6378
    %v6507 = vunpack.c.l.b16 %v6379
    %v6508 = vunpack.c.l.b16 %v6380
    %v6509 = vunpack.c.l.b16 %v6381
    %v6510 = vunpack.c.l.b16 %v6382
    %v6511 = vunpack.c.l.b16 %v6383
    %v6512 = vunpack.c.l.b16 %v6384
    %v6513 = vunpack.c.l.b16 %v6385
    %v6514 = vunpack.c.l.b16 %v6386
    %v6515 = vunpack.c.l.b16 %v6387
    %v6516 = vunpack.c.l.b16 %v6388
    %v6517 = vunpack.c.l.b16 %v6389
    %v6518 = vunpack.c.l.b16 %v6390
    %v6519 = vunpack.c.l.b16 %v6391
    %v6520 = vunpack.c.l.b16 %v6392
    %v6521 = vunpack.c.l.b16 %v6393
    %v6522 = vunpack.c.l.b16 %v6394
    %v6523 = vunpack.c.l.b16 %v6395
    %v6524 = vunpack.c.l.b16 %v6396
    %v6525 = vunpack.c.l.b16 %v6397
    %v6526 = vpack.c.b16 %v6463, %v6462
    %v6527 = vpack.c.b16 %v6465, %v6464
    %v6528 = vpack.c.b16 %v6467, %v6466
    %v6529 = vpack.c.b16 %v6469, %v6468
    %v6530 = vpack.c.b16 %v6471, %v6470
    %v6531 = vpack.c.b16 %v6473, %v6472
    %v6532 = vpack.c.b16 %v6475, %v6474
    %v6533 = vpack.c.b16 %v6477, %v6476
    %v6534 = vpack.c.b16 %v6479, %v6478
    %v6535 = vpack.c.b16 %v6481, %v6480
    %v6536 = vpack.c.b16 %v6483, %v6482
    %v6537 = vpack.c.b16 %v6485, %v6484
    %v6538 = vpack.c.b16 %v6487, %v6486
    %v6539 = vpack.c.b16 %v6489, %v6488
    %v6540 = vpack.c.b16 %v6491, %v6490
    %v6541 = vpack.c.b16 %v6493, %v6492
    %v6542 = vpack.c.b16 %v6495, %v6494
    %v6543 = vpack.c.b16 %v6497, %v6496
    %v6544 = vpack.c.b16 %v6499, %v6498
    %v6545 = vpack.c.b16 %v6501, %v6500
    %v6546 = vpack.c.b16 %v6503, %v6502
    %v6547 = vpack.c.b16 %v6505, %v6504
    %v6548 = vpack.c.b16 %v6507, %v6506
    %v6549 = vpack.c.b16 %v6509, %v6508
    %v6550 = vpack.c.b16 %v6511, %v6510
    %v6551 = vpack.c.b16 %v6513, %v6512
    %v6552 = vpack.c.b16 %v6515, %v6514
    %v6553 = vpack.c.b16 %v6517, %v6516
    %v6554 = vpack.c.b16 %v6519, %v6518
    %v6555 = vpack.c.b16 %v6521, %v6520
    %v6556 = vpack.c.b16 %v6523, %v6522
    %v6557 = vpack.c.b16 %v6525, %v6524
    %6590 = vmatpush.bf16.msra.mxu0 %v6533
    %6591 = vmatpush.bf16.msra.mxu0 %v6532
    %6592 = vmatpush.bf16.msra.mxu0 %v6531
    %6593 = vmatpush.bf16.msra.mxu0 %v6530
    %6594 = vmatpush.bf16.msra.mxu0 %v6529
    %6595 = vmatpush.bf16.msra.mxu0 %v6528
    %6596 = vmatpush.bf16.msra.mxu0 %v6527
    %6597 = vmatpush.bf16.msra.mxu0 %v6526
    %6598 = vmatmul.bf16.gmra.mxu0 %v6329
    %v6599 = vpop.f32.mrf.mxu0
    %v6600 = vadd.f32 0.0, %v6599
    %v6601 = vpop.f32.mrf.mxu0
    %6602 = vdwg.mxu0
    %6603 = vmatpush.bf16.msra.mxu0 %v6541
    %6604 = vmatpush.bf16.msra.mxu0 %v6540
    %6605 = vmatpush.bf16.msra.mxu0 %v6539
    %6606 = vmatpush.bf16.msra.mxu0 %v6538
    %6607 = vmatpush.bf16.msra.mxu0 %v6537
    %6608 = vmatpush.bf16.msra.mxu0 %v6536
    %6609 = vmatpush.bf16.msra.mxu0 %v6535
    %6610 = vmatpush.bf16.msra.mxu0 %v6534
    %6611 = vmatmul.bf16.gmra.mxu0 %v6330
    %v6612 = vpop.f32.mrf.mxu0
    %v6613 = vadd.f32 %v6600, %v6612
    %v6614 = vpop.f32.mrf.mxu0
    %6615 = vdwg.mxu0
    %6616 = vmatpush.bf16.msra.mxu0 %v6549
    %6617 = vmatpush.bf16.msra.mxu0 %v6548
    %6618 = vmatpush.bf16.msra.mxu0 %v6547
    %6619 = vmatpush.bf16.msra.mxu0 %v6546
    %6620 = vmatpush.bf16.msra.mxu0 %v6545
    %6621 = vmatpush.bf16.msra.mxu0 %v6544
    %6622 = vmatpush.bf16.msra.mxu0 %v6543
    %6623 = vmatpush.bf16.msra.mxu0 %v6542
    %6624 = vmatmul.bf16.gmra.mxu0 %v6331
    %v6625 = vpop.f32.mrf.mxu0
    %v6626 = vadd.f32 %v6613, %v6625
    %v6627 = vpop.f32.mrf.mxu0
    %6628 = vdwg.mxu0
    %6629 = vmatpush.bf16.msra.mxu0 %v6557
    %6630 = vmatpush.bf16.msra.mxu0 %v6556
    %6631 = vmatpush.bf16.msra.mxu0 %v6555
    %6632 = vmatpush.bf16.msra.mxu0 %v6554
    %6633 = vmatpush.bf16.msra.mxu0 %v6553
    %6634 = vmatpush.bf16.msra.mxu0 %v6552
    %6635 = vmatpush.bf16.msra.mxu0 %v6551
    %6636 = vmatpush.bf16.msra.mxu0 %v6550
    %6637 = vmatmul.bf16.gmra.mxu0 %v6332
    %v6638 = vpop.f32.mrf.mxu0
    %v6639 = vadd.f32 %v6626, %v6638
    %v6640 = vpop.f32.mrf.mxu0
    %6641 = vdwg.mxu0
    %v6642 = vadd.f32 %v6328, %v6639
    %v6643 = vpack.c.bf16 %v2540, %v2540
    %v6644 = vpack.c.bf16 %v2541, %v2541
    %v6645 = vpack.c.bf16 %v2542, %v2542
    %v6646 = vpack.c.bf16 %v2543, %v2543
    %s6647 = scalar_lea.vmem [#allocation17], 3328
    %v6648 = vld [vmem:[%s6647] sm:$0xf]
    %v6649 = vld [vmem:[%s6647 + $0x4] sm:$0xf]
    %v6650 = vld [vmem:[%s6647 + $0x8] sm:$0xf]
    %v6651 = vld [vmem:[%s6647 + $0xc] sm:$0xf]
    %v6652 = vld [vmem:[%s6647 + $0x10] sm:$0xf]
    %v6653 = vld [vmem:[%s6647 + $0x14] sm:$0xf]
    %v6654 = vld [vmem:[%s6647 + $0x18] sm:$0xf]
    %v6655 = vld [vmem:[%s6647 + $0x1c] sm:$0xf]
    %v6656 = vld [vmem:[%s6647 + $0x20] sm:$0xf]
    %v6657 = vld [vmem:[%s6647 + $0x24] sm:$0xf]
    %v6658 = vld [vmem:[%s6647 + $0x28] sm:$0xf]
    %v6659 = vld [vmem:[%s6647 + $0x2c] sm:$0xf]
    %v6660 = vld [vmem:[%s6647 + $0x30] sm:$0xf]
    %v6661 = vld [vmem:[%s6647 + $0x34] sm:$0xf]
    %v6662 = vld [vmem:[%s6647 + $0x38] sm:$0xf]
    %v6663 = vld [vmem:[%s6647 + $0x3c] sm:$0xf]
    %v6664 = vld [vmem:[%s6647 + $0x40] sm:$0xf]
    %v6665 = vld [vmem:[%s6647 + $0x44] sm:$0xf]
    %v6666 = vld [vmem:[%s6647 + $0x48] sm:$0xf]
    %v6667 = vld [vmem:[%s6647 + $0x4c] sm:$0xf]
    %v6668 = vld [vmem:[%s6647 + $0x50] sm:$0xf]
    %v6669 = vld [vmem:[%s6647 + $0x54] sm:$0xf]
    %v6670 = vld [vmem:[%s6647 + $0x58] sm:$0xf]
    %v6671 = vld [vmem:[%s6647 + $0x5c] sm:$0xf]
    %v6672 = vld [vmem:[%s6647 + $0x60] sm:$0xf]
    %v6673 = vld [vmem:[%s6647 + $0x64] sm:$0xf]
    %v6674 = vld [vmem:[%s6647 + $0x68] sm:$0xf]
    %v6675 = vld [vmem:[%s6647 + $0x6c] sm:$0xf]
    %v6676 = vld [vmem:[%s6647 + $0x70] sm:$0xf]
    %v6677 = vld [vmem:[%s6647 + $0x74] sm:$0xf]
    %v6678 = vld [vmem:[%s6647 + $0x78] sm:$0xf]
    %v6679 = vld [vmem:[%s6647 + $0x7c] sm:$0xf]
    %v6680 = vld [vmem:[%s6647 + $0x80] sm:$0xf]
    %v6681 = vld [vmem:[%s6647 + $0x84] sm:$0xf]
    %v6682 = vld [vmem:[%s6647 + $0x88] sm:$0xf]
    %v6683 = vld [vmem:[%s6647 + $0x8c] sm:$0xf]
    %v6684 = vld [vmem:[%s6647 + $0x90] sm:$0xf]
    %v6685 = vld [vmem:[%s6647 + $0x94] sm:$0xf]
    %v6686 = vld [vmem:[%s6647 + $0x98] sm:$0xf]
    %v6687 = vld [vmem:[%s6647 + $0x9c] sm:$0xf]
    %v6688 = vld [vmem:[%s6647 + $0xa0] sm:$0xf]
    %v6689 = vld [vmem:[%s6647 + $0xa4] sm:$0xf]
    %v6690 = vld [vmem:[%s6647 + $0xa8] sm:$0xf]
    %v6691 = vld [vmem:[%s6647 + $0xac] sm:$0xf]
    %v6692 = vld [vmem:[%s6647 + $0xb0] sm:$0xf]
    %v6693 = vld [vmem:[%s6647 + $0xb4] sm:$0xf]
    %v6694 = vld [vmem:[%s6647 + $0xb8] sm:$0xf]
    %v6695 = vld [vmem:[%s6647 + $0xbc] sm:$0xf]
    %v6696 = vld [vmem:[%s6647 + $0xc0] sm:$0xf]
    %v6697 = vld [vmem:[%s6647 + $0xc4] sm:$0xf]
    %v6698 = vld [vmem:[%s6647 + $0xc8] sm:$0xf]
    %v6699 = vld [vmem:[%s6647 + $0xcc] sm:$0xf]
    %v6700 = vld [vmem:[%s6647 + $0xd0] sm:$0xf]
    %v6701 = vld [vmem:[%s6647 + $0xd4] sm:$0xf]
    %v6702 = vld [vmem:[%s6647 + $0xd8] sm:$0xf]
    %v6703 = vld [vmem:[%s6647 + $0xdc] sm:$0xf]
    %v6704 = vld [vmem:[%s6647 + $0xe0] sm:$0xf]
    %v6705 = vld [vmem:[%s6647 + $0xe4] sm:$0xf]
    %v6706 = vld [vmem:[%s6647 + $0xe8] sm:$0xf]
    %v6707 = vld [vmem:[%s6647 + $0xec] sm:$0xf]
    %v6708 = vld [vmem:[%s6647 + $0xf0] sm:$0xf]
    %v6709 = vld [vmem:[%s6647 + $0xf4] sm:$0xf]
    %v6710 = vld [vmem:[%s6647 + $0xf8] sm:$0xf]
    %v6711 = vld [vmem:[%s6647 + $0xfc] sm:$0xf]
    %v6776 = vunpack.c.l.b16 %v6648
    %v6777 = vunpack.c.l.b16 %v6649
    %v6778 = vunpack.c.l.b16 %v6650
    %v6779 = vunpack.c.l.b16 %v6651
    %v6780 = vunpack.c.l.b16 %v6652
    %v6781 = vunpack.c.l.b16 %v6653
    %v6782 = vunpack.c.l.b16 %v6654
    %v6783 = vunpack.c.l.b16 %v6655
    %v6784 = vunpack.c.l.b16 %v6656
    %v6785 = vunpack.c.l.b16 %v6657
    %v6786 = vunpack.c.l.b16 %v6658
    %v6787 = vunpack.c.l.b16 %v6659
    %v6788 = vunpack.c.l.b16 %v6660
    %v6789 = vunpack.c.l.b16 %v6661
    %v6790 = vunpack.c.l.b16 %v6662
    %v6791 = vunpack.c.l.b16 %v6663
    %v6792 = vunpack.c.l.b16 %v6664
    %v6793 = vunpack.c.l.b16 %v6665
    %v6794 = vunpack.c.l.b16 %v6666
    %v6795 = vunpack.c.l.b16 %v6667
    %v6796 = vunpack.c.l.b16 %v6668
    %v6797 = vunpack.c.l.b16 %v6669
    %v6798 = vunpack.c.l.b16 %v6670
    %v6799 = vunpack.c.l.b16 %v6671
    %v6800 = vunpack.c.l.b16 %v6672
    %v6801 = vunpack.c.l.b16 %v6673
    %v6802 = vunpack.c.l.b16 %v6674
    %v6803 = vunpack.c.l.b16 %v6675
    %v6804 = vunpack.c.l.b16 %v6676
    %v6805 = vunpack.c.l.b16 %v6677
    %v6806 = vunpack.c.l.b16 %v6678
    %v6807 = vunpack.c.l.b16 %v6679
    %v6808 = vunpack.c.l.b16 %v6680
    %v6809 = vunpack.c.l.b16 %v6681
    %v6810 = vunpack.c.l.b16 %v6682
    %v6811 = vunpack.c.l.b16 %v6683
    %v6812 = vunpack.c.l.b16 %v6684
    %v6813 = vunpack.c.l.b16 %v6685
    %v6814 = vunpack.c.l.b16 %v6686
    %v6815 = vunpack.c.l.b16 %v6687
    %v6816 = vunpack.c.l.b16 %v6688
    %v6817 = vunpack.c.l.b16 %v6689
    %v6818 = vunpack.c.l.b16 %v6690
    %v6819 = vunpack.c.l.b16 %v6691
    %v6820 = vunpack.c.l.b16 %v6692
    %v6821 = vunpack.c.l.b16 %v6693
    %v6822 = vunpack.c.l.b16 %v6694
    %v6823 = vunpack.c.l.b16 %v6695
    %v6824 = vunpack.c.l.b16 %v6696
    %v6825 = vunpack.c.l.b16 %v6697
    %v6826 = vunpack.c.l.b16 %v6698
    %v6827 = vunpack.c.l.b16 %v6699
    %v6828 = vunpack.c.l.b16 %v6700
    %v6829 = vunpack.c.l.b16 %v6701
    %v6830 = vunpack.c.l.b16 %v6702
    %v6831 = vunpack.c.l.b16 %v6703
    %v6832 = vunpack.c.l.b16 %v6704
    %v6833 = vunpack.c.l.b16 %v6705
    %v6834 = vunpack.c.l.b16 %v6706
    %v6835 = vunpack.c.l.b16 %v6707
    %v6836 = vunpack.c.l.b16 %v6708
    %v6837 = vunpack.c.l.b16 %v6709
    %v6838 = vunpack.c.l.b16 %v6710
    %v6839 = vunpack.c.l.b16 %v6711
    %v6840 = vpack.c.b16 %v6777, %v6776
    %v6841 = vpack.c.b16 %v6779, %v6778
    %v6842 = vpack.c.b16 %v6781, %v6780
    %v6843 = vpack.c.b16 %v6783, %v6782
    %v6844 = vpack.c.b16 %v6785, %v6784
    %v6845 = vpack.c.b16 %v6787, %v6786
    %v6846 = vpack.c.b16 %v6789, %v6788
    %v6847 = vpack.c.b16 %v6791, %v6790
    %v6848 = vpack.c.b16 %v6793, %v6792
    %v6849 = vpack.c.b16 %v6795, %v6794
    %v6850 = vpack.c.b16 %v6797, %v6796
    %v6851 = vpack.c.b16 %v6799, %v6798
    %v6852 = vpack.c.b16 %v6801, %v6800
    %v6853 = vpack.c.b16 %v6803, %v6802
    %v6854 = vpack.c.b16 %v6805, %v6804
    %v6855 = vpack.c.b16 %v6807, %v6806
    %v6856 = vpack.c.b16 %v6809, %v6808
    %v6857 = vpack.c.b16 %v6811, %v6810
    %v6858 = vpack.c.b16 %v6813, %v6812
    %v6859 = vpack.c.b16 %v6815, %v6814
    %v6860 = vpack.c.b16 %v6817, %v6816
    %v6861 = vpack.c.b16 %v6819, %v6818
    %v6862 = vpack.c.b16 %v6821, %v6820
    %v6863 = vpack.c.b16 %v6823, %v6822
    %v6864 = vpack.c.b16 %v6825, %v6824
    %v6865 = vpack.c.b16 %v6827, %v6826
    %v6866 = vpack.c.b16 %v6829, %v6828
    %v6867 = vpack.c.b16 %v6831, %v6830
    %v6868 = vpack.c.b16 %v6833, %v6832
    %v6869 = vpack.c.b16 %v6835, %v6834
    %v6870 = vpack.c.b16 %v6837, %v6836
    %v6871 = vpack.c.b16 %v6839, %v6838
    %6904 = vmatpush.bf16.msra.mxu0 %v6847
    %6905 = vmatpush.bf16.msra.mxu0 %v6846
    %6906 = vmatpush.bf16.msra.mxu0 %v6845
    %6907 = vmatpush.bf16.msra.mxu0 %v6844
    %6908 = vmatpush.bf16.msra.mxu0 %v6843
    %6909 = vmatpush.bf16.msra.mxu0 %v6842
    %6910 = vmatpush.bf16.msra.mxu0 %v6841
    %6911 = vmatpush.bf16.msra.mxu0 %v6840
    %6912 = vmatmul.bf16.gmra.mxu0 %v6643
    %v6913 = vpop.f32.mrf.mxu0
    %v6914 = vadd.f32 0.0, %v6913
    %v6915 = vpop.f32.mrf.mxu0
    %6916 = vdwg.mxu0
    %6917 = vmatpush.bf16.msra.mxu0 %v6855
    %6918 = vmatpush.bf16.msra.mxu0 %v6854
    %6919 = vmatpush.bf16.msra.mxu0 %v6853
    %6920 = vmatpush.bf16.msra.mxu0 %v6852
    %6921 = vmatpush.bf16.msra.mxu0 %v6851
    %6922 = vmatpush.bf16.msra.mxu0 %v6850
    %6923 = vmatpush.bf16.msra.mxu0 %v6849
    %6924 = vmatpush.bf16.msra.mxu0 %v6848
    %6925 = vmatmul.bf16.gmra.mxu0 %v6644
    %v6926 = vpop.f32.mrf.mxu0
    %v6927 = vadd.f32 %v6914, %v6926
    %v6928 = vpop.f32.mrf.mxu0
    %6929 = vdwg.mxu0
    %6930 = vmatpush.bf16.msra.mxu0 %v6863
    %6931 = vmatpush.bf16.msra.mxu0 %v6862
    %6932 = vmatpush.bf16.msra.mxu0 %v6861
    %6933 = vmatpush.bf16.msra.mxu0 %v6860
    %6934 = vmatpush.bf16.msra.mxu0 %v6859
    %6935 = vmatpush.bf16.msra.mxu0 %v6858
    %6936 = vmatpush.bf16.msra.mxu0 %v6857
    %6937 = vmatpush.bf16.msra.mxu0 %v6856
    %6938 = vmatmul.bf16.gmra.mxu0 %v6645
    %v6939 = vpop.f32.mrf.mxu0
    %v6940 = vadd.f32 %v6927, %v6939
    %v6941 = vpop.f32.mrf.mxu0
    %6942 = vdwg.mxu0
    %6943 = vmatpush.bf16.msra.mxu0 %v6871
    %6944 = vmatpush.bf16.msra.mxu0 %v6870
    %6945 = vmatpush.bf16.msra.mxu0 %v6869
    %6946 = vmatpush.bf16.msra.mxu0 %v6868
    %6947 = vmatpush.bf16.msra.mxu0 %v6867
    %6948 = vmatpush.bf16.msra.mxu0 %v6866
    %6949 = vmatpush.bf16.msra.mxu0 %v6865
    %6950 = vmatpush.bf16.msra.mxu0 %v6864
    %6951 = vmatmul.bf16.gmra.mxu0 %v6646
    %v6952 = vpop.f32.mrf.mxu0
    %v6953 = vadd.f32 %v6940, %v6952
    %v6954 = vpop.f32.mrf.mxu0
    %6955 = vdwg.mxu0
    %v6956 = vadd.f32 %v6642, %v6953
    %v6957 = vpack.c.bf16 %v2544, %v2544
    %v6958 = vpack.c.bf16 %v2545, %v2545
    %v6959 = vpack.c.bf16 %v2546, %v2546
    %v6960 = vpack.c.bf16 %v2547, %v2547
    %s6961 = scalar_lea.vmem [#allocation17], 3584
    %v6962 = vld [vmem:[%s6961] sm:$0xf]
    %v6963 = vld [vmem:[%s6961 + $0x4] sm:$0xf]
    %v6964 = vld [vmem:[%s6961 + $0x8] sm:$0xf]
    %v6965 = vld [vmem:[%s6961 + $0xc] sm:$0xf]
    %v6966 = vld [vmem:[%s6961 + $0x10] sm:$0xf]
    %v6967 = vld [vmem:[%s6961 + $0x14] sm:$0xf]
    %v6968 = vld [vmem:[%s6961 + $0x18] sm:$0xf]
    %v6969 = vld [vmem:[%s6961 + $0x1c] sm:$0xf]
    %v6970 = vld [vmem:[%s6961 + $0x20] sm:$0xf]
    %v6971 = vld [vmem:[%s6961 + $0x24] sm:$0xf]
    %v6972 = vld [vmem:[%s6961 + $0x28] sm:$0xf]
    %v6973 = vld [vmem:[%s6961 + $0x2c] sm:$0xf]
    %v6974 = vld [vmem:[%s6961 + $0x30] sm:$0xf]
    %v6975 = vld [vmem:[%s6961 + $0x34] sm:$0xf]
    %v6976 = vld [vmem:[%s6961 + $0x38] sm:$0xf]
    %v6977 = vld [vmem:[%s6961 + $0x3c] sm:$0xf]
    %v6978 = vld [vmem:[%s6961 + $0x40] sm:$0xf]
    %v6979 = vld [vmem:[%s6961 + $0x44] sm:$0xf]
    %v6980 = vld [vmem:[%s6961 + $0x48] sm:$0xf]
    %v6981 = vld [vmem:[%s6961 + $0x4c] sm:$0xf]
    %v6982 = vld [vmem:[%s6961 + $0x50] sm:$0xf]
    %v6983 = vld [vmem:[%s6961 + $0x54] sm:$0xf]
    %v6984 = vld [vmem:[%s6961 + $0x58] sm:$0xf]
    %v6985 = vld [vmem:[%s6961 + $0x5c] sm:$0xf]
    %v6986 = vld [vmem:[%s6961 + $0x60] sm:$0xf]
    %v6987 = vld [vmem:[%s6961 + $0x64] sm:$0xf]
    %v6988 = vld [vmem:[%s6961 + $0x68] sm:$0xf]
    %v6989 = vld [vmem:[%s6961 + $0x6c] sm:$0xf]
    %v6990 = vld [vmem:[%s6961 + $0x70] sm:$0xf]
    %v6991 = vld [vmem:[%s6961 + $0x74] sm:$0xf]
    %v6992 = vld [vmem:[%s6961 + $0x78] sm:$0xf]
    %v6993 = vld [vmem:[%s6961 + $0x7c] sm:$0xf]
    %v6994 = vld [vmem:[%s6961 + $0x80] sm:$0xf]
    %v6995 = vld [vmem:[%s6961 + $0x84] sm:$0xf]
    %v6996 = vld [vmem:[%s6961 + $0x88] sm:$0xf]
    %v6997 = vld [vmem:[%s6961 + $0x8c] sm:$0xf]
    %v6998 = vld [vmem:[%s6961 + $0x90] sm:$0xf]
    %v6999 = vld [vmem:[%s6961 + $0x94] sm:$0xf]
    %v7000 = vld [vmem:[%s6961 + $0x98] sm:$0xf]
    %v7001 = vld [vmem:[%s6961 + $0x9c] sm:$0xf]
    %v7002 = vld [vmem:[%s6961 + $0xa0] sm:$0xf]
    %v7003 = vld [vmem:[%s6961 + $0xa4] sm:$0xf]
    %v7004 = vld [vmem:[%s6961 + $0xa8] sm:$0xf]
    %v7005 = vld [vmem:[%s6961 + $0xac] sm:$0xf]
    %v7006 = vld [vmem:[%s6961 + $0xb0] sm:$0xf]
    %v7007 = vld [vmem:[%s6961 + $0xb4] sm:$0xf]
    %v7008 = vld [vmem:[%s6961 + $0xb8] sm:$0xf]
    %v7009 = vld [vmem:[%s6961 + $0xbc] sm:$0xf]
    %v7010 = vld [vmem:[%s6961 + $0xc0] sm:$0xf]
    %v7011 = vld [vmem:[%s6961 + $0xc4] sm:$0xf]
    %v7012 = vld [vmem:[%s6961 + $0xc8] sm:$0xf]
    %v7013 = vld [vmem:[%s6961 + $0xcc] sm:$0xf]
    %v7014 = vld [vmem:[%s6961 + $0xd0] sm:$0xf]
    %v7015 = vld [vmem:[%s6961 + $0xd4] sm:$0xf]
    %v7016 = vld [vmem:[%s6961 + $0xd8] sm:$0xf]
    %v7017 = vld [vmem:[%s6961 + $0xdc] sm:$0xf]
    %v7018 = vld [vmem:[%s6961 + $0xe0] sm:$0xf]
    %v7019 = vld [vmem:[%s6961 + $0xe4] sm:$0xf]
    %v7020 = vld [vmem:[%s6961 + $0xe8] sm:$0xf]
    %v7021 = vld [vmem:[%s6961 + $0xec] sm:$0xf]
    %v7022 = vld [vmem:[%s6961 + $0xf0] sm:$0xf]
    %v7023 = vld [vmem:[%s6961 + $0xf4] sm:$0xf]
    %v7024 = vld [vmem:[%s6961 + $0xf8] sm:$0xf]
    %v7025 = vld [vmem:[%s6961 + $0xfc] sm:$0xf]
    %v7090 = vunpack.c.l.b16 %v6962
    %v7091 = vunpack.c.l.b16 %v6963
    %v7092 = vunpack.c.l.b16 %v6964
    %v7093 = vunpack.c.l.b16 %v6965
    %v7094 = vunpack.c.l.b16 %v6966
    %v7095 = vunpack.c.l.b16 %v6967
    %v7096 = vunpack.c.l.b16 %v6968
    %v7097 = vunpack.c.l.b16 %v6969
    %v7098 = vunpack.c.l.b16 %v6970
    %v7099 = vunpack.c.l.b16 %v6971
    %v7100 = vunpack.c.l.b16 %v6972
    %v7101 = vunpack.c.l.b16 %v6973
    %v7102 = vunpack.c.l.b16 %v6974
    %v7103 = vunpack.c.l.b16 %v6975
    %v7104 = vunpack.c.l.b16 %v6976
    %v7105 = vunpack.c.l.b16 %v6977
    %v7106 = vunpack.c.l.b16 %v6978
    %v7107 = vunpack.c.l.b16 %v6979
    %v7108 = vunpack.c.l.b16 %v6980
    %v7109 = vunpack.c.l.b16 %v6981
    %v7110 = vunpack.c.l.b16 %v6982
    %v7111 = vunpack.c.l.b16 %v6983
    %v7112 = vunpack.c.l.b16 %v6984
    %v7113 = vunpack.c.l.b16 %v6985
    %v7114 = vunpack.c.l.b16 %v6986
    %v7115 = vunpack.c.l.b16 %v6987
    %v7116 = vunpack.c.l.b16 %v6988
    %v7117 = vunpack.c.l.b16 %v6989
    %v7118 = vunpack.c.l.b16 %v6990
    %v7119 = vunpack.c.l.b16 %v6991
    %v7120 = vunpack.c.l.b16 %v6992
    %v7121 = vunpack.c.l.b16 %v6993
    %v7122 = vunpack.c.l.b16 %v6994
    %v7123 = vunpack.c.l.b16 %v6995
    %v7124 = vunpack.c.l.b16 %v6996
    %v7125 = vunpack.c.l.b16 %v6997
    %v7126 = vunpack.c.l.b16 %v6998
    %v7127 = vunpack.c.l.b16 %v6999
    %v7128 = vunpack.c.l.b16 %v7000
    %v7129 = vunpack.c.l.b16 %v7001
    %v7130 = vunpack.c.l.b16 %v7002
    %v7131 = vunpack.c.l.b16 %v7003
    %v7132 = vunpack.c.l.b16 %v7004
    %v7133 = vunpack.c.l.b16 %v7005
    %v7134 = vunpack.c.l.b16 %v7006
    %v7135 = vunpack.c.l.b16 %v7007
    %v7136 = vunpack.c.l.b16 %v7008
    %v7137 = vunpack.c.l.b16 %v7009
    %v7138 = vunpack.c.l.b16 %v7010
    %v7139 = vunpack.c.l.b16 %v7011
    %v7140 = vunpack.c.l.b16 %v7012
    %v7141 = vunpack.c.l.b16 %v7013
    %v7142 = vunpack.c.l.b16 %v7014
    %v7143 = vunpack.c.l.b16 %v7015
    %v7144 = vunpack.c.l.b16 %v7016
    %v7145 = vunpack.c.l.b16 %v7017
    %v7146 = vunpack.c.l.b16 %v7018
    %v7147 = vunpack.c.l.b16 %v7019
    %v7148 = vunpack.c.l.b16 %v7020
    %v7149 = vunpack.c.l.b16 %v7021
    %v7150 = vunpack.c.l.b16 %v7022
    %v7151 = vunpack.c.l.b16 %v7023
    %v7152 = vunpack.c.l.b16 %v7024
    %v7153 = vunpack.c.l.b16 %v7025
    %v7154 = vpack.c.b16 %v7091, %v7090
    %v7155 = vpack.c.b16 %v7093, %v7092
    %v7156 = vpack.c.b16 %v7095, %v7094
    %v7157 = vpack.c.b16 %v7097, %v7096
    %v7158 = vpack.c.b16 %v7099, %v7098
    %v7159 = vpack.c.b16 %v7101, %v7100
    %v7160 = vpack.c.b16 %v7103, %v7102
    %v7161 = vpack.c.b16 %v7105, %v7104
    %v7162 = vpack.c.b16 %v7107, %v7106
    %v7163 = vpack.c.b16 %v7109, %v7108
    %v7164 = vpack.c.b16 %v7111, %v7110
    %v7165 = vpack.c.b16 %v7113, %v7112
    %v7166 = vpack.c.b16 %v7115, %v7114
    %v7167 = vpack.c.b16 %v7117, %v7116
    %v7168 = vpack.c.b16 %v7119, %v7118
    %v7169 = vpack.c.b16 %v7121, %v7120
    %v7170 = vpack.c.b16 %v7123, %v7122
    %v7171 = vpack.c.b16 %v7125, %v7124
    %v7172 = vpack.c.b16 %v7127, %v7126
    %v7173 = vpack.c.b16 %v7129, %v7128
    %v7174 = vpack.c.b16 %v7131, %v7130
    %v7175 = vpack.c.b16 %v7133, %v7132
    %v7176 = vpack.c.b16 %v7135, %v7134
    %v7177 = vpack.c.b16 %v7137, %v7136
    %v7178 = vpack.c.b16 %v7139, %v7138
    %v7179 = vpack.c.b16 %v7141, %v7140
    %v7180 = vpack.c.b16 %v7143, %v7142
    %v7181 = vpack.c.b16 %v7145, %v7144
    %v7182 = vpack.c.b16 %v7147, %v7146
    %v7183 = vpack.c.b16 %v7149, %v7148
    %v7184 = vpack.c.b16 %v7151, %v7150
    %v7185 = vpack.c.b16 %v7153, %v7152
    %7218 = vmatpush.bf16.msra.mxu0 %v7161
    %7219 = vmatpush.bf16.msra.mxu0 %v7160
    %7220 = vmatpush.bf16.msra.mxu0 %v7159
    %7221 = vmatpush.bf16.msra.mxu0 %v7158
    %7222 = vmatpush.bf16.msra.mxu0 %v7157
    %7223 = vmatpush.bf16.msra.mxu0 %v7156
    %7224 = vmatpush.bf16.msra.mxu0 %v7155
    %7225 = vmatpush.bf16.msra.mxu0 %v7154
    %7226 = vmatmul.bf16.gmra.mxu0 %v6957
    %v7227 = vpop.f32.mrf.mxu0
    %v7228 = vadd.f32 0.0, %v7227
    %v7229 = vpop.f32.mrf.mxu0
    %7230 = vdwg.mxu0
    %7231 = vmatpush.bf16.msra.mxu0 %v7169
    %7232 = vmatpush.bf16.msra.mxu0 %v7168
    %7233 = vmatpush.bf16.msra.mxu0 %v7167
    %7234 = vmatpush.bf16.msra.mxu0 %v7166
    %7235 = vmatpush.bf16.msra.mxu0 %v7165
    %7236 = vmatpush.bf16.msra.mxu0 %v7164
    %7237 = vmatpush.bf16.msra.mxu0 %v7163
    %7238 = vmatpush.bf16.msra.mxu0 %v7162
    %7239 = vmatmul.bf16.gmra.mxu0 %v6958
    %v7240 = vpop.f32.mrf.mxu0
    %v7241 = vadd.f32 %v7228, %v7240
    %v7242 = vpop.f32.mrf.mxu0
    %7243 = vdwg.mxu0
    %7244 = vmatpush.bf16.msra.mxu0 %v7177
    %7245 = vmatpush.bf16.msra.mxu0 %v7176
    %7246 = vmatpush.bf16.msra.mxu0 %v7175
    %7247 = vmatpush.bf16.msra.mxu0 %v7174
    %7248 = vmatpush.bf16.msra.mxu0 %v7173
    %7249 = vmatpush.bf16.msra.mxu0 %v7172
    %7250 = vmatpush.bf16.msra.mxu0 %v7171
    %7251 = vmatpush.bf16.msra.mxu0 %v7170
    %7252 = vmatmul.bf16.gmra.mxu0 %v6959
    %v7253 = vpop.f32.mrf.mxu0
    %v7254 = vadd.f32 %v7241, %v7253
    %v7255 = vpop.f32.mrf.mxu0
    %7256 = vdwg.mxu0
    %7257 = vmatpush.bf16.msra.mxu0 %v7185
    %7258 = vmatpush.bf16.msra.mxu0 %v7184
    %7259 = vmatpush.bf16.msra.mxu0 %v7183
    %7260 = vmatpush.bf16.msra.mxu0 %v7182
    %7261 = vmatpush.bf16.msra.mxu0 %v7181
    %7262 = vmatpush.bf16.msra.mxu0 %v7180
    %7263 = vmatpush.bf16.msra.mxu0 %v7179
    %7264 = vmatpush.bf16.msra.mxu0 %v7178
    %7265 = vmatmul.bf16.gmra.mxu0 %v6960
    %v7266 = vpop.f32.mrf.mxu0
    %v7267 = vadd.f32 %v7254, %v7266
    %v7268 = vpop.f32.mrf.mxu0
    %7269 = vdwg.mxu0
    %v7270 = vadd.f32 %v6956, %v7267
    %v7271 = vpack.c.bf16 %v2548, %v2548
    %v7272 = vpack.c.bf16 %v2549, %v2549
    %v7273 = vpack.c.bf16 %v2550, %v2550
    %v7274 = vpack.c.bf16 %v2551, %v2551
    %s7275 = scalar_lea.vmem [#allocation17], 3840
    %v7276 = vld [vmem:[%s7275] sm:$0xf]
    %v7277 = vld [vmem:[%s7275 + $0x4] sm:$0xf]
    %v7278 = vld [vmem:[%s7275 + $0x8] sm:$0xf]
    %v7279 = vld [vmem:[%s7275 + $0xc] sm:$0xf]
    %v7280 = vld [vmem:[%s7275 + $0x10] sm:$0xf]
    %v7281 = vld [vmem:[%s7275 + $0x14] sm:$0xf]
    %v7282 = vld [vmem:[%s7275 + $0x18] sm:$0xf]
    %v7283 = vld [vmem:[%s7275 + $0x1c] sm:$0xf]
    %v7284 = vld [vmem:[%s7275 + $0x20] sm:$0xf]
    %v7285 = vld [vmem:[%s7275 + $0x24] sm:$0xf]
    %v7286 = vld [vmem:[%s7275 + $0x28] sm:$0xf]
    %v7287 = vld [vmem:[%s7275 + $0x2c] sm:$0xf]
    %v7288 = vld [vmem:[%s7275 + $0x30] sm:$0xf]
    %v7289 = vld [vmem:[%s7275 + $0x34] sm:$0xf]
    %v7290 = vld [vmem:[%s7275 + $0x38] sm:$0xf]
    %v7291 = vld [vmem:[%s7275 + $0x3c] sm:$0xf]
    %v7292 = vld [vmem:[%s7275 + $0x40] sm:$0xf]
    %v7293 = vld [vmem:[%s7275 + $0x44] sm:$0xf]
    %v7294 = vld [vmem:[%s7275 + $0x48] sm:$0xf]
    %v7295 = vld [vmem:[%s7275 + $0x4c] sm:$0xf]
    %v7296 = vld [vmem:[%s7275 + $0x50] sm:$0xf]
    %v7297 = vld [vmem:[%s7275 + $0x54] sm:$0xf]
    %v7298 = vld [vmem:[%s7275 + $0x58] sm:$0xf]
    %v7299 = vld [vmem:[%s7275 + $0x5c] sm:$0xf]
    %v7300 = vld [vmem:[%s7275 + $0x60] sm:$0xf]
    %v7301 = vld [vmem:[%s7275 + $0x64] sm:$0xf]
    %v7302 = vld [vmem:[%s7275 + $0x68] sm:$0xf]
    %v7303 = vld [vmem:[%s7275 + $0x6c] sm:$0xf]
    %v7304 = vld [vmem:[%s7275 + $0x70] sm:$0xf]
    %v7305 = vld [vmem:[%s7275 + $0x74] sm:$0xf]
    %v7306 = vld [vmem:[%s7275 + $0x78] sm:$0xf]
    %v7307 = vld [vmem:[%s7275 + $0x7c] sm:$0xf]
    %v7308 = vld [vmem:[%s7275 + $0x80] sm:$0xf]
    %v7309 = vld [vmem:[%s7275 + $0x84] sm:$0xf]
    %v7310 = vld [vmem:[%s7275 + $0x88] sm:$0xf]
    %v7311 = vld [vmem:[%s7275 + $0x8c] sm:$0xf]
    %v7312 = vld [vmem:[%s7275 + $0x90] sm:$0xf]
    %v7313 = vld [vmem:[%s7275 + $0x94] sm:$0xf]
    %v7314 = vld [vmem:[%s7275 + $0x98] sm:$0xf]
    %v7315 = vld [vmem:[%s7275 + $0x9c] sm:$0xf]
    %v7316 = vld [vmem:[%s7275 + $0xa0] sm:$0xf]
    %v7317 = vld [vmem:[%s7275 + $0xa4] sm:$0xf]
    %v7318 = vld [vmem:[%s7275 + $0xa8] sm:$0xf]
    %v7319 = vld [vmem:[%s7275 + $0xac] sm:$0xf]
    %v7320 = vld [vmem:[%s7275 + $0xb0] sm:$0xf]
    %v7321 = vld [vmem:[%s7275 + $0xb4] sm:$0xf]
    %v7322 = vld [vmem:[%s7275 + $0xb8] sm:$0xf]
    %v7323 = vld [vmem:[%s7275 + $0xbc] sm:$0xf]
    %v7324 = vld [vmem:[%s7275 + $0xc0] sm:$0xf]
    %v7325 = vld [vmem:[%s7275 + $0xc4] sm:$0xf]
    %v7326 = vld [vmem:[%s7275 + $0xc8] sm:$0xf]
    %v7327 = vld [vmem:[%s7275 + $0xcc] sm:$0xf]
    %v7328 = vld [vmem:[%s7275 + $0xd0] sm:$0xf]
    %v7329 = vld [vmem:[%s7275 + $0xd4] sm:$0xf]
    %v7330 = vld [vmem:[%s7275 + $0xd8] sm:$0xf]
    %v7331 = vld [vmem:[%s7275 + $0xdc] sm:$0xf]
    %v7332 = vld [vmem:[%s7275 + $0xe0] sm:$0xf]
    %v7333 = vld [vmem:[%s7275 + $0xe4] sm:$0xf]
    %v7334 = vld [vmem:[%s7275 + $0xe8] sm:$0xf]
    %v7335 = vld [vmem:[%s7275 + $0xec] sm:$0xf]
    %v7336 = vld [vmem:[%s7275 + $0xf0] sm:$0xf]
    %v7337 = vld [vmem:[%s7275 + $0xf4] sm:$0xf]
    %v7338 = vld [vmem:[%s7275 + $0xf8] sm:$0xf]
    %v7339 = vld [vmem:[%s7275 + $0xfc] sm:$0xf]
    %v7404 = vunpack.c.l.b16 %v7276
    %v7405 = vunpack.c.l.b16 %v7277
    %v7406 = vunpack.c.l.b16 %v7278
    %v7407 = vunpack.c.l.b16 %v7279
    %v7408 = vunpack.c.l.b16 %v7280
    %v7409 = vunpack.c.l.b16 %v7281
    %v7410 = vunpack.c.l.b16 %v7282
    %v7411 = vunpack.c.l.b16 %v7283
    %v7412 = vunpack.c.l.b16 %v7284
    %v7413 = vunpack.c.l.b16 %v7285
    %v7414 = vunpack.c.l.b16 %v7286
    %v7415 = vunpack.c.l.b16 %v7287
    %v7416 = vunpack.c.l.b16 %v7288
    %v7417 = vunpack.c.l.b16 %v7289
    %v7418 = vunpack.c.l.b16 %v7290
    %v7419 = vunpack.c.l.b16 %v7291
    %v7420 = vunpack.c.l.b16 %v7292
    %v7421 = vunpack.c.l.b16 %v7293
    %v7422 = vunpack.c.l.b16 %v7294
    %v7423 = vunpack.c.l.b16 %v7295
    %v7424 = vunpack.c.l.b16 %v7296
    %v7425 = vunpack.c.l.b16 %v7297
    %v7426 = vunpack.c.l.b16 %v7298
    %v7427 = vunpack.c.l.b16 %v7299
    %v7428 = vunpack.c.l.b16 %v7300
    %v7429 = vunpack.c.l.b16 %v7301
    %v7430 = vunpack.c.l.b16 %v7302
    %v7431 = vunpack.c.l.b16 %v7303
    %v7432 = vunpack.c.l.b16 %v7304
    %v7433 = vunpack.c.l.b16 %v7305
    %v7434 = vunpack.c.l.b16 %v7306
    %v7435 = vunpack.c.l.b16 %v7307
    %v7436 = vunpack.c.l.b16 %v7308
    %v7437 = vunpack.c.l.b16 %v7309
    %v7438 = vunpack.c.l.b16 %v7310
    %v7439 = vunpack.c.l.b16 %v7311
    %v7440 = vunpack.c.l.b16 %v7312
    %v7441 = vunpack.c.l.b16 %v7313
    %v7442 = vunpack.c.l.b16 %v7314
    %v7443 = vunpack.c.l.b16 %v7315
    %v7444 = vunpack.c.l.b16 %v7316
    %v7445 = vunpack.c.l.b16 %v7317
    %v7446 = vunpack.c.l.b16 %v7318
    %v7447 = vunpack.c.l.b16 %v7319
    %v7448 = vunpack.c.l.b16 %v7320
    %v7449 = vunpack.c.l.b16 %v7321
    %v7450 = vunpack.c.l.b16 %v7322
    %v7451 = vunpack.c.l.b16 %v7323
    %v7452 = vunpack.c.l.b16 %v7324
    %v7453 = vunpack.c.l.b16 %v7325
    %v7454 = vunpack.c.l.b16 %v7326
    %v7455 = vunpack.c.l.b16 %v7327
    %v7456 = vunpack.c.l.b16 %v7328
    %v7457 = vunpack.c.l.b16 %v7329
    %v7458 = vunpack.c.l.b16 %v7330
    %v7459 = vunpack.c.l.b16 %v7331
    %v7460 = vunpack.c.l.b16 %v7332
    %v7461 = vunpack.c.l.b16 %v7333
    %v7462 = vunpack.c.l.b16 %v7334
    %v7463 = vunpack.c.l.b16 %v7335
    %v7464 = vunpack.c.l.b16 %v7336
    %v7465 = vunpack.c.l.b16 %v7337
    %v7466 = vunpack.c.l.b16 %v7338
    %v7467 = vunpack.c.l.b16 %v7339
    %v7468 = vpack.c.b16 %v7405, %v7404
    %v7469 = vpack.c.b16 %v7407, %v7406
    %v7470 = vpack.c.b16 %v7409, %v7408
    %v7471 = vpack.c.b16 %v7411, %v7410
    %v7472 = vpack.c.b16 %v7413, %v7412
    %v7473 = vpack.c.b16 %v7415, %v7414
    %v7474 = vpack.c.b16 %v7417, %v7416
    %v7475 = vpack.c.b16 %v7419, %v7418
    %v7476 = vpack.c.b16 %v7421, %v7420
    %v7477 = vpack.c.b16 %v7423, %v7422
    %v7478 = vpack.c.b16 %v7425, %v7424
    %v7479 = vpack.c.b16 %v7427, %v7426
    %v7480 = vpack.c.b16 %v7429, %v7428
    %v7481 = vpack.c.b16 %v7431, %v7430
    %v7482 = vpack.c.b16 %v7433, %v7432
    %v7483 = vpack.c.b16 %v7435, %v7434
    %v7484 = vpack.c.b16 %v7437, %v7436
    %v7485 = vpack.c.b16 %v7439, %v7438
    %v7486 = vpack.c.b16 %v7441, %v7440
    %v7487 = vpack.c.b16 %v7443, %v7442
    %v7488 = vpack.c.b16 %v7445, %v7444
    %v7489 = vpack.c.b16 %v7447, %v7446
    %v7490 = vpack.c.b16 %v7449, %v7448
    %v7491 = vpack.c.b16 %v7451, %v7450
    %v7492 = vpack.c.b16 %v7453, %v7452
    %v7493 = vpack.c.b16 %v7455, %v7454
    %v7494 = vpack.c.b16 %v7457, %v7456
    %v7495 = vpack.c.b16 %v7459, %v7458
    %v7496 = vpack.c.b16 %v7461, %v7460
    %v7497 = vpack.c.b16 %v7463, %v7462
    %v7498 = vpack.c.b16 %v7465, %v7464
    %v7499 = vpack.c.b16 %v7467, %v7466
    %7532 = vmatpush.bf16.msra.mxu0 %v7475
    %7533 = vmatpush.bf16.msra.mxu0 %v7474
    %7534 = vmatpush.bf16.msra.mxu0 %v7473
    %7535 = vmatpush.bf16.msra.mxu0 %v7472
    %7536 = vmatpush.bf16.msra.mxu0 %v7471
    %7537 = vmatpush.bf16.msra.mxu0 %v7470
    %7538 = vmatpush.bf16.msra.mxu0 %v7469
    %7539 = vmatpush.bf16.msra.mxu0 %v7468
    %7540 = vmatmul.bf16.gmra.mxu0 %v7271
    %v7541 = vpop.f32.mrf.mxu0
    %v7542 = vadd.f32 0.0, %v7541
    %v7543 = vpop.f32.mrf.mxu0
    %7544 = vdwg.mxu0
    %7545 = vmatpush.bf16.msra.mxu0 %v7483
    %7546 = vmatpush.bf16.msra.mxu0 %v7482
    %7547 = vmatpush.bf16.msra.mxu0 %v7481
    %7548 = vmatpush.bf16.msra.mxu0 %v7480
    %7549 = vmatpush.bf16.msra.mxu0 %v7479
    %7550 = vmatpush.bf16.msra.mxu0 %v7478
    %7551 = vmatpush.bf16.msra.mxu0 %v7477
    %7552 = vmatpush.bf16.msra.mxu0 %v7476
    %7553 = vmatmul.bf16.gmra.mxu0 %v7272
    %v7554 = vpop.f32.mrf.mxu0
    %v7555 = vadd.f32 %v7542, %v7554
    %v7556 = vpop.f32.mrf.mxu0
    %7557 = vdwg.mxu0
    %7558 = vmatpush.bf16.msra.mxu0 %v7491
    %7559 = vmatpush.bf16.msra.mxu0 %v7490
    %7560 = vmatpush.bf16.msra.mxu0 %v7489
    %7561 = vmatpush.bf16.msra.mxu0 %v7488
    %7562 = vmatpush.bf16.msra.mxu0 %v7487
    %7563 = vmatpush.bf16.msra.mxu0 %v7486
    %7564 = vmatpush.bf16.msra.mxu0 %v7485
    %7565 = vmatpush.bf16.msra.mxu0 %v7484
    %7566 = vmatmul.bf16.gmra.mxu0 %v7273
    %v7567 = vpop.f32.mrf.mxu0
    %v7568 = vadd.f32 %v7555, %v7567
    %v7569 = vpop.f32.mrf.mxu0
    %7570 = vdwg.mxu0
    %7571 = vmatpush.bf16.msra.mxu0 %v7499
    %7572 = vmatpush.bf16.msra.mxu0 %v7498
    %7573 = vmatpush.bf16.msra.mxu0 %v7497
    %7574 = vmatpush.bf16.msra.mxu0 %v7496
    %7575 = vmatpush.bf16.msra.mxu0 %v7495
    %7576 = vmatpush.bf16.msra.mxu0 %v7494
    %7577 = vmatpush.bf16.msra.mxu0 %v7493
    %7578 = vmatpush.bf16.msra.mxu0 %v7492
    %7579 = vmatmul.bf16.gmra.mxu0 %v7274
    %v7580 = vpop.f32.mrf.mxu0
    %v7581 = vadd.f32 %v7568, %v7580
    %v7582 = vpop.f32.mrf.mxu0
    %7583 = vdwg.mxu0
    %v7584 = vadd.f32 %v7270, %v7581
    %v7585 = vpack.c.bf16 %v2552, %v2552
    %v7586 = vpack.c.bf16 %v2553, %v2553
    %v7587 = vpack.c.bf16 %v2554, %v2554
    %v7588 = vpack.c.bf16 %v2555, %v2555
    %s7589 = scalar_lea.vmem [#allocation17], 4096
    %v7590 = vld [vmem:[%s7589] sm:$0xf]
    %v7591 = vld [vmem:[%s7589 + $0x4] sm:$0xf]
    %v7592 = vld [vmem:[%s7589 + $0x8] sm:$0xf]
    %v7593 = vld [vmem:[%s7589 + $0xc] sm:$0xf]
    %v7594 = vld [vmem:[%s7589 + $0x10] sm:$0xf]
    %v7595 = vld [vmem:[%s7589 + $0x14] sm:$0xf]
    %v7596 = vld [vmem:[%s7589 + $0x18] sm:$0xf]
    %v7597 = vld [vmem:[%s7589 + $0x1c] sm:$0xf]
    %v7598 = vld [vmem:[%s7589 + $0x20] sm:$0xf]
    %v7599 = vld [vmem:[%s7589 + $0x24] sm:$0xf]
    %v7600 = vld [vmem:[%s7589 + $0x28] sm:$0xf]
    %v7601 = vld [vmem:[%s7589 + $0x2c] sm:$0xf]
    %v7602 = vld [vmem:[%s7589 + $0x30] sm:$0xf]
    %v7603 = vld [vmem:[%s7589 + $0x34] sm:$0xf]
    %v7604 = vld [vmem:[%s7589 + $0x38] sm:$0xf]
    %v7605 = vld [vmem:[%s7589 + $0x3c] sm:$0xf]
    %v7606 = vld [vmem:[%s7589 + $0x40] sm:$0xf]
    %v7607 = vld [vmem:[%s7589 + $0x44] sm:$0xf]
    %v7608 = vld [vmem:[%s7589 + $0x48] sm:$0xf]
    %v7609 = vld [vmem:[%s7589 + $0x4c] sm:$0xf]
    %v7610 = vld [vmem:[%s7589 + $0x50] sm:$0xf]
    %v7611 = vld [vmem:[%s7589 + $0x54] sm:$0xf]
    %v7612 = vld [vmem:[%s7589 + $0x58] sm:$0xf]
    %v7613 = vld [vmem:[%s7589 + $0x5c] sm:$0xf]
    %v7614 = vld [vmem:[%s7589 + $0x60] sm:$0xf]
    %v7615 = vld [vmem:[%s7589 + $0x64] sm:$0xf]
    %v7616 = vld [vmem:[%s7589 + $0x68] sm:$0xf]
    %v7617 = vld [vmem:[%s7589 + $0x6c] sm:$0xf]
    %v7618 = vld [vmem:[%s7589 + $0x70] sm:$0xf]
    %v7619 = vld [vmem:[%s7589 + $0x74] sm:$0xf]
    %v7620 = vld [vmem:[%s7589 + $0x78] sm:$0xf]
    %v7621 = vld [vmem:[%s7589 + $0x7c] sm:$0xf]
    %v7622 = vld [vmem:[%s7589 + $0x80] sm:$0xf]
    %v7623 = vld [vmem:[%s7589 + $0x84] sm:$0xf]
    %v7624 = vld [vmem:[%s7589 + $0x88] sm:$0xf]
    %v7625 = vld [vmem:[%s7589 + $0x8c] sm:$0xf]
    %v7626 = vld [vmem:[%s7589 + $0x90] sm:$0xf]
    %v7627 = vld [vmem:[%s7589 + $0x94] sm:$0xf]
    %v7628 = vld [vmem:[%s7589 + $0x98] sm:$0xf]
    %v7629 = vld [vmem:[%s7589 + $0x9c] sm:$0xf]
    %v7630 = vld [vmem:[%s7589 + $0xa0] sm:$0xf]
    %v7631 = vld [vmem:[%s7589 + $0xa4] sm:$0xf]
    %v7632 = vld [vmem:[%s7589 + $0xa8] sm:$0xf]
    %v7633 = vld [vmem:[%s7589 + $0xac] sm:$0xf]
    %v7634 = vld [vmem:[%s7589 + $0xb0] sm:$0xf]
    %v7635 = vld [vmem:[%s7589 + $0xb4] sm:$0xf]
    %v7636 = vld [vmem:[%s7589 + $0xb8] sm:$0xf]
    %v7637 = vld [vmem:[%s7589 + $0xbc] sm:$0xf]
    %v7638 = vld [vmem:[%s7589 + $0xc0] sm:$0xf]
    %v7639 = vld [vmem:[%s7589 + $0xc4] sm:$0xf]
    %v7640 = vld [vmem:[%s7589 + $0xc8] sm:$0xf]
    %v7641 = vld [vmem:[%s7589 + $0xcc] sm:$0xf]
    %v7642 = vld [vmem:[%s7589 + $0xd0] sm:$0xf]
    %v7643 = vld [vmem:[%s7589 + $0xd4] sm:$0xf]
    %v7644 = vld [vmem:[%s7589 + $0xd8] sm:$0xf]
    %v7645 = vld [vmem:[%s7589 + $0xdc] sm:$0xf]
    %v7646 = vld [vmem:[%s7589 + $0xe0] sm:$0xf]
    %v7647 = vld [vmem:[%s7589 + $0xe4] sm:$0xf]
    %v7648 = vld [vmem:[%s7589 + $0xe8] sm:$0xf]
    %v7649 = vld [vmem:[%s7589 + $0xec] sm:$0xf]
    %v7650 = vld [vmem:[%s7589 + $0xf0] sm:$0xf]
    %v7651 = vld [vmem:[%s7589 + $0xf4] sm:$0xf]
    %v7652 = vld [vmem:[%s7589 + $0xf8] sm:$0xf]
    %v7653 = vld [vmem:[%s7589 + $0xfc] sm:$0xf]
    %v7718 = vunpack.c.l.b16 %v7590
    %v7719 = vunpack.c.l.b16 %v7591
    %v7720 = vunpack.c.l.b16 %v7592
    %v7721 = vunpack.c.l.b16 %v7593
    %v7722 = vunpack.c.l.b16 %v7594
    %v7723 = vunpack.c.l.b16 %v7595
    %v7724 = vunpack.c.l.b16 %v7596
    %v7725 = vunpack.c.l.b16 %v7597
    %v7726 = vunpack.c.l.b16 %v7598
    %v7727 = vunpack.c.l.b16 %v7599
    %v7728 = vunpack.c.l.b16 %v7600
    %v7729 = vunpack.c.l.b16 %v7601
    %v7730 = vunpack.c.l.b16 %v7602
    %v7731 = vunpack.c.l.b16 %v7603
    %v7732 = vunpack.c.l.b16 %v7604
    %v7733 = vunpack.c.l.b16 %v7605
    %v7734 = vunpack.c.l.b16 %v7606
    %v7735 = vunpack.c.l.b16 %v7607
    %v7736 = vunpack.c.l.b16 %v7608
    %v7737 = vunpack.c.l.b16 %v7609
    %v7738 = vunpack.c.l.b16 %v7610
    %v7739 = vunpack.c.l.b16 %v7611
    %v7740 = vunpack.c.l.b16 %v7612
    %v7741 = vunpack.c.l.b16 %v7613
    %v7742 = vunpack.c.l.b16 %v7614
    %v7743 = vunpack.c.l.b16 %v7615
    %v7744 = vunpack.c.l.b16 %v7616
    %v7745 = vunpack.c.l.b16 %v7617
    %v7746 = vunpack.c.l.b16 %v7618
    %v7747 = vunpack.c.l.b16 %v7619
    %v7748 = vunpack.c.l.b16 %v7620
    %v7749 = vunpack.c.l.b16 %v7621
    %v7750 = vunpack.c.l.b16 %v7622
    %v7751 = vunpack.c.l.b16 %v7623
    %v7752 = vunpack.c.l.b16 %v7624
    %v7753 = vunpack.c.l.b16 %v7625
    %v7754 = vunpack.c.l.b16 %v7626
    %v7755 = vunpack.c.l.b16 %v7627
    %v7756 = vunpack.c.l.b16 %v7628
    %v7757 = vunpack.c.l.b16 %v7629
    %v7758 = vunpack.c.l.b16 %v7630
    %v7759 = vunpack.c.l.b16 %v7631
    %v7760 = vunpack.c.l.b16 %v7632
    %v7761 = vunpack.c.l.b16 %v7633
    %v7762 = vunpack.c.l.b16 %v7634
    %v7763 = vunpack.c.l.b16 %v7635
    %v7764 = vunpack.c.l.b16 %v7636
    %v7765 = vunpack.c.l.b16 %v7637
    %v7766 = vunpack.c.l.b16 %v7638
    %v7767 = vunpack.c.l.b16 %v7639
    %v7768 = vunpack.c.l.b16 %v7640
    %v7769 = vunpack.c.l.b16 %v7641
    %v7770 = vunpack.c.l.b16 %v7642
    %v7771 = vunpack.c.l.b16 %v7643
    %v7772 = vunpack.c.l.b16 %v7644
    %v7773 = vunpack.c.l.b16 %v7645
    %v7774 = vunpack.c.l.b16 %v7646
    %v7775 = vunpack.c.l.b16 %v7647
    %v7776 = vunpack.c.l.b16 %v7648
    %v7777 = vunpack.c.l.b16 %v7649
    %v7778 = vunpack.c.l.b16 %v7650
    %v7779 = vunpack.c.l.b16 %v7651
    %v7780 = vunpack.c.l.b16 %v7652
    %v7781 = vunpack.c.l.b16 %v7653
    %v7782 = vpack.c.b16 %v7719, %v7718
    %v7783 = vpack.c.b16 %v7721, %v7720
    %v7784 = vpack.c.b16 %v7723, %v7722
    %v7785 = vpack.c.b16 %v7725, %v7724
    %v7786 = vpack.c.b16 %v7727, %v7726
    %v7787 = vpack.c.b16 %v7729, %v7728
    %v7788 = vpack.c.b16 %v7731, %v7730
    %v7789 = vpack.c.b16 %v7733, %v7732
    %v7790 = vpack.c.b16 %v7735, %v7734
    %v7791 = vpack.c.b16 %v7737, %v7736
    %v7792 = vpack.c.b16 %v7739, %v7738
    %v7793 = vpack.c.b16 %v7741, %v7740
    %v7794 = vpack.c.b16 %v7743, %v7742
    %v7795 = vpack.c.b16 %v7745, %v7744
    %v7796 = vpack.c.b16 %v7747, %v7746
    %v7797 = vpack.c.b16 %v7749, %v7748
    %v7798 = vpack.c.b16 %v7751, %v7750
    %v7799 = vpack.c.b16 %v7753, %v7752
    %v7800 = vpack.c.b16 %v7755, %v7754
    %v7801 = vpack.c.b16 %v7757, %v7756
    %v7802 = vpack.c.b16 %v7759, %v7758
    %v7803 = vpack.c.b16 %v7761, %v7760
    %v7804 = vpack.c.b16 %v7763, %v7762
    %v7805 = vpack.c.b16 %v7765, %v7764
    %v7806 = vpack.c.b16 %v7767, %v7766
    %v7807 = vpack.c.b16 %v7769, %v7768
    %v7808 = vpack.c.b16 %v7771, %v7770
    %v7809 = vpack.c.b16 %v7773, %v7772
    %v7810 = vpack.c.b16 %v7775, %v7774
    %v7811 = vpack.c.b16 %v7777, %v7776
    %v7812 = vpack.c.b16 %v7779, %v7778
    %v7813 = vpack.c.b16 %v7781, %v7780
    %7846 = vmatpush.bf16.msra.mxu0 %v7789
    %7847 = vmatpush.bf16.msra.mxu0 %v7788
    %7848 = vmatpush.bf16.msra.mxu0 %v7787
    %7849 = vmatpush.bf16.msra.mxu0 %v7786
    %7850 = vmatpush.bf16.msra.mxu0 %v7785
    %7851 = vmatpush.bf16.msra.mxu0 %v7784
    %7852 = vmatpush.bf16.msra.mxu0 %v7783
    %7853 = vmatpush.bf16.msra.mxu0 %v7782
    %7854 = vmatmul.bf16.gmra.mxu0 %v7585
    %v7855 = vpop.f32.mrf.mxu0
    %v7856 = vadd.f32 0.0, %v7855
    %v7857 = vpop.f32.mrf.mxu0
    %7858 = vdwg.mxu0
    %7859 = vmatpush.bf16.msra.mxu0 %v7797
    %7860 = vmatpush.bf16.msra.mxu0 %v7796
    %7861 = vmatpush.bf16.msra.mxu0 %v7795
    %7862 = vmatpush.bf16.msra.mxu0 %v7794
    %7863 = vmatpush.bf16.msra.mxu0 %v7793
    %7864 = vmatpush.bf16.msra.mxu0 %v7792
    %7865 = vmatpush.bf16.msra.mxu0 %v7791
    %7866 = vmatpush.bf16.msra.mxu0 %v7790
    %7867 = vmatmul.bf16.gmra.mxu0 %v7586
    %v7868 = vpop.f32.mrf.mxu0
    %v7869 = vadd.f32 %v7856, %v7868
    %v7870 = vpop.f32.mrf.mxu0
    %7871 = vdwg.mxu0
    %7872 = vmatpush.bf16.msra.mxu0 %v7805
    %7873 = vmatpush.bf16.msra.mxu0 %v7804
    %7874 = vmatpush.bf16.msra.mxu0 %v7803
    %7875 = vmatpush.bf16.msra.mxu0 %v7802
    %7876 = vmatpush.bf16.msra.mxu0 %v7801
    %7877 = vmatpush.bf16.msra.mxu0 %v7800
    %7878 = vmatpush.bf16.msra.mxu0 %v7799
    %7879 = vmatpush.bf16.msra.mxu0 %v7798
    %7880 = vmatmul.bf16.gmra.mxu0 %v7587
    %v7881 = vpop.f32.mrf.mxu0
    %v7882 = vadd.f32 %v7869, %v7881
    %v7883 = vpop.f32.mrf.mxu0
    %7884 = vdwg.mxu0
    %7885 = vmatpush.bf16.msra.mxu0 %v7813
    %7886 = vmatpush.bf16.msra.mxu0 %v7812
    %7887 = vmatpush.bf16.msra.mxu0 %v7811
    %7888 = vmatpush.bf16.msra.mxu0 %v7810
    %7889 = vmatpush.bf16.msra.mxu0 %v7809
    %7890 = vmatpush.bf16.msra.mxu0 %v7808
    %7891 = vmatpush.bf16.msra.mxu0 %v7807
    %7892 = vmatpush.bf16.msra.mxu0 %v7806
    %7893 = vmatmul.bf16.gmra.mxu0 %v7588
    %v7894 = vpop.f32.mrf.mxu0
    %v7895 = vadd.f32 %v7882, %v7894
    %v7896 = vpop.f32.mrf.mxu0
    %7897 = vdwg.mxu0
    %v7898 = vadd.f32 %v7584, %v7895
    %v7899 = vpack.c.bf16 %v2556, %v2556
    %v7900 = vpack.c.bf16 %v2557, %v2557
    %v7901 = vpack.c.bf16 %v2558, %v2558
    %v7902 = vpack.c.bf16 %v2559, %v2559
    %s7903 = scalar_lea.vmem [#allocation17], 4352
    %v7904 = vld [vmem:[%s7903] sm:$0xf]
    %v7905 = vld [vmem:[%s7903 + $0x4] sm:$0xf]
    %v7906 = vld [vmem:[%s7903 + $0x8] sm:$0xf]
    %v7907 = vld [vmem:[%s7903 + $0xc] sm:$0xf]
    %v7908 = vld [vmem:[%s7903 + $0x10] sm:$0xf]
    %v7909 = vld [vmem:[%s7903 + $0x14] sm:$0xf]
    %v7910 = vld [vmem:[%s7903 + $0x18] sm:$0xf]
    %v7911 = vld [vmem:[%s7903 + $0x1c] sm:$0xf]
    %v7912 = vld [vmem:[%s7903 + $0x20] sm:$0xf]
    %v7913 = vld [vmem:[%s7903 + $0x24] sm:$0xf]
    %v7914 = vld [vmem:[%s7903 + $0x28] sm:$0xf]
    %v7915 = vld [vmem:[%s7903 + $0x2c] sm:$0xf]
    %v7916 = vld [vmem:[%s7903 + $0x30] sm:$0xf]
    %v7917 = vld [vmem:[%s7903 + $0x34] sm:$0xf]
    %v7918 = vld [vmem:[%s7903 + $0x38] sm:$0xf]
    %v7919 = vld [vmem:[%s7903 + $0x3c] sm:$0xf]
    %v7920 = vld [vmem:[%s7903 + $0x40] sm:$0xf]
    %v7921 = vld [vmem:[%s7903 + $0x44] sm:$0xf]
    %v7922 = vld [vmem:[%s7903 + $0x48] sm:$0xf]
    %v7923 = vld [vmem:[%s7903 + $0x4c] sm:$0xf]
    %v7924 = vld [vmem:[%s7903 + $0x50] sm:$0xf]
    %v7925 = vld [vmem:[%s7903 + $0x54] sm:$0xf]
    %v7926 = vld [vmem:[%s7903 + $0x58] sm:$0xf]
    %v7927 = vld [vmem:[%s7903 + $0x5c] sm:$0xf]
    %v7928 = vld [vmem:[%s7903 + $0x60] sm:$0xf]
    %v7929 = vld [vmem:[%s7903 + $0x64] sm:$0xf]
    %v7930 = vld [vmem:[%s7903 + $0x68] sm:$0xf]
    %v7931 = vld [vmem:[%s7903 + $0x6c] sm:$0xf]
    %v7932 = vld [vmem:[%s7903 + $0x70] sm:$0xf]
    %v7933 = vld [vmem:[%s7903 + $0x74] sm:$0xf]
    %v7934 = vld [vmem:[%s7903 + $0x78] sm:$0xf]
    %v7935 = vld [vmem:[%s7903 + $0x7c] sm:$0xf]
    %v7936 = vld [vmem:[%s7903 + $0x80] sm:$0xf]
    %v7937 = vld [vmem:[%s7903 + $0x84] sm:$0xf]
    %v7938 = vld [vmem:[%s7903 + $0x88] sm:$0xf]
    %v7939 = vld [vmem:[%s7903 + $0x8c] sm:$0xf]
    %v7940 = vld [vmem:[%s7903 + $0x90] sm:$0xf]
    %v7941 = vld [vmem:[%s7903 + $0x94] sm:$0xf]
    %v7942 = vld [vmem:[%s7903 + $0x98] sm:$0xf]
    %v7943 = vld [vmem:[%s7903 + $0x9c] sm:$0xf]
    %v7944 = vld [vmem:[%s7903 + $0xa0] sm:$0xf]
    %v7945 = vld [vmem:[%s7903 + $0xa4] sm:$0xf]
    %v7946 = vld [vmem:[%s7903 + $0xa8] sm:$0xf]
    %v7947 = vld [vmem:[%s7903 + $0xac] sm:$0xf]
    %v7948 = vld [vmem:[%s7903 + $0xb0] sm:$0xf]
    %v7949 = vld [vmem:[%s7903 + $0xb4] sm:$0xf]
    %v7950 = vld [vmem:[%s7903 + $0xb8] sm:$0xf]
    %v7951 = vld [vmem:[%s7903 + $0xbc] sm:$0xf]
    %v7952 = vld [vmem:[%s7903 + $0xc0] sm:$0xf]
    %v7953 = vld [vmem:[%s7903 + $0xc4] sm:$0xf]
    %v7954 = vld [vmem:[%s7903 + $0xc8] sm:$0xf]
    %v7955 = vld [vmem:[%s7903 + $0xcc] sm:$0xf]
    %v7956 = vld [vmem:[%s7903 + $0xd0] sm:$0xf]
    %v7957 = vld [vmem:[%s7903 + $0xd4] sm:$0xf]
    %v7958 = vld [vmem:[%s7903 + $0xd8] sm:$0xf]
    %v7959 = vld [vmem:[%s7903 + $0xdc] sm:$0xf]
    %v7960 = vld [vmem:[%s7903 + $0xe0] sm:$0xf]
    %v7961 = vld [vmem:[%s7903 + $0xe4] sm:$0xf]
    %v7962 = vld [vmem:[%s7903 + $0xe8] sm:$0xf]
    %v7963 = vld [vmem:[%s7903 + $0xec] sm:$0xf]
    %v7964 = vld [vmem:[%s7903 + $0xf0] sm:$0xf]
    %v7965 = vld [vmem:[%s7903 + $0xf4] sm:$0xf]
    %v7966 = vld [vmem:[%s7903 + $0xf8] sm:$0xf]
    %v7967 = vld [vmem:[%s7903 + $0xfc] sm:$0xf]
    %v8032 = vunpack.c.l.b16 %v7904
    %v8033 = vunpack.c.l.b16 %v7905
    %v8034 = vunpack.c.l.b16 %v7906
    %v8035 = vunpack.c.l.b16 %v7907
    %v8036 = vunpack.c.l.b16 %v7908
    %v8037 = vunpack.c.l.b16 %v7909
    %v8038 = vunpack.c.l.b16 %v7910
    %v8039 = vunpack.c.l.b16 %v7911
    %v8040 = vunpack.c.l.b16 %v7912
    %v8041 = vunpack.c.l.b16 %v7913
    %v8042 = vunpack.c.l.b16 %v7914
    %v8043 = vunpack.c.l.b16 %v7915
    %v8044 = vunpack.c.l.b16 %v7916
    %v8045 = vunpack.c.l.b16 %v7917
    %v8046 = vunpack.c.l.b16 %v7918
    %v8047 = vunpack.c.l.b16 %v7919
    %v8048 = vunpack.c.l.b16 %v7920
    %v8049 = vunpack.c.l.b16 %v7921
    %v8050 = vunpack.c.l.b16 %v7922
    %v8051 = vunpack.c.l.b16 %v7923
    %v8052 = vunpack.c.l.b16 %v7924
    %v8053 = vunpack.c.l.b16 %v7925
    %v8054 = vunpack.c.l.b16 %v7926
    %v8055 = vunpack.c.l.b16 %v7927
    %v8056 = vunpack.c.l.b16 %v7928
    %v8057 = vunpack.c.l.b16 %v7929
    %v8058 = vunpack.c.l.b16 %v7930
    %v8059 = vunpack.c.l.b16 %v7931
    %v8060 = vunpack.c.l.b16 %v7932
    %v8061 = vunpack.c.l.b16 %v7933
    %v8062 = vunpack.c.l.b16 %v7934
    %v8063 = vunpack.c.l.b16 %v7935
    %v8064 = vunpack.c.l.b16 %v7936
    %v8065 = vunpack.c.l.b16 %v7937
    %v8066 = vunpack.c.l.b16 %v7938
    %v8067 = vunpack.c.l.b16 %v7939
    %v8068 = vunpack.c.l.b16 %v7940
    %v8069 = vunpack.c.l.b16 %v7941
    %v8070 = vunpack.c.l.b16 %v7942
    %v8071 = vunpack.c.l.b16 %v7943
    %v8072 = vunpack.c.l.b16 %v7944
    %v8073 = vunpack.c.l.b16 %v7945
    %v8074 = vunpack.c.l.b16 %v7946
    %v8075 = vunpack.c.l.b16 %v7947
    %v8076 = vunpack.c.l.b16 %v7948
    %v8077 = vunpack.c.l.b16 %v7949
    %v8078 = vunpack.c.l.b16 %v7950
    %v8079 = vunpack.c.l.b16 %v7951
    %v8080 = vunpack.c.l.b16 %v7952
    %v8081 = vunpack.c.l.b16 %v7953
    %v8082 = vunpack.c.l.b16 %v7954
    %v8083 = vunpack.c.l.b16 %v7955
    %v8084 = vunpack.c.l.b16 %v7956
    %v8085 = vunpack.c.l.b16 %v7957
    %v8086 = vunpack.c.l.b16 %v7958
    %v8087 = vunpack.c.l.b16 %v7959
    %v8088 = vunpack.c.l.b16 %v7960
    %v8089 = vunpack.c.l.b16 %v7961
    %v8090 = vunpack.c.l.b16 %v7962
    %v8091 = vunpack.c.l.b16 %v7963
    %v8092 = vunpack.c.l.b16 %v7964
    %v8093 = vunpack.c.l.b16 %v7965
    %v8094 = vunpack.c.l.b16 %v7966
    %v8095 = vunpack.c.l.b16 %v7967
    %v8096 = vpack.c.b16 %v8033, %v8032
    %v8097 = vpack.c.b16 %v8035, %v8034
    %v8098 = vpack.c.b16 %v8037, %v8036
    %v8099 = vpack.c.b16 %v8039, %v8038
    %v8100 = vpack.c.b16 %v8041, %v8040
    %v8101 = vpack.c.b16 %v8043, %v8042
    %v8102 = vpack.c.b16 %v8045, %v8044
    %v8103 = vpack.c.b16 %v8047, %v8046
    %v8104 = vpack.c.b16 %v8049, %v8048
    %v8105 = vpack.c.b16 %v8051, %v8050
    %v8106 = vpack.c.b16 %v8053, %v8052
    %v8107 = vpack.c.b16 %v8055, %v8054
    %v8108 = vpack.c.b16 %v8057, %v8056
    %v8109 = vpack.c.b16 %v8059, %v8058
    %v8110 = vpack.c.b16 %v8061, %v8060
    %v8111 = vpack.c.b16 %v8063, %v8062
    %v8112 = vpack.c.b16 %v8065, %v8064
    %v8113 = vpack.c.b16 %v8067, %v8066
    %v8114 = vpack.c.b16 %v8069, %v8068
    %v8115 = vpack.c.b16 %v8071, %v8070
    %v8116 = vpack.c.b16 %v8073, %v8072
    %v8117 = vpack.c.b16 %v8075, %v8074
    %v8118 = vpack.c.b16 %v8077, %v8076
    %v8119 = vpack.c.b16 %v8079, %v8078
    %v8120 = vpack.c.b16 %v8081, %v8080
    %v8121 = vpack.c.b16 %v8083, %v8082
    %v8122 = vpack.c.b16 %v8085, %v8084
    %v8123 = vpack.c.b16 %v8087, %v8086
    %v8124 = vpack.c.b16 %v8089, %v8088
    %v8125 = vpack.c.b16 %v8091, %v8090
    %v8126 = vpack.c.b16 %v8093, %v8092
    %v8127 = vpack.c.b16 %v8095, %v8094
    %8160 = vmatpush.bf16.msra.mxu0 %v8103
    %8161 = vmatpush.bf16.msra.mxu0 %v8102
    %8162 = vmatpush.bf16.msra.mxu0 %v8101
    %8163 = vmatpush.bf16.msra.mxu0 %v8100
    %8164 = vmatpush.bf16.msra.mxu0 %v8099
    %8165 = vmatpush.bf16.msra.mxu0 %v8098
    %8166 = vmatpush.bf16.msra.mxu0 %v8097
    %8167 = vmatpush.bf16.msra.mxu0 %v8096
    %8168 = vmatmul.bf16.gmra.mxu0 %v7899
    %v8169 = vpop.f32.mrf.mxu0
    %v8170 = vadd.f32 0.0, %v8169
    %v8171 = vpop.f32.mrf.mxu0
    %8172 = vdwg.mxu0
    %8173 = vmatpush.bf16.msra.mxu0 %v8111
    %8174 = vmatpush.bf16.msra.mxu0 %v8110
    %8175 = vmatpush.bf16.msra.mxu0 %v8109
    %8176 = vmatpush.bf16.msra.mxu0 %v8108
    %8177 = vmatpush.bf16.msra.mxu0 %v8107
    %8178 = vmatpush.bf16.msra.mxu0 %v8106
    %8179 = vmatpush.bf16.msra.mxu0 %v8105
    %8180 = vmatpush.bf16.msra.mxu0 %v8104
    %8181 = vmatmul.bf16.gmra.mxu0 %v7900
    %v8182 = vpop.f32.mrf.mxu0
    %v8183 = vadd.f32 %v8170, %v8182
    %v8184 = vpop.f32.mrf.mxu0
    %8185 = vdwg.mxu0
    %8186 = vmatpush.bf16.msra.mxu0 %v8119
    %8187 = vmatpush.bf16.msra.mxu0 %v8118
    %8188 = vmatpush.bf16.msra.mxu0 %v8117
    %8189 = vmatpush.bf16.msra.mxu0 %v8116
    %8190 = vmatpush.bf16.msra.mxu0 %v8115
    %8191 = vmatpush.bf16.msra.mxu0 %v8114
    %8192 = vmatpush.bf16.msra.mxu0 %v8113
    %8193 = vmatpush.bf16.msra.mxu0 %v8112
    %8194 = vmatmul.bf16.gmra.mxu0 %v7901
    %v8195 = vpop.f32.mrf.mxu0
    %v8196 = vadd.f32 %v8183, %v8195
    %v8197 = vpop.f32.mrf.mxu0
    %8198 = vdwg.mxu0
    %8199 = vmatpush.bf16.msra.mxu0 %v8127
    %8200 = vmatpush.bf16.msra.mxu0 %v8126
    %8201 = vmatpush.bf16.msra.mxu0 %v8125
    %8202 = vmatpush.bf16.msra.mxu0 %v8124
    %8203 = vmatpush.bf16.msra.mxu0 %v8123
    %8204 = vmatpush.bf16.msra.mxu0 %v8122
    %8205 = vmatpush.bf16.msra.mxu0 %v8121
    %8206 = vmatpush.bf16.msra.mxu0 %v8120
    %8207 = vmatmul.bf16.gmra.mxu0 %v7902
    %v8208 = vpop.f32.mrf.mxu0
    %v8209 = vadd.f32 %v8196, %v8208
    %v8210 = vpop.f32.mrf.mxu0
    %8211 = vdwg.mxu0
    %v8212 = vadd.f32 %v7898, %v8209
    %v8213 = vpack.c.bf16 %v2560, %v2560
    %v8214 = vpack.c.bf16 %v2561, %v2561
    %v8215 = vpack.c.bf16 %v2562, %v2562
    %v8216 = vpack.c.bf16 %v2563, %v2563
    %s8217 = scalar_lea.vmem [#allocation17], 4608
    %v8218 = vld [vmem:[%s8217] sm:$0xf]
    %v8219 = vld [vmem:[%s8217 + $0x4] sm:$0xf]
    %v8220 = vld [vmem:[%s8217 + $0x8] sm:$0xf]
    %v8221 = vld [vmem:[%s8217 + $0xc] sm:$0xf]
    %v8222 = vld [vmem:[%s8217 + $0x10] sm:$0xf]
    %v8223 = vld [vmem:[%s8217 + $0x14] sm:$0xf]
    %v8224 = vld [vmem:[%s8217 + $0x18] sm:$0xf]
    %v8225 = vld [vmem:[%s8217 + $0x1c] sm:$0xf]
    %v8226 = vld [vmem:[%s8217 + $0x20] sm:$0xf]
    %v8227 = vld [vmem:[%s8217 + $0x24] sm:$0xf]
    %v8228 = vld [vmem:[%s8217 + $0x28] sm:$0xf]
    %v8229 = vld [vmem:[%s8217 + $0x2c] sm:$0xf]
    %v8230 = vld [vmem:[%s8217 + $0x30] sm:$0xf]
    %v8231 = vld [vmem:[%s8217 + $0x34] sm:$0xf]
    %v8232 = vld [vmem:[%s8217 + $0x38] sm:$0xf]
    %v8233 = vld [vmem:[%s8217 + $0x3c] sm:$0xf]
    %v8234 = vld [vmem:[%s8217 + $0x40] sm:$0xf]
    %v8235 = vld [vmem:[%s8217 + $0x44] sm:$0xf]
    %v8236 = vld [vmem:[%s8217 + $0x48] sm:$0xf]
    %v8237 = vld [vmem:[%s8217 + $0x4c] sm:$0xf]
    %v8238 = vld [vmem:[%s8217 + $0x50] sm:$0xf]
    %v8239 = vld [vmem:[%s8217 + $0x54] sm:$0xf]
    %v8240 = vld [vmem:[%s8217 + $0x58] sm:$0xf]
    %v8241 = vld [vmem:[%s8217 + $0x5c] sm:$0xf]
    %v8242 = vld [vmem:[%s8217 + $0x60] sm:$0xf]
    %v8243 = vld [vmem:[%s8217 + $0x64] sm:$0xf]
    %v8244 = vld [vmem:[%s8217 + $0x68] sm:$0xf]
    %v8245 = vld [vmem:[%s8217 + $0x6c] sm:$0xf]
    %v8246 = vld [vmem:[%s8217 + $0x70] sm:$0xf]
    %v8247 = vld [vmem:[%s8217 + $0x74] sm:$0xf]
    %v8248 = vld [vmem:[%s8217 + $0x78] sm:$0xf]
    %v8249 = vld [vmem:[%s8217 + $0x7c] sm:$0xf]
    %v8250 = vld [vmem:[%s8217 + $0x80] sm:$0xf]
    %v8251 = vld [vmem:[%s8217 + $0x84] sm:$0xf]
    %v8252 = vld [vmem:[%s8217 + $0x88] sm:$0xf]
    %v8253 = vld [vmem:[%s8217 + $0x8c] sm:$0xf]
    %v8254 = vld [vmem:[%s8217 + $0x90] sm:$0xf]
    %v8255 = vld [vmem:[%s8217 + $0x94] sm:$0xf]
    %v8256 = vld [vmem:[%s8217 + $0x98] sm:$0xf]
    %v8257 = vld [vmem:[%s8217 + $0x9c] sm:$0xf]
    %v8258 = vld [vmem:[%s8217 + $0xa0] sm:$0xf]
    %v8259 = vld [vmem:[%s8217 + $0xa4] sm:$0xf]
    %v8260 = vld [vmem:[%s8217 + $0xa8] sm:$0xf]
    %v8261 = vld [vmem:[%s8217 + $0xac] sm:$0xf]
    %v8262 = vld [vmem:[%s8217 + $0xb0] sm:$0xf]
    %v8263 = vld [vmem:[%s8217 + $0xb4] sm:$0xf]
    %v8264 = vld [vmem:[%s8217 + $0xb8] sm:$0xf]
    %v8265 = vld [vmem:[%s8217 + $0xbc] sm:$0xf]
    %v8266 = vld [vmem:[%s8217 + $0xc0] sm:$0xf]
    %v8267 = vld [vmem:[%s8217 + $0xc4] sm:$0xf]
    %v8268 = vld [vmem:[%s8217 + $0xc8] sm:$0xf]
    %v8269 = vld [vmem:[%s8217 + $0xcc] sm:$0xf]
    %v8270 = vld [vmem:[%s8217 + $0xd0] sm:$0xf]
    %v8271 = vld [vmem:[%s8217 + $0xd4] sm:$0xf]
    %v8272 = vld [vmem:[%s8217 + $0xd8] sm:$0xf]
    %v8273 = vld [vmem:[%s8217 + $0xdc] sm:$0xf]
    %v8274 = vld [vmem:[%s8217 + $0xe0] sm:$0xf]
    %v8275 = vld [vmem:[%s8217 + $0xe4] sm:$0xf]
    %v8276 = vld [vmem:[%s8217 + $0xe8] sm:$0xf]
    %v8277 = vld [vmem:[%s8217 + $0xec] sm:$0xf]
    %v8278 = vld [vmem:[%s8217 + $0xf0] sm:$0xf]
    %v8279 = vld [vmem:[%s8217 + $0xf4] sm:$0xf]
    %v8280 = vld [vmem:[%s8217 + $0xf8] sm:$0xf]
    %v8281 = vld [vmem:[%s8217 + $0xfc] sm:$0xf]
    %v8346 = vunpack.c.l.b16 %v8218
    %v8347 = vunpack.c.l.b16 %v8219
    %v8348 = vunpack.c.l.b16 %v8220
    %v8349 = vunpack.c.l.b16 %v8221
    %v8350 = vunpack.c.l.b16 %v8222
    %v8351 = vunpack.c.l.b16 %v8223
    %v8352 = vunpack.c.l.b16 %v8224
    %v8353 = vunpack.c.l.b16 %v8225
    %v8354 = vunpack.c.l.b16 %v8226
    %v8355 = vunpack.c.l.b16 %v8227
    %v8356 = vunpack.c.l.b16 %v8228
    %v8357 = vunpack.c.l.b16 %v8229
    %v8358 = vunpack.c.l.b16 %v8230
    %v8359 = vunpack.c.l.b16 %v8231
    %v8360 = vunpack.c.l.b16 %v8232
    %v8361 = vunpack.c.l.b16 %v8233
    %v8362 = vunpack.c.l.b16 %v8234
    %v8363 = vunpack.c.l.b16 %v8235
    %v8364 = vunpack.c.l.b16 %v8236
    %v8365 = vunpack.c.l.b16 %v8237
    %v8366 = vunpack.c.l.b16 %v8238
    %v8367 = vunpack.c.l.b16 %v8239
    %v8368 = vunpack.c.l.b16 %v8240
    %v8369 = vunpack.c.l.b16 %v8241
    %v8370 = vunpack.c.l.b16 %v8242
    %v8371 = vunpack.c.l.b16 %v8243
    %v8372 = vunpack.c.l.b16 %v8244
    %v8373 = vunpack.c.l.b16 %v8245
    %v8374 = vunpack.c.l.b16 %v8246
    %v8375 = vunpack.c.l.b16 %v8247
    %v8376 = vunpack.c.l.b16 %v8248
    %v8377 = vunpack.c.l.b16 %v8249
    %v8378 = vunpack.c.l.b16 %v8250
    %v8379 = vunpack.c.l.b16 %v8251
    %v8380 = vunpack.c.l.b16 %v8252
    %v8381 = vunpack.c.l.b16 %v8253
    %v8382 = vunpack.c.l.b16 %v8254
    %v8383 = vunpack.c.l.b16 %v8255
    %v8384 = vunpack.c.l.b16 %v8256
    %v8385 = vunpack.c.l.b16 %v8257
    %v8386 = vunpack.c.l.b16 %v8258
    %v8387 = vunpack.c.l.b16 %v8259
    %v8388 = vunpack.c.l.b16 %v8260
    %v8389 = vunpack.c.l.b16 %v8261
    %v8390 = vunpack.c.l.b16 %v8262
    %v8391 = vunpack.c.l.b16 %v8263
    %v8392 = vunpack.c.l.b16 %v8264
    %v8393 = vunpack.c.l.b16 %v8265
    %v8394 = vunpack.c.l.b16 %v8266
    %v8395 = vunpack.c.l.b16 %v8267
    %v8396 = vunpack.c.l.b16 %v8268
    %v8397 = vunpack.c.l.b16 %v8269
    %v8398 = vunpack.c.l.b16 %v8270
    %v8399 = vunpack.c.l.b16 %v8271
    %v8400 = vunpack.c.l.b16 %v8272
    %v8401 = vunpack.c.l.b16 %v8273
    %v8402 = vunpack.c.l.b16 %v8274
    %v8403 = vunpack.c.l.b16 %v8275
    %v8404 = vunpack.c.l.b16 %v8276
    %v8405 = vunpack.c.l.b16 %v8277
    %v8406 = vunpack.c.l.b16 %v8278
    %v8407 = vunpack.c.l.b16 %v8279
    %v8408 = vunpack.c.l.b16 %v8280
    %v8409 = vunpack.c.l.b16 %v8281
    %v8410 = vpack.c.b16 %v8347, %v8346
    %v8411 = vpack.c.b16 %v8349, %v8348
    %v8412 = vpack.c.b16 %v8351, %v8350
    %v8413 = vpack.c.b16 %v8353, %v8352
    %v8414 = vpack.c.b16 %v8355, %v8354
    %v8415 = vpack.c.b16 %v8357, %v8356
    %v8416 = vpack.c.b16 %v8359, %v8358
    %v8417 = vpack.c.b16 %v8361, %v8360
    %v8418 = vpack.c.b16 %v8363, %v8362
    %v8419 = vpack.c.b16 %v8365, %v8364
    %v8420 = vpack.c.b16 %v8367, %v8366
    %v8421 = vpack.c.b16 %v8369, %v8368
    %v8422 = vpack.c.b16 %v8371, %v8370
    %v8423 = vpack.c.b16 %v8373, %v8372
    %v8424 = vpack.c.b16 %v8375, %v8374
    %v8425 = vpack.c.b16 %v8377, %v8376
    %v8426 = vpack.c.b16 %v8379, %v8378
    %v8427 = vpack.c.b16 %v8381, %v8380
    %v8428 = vpack.c.b16 %v8383, %v8382
    %v8429 = vpack.c.b16 %v8385, %v8384
    %v8430 = vpack.c.b16 %v8387, %v8386
    %v8431 = vpack.c.b16 %v8389, %v8388
    %v8432 = vpack.c.b16 %v8391, %v8390
    %v8433 = vpack.c.b16 %v8393, %v8392
    %v8434 = vpack.c.b16 %v8395, %v8394
    %v8435 = vpack.c.b16 %v8397, %v8396
    %v8436 = vpack.c.b16 %v8399, %v8398
    %v8437 = vpack.c.b16 %v8401, %v8400
    %v8438 = vpack.c.b16 %v8403, %v8402
    %v8439 = vpack.c.b16 %v8405, %v8404
    %v8440 = vpack.c.b16 %v8407, %v8406
    %v8441 = vpack.c.b16 %v8409, %v8408
    %8474 = vmatpush.bf16.msra.mxu0 %v8417
    %8475 = vmatpush.bf16.msra.mxu0 %v8416
    %8476 = vmatpush.bf16.msra.mxu0 %v8415
    %8477 = vmatpush.bf16.msra.mxu0 %v8414
    %8478 = vmatpush.bf16.msra.mxu0 %v8413
    %8479 = vmatpush.bf16.msra.mxu0 %v8412
    %8480 = vmatpush.bf16.msra.mxu0 %v8411
    %8481 = vmatpush.bf16.msra.mxu0 %v8410
    %8482 = vmatmul.bf16.gmra.mxu0 %v8213
    %v8483 = vpop.f32.mrf.mxu0
    %v8484 = vadd.f32 0.0, %v8483
    %v8485 = vpop.f32.mrf.mxu0
    %8486 = vdwg.mxu0
    %8487 = vmatpush.bf16.msra.mxu0 %v8425
    %8488 = vmatpush.bf16.msra.mxu0 %v8424
    %8489 = vmatpush.bf16.msra.mxu0 %v8423
    %8490 = vmatpush.bf16.msra.mxu0 %v8422
    %8491 = vmatpush.bf16.msra.mxu0 %v8421
    %8492 = vmatpush.bf16.msra.mxu0 %v8420
    %8493 = vmatpush.bf16.msra.mxu0 %v8419
    %8494 = vmatpush.bf16.msra.mxu0 %v8418
    %8495 = vmatmul.bf16.gmra.mxu0 %v8214
    %v8496 = vpop.f32.mrf.mxu0
    %v8497 = vadd.f32 %v8484, %v8496
    %v8498 = vpop.f32.mrf.mxu0
    %8499 = vdwg.mxu0
    %8500 = vmatpush.bf16.msra.mxu0 %v8433
    %8501 = vmatpush.bf16.msra.mxu0 %v8432
    %8502 = vmatpush.bf16.msra.mxu0 %v8431
    %8503 = vmatpush.bf16.msra.mxu0 %v8430
    %8504 = vmatpush.bf16.msra.mxu0 %v8429
    %8505 = vmatpush.bf16.msra.mxu0 %v8428
    %8506 = vmatpush.bf16.msra.mxu0 %v8427
    %8507 = vmatpush.bf16.msra.mxu0 %v8426
    %8508 = vmatmul.bf16.gmra.mxu0 %v8215
    %v8509 = vpop.f32.mrf.mxu0
    %v8510 = vadd.f32 %v8497, %v8509
    %v8511 = vpop.f32.mrf.mxu0
    %8512 = vdwg.mxu0
    %8513 = vmatpush.bf16.msra.mxu0 %v8441
    %8514 = vmatpush.bf16.msra.mxu0 %v8440
    %8515 = vmatpush.bf16.msra.mxu0 %v8439
    %8516 = vmatpush.bf16.msra.mxu0 %v8438
    %8517 = vmatpush.bf16.msra.mxu0 %v8437
    %8518 = vmatpush.bf16.msra.mxu0 %v8436
    %8519 = vmatpush.bf16.msra.mxu0 %v8435
    %8520 = vmatpush.bf16.msra.mxu0 %v8434
    %8521 = vmatmul.bf16.gmra.mxu0 %v8216
    %v8522 = vpop.f32.mrf.mxu0
    %v8523 = vadd.f32 %v8510, %v8522
    %v8524 = vpop.f32.mrf.mxu0
    %8525 = vdwg.mxu0
    %v8526 = vadd.f32 %v8212, %v8523
    %v8527 = vld [vmem:[#allocation18] sm:$0x1]
    %v8529 = vperm.slane %v8527, 0
    %v8531 = vadd.f32 %v8526, %v8529
    %v8532 = vmax.f32 %v8531, 0.0
    %v8533 = vld [vmem:[#allocation20] sm:$0xff]
    %v8534 = vld [vmem:[#allocation20 + $0x8] sm:$0xff]
    %v8535 = vld [vmem:[#allocation20 + $0x10] sm:$0xff]
    %v8536 = vld [vmem:[#allocation20 + $0x18] sm:$0xff]
    %v8537 = vld [vmem:[#allocation20 + $0x20] sm:$0xff]
    %v8538 = vld [vmem:[#allocation20 + $0x28] sm:$0xff]
    %v8539 = vld [vmem:[#allocation20 + $0x30] sm:$0xff]
    %v8540 = vld [vmem:[#allocation20 + $0x38] sm:$0xff]
    %v8541 = vld [vmem:[#allocation20 + $0x40] sm:$0xff]
    %v8542 = vld [vmem:[#allocation20 + $0x48] sm:$0xff]
    %v8543 = vld [vmem:[#allocation20 + $0x50] sm:$0xff]
    %v8544 = vld [vmem:[#allocation20 + $0x58] sm:$0xff]
    %v8545 = vld [vmem:[#allocation20 + $0x60] sm:$0xff]
    %v8546 = vld [vmem:[#allocation20 + $0x68] sm:$0xff]
    %v8547 = vld [vmem:[#allocation20 + $0x70] sm:$0xff]
    %v8548 = vld [vmem:[#allocation20 + $0x78] sm:$0xff]
    %v8549 = vld [vmem:[#allocation21] sm:$0x1]
    %v8551 = vperm.slane %v8549, 0
    %8553 = vmatpush.msra.mxu0 %v8548
    %8554 = vmatpush.msra.mxu0 %v8547
    %8555 = vmatpush.msra.mxu0 %v8546
    %8556 = vmatpush.msra.mxu0 %v8545
    %8557 = vmatpush.msra.mxu0 %v8544
    %8558 = vmatpush.msra.mxu0 %v8543
    %8559 = vmatpush.msra.mxu0 %v8542
    %8560 = vmatpush.msra.mxu0 %v8541
    %8561 = vmatpush.msra.mxu0 %v8540
    %8562 = vmatpush.msra.mxu0 %v8539
    %8563 = vmatpush.msra.mxu0 %v8538
    %8564 = vmatpush.msra.mxu0 %v8537
    %8565 = vmatpush.msra.mxu0 %v8536
    %8566 = vmatpush.msra.mxu0 %v8535
    %8567 = vmatpush.msra.mxu0 %v8534
    %8568 = vmatpush.msra.mxu0 %v8533
    %8569 = vmatmul.f32.gmra.mxu0 %v8532
    %v8570 = vpop.f32.mrf.mxu0
    %v8571 = vadd.f32 %v8551, %v8570
    %8572 = vdwg.mxu0
    %8573 = vst [vmem:[#allocation23] sm:$0xff] %v8571
    // Predicated region
    $region102: #{tpu_custom_call.1} parent=1 // pred_check
      _
    $region103: #{tpu_custom_call.1} parent=1 // pred_check_branch
      %8575 = sbr.rel (0) target = $region105
    $region104: #{tpu_custom_call.1} parent=1 // pred_region
      %8577 = vsyncadd [#allocation4], 0
      %s8579 = sshll.u32 [#allocation23], 4
      %s8580 = int_to_ptr.vmem [resolvable:$true] %s8579
      %s8581 = sshll.u32 %s13, 4
      %s8582 = int_to_ptr.hbm [resolvable:$true] %s8581
      %8584 = dma.vmem_to_hbm [thread:$0]  %s8580, 128, %s8582, [#allocation4]
    $region105: #{tpu_custom_call.1} parent=1 // pred_fallthru
      _
    // Predicated region
    $region106: #{tpu_custom_call.1} parent=1 // pred_check
      _
    $region107: #{tpu_custom_call.1} parent=1 // pred_check_branch
      %8586 = sbr.rel (0) target = $region109
    $region108: #{tpu_custom_call.1} parent=1 // pred_region
      %8588 = dma.done [#allocation4], 128
    $region109: #{tpu_custom_call.1} parent=1 // pred_fallthru
      _
    %8589 = vsyncpa [#allocation3], 1
    %8590 = vsyncpa [#allocation10], 1
    %8591 = vsyncpa [#allocation13], 1
    %8592 = vsyncpa [#allocation16], 1
    %8593 = vsyncpa [#allocation19], 1
    %8594 = vsyncpa [#allocation22], 1
    %8595 = vsyncpa [#allocation4], 1
    %8596 = vsyncpa [#allocation5], 1
    %8597 = vsyncpa [#allocation6], 1

</llo_original>
